<compile_context>
chip_gen: v7x
topology: tpu7x:2x2x1
jax: 0.10.0
libtpu: 0.0.40
codegen_flags: <defaults>
</compile_context>

<pallas_src>
import numpy as np

import jax
import jax.numpy as jnp
from jax.experimental import pallas as pl
from jax.experimental.pallas import tpu as pltpu


# --------------------------------------------------------------------------
# Fused kernel: conv1 -> pool -> conv2 -> pool -> conv3 -> pool+flatten -> fc -> softmax
# --------------------------------------------------------------------------
def _cnn3_fused_kernel(xcol_ref, w1_ref, sh1_ref, sel1_ref,
                       w2_ref, sh2_ref, sel2_ref,
                       w3_ref, sh3_ref, sel3f_ref, bmask_ref,
                       wfc_ref, bfc_ref, o_ref):
    f32 = jnp.float32

    def conv_taps(x, w_ref, shift):
        # x: (C_in, L); w_ref: (K, C_out, C_in)  ->  relu(conv + shift): (C_out, L-K+1)
        k_taps = w_ref.shape[0]
        l_out = x.shape[1] - k_taps + 1
        acc = jnp.dot(w_ref[0], x[:, 0:l_out], preferred_element_type=f32)
        for k in range(1, k_taps):                      # static, unrolled
            acc = acc + jnp.dot(w_ref[k], x[:, k:k + l_out],
                                preferred_element_type=f32)
        return jnp.maximum(acc + shift, 0.0)

    def max3(y):
        # z[c, t] = max(y[c, t], y[c, t+1], y[c, t+2]) for t < L-2
        l = y.shape[1]
        return jnp.maximum(jnp.maximum(y[:, 0:l - 2], y[:, 1:l - 1]), y[:, 2:l])

    # ---- block 1 (C_in = 1): one MXU matmul on the pre-built im2col input ----
    y1 = jnp.dot(w1_ref[...], xcol_ref[0], preferred_element_type=f32)   # (64, 380)
    y1 = jnp.maximum(y1 + sh1_ref[...], 0.0)
    p1 = jnp.dot(max3(y1), sel1_ref[...], preferred_element_type=f32)    # (64, 126)

    # ---- block 2 ----
    y2 = conv_taps(p1, w2_ref, sh2_ref[...])                             # (64, 108)
    p2 = jnp.dot(max3(y2), sel2_ref[...], preferred_element_type=f32)    # (64, 36)

    # ---- block 3: pool fused with the row-major (C, L) -> (1, C*L) flatten ----
    y3 = conv_taps(p2, w3_ref, sh3_ref[...])                             # (64, 20)
    e3 = jnp.dot(max3(y3), sel3f_ref[...], preferred_element_type=f32)   # (64, 384)
    flat = jnp.sum(e3 * bmask_ref[...], axis=0, keepdims=True)           # (1, 384)

    # ---- Linear + softmax (per batch element) ----
    logits = jnp.dot(flat, wfc_ref[...], preferred_element_type=f32) + bfc_ref[...]
    mx = jnp.max(logits, axis=1, keepdims=True)
    ex = jnp.exp(logits - mx)
    o_ref[0] = (ex / jnp.sum(ex, axis=1, keepdims=True)).astype(o_ref.dtype)


def _const_spec(a):
    nd = a.ndim
    if nd == 2:
        return pl.BlockSpec(a.shape, lambda n: (0, 0))
    return pl.BlockSpec(a.shape, lambda n: (0, 0, 0))


@jax.jit
def cnn3layers_forward(x, prep):
    (w1c, shift1, sel1, w2t, shift2, sel2, w3t, shift3, sel3f, bmask,
     wfc_t, bfc_r) = prep
    n, _, l_in = x.shape
    k1 = w1c.shape[1]
    l1_out = l_in - k1 + 1
    nls = wfc_t.shape[1]

    # Wrapper-side im2col for the single-input-channel first conv (layout plumbing only).
    xcol = jnp.stack([x[:, 0, k:k + l1_out] for k in range(k1)], axis=1)  # (N, K1, L1_out)

    consts = (w1c, shift1, sel1, w2t, shift2, sel2, w3t, shift3, sel3f, bmask,
              wfc_t, bfc_r)

    out = pl.pallas_call(
        _cnn3_fused_kernel,
        out_shape=jax.ShapeDtypeStruct((n, 1, nls), x.dtype),
        grid=(n,),
        in_specs=[pl.BlockSpec((1, k1, l1_out), lambda i: (i, 0, 0))]
                 + [_const_spec(a) for a in consts],
        out_specs=pl.BlockSpec((1, 1, nls), lambda i: (i, 0, 0)),
        compiler_params=pltpu.CompilerParams(
            dimension_semantics=("parallel",)),
    )(xcol, *consts)
    return out.reshape(n, nls)


# --------------------------------------------------------------------------
# Parameter construction (deterministic, synthetic) and wrapper-side folding
# --------------------------------------------------------------------------
def make_params(key, nls):
    keys = jax.random.split(key, 4)

    def conv_bn(k, c_out, c_in, ksize):
        kw, kb, kg, kbt, km, kv = jax.random.split(k, 6)
        fan = float(c_in * ksize)
        w = jax.random.uniform(kw, (c_out, c_in, ksize), jnp.float32, -1, 1) / jnp.sqrt(fan)
        b = jax.random.uniform(kb, (c_out,), jnp.float32, -1, 1) / jnp.sqrt(fan)
        gamma = 1.0 + 0.1 * jax.random.normal(kg, (c_out,))
        beta = 0.1 * jax.random.normal(kbt, (c_out,))
        rmean = 0.1 * jax.random.normal(km, (c_out,))
        rvar = jax.random.uniform(kv, (c_out,), jnp.float32, 0.5, 1.5)
        eps = 1e-5
        scale = gamma / jnp.sqrt(rvar + eps)   # BatchNorm eval-mode folded
        shift = beta - rmean * scale
        return w, b, scale.astype(jnp.float32), shift.astype(jnp.float32)

    p1 = conv_bn(keys[0], 64, 1, 21)
    p2 = conv_bn(keys[1], 64, 64, 19)
    p3 = conv_bn(keys[2], 64, 64, 17)

    kw, kb = jax.random.split(keys[3])
    w_fc = jax.random.uniform(kw, (nls, 384), jnp.float32, -1, 1) / jnp.sqrt(384.0)
    b_fc = jax.random.uniform(kb, (nls,), jnp.float32, -1, 1) / jnp.sqrt(384.0)
    return p1, p2, p3, (w_fc, b_fc)


def prepare_params(params, l_in):
    """One-time folding / layout prep of the raw (PyTorch-style) parameters."""
    (w1, b1, sc1, bs1), (w2, b2, sc2, bs2), (w3, b3, sc3, bs3), (wfc, bfc) = params

    def fold(w, b, scale, shift):
        # BN(eval)(conv(x) + b) == (scale*w) (*) x + (scale*b + shift)
        wf = (w * scale[:, None, None]).astype(jnp.float32)
        sf = ((b * scale + shift)[:, None]).astype(jnp.float32)   # (C_out, 1)
        return wf, sf

    w1f, shift1 = fold(w1, b1, sc1, bs1)
    w2f, shift2 = fold(w2, b2, sc2, bs2)
    w3f, shift3 = fold(w3, b3, sc3, bs3)

    w1c = w1f[:, 0, :]                          # (C_out, K1)  -- C_in == 1
    w2t = jnp.transpose(w2f, (2, 0, 1))         # (K2, C_out, C_in)
    w3t = jnp.transpose(w3f, (2, 0, 1))         # (K3, C_out, C_in)

    c_out, _, k1 = w1.shape
    k2, k3 = w2.shape[2], w3.shape[2]
    l1_out = l_in - k1 + 1
    l1_pool = l1_out // 3
    l2_out = l1_pool - k2 + 1
    l2_pool = l2_out // 3
    l3_out = l2_pool - k3 + 1
    l3_pool = l3_out // 3
    assert c_out * l3_pool == wfc.shape[1], "input length inconsistent with Linear(384, nls)"

    def pool_sel(l_shifted, l_pool):
        u = np.arange(l_shifted)[:, None]
        i = np.arange(l_pool)[None, :]
        return jnp.asarray((u == 3 * i).astype(np.float32))

    sel1 = pool_sel(l1_out - 2, l1_pool)        # (378, 126)
    sel2 = pool_sel(l2_out - 2, l2_pool)        # (106, 36)

    # Block-3 pool fused with the row-major flatten:
    #   flat[c*l3_pool + t] = max(y3[c, 3t], y3[c, 3t+1], y3[c, 3t+2])
    m = np.arange(c_out * l3_pool)
    sel3f = jnp.asarray(
        (np.arange(l3_out - 2)[:, None] == 3 * (m[None, :] % l3_pool)).astype(np.float32))
    bmask = jnp.asarray(
        ((m[None, :] // l3_pool) == np.arange(c_out)[:, None]).astype(np.float32))

    wfc_t = jnp.asarray(wfc).T.astype(jnp.float32)        # (384, nls)
    bfc_r = jnp.asarray(bfc).reshape(1, -1).astype(jnp.float32)

    return (w1c, shift1, sel1, w2t, shift2, sel2, w3t, shift3, sel3f, bmask,
            wfc_t, bfc_r)


# --------------------------------------------------------------------------
# Pure-JAX reference (for numerical verification)
# --------------------------------------------------------------------------
def _reference_forward(x, params):
    (w1, b1, sc1, bs1), (w2, b2, sc2, bs2), (w3, b3, sc3, bs3), (wfc, bfc) = params

    def block(h, w, b, scale, shift):
        y = jax.lax.conv_general_dilated(
            h, w, window_strides=(1,), padding="VALID",
            dimension_numbers=("NCH", "OIH", "NCH"),
            precision=jax.lax.Precision.HIGHEST)
        y = (y + b[None, :, None]) * scale[None, :, None] + shift[None, :, None]
        y = jnp.maximum(y, 0.0)
        lp = y.shape[2] // 3
        return y[:, :, :lp * 3].reshape(y.shape[0], y.shape[1], lp, 3).max(axis=3)

    h = block(x, w1, b1, sc1, bs1)
    h = block(h, w2, b2, sc2, bs2)
    h = block(h, w3, b3, sc3, bs3)
    flat = h.reshape(h.shape[0], -1)
    logits = jnp.dot(flat, wfc.T, precision=jax.lax.Precision.HIGHEST) + bfc[None, :]
    return jax.nn.softmax(logits, axis=1)


if __name__ == "__main__":
    key = jax.random.PRNGKey(0)
    kx, kp = jax.random.split(key)

    nls = 8
    # Input length 400: 400 -conv21-> 380 -pool-> 126 -conv19-> 108 -pool-> 36
    #                   -conv17-> 20 -pool-> 6  =>  64 * 6 = 384 (matches Linear(384, nls))
    x = jax.random.normal(kx, (2, 1, 400), jnp.float32)
    params = make_params(kp, nls)
    prep = prepare_params(params, l_in=x.shape[2])

    out = jax.block_until_ready(cnn3layers_forward(x, prep))
    ref = jax.block_until_ready(_reference_forward(x, params))

    assert out.shape == (2, nls)
    assert bool(jnp.all(jnp.isfinite(out)))
    assert bool(jnp.allclose(jnp.sum(out, axis=1), 1.0, atol=1e-5))
    assert bool(jnp.allclose(out, ref, atol=1e-4, rtol=1e-3))
    print("KERNEL_OK")
</pallas_src>

<mosaic_0001>
module attributes {stable_mosaic.version = 11 : i64} {
  func.func @_cnn3_fused_kernel(%arg0: i32, %arg1: memref<1x21x380xf32, #tpu.memory_space<vmem>>, %arg2: memref<64x21xf32, #tpu.memory_space<vmem>>, %arg3: memref<64x1xf32, #tpu.memory_space<vmem>>, %arg4: memref<378x126xf32, #tpu.memory_space<vmem>>, %arg5: memref<19x64x64xf32, #tpu.memory_space<vmem>>, %arg6: memref<64x1xf32, #tpu.memory_space<vmem>>, %arg7: memref<106x36xf32, #tpu.memory_space<vmem>>, %arg8: memref<17x64x64xf32, #tpu.memory_space<vmem>>, %arg9: memref<64x1xf32, #tpu.memory_space<vmem>>, %arg10: memref<18x384xf32, #tpu.memory_space<vmem>>, %arg11: memref<64x384xf32, #tpu.memory_space<vmem>>, %arg12: memref<384x8xf32, #tpu.memory_space<vmem>>, %arg13: memref<1x8xf32, #tpu.memory_space<vmem>>, %arg14: memref<1x1x8xf32, #tpu.memory_space<vmem>>) attributes {dimension_semantics = [#tpu.dimension_semantics<parallel>], iteration_bounds = array<i64: 2>, scalar_prefetch = 0 : i64, scratch_operands = 0 : i64, tpu.core_type = #tpu.core_type<tc>, window_params = [{transform_indices = @transform_0, window_bounds = array<i64: 1, 21, 380>}, {pipeline_mode = #tpu.pipeline_mode<synchronous>, transform_indices = @transform_1, window_bounds = array<i64: 64, 21>}, {pipeline_mode = #tpu.pipeline_mode<synchronous>, transform_indices = @transform_2, window_bounds = array<i64: 64, 1>}, {pipeline_mode = #tpu.pipeline_mode<synchronous>, transform_indices = @transform_3, window_bounds = array<i64: 378, 126>}, {pipeline_mode = #tpu.pipeline_mode<synchronous>, transform_indices = @transform_4, window_bounds = array<i64: 19, 64, 64>}, {pipeline_mode = #tpu.pipeline_mode<synchronous>, transform_indices = @transform_5, window_bounds = array<i64: 64, 1>}, {pipeline_mode = #tpu.pipeline_mode<synchronous>, transform_indices = @transform_6, window_bounds = array<i64: 106, 36>}, {pipeline_mode = #tpu.pipeline_mode<synchronous>, transform_indices = @transform_7, window_bounds = array<i64: 17, 64, 64>}, {pipeline_mode = #tpu.pipeline_mode<synchronous>, transform_indices = @transform_8, window_bounds = array<i64: 64, 1>}, {pipeline_mode = #tpu.pipeline_mode<synchronous>, transform_indices = @transform_9, window_bounds = array<i64: 18, 384>}, {pipeline_mode = #tpu.pipeline_mode<synchronous>, transform_indices = @transform_10, window_bounds = array<i64: 64, 384>}, {pipeline_mode = #tpu.pipeline_mode<synchronous>, transform_indices = @transform_11, window_bounds = array<i64: 384, 8>}, {pipeline_mode = #tpu.pipeline_mode<synchronous>, transform_indices = @transform_12, window_bounds = array<i64: 1, 8>}, {transform_indices = @transform_13, window_bounds = array<i64: 1, 1, 8>}]} {
    %c0 = arith.constant 0 : index
    %c0_0 = arith.constant 0 : index
    %0 = vector.load %arg2[%c0, %c0_0] : memref<64x21xf32, #tpu.memory_space<vmem>>, vector<64x21xf32>
    %c0_1 = arith.constant 0 : index
    %c0_2 = arith.constant 0 : index
    %c0_3 = arith.constant 0 : index
    %1 = vector.load %arg1[%c0_1, %c0_2, %c0_3] : memref<1x21x380xf32, #tpu.memory_space<vmem>>, vector<1x21x380xf32>
    %2 = vector.shape_cast %1 : vector<1x21x380xf32> to vector<21x380xf32>
    %cst = arith.constant dense<0.000000e+00> : vector<64x380xf32>
    %3 = tpu.matmul %0, %2, %cst {dimension_numbers = #tpu.dot_dimension_numbers<[1], [0], [0], [1], [0, 0, 1, 1], [], []>} : vector<64x21xf32>, vector<21x380xf32>, vector<64x380xf32> -> vector<64x380xf32>
    %c0_4 = arith.constant 0 : index
    %c0_5 = arith.constant 0 : index
    %4 = vector.load %arg3[%c0_4, %c0_5] : memref<64x1xf32, #tpu.memory_space<vmem>>, vector<64x1xf32>
    %5 = vector.broadcast %4 : vector<64x1xf32> to vector<64x380xf32>
    %6 = arith.addf %3, %5 : vector<64x380xf32>
    %cst_6 = arith.constant 0.000000e+00 : f32
    %7 = vector.broadcast %cst_6 : f32 to vector<64x380xf32>
    %8 = arith.maximumf %6, %7 : vector<64x380xf32>
    %9 = vector.extract_strided_slice %8 {offsets = [0, 0], sizes = [64, 378], strides = [1, 1]} : vector<64x380xf32> to vector<64x378xf32>
    %10 = vector.extract_strided_slice %8 {offsets = [0, 1], sizes = [64, 378], strides = [1, 1]} : vector<64x380xf32> to vector<64x378xf32>
    %11 = arith.maximumf %9, %10 : vector<64x378xf32>
    %12 = vector.extract_strided_slice %8 {offsets = [0, 2], sizes = [64, 378], strides = [1, 1]} : vector<64x380xf32> to vector<64x378xf32>
    %13 = arith.maximumf %11, %12 : vector<64x378xf32>
    %c0_7 = arith.constant 0 : index
    %c0_8 = arith.constant 0 : index
    %14 = vector.load %arg4[%c0_7, %c0_8] : memref<378x126xf32, #tpu.memory_space<vmem>>, vector<378x126xf32>
    %cst_9 = arith.constant dense<0.000000e+00> : vector<64x126xf32>
    %15 = tpu.matmul %13, %14, %cst_9 {dimension_numbers = #tpu.dot_dimension_numbers<[1], [0], [0], [1], [0, 0, 1, 1], [], []>} : vector<64x378xf32>, vector<378x126xf32>, vector<64x126xf32> -> vector<64x126xf32>
    %c0_10 = arith.constant 0 : index
    %c0_11 = arith.constant 0 : index
    %16 = vector.load %arg6[%c0_10, %c0_11] : memref<64x1xf32, #tpu.memory_space<vmem>>, vector<64x1xf32>
    %c0_12 = arith.constant 0 : index
    %c0_13 = arith.constant 0 : index
    %c0_14 = arith.constant 0 : index
    %17 = vector.load %arg5[%c0_12, %c0_13, %c0_14] : memref<19x64x64xf32, #tpu.memory_space<vmem>>, vector<1x64x64xf32>
    %18 = vector.shape_cast %17 : vector<1x64x64xf32> to vector<64x64xf32>
    %19 = vector.extract_strided_slice %15 {offsets = [0, 0], sizes = [64, 108], strides = [1, 1]} : vector<64x126xf32> to vector<64x108xf32>
    %cst_15 = arith.constant dense<0.000000e+00> : vector<64x108xf32>
    %20 = tpu.matmul %18, %19, %cst_15 {dimension_numbers = #tpu.dot_dimension_numbers<[1], [0], [0], [1], [0, 0, 1, 1], [], []>} : vector<64x64xf32>, vector<64x108xf32>, vector<64x108xf32> -> vector<64x108xf32>
    %c1 = arith.constant 1 : index
    %c0_16 = arith.constant 0 : index
    %c0_17 = arith.constant 0 : index
    %21 = vector.load %arg5[%c1, %c0_16, %c0_17] : memref<19x64x64xf32, #tpu.memory_space<vmem>>, vector<1x64x64xf32>
    %22 = vector.shape_cast %21 : vector<1x64x64xf32> to vector<64x64xf32>
    %23 = vector.extract_strided_slice %15 {offsets = [0, 1], sizes = [64, 108], strides = [1, 1]} : vector<64x126xf32> to vector<64x108xf32>
    %cst_18 = arith.constant dense<0.000000e+00> : vector<64x108xf32>
    %24 = tpu.matmul %22, %23, %cst_18 {dimension_numbers = #tpu.dot_dimension_numbers<[1], [0], [0], [1], [0, 0, 1, 1], [], []>} : vector<64x64xf32>, vector<64x108xf32>, vector<64x108xf32> -> vector<64x108xf32>
    %25 = arith.addf %20, %24 : vector<64x108xf32>
    %c2 = arith.constant 2 : index
    %c0_19 = arith.constant 0 : index
    %c0_20 = arith.constant 0 : index
    %26 = vector.load %arg5[%c2, %c0_19, %c0_20] : memref<19x64x64xf32, #tpu.memory_space<vmem>>, vector<1x64x64xf32>
    %27 = vector.shape_cast %26 : vector<1x64x64xf32> to vector<64x64xf32>
    %28 = vector.extract_strided_slice %15 {offsets = [0, 2], sizes = [64, 108], strides = [1, 1]} : vector<64x126xf32> to vector<64x108xf32>
    %cst_21 = arith.constant dense<0.000000e+00> : vector<64x108xf32>
    %29 = tpu.matmul %27, %28, %cst_21 {dimension_numbers = #tpu.dot_dimension_numbers<[1], [0], [0], [1], [0, 0, 1, 1], [], []>} : vector<64x64xf32>, vector<64x108xf32>, vector<64x108xf32> -> vector<64x108xf32>
    %30 = arith.addf %25, %29 : vector<64x108xf32>
    %c3 = arith.constant 3 : index
    %c0_22 = arith.constant 0 : index
    %c0_23 = arith.constant 0 : index
    %31 = vector.load %arg5[%c3, %c0_22, %c0_23] : memref<19x64x64xf32, #tpu.memory_space<vmem>>, vector<1x64x64xf32>
    %32 = vector.shape_cast %31 : vector<1x64x64xf32> to vector<64x64xf32>
    %33 = vector.extract_strided_slice %15 {offsets = [0, 3], sizes = [64, 108], strides = [1, 1]} : vector<64x126xf32> to vector<64x108xf32>
    %cst_24 = arith.constant dense<0.000000e+00> : vector<64x108xf32>
    %34 = tpu.matmul %32, %33, %cst_24 {dimension_numbers = #tpu.dot_dimension_numbers<[1], [0], [0], [1], [0, 0, 1, 1], [], []>} : vector<64x64xf32>, vector<64x108xf32>, vector<64x108xf32> -> vector<64x108xf32>
    %35 = arith.addf %30, %34 : vector<64x108xf32>
    %c4 = arith.constant 4 : index
    %c0_25 = arith.constant 0 : index
    %c0_26 = arith.constant 0 : index
    %36 = vector.load %arg5[%c4, %c0_25, %c0_26] : memref<19x64x64xf32, #tpu.memory_space<vmem>>, vector<1x64x64xf32>
    %37 = vector.shape_cast %36 : vector<1x64x64xf32> to vector<64x64xf32>
    %38 = vector.extract_strided_slice %15 {offsets = [0, 4], sizes = [64, 108], strides = [1, 1]} : vector<64x126xf32> to vector<64x108xf32>
    %cst_27 = arith.constant dense<0.000000e+00> : vector<64x108xf32>
    %39 = tpu.matmul %37, %38, %cst_27 {dimension_numbers = #tpu.dot_dimension_numbers<[1], [0], [0], [1], [0, 0, 1, 1], [], []>} : vector<64x64xf32>, vector<64x108xf32>, vector<64x108xf32> -> vector<64x108xf32>
    %40 = arith.addf %35, %39 : vector<64x108xf32>
    %c5 = arith.constant 5 : index
    %c0_28 = arith.constant 0 : index
    %c0_29 = arith.constant 0 : index
    %41 = vector.load %arg5[%c5, %c0_28, %c0_29] : memref<19x64x64xf32, #tpu.memory_space<vmem>>, vector<1x64x64xf32>
    %42 = vector.shape_cast %41 : vector<1x64x64xf32> to vector<64x64xf32>
    %43 = vector.extract_strided_slice %15 {offsets = [0, 5], sizes = [64, 108], strides = [1, 1]} : vector<64x126xf32> to vector<64x108xf32>
    %cst_30 = arith.constant dense<0.000000e+00> : vector<64x108xf32>
    %44 = tpu.matmul %42, %43, %cst_30 {dimension_numbers = #tpu.dot_dimension_numbers<[1], [0], [0], [1], [0, 0, 1, 1], [], []>} : vector<64x64xf32>, vector<64x108xf32>, vector<64x108xf32> -> vector<64x108xf32>
    %45 = arith.addf %40, %44 : vector<64x108xf32>
    %c6 = arith.constant 6 : index
    %c0_31 = arith.constant 0 : index
    %c0_32 = arith.constant 0 : index
    %46 = vector.load %arg5[%c6, %c0_31, %c0_32] : memref<19x64x64xf32, #tpu.memory_space<vmem>>, vector<1x64x64xf32>
    %47 = vector.shape_cast %46 : vector<1x64x64xf32> to vector<64x64xf32>
    %48 = vector.extract_strided_slice %15 {offsets = [0, 6], sizes = [64, 108], strides = [1, 1]} : vector<64x126xf32> to vector<64x108xf32>
    %cst_33 = arith.constant dense<0.000000e+00> : vector<64x108xf32>
    %49 = tpu.matmul %47, %48, %cst_33 {dimension_numbers = #tpu.dot_dimension_numbers<[1], [0], [0], [1], [0, 0, 1, 1], [], []>} : vector<64x64xf32>, vector<64x108xf32>, vector<64x108xf32> -> vector<64x108xf32>
    %50 = arith.addf %45, %49 : vector<64x108xf32>
    %c7 = arith.constant 7 : index
    %c0_34 = arith.constant 0 : index
    %c0_35 = arith.constant 0 : index
    %51 = vector.load %arg5[%c7, %c0_34, %c0_35] : memref<19x64x64xf32, #tpu.memory_space<vmem>>, vector<1x64x64xf32>
    %52 = vector.shape_cast %51 : vector<1x64x64xf32> to vector<64x64xf32>
    %53 = vector.extract_strided_slice %15 {offsets = [0, 7], sizes = [64, 108], strides = [1, 1]} : vector<64x126xf32> to vector<64x108xf32>
    %cst_36 = arith.constant dense<0.000000e+00> : vector<64x108xf32>
    %54 = tpu.matmul %52, %53, %cst_36 {dimension_numbers = #tpu.dot_dimension_numbers<[1], [0], [0], [1], [0, 0, 1, 1], [], []>} : vector<64x64xf32>, vector<64x108xf32>, vector<64x108xf32> -> vector<64x108xf32>
    %55 = arith.addf %50, %54 : vector<64x108xf32>
    %c8 = arith.constant 8 : index
    %c0_37 = arith.constant 0 : index
    %c0_38 = arith.constant 0 : index
    %56 = vector.load %arg5[%c8, %c0_37, %c0_38] : memref<19x64x64xf32, #tpu.memory_space<vmem>>, vector<1x64x64xf32>
    %57 = vector.shape_cast %56 : vector<1x64x64xf32> to vector<64x64xf32>
    %58 = vector.extract_strided_slice %15 {offsets = [0, 8], sizes = [64, 108], strides = [1, 1]} : vector<64x126xf32> to vector<64x108xf32>
    %cst_39 = arith.constant dense<0.000000e+00> : vector<64x108xf32>
    %59 = tpu.matmul %57, %58, %cst_39 {dimension_numbers = #tpu.dot_dimension_numbers<[1], [0], [0], [1], [0, 0, 1, 1], [], []>} : vector<64x64xf32>, vector<64x108xf32>, vector<64x108xf32> -> vector<64x108xf32>
    %60 = arith.addf %55, %59 : vector<64x108xf32>
    %c9 = arith.constant 9 : index
    %c0_40 = arith.constant 0 : index
    %c0_41 = arith.constant 0 : index
    %61 = vector.load %arg5[%c9, %c0_40, %c0_41] : memref<19x64x64xf32, #tpu.memory_space<vmem>>, vector<1x64x64xf32>
    %62 = vector.shape_cast %61 : vector<1x64x64xf32> to vector<64x64xf32>
    %63 = vector.extract_strided_slice %15 {offsets = [0, 9], sizes = [64, 108], strides = [1, 1]} : vector<64x126xf32> to vector<64x108xf32>
    %cst_42 = arith.constant dense<0.000000e+00> : vector<64x108xf32>
    %64 = tpu.matmul %62, %63, %cst_42 {dimension_numbers = #tpu.dot_dimension_numbers<[1], [0], [0], [1], [0, 0, 1, 1], [], []>} : vector<64x64xf32>, vector<64x108xf32>, vector<64x108xf32> -> vector<64x108xf32>
    %65 = arith.addf %60, %64 : vector<64x108xf32>
    %c10 = arith.constant 10 : index
    %c0_43 = arith.constant 0 : index
    %c0_44 = arith.constant 0 : index
    %66 = vector.load %arg5[%c10, %c0_43, %c0_44] : memref<19x64x64xf32, #tpu.memory_space<vmem>>, vector<1x64x64xf32>
    %67 = vector.shape_cast %66 : vector<1x64x64xf32> to vector<64x64xf32>
    %68 = vector.extract_strided_slice %15 {offsets = [0, 10], sizes = [64, 108], strides = [1, 1]} : vector<64x126xf32> to vector<64x108xf32>
    %cst_45 = arith.constant dense<0.000000e+00> : vector<64x108xf32>
    %69 = tpu.matmul %67, %68, %cst_45 {dimension_numbers = #tpu.dot_dimension_numbers<[1], [0], [0], [1], [0, 0, 1, 1], [], []>} : vector<64x64xf32>, vector<64x108xf32>, vector<64x108xf32> -> vector<64x108xf32>
    %70 = arith.addf %65, %69 : vector<64x108xf32>
    %c11 = arith.constant 11 : index
    %c0_46 = arith.constant 0 : index
    %c0_47 = arith.constant 0 : index
    %71 = vector.load %arg5[%c11, %c0_46, %c0_47] : memref<19x64x64xf32, #tpu.memory_space<vmem>>, vector<1x64x64xf32>
    %72 = vector.shape_cast %71 : vector<1x64x64xf32> to vector<64x64xf32>
    %73 = vector.extract_strided_slice %15 {offsets = [0, 11], sizes = [64, 108], strides = [1, 1]} : vector<64x126xf32> to vector<64x108xf32>
    %cst_48 = arith.constant dense<0.000000e+00> : vector<64x108xf32>
    %74 = tpu.matmul %72, %73, %cst_48 {dimension_numbers = #tpu.dot_dimension_numbers<[1], [0], [0], [1], [0, 0, 1, 1], [], []>} : vector<64x64xf32>, vector<64x108xf32>, vector<64x108xf32> -> vector<64x108xf32>
    %75 = arith.addf %70, %74 : vector<64x108xf32>
    %c12 = arith.constant 12 : index
    %c0_49 = arith.constant 0 : index
    %c0_50 = arith.constant 0 : index
    %76 = vector.load %arg5[%c12, %c0_49, %c0_50] : memref<19x64x64xf32, #tpu.memory_space<vmem>>, vector<1x64x64xf32>
    %77 = vector.shape_cast %76 : vector<1x64x64xf32> to vector<64x64xf32>
    %78 = vector.extract_strided_slice %15 {offsets = [0, 12], sizes = [64, 108], strides = [1, 1]} : vector<64x126xf32> to vector<64x108xf32>
    %cst_51 = arith.constant dense<0.000000e+00> : vector<64x108xf32>
    %79 = tpu.matmul %77, %78, %cst_51 {dimension_numbers = #tpu.dot_dimension_numbers<[1], [0], [0], [1], [0, 0, 1, 1], [], []>} : vector<64x64xf32>, vector<64x108xf32>, vector<64x108xf32> -> vector<64x108xf32>
    %80 = arith.addf %75, %79 : vector<64x108xf32>
    %c13 = arith.constant 13 : index
    %c0_52 = arith.constant 0 : index
    %c0_53 = arith.constant 0 : index
    %81 = vector.load %arg5[%c13, %c0_52, %c0_53] : memref<19x64x64xf32, #tpu.memory_space<vmem>>, vector<1x64x64xf32>
    %82 = vector.shape_cast %81 : vector<1x64x64xf32> to vector<64x64xf32>
    %83 = vector.extract_strided_slice %15 {offsets = [0, 13], sizes = [64, 108], strides = [1, 1]} : vector<64x126xf32> to vector<64x108xf32>
    %cst_54 = arith.constant dense<0.000000e+00> : vector<64x108xf32>
    %84 = tpu.matmul %82, %83, %cst_54 {dimension_numbers = #tpu.dot_dimension_numbers<[1], [0], [0], [1], [0, 0, 1, 1], [], []>} : vector<64x64xf32>, vector<64x108xf32>, vector<64x108xf32> -> vector<64x108xf32>
    %85 = arith.addf %80, %84 : vector<64x108xf32>
    %c14 = arith.constant 14 : index
    %c0_55 = arith.constant 0 : index
    %c0_56 = arith.constant 0 : index
    %86 = vector.load %arg5[%c14, %c0_55, %c0_56] : memref<19x64x64xf32, #tpu.memory_space<vmem>>, vector<1x64x64xf32>
    %87 = vector.shape_cast %86 : vector<1x64x64xf32> to vector<64x64xf32>
    %88 = vector.extract_strided_slice %15 {offsets = [0, 14], sizes = [64, 108], strides = [1, 1]} : vector<64x126xf32> to vector<64x108xf32>
    %cst_57 = arith.constant dense<0.000000e+00> : vector<64x108xf32>
    %89 = tpu.matmul %87, %88, %cst_57 {dimension_numbers = #tpu.dot_dimension_numbers<[1], [0], [0], [1], [0, 0, 1, 1], [], []>} : vector<64x64xf32>, vector<64x108xf32>, vector<64x108xf32> -> vector<64x108xf32>
    %90 = arith.addf %85, %89 : vector<64x108xf32>
    %c15 = arith.constant 15 : index
    %c0_58 = arith.constant 0 : index
    %c0_59 = arith.constant 0 : index
    %91 = vector.load %arg5[%c15, %c0_58, %c0_59] : memref<19x64x64xf32, #tpu.memory_space<vmem>>, vector<1x64x64xf32>
    %92 = vector.shape_cast %91 : vector<1x64x64xf32> to vector<64x64xf32>
    %93 = vector.extract_strided_slice %15 {offsets = [0, 15], sizes = [64, 108], strides = [1, 1]} : vector<64x126xf32> to vector<64x108xf32>
    %cst_60 = arith.constant dense<0.000000e+00> : vector<64x108xf32>
    %94 = tpu.matmul %92, %93, %cst_60 {dimension_numbers = #tpu.dot_dimension_numbers<[1], [0], [0], [1], [0, 0, 1, 1], [], []>} : vector<64x64xf32>, vector<64x108xf32>, vector<64x108xf32> -> vector<64x108xf32>
    %95 = arith.addf %90, %94 : vector<64x108xf32>
    %c16 = arith.constant 16 : index
    %c0_61 = arith.constant 0 : index
    %c0_62 = arith.constant 0 : index
    %96 = vector.load %arg5[%c16, %c0_61, %c0_62] : memref<19x64x64xf32, #tpu.memory_space<vmem>>, vector<1x64x64xf32>
    %97 = vector.shape_cast %96 : vector<1x64x64xf32> to vector<64x64xf32>
    %98 = vector.extract_strided_slice %15 {offsets = [0, 16], sizes = [64, 108], strides = [1, 1]} : vector<64x126xf32> to vector<64x108xf32>
    %cst_63 = arith.constant dense<0.000000e+00> : vector<64x108xf32>
    %99 = tpu.matmul %97, %98, %cst_63 {dimension_numbers = #tpu.dot_dimension_numbers<[1], [0], [0], [1], [0, 0, 1, 1], [], []>} : vector<64x64xf32>, vector<64x108xf32>, vector<64x108xf32> -> vector<64x108xf32>
    %100 = arith.addf %95, %99 : vector<64x108xf32>
    %c17 = arith.constant 17 : index
    %c0_64 = arith.constant 0 : index
    %c0_65 = arith.constant 0 : index
    %101 = vector.load %arg5[%c17, %c0_64, %c0_65] : memref<19x64x64xf32, #tpu.memory_space<vmem>>, vector<1x64x64xf32>
    %102 = vector.shape_cast %101 : vector<1x64x64xf32> to vector<64x64xf32>
    %103 = vector.extract_strided_slice %15 {offsets = [0, 17], sizes = [64, 108], strides = [1, 1]} : vector<64x126xf32> to vector<64x108xf32>
    %cst_66 = arith.constant dense<0.000000e+00> : vector<64x108xf32>
    %104 = tpu.matmul %102, %103, %cst_66 {dimension_numbers = #tpu.dot_dimension_numbers<[1], [0], [0], [1], [0, 0, 1, 1], [], []>} : vector<64x64xf32>, vector<64x108xf32>, vector<64x108xf32> -> vector<64x108xf32>
    %105 = arith.addf %100, %104 : vector<64x108xf32>
    %c18 = arith.constant 18 : index
    %c0_67 = arith.constant 0 : index
    %c0_68 = arith.constant 0 : index
    %106 = vector.load %arg5[%c18, %c0_67, %c0_68] : memref<19x64x64xf32, #tpu.memory_space<vmem>>, vector<1x64x64xf32>
    %107 = vector.shape_cast %106 : vector<1x64x64xf32> to vector<64x64xf32>
    %108 = vector.extract_strided_slice %15 {offsets = [0, 18], sizes = [64, 108], strides = [1, 1]} : vector<64x126xf32> to vector<64x108xf32>
    %cst_69 = arith.constant dense<0.000000e+00> : vector<64x108xf32>
    %109 = tpu.matmul %107, %108, %cst_69 {dimension_numbers = #tpu.dot_dimension_numbers<[1], [0], [0], [1], [0, 0, 1, 1], [], []>} : vector<64x64xf32>, vector<64x108xf32>, vector<64x108xf32> -> vector<64x108xf32>
    %110 = arith.addf %105, %109 : vector<64x108xf32>
    %111 = vector.broadcast %16 : vector<64x1xf32> to vector<64x108xf32>
    %112 = arith.addf %110, %111 : vector<64x108xf32>
    %cst_70 = arith.constant 0.000000e+00 : f32
    %113 = vector.broadcast %cst_70 : f32 to vector<64x108xf32>
    %114 = arith.maximumf %112, %113 : vector<64x108xf32>
    %115 = vector.extract_strided_slice %114 {offsets = [0, 0], sizes = [64, 106], strides = [1, 1]} : vector<64x108xf32> to vector<64x106xf32>
    %116 = vector.extract_strided_slice %114 {offsets = [0, 1], sizes = [64, 106], strides = [1, 1]} : vector<64x108xf32> to vector<64x106xf32>
    %117 = arith.maximumf %115, %116 : vector<64x106xf32>
    %118 = vector.extract_strided_slice %114 {offsets = [0, 2], sizes = [64, 106], strides = [1, 1]} : vector<64x108xf32> to vector<64x106xf32>
    %119 = arith.maximumf %117, %118 : vector<64x106xf32>
    %c0_71 = arith.constant 0 : index
    %c0_72 = arith.constant 0 : index
    %120 = vector.load %arg7[%c0_71, %c0_72] : memref<106x36xf32, #tpu.memory_space<vmem>>, vector<106x36xf32>
    %cst_73 = arith.constant dense<0.000000e+00> : vector<64x36xf32>
    %121 = tpu.matmul %119, %120, %cst_73 {dimension_numbers = #tpu.dot_dimension_numbers<[1], [0], [0], [1], [0, 0, 1, 1], [], []>} : vector<64x106xf32>, vector<106x36xf32>, vector<64x36xf32> -> vector<64x36xf32>
    %c0_74 = arith.constant 0 : index
    %c0_75 = arith.constant 0 : index
    %122 = vector.load %arg9[%c0_74, %c0_75] : memref<64x1xf32, #tpu.memory_space<vmem>>, vector<64x1xf32>
    %c0_76 = arith.constant 0 : index
    %c0_77 = arith.constant 0 : index
    %c0_78 = arith.constant 0 : index
    %123 = vector.load %arg8[%c0_76, %c0_77, %c0_78] : memref<17x64x64xf32, #tpu.memory_space<vmem>>, vector<1x64x64xf32>
    %124 = vector.shape_cast %123 : vector<1x64x64xf32> to vector<64x64xf32>
    %125 = vector.extract_strided_slice %121 {offsets = [0, 0], sizes = [64, 20], strides = [1, 1]} : vector<64x36xf32> to vector<64x20xf32>
    %cst_79 = arith.constant dense<0.000000e+00> : vector<64x20xf32>
    %126 = tpu.matmul %124, %125, %cst_79 {dimension_numbers = #tpu.dot_dimension_numbers<[1], [0], [0], [1], [0, 0, 1, 1], [], []>} : vector<64x64xf32>, vector<64x20xf32>, vector<64x20xf32> -> vector<64x20xf32>
    %c1_80 = arith.constant 1 : index
    %c0_81 = arith.constant 0 : index
    %c0_82 = arith.constant 0 : index
    %127 = vector.load %arg8[%c1_80, %c0_81, %c0_82] : memref<17x64x64xf32, #tpu.memory_space<vmem>>, vector<1x64x64xf32>
    %128 = vector.shape_cast %127 : vector<1x64x64xf32> to vector<64x64xf32>
    %129 = vector.extract_strided_slice %121 {offsets = [0, 1], sizes = [64, 20], strides = [1, 1]} : vector<64x36xf32> to vector<64x20xf32>
    %cst_83 = arith.constant dense<0.000000e+00> : vector<64x20xf32>
    %130 = tpu.matmul %128, %129, %cst_83 {dimension_numbers = #tpu.dot_dimension_numbers<[1], [0], [0], [1], [0, 0, 1, 1], [], []>} : vector<64x64xf32>, vector<64x20xf32>, vector<64x20xf32> -> vector<64x20xf32>
    %131 = arith.addf %126, %130 : vector<64x20xf32>
    %c2_84 = arith.constant 2 : index
    %c0_85 = arith.constant 0 : index
    %c0_86 = arith.constant 0 : index
    %132 = vector.load %arg8[%c2_84, %c0_85, %c0_86] : memref<17x64x64xf32, #tpu.memory_space<vmem>>, vector<1x64x64xf32>
    %133 = vector.shape_cast %132 : vector<1x64x64xf32> to vector<64x64xf32>
    %134 = vector.extract_strided_slice %121 {offsets = [0, 2], sizes = [64, 20], strides = [1, 1]} : vector<64x36xf32> to vector<64x20xf32>
    %cst_87 = arith.constant dense<0.000000e+00> : vector<64x20xf32>
    %135 = tpu.matmul %133, %134, %cst_87 {dimension_numbers = #tpu.dot_dimension_numbers<[1], [0], [0], [1], [0, 0, 1, 1], [], []>} : vector<64x64xf32>, vector<64x20xf32>, vector<64x20xf32> -> vector<64x20xf32>
    %136 = arith.addf %131, %135 : vector<64x20xf32>
    %c3_88 = arith.constant 3 : index
    %c0_89 = arith.constant 0 : index
    %c0_90 = arith.constant 0 : index
    %137 = vector.load %arg8[%c3_88, %c0_89, %c0_90] : memref<17x64x64xf32, #tpu.memory_space<vmem>>, vector<1x64x64xf32>
    %138 = vector.shape_cast %137 : vector<1x64x64xf32> to vector<64x64xf32>
    %139 = vector.extract_strided_slice %121 {offsets = [0, 3], sizes = [64, 20], strides = [1, 1]} : vector<64x36xf32> to vector<64x20xf32>
    %cst_91 = arith.constant dense<0.000000e+00> : vector<64x20xf32>
    %140 = tpu.matmul %138, %139, %cst_91 {dimension_numbers = #tpu.dot_dimension_numbers<[1], [0], [0], [1], [0, 0, 1, 1], [], []>} : vector<64x64xf32>, vector<64x20xf32>, vector<64x20xf32> -> vector<64x20xf32>
    %141 = arith.addf %136, %140 : vector<64x20xf32>
    %c4_92 = arith.constant 4 : index
    %c0_93 = arith.constant 0 : index
    %c0_94 = arith.constant 0 : index
    %142 = vector.load %arg8[%c4_92, %c0_93, %c0_94] : memref<17x64x64xf32, #tpu.memory_space<vmem>>, vector<1x64x64xf32>
    %143 = vector.shape_cast %142 : vector<1x64x64xf32> to vector<64x64xf32>
    %144 = vector.extract_strided_slice %121 {offsets = [0, 4], sizes = [64, 20], strides = [1, 1]} : vector<64x36xf32> to vector<64x20xf32>
    %cst_95 = arith.constant dense<0.000000e+00> : vector<64x20xf32>
    %145 = tpu.matmul %143, %144, %cst_95 {dimension_numbers = #tpu.dot_dimension_numbers<[1], [0], [0], [1], [0, 0, 1, 1], [], []>} : vector<64x64xf32>, vector<64x20xf32>, vector<64x20xf32> -> vector<64x20xf32>
    %146 = arith.addf %141, %145 : vector<64x20xf32>
    %c5_96 = arith.constant 5 : index
    %c0_97 = arith.constant 0 : index
    %c0_98 = arith.constant 0 : index
    %147 = vector.load %arg8[%c5_96, %c0_97, %c0_98] : memref<17x64x64xf32, #tpu.memory_space<vmem>>, vector<1x64x64xf32>
    %148 = vector.shape_cast %147 : vector<1x64x64xf32> to vector<64x64xf32>
    %149 = vector.extract_strided_slice %121 {offsets = [0, 5], sizes = [64, 20], strides = [1, 1]} : vector<64x36xf32> to vector<64x20xf32>
    %cst_99 = arith.constant dense<0.000000e+00> : vector<64x20xf32>
    %150 = tpu.matmul %148, %149, %cst_99 {dimension_numbers = #tpu.dot_dimension_numbers<[1], [0], [0], [1], [0, 0, 1, 1], [], []>} : vector<64x64xf32>, vector<64x20xf32>, vector<64x20xf32> -> vector<64x20xf32>
    %151 = arith.addf %146, %150 : vector<64x20xf32>
    %c6_100 = arith.constant 6 : index
    %c0_101 = arith.constant 0 : index
    %c0_102 = arith.constant 0 : index
    %152 = vector.load %arg8[%c6_100, %c0_101, %c0_102] : memref<17x64x64xf32, #tpu.memory_space<vmem>>, vector<1x64x64xf32>
    %153 = vector.shape_cast %152 : vector<1x64x64xf32> to vector<64x64xf32>
    %154 = vector.extract_strided_slice %121 {offsets = [0, 6], sizes = [64, 20], strides = [1, 1]} : vector<64x36xf32> to vector<64x20xf32>
    %cst_103 = arith.constant dense<0.000000e+00> : vector<64x20xf32>
    %155 = tpu.matmul %153, %154, %cst_103 {dimension_numbers = #tpu.dot_dimension_numbers<[1], [0], [0], [1], [0, 0, 1, 1], [], []>} : vector<64x64xf32>, vector<64x20xf32>, vector<64x20xf32> -> vector<64x20xf32>
    %156 = arith.addf %151, %155 : vector<64x20xf32>
    %c7_104 = arith.constant 7 : index
    %c0_105 = arith.constant 0 : index
    %c0_106 = arith.constant 0 : index
    %157 = vector.load %arg8[%c7_104, %c0_105, %c0_106] : memref<17x64x64xf32, #tpu.memory_space<vmem>>, vector<1x64x64xf32>
    %158 = vector.shape_cast %157 : vector<1x64x64xf32> to vector<64x64xf32>
    %159 = vector.extract_strided_slice %121 {offsets = [0, 7], sizes = [64, 20], strides = [1, 1]} : vector<64x36xf32> to vector<64x20xf32>
    %cst_107 = arith.constant dense<0.000000e+00> : vector<64x20xf32>
    %160 = tpu.matmul %158, %159, %cst_107 {dimension_numbers = #tpu.dot_dimension_numbers<[1], [0], [0], [1], [0, 0, 1, 1], [], []>} : vector<64x64xf32>, vector<64x20xf32>, vector<64x20xf32> -> vector<64x20xf32>
    %161 = arith.addf %156, %160 : vector<64x20xf32>
    %c8_108 = arith.constant 8 : index
    %c0_109 = arith.constant 0 : index
    %c0_110 = arith.constant 0 : index
    %162 = vector.load %arg8[%c8_108, %c0_109, %c0_110] : memref<17x64x64xf32, #tpu.memory_space<vmem>>, vector<1x64x64xf32>
    %163 = vector.shape_cast %162 : vector<1x64x64xf32> to vector<64x64xf32>
    %164 = vector.extract_strided_slice %121 {offsets = [0, 8], sizes = [64, 20], strides = [1, 1]} : vector<64x36xf32> to vector<64x20xf32>
    %cst_111 = arith.constant dense<0.000000e+00> : vector<64x20xf32>
    %165 = tpu.matmul %163, %164, %cst_111 {dimension_numbers = #tpu.dot_dimension_numbers<[1], [0], [0], [1], [0, 0, 1, 1], [], []>} : vector<64x64xf32>, vector<64x20xf32>, vector<64x20xf32> -> vector<64x20xf32>
    %166 = arith.addf %161, %165 : vector<64x20xf32>
    %c9_112 = arith.constant 9 : index
    %c0_113 = arith.constant 0 : index
    %c0_114 = arith.constant 0 : index
    %167 = vector.load %arg8[%c9_112, %c0_113, %c0_114] : memref<17x64x64xf32, #tpu.memory_space<vmem>>, vector<1x64x64xf32>
    %168 = vector.shape_cast %167 : vector<1x64x64xf32> to vector<64x64xf32>
    %169 = vector.extract_strided_slice %121 {offsets = [0, 9], sizes = [64, 20], strides = [1, 1]} : vector<64x36xf32> to vector<64x20xf32>
    %cst_115 = arith.constant dense<0.000000e+00> : vector<64x20xf32>
    %170 = tpu.matmul %168, %169, %cst_115 {dimension_numbers = #tpu.dot_dimension_numbers<[1], [0], [0], [1], [0, 0, 1, 1], [], []>} : vector<64x64xf32>, vector<64x20xf32>, vector<64x20xf32> -> vector<64x20xf32>
    %171 = arith.addf %166, %170 : vector<64x20xf32>
    %c10_116 = arith.constant 10 : index
    %c0_117 = arith.constant 0 : index
    %c0_118 = arith.constant 0 : index
    %172 = vector.load %arg8[%c10_116, %c0_117, %c0_118] : memref<17x64x64xf32, #tpu.memory_space<vmem>>, vector<1x64x64xf32>
    %173 = vector.shape_cast %172 : vector<1x64x64xf32> to vector<64x64xf32>
    %174 = vector.extract_strided_slice %121 {offsets = [0, 10], sizes = [64, 20], strides = [1, 1]} : vector<64x36xf32> to vector<64x20xf32>
    %cst_119 = arith.constant dense<0.000000e+00> : vector<64x20xf32>
    %175 = tpu.matmul %173, %174, %cst_119 {dimension_numbers = #tpu.dot_dimension_numbers<[1], [0], [0], [1], [0, 0, 1, 1], [], []>} : vector<64x64xf32>, vector<64x20xf32>, vector<64x20xf32> -> vector<64x20xf32>
    %176 = arith.addf %171, %175 : vector<64x20xf32>
    %c11_120 = arith.constant 11 : index
    %c0_121 = arith.constant 0 : index
    %c0_122 = arith.constant 0 : index
    %177 = vector.load %arg8[%c11_120, %c0_121, %c0_122] : memref<17x64x64xf32, #tpu.memory_space<vmem>>, vector<1x64x64xf32>
    %178 = vector.shape_cast %177 : vector<1x64x64xf32> to vector<64x64xf32>
    %179 = vector.extract_strided_slice %121 {offsets = [0, 11], sizes = [64, 20], strides = [1, 1]} : vector<64x36xf32> to vector<64x20xf32>
    %cst_123 = arith.constant dense<0.000000e+00> : vector<64x20xf32>
    %180 = tpu.matmul %178, %179, %cst_123 {dimension_numbers = #tpu.dot_dimension_numbers<[1], [0], [0], [1], [0, 0, 1, 1], [], []>} : vector<64x64xf32>, vector<64x20xf32>, vector<64x20xf32> -> vector<64x20xf32>
    %181 = arith.addf %176, %180 : vector<64x20xf32>
    %c12_124 = arith.constant 12 : index
    %c0_125 = arith.constant 0 : index
    %c0_126 = arith.constant 0 : index
    %182 = vector.load %arg8[%c12_124, %c0_125, %c0_126] : memref<17x64x64xf32, #tpu.memory_space<vmem>>, vector<1x64x64xf32>
    %183 = vector.shape_cast %182 : vector<1x64x64xf32> to vector<64x64xf32>
    %184 = vector.extract_strided_slice %121 {offsets = [0, 12], sizes = [64, 20], strides = [1, 1]} : vector<64x36xf32> to vector<64x20xf32>
    %cst_127 = arith.constant dense<0.000000e+00> : vector<64x20xf32>
    %185 = tpu.matmul %183, %184, %cst_127 {dimension_numbers = #tpu.dot_dimension_numbers<[1], [0], [0], [1], [0, 0, 1, 1], [], []>} : vector<64x64xf32>, vector<64x20xf32>, vector<64x20xf32> -> vector<64x20xf32>
    %186 = arith.addf %181, %185 : vector<64x20xf32>
    %c13_128 = arith.constant 13 : index
    %c0_129 = arith.constant 0 : index
    %c0_130 = arith.constant 0 : index
    %187 = vector.load %arg8[%c13_128, %c0_129, %c0_130] : memref<17x64x64xf32, #tpu.memory_space<vmem>>, vector<1x64x64xf32>
    %188 = vector.shape_cast %187 : vector<1x64x64xf32> to vector<64x64xf32>
    %189 = vector.extract_strided_slice %121 {offsets = [0, 13], sizes = [64, 20], strides = [1, 1]} : vector<64x36xf32> to vector<64x20xf32>
    %cst_131 = arith.constant dense<0.000000e+00> : vector<64x20xf32>
    %190 = tpu.matmul %188, %189, %cst_131 {dimension_numbers = #tpu.dot_dimension_numbers<[1], [0], [0], [1], [0, 0, 1, 1], [], []>} : vector<64x64xf32>, vector<64x20xf32>, vector<64x20xf32> -> vector<64x20xf32>
    %191 = arith.addf %186, %190 : vector<64x20xf32>
    %c14_132 = arith.constant 14 : index
    %c0_133 = arith.constant 0 : index
    %c0_134 = arith.constant 0 : index
    %192 = vector.load %arg8[%c14_132, %c0_133, %c0_134] : memref<17x64x64xf32, #tpu.memory_space<vmem>>, vector<1x64x64xf32>
    %193 = vector.shape_cast %192 : vector<1x64x64xf32> to vector<64x64xf32>
    %194 = vector.extract_strided_slice %121 {offsets = [0, 14], sizes = [64, 20], strides = [1, 1]} : vector<64x36xf32> to vector<64x20xf32>
    %cst_135 = arith.constant dense<0.000000e+00> : vector<64x20xf32>
    %195 = tpu.matmul %193, %194, %cst_135 {dimension_numbers = #tpu.dot_dimension_numbers<[1], [0], [0], [1], [0, 0, 1, 1], [], []>} : vector<64x64xf32>, vector<64x20xf32>, vector<64x20xf32> -> vector<64x20xf32>
    %196 = arith.addf %191, %195 : vector<64x20xf32>
    %c15_136 = arith.constant 15 : index
    %c0_137 = arith.constant 0 : index
    %c0_138 = arith.constant 0 : index
    %197 = vector.load %arg8[%c15_136, %c0_137, %c0_138] : memref<17x64x64xf32, #tpu.memory_space<vmem>>, vector<1x64x64xf32>
    %198 = vector.shape_cast %197 : vector<1x64x64xf32> to vector<64x64xf32>
    %199 = vector.extract_strided_slice %121 {offsets = [0, 15], sizes = [64, 20], strides = [1, 1]} : vector<64x36xf32> to vector<64x20xf32>
    %cst_139 = arith.constant dense<0.000000e+00> : vector<64x20xf32>
    %200 = tpu.matmul %198, %199, %cst_139 {dimension_numbers = #tpu.dot_dimension_numbers<[1], [0], [0], [1], [0, 0, 1, 1], [], []>} : vector<64x64xf32>, vector<64x20xf32>, vector<64x20xf32> -> vector<64x20xf32>
    %201 = arith.addf %196, %200 : vector<64x20xf32>
    %c16_140 = arith.constant 16 : index
    %c0_141 = arith.constant 0 : index
    %c0_142 = arith.constant 0 : index
    %202 = vector.load %arg8[%c16_140, %c0_141, %c0_142] : memref<17x64x64xf32, #tpu.memory_space<vmem>>, vector<1x64x64xf32>
    %203 = vector.shape_cast %202 : vector<1x64x64xf32> to vector<64x64xf32>
    %204 = vector.extract_strided_slice %121 {offsets = [0, 16], sizes = [64, 20], strides = [1, 1]} : vector<64x36xf32> to vector<64x20xf32>
    %cst_143 = arith.constant dense<0.000000e+00> : vector<64x20xf32>
    %205 = tpu.matmul %203, %204, %cst_143 {dimension_numbers = #tpu.dot_dimension_numbers<[1], [0], [0], [1], [0, 0, 1, 1], [], []>} : vector<64x64xf32>, vector<64x20xf32>, vector<64x20xf32> -> vector<64x20xf32>
    %206 = arith.addf %201, %205 : vector<64x20xf32>
    %207 = vector.broadcast %122 : vector<64x1xf32> to vector<64x20xf32>
    %208 = arith.addf %206, %207 : vector<64x20xf32>
    %cst_144 = arith.constant 0.000000e+00 : f32
    %209 = vector.broadcast %cst_144 : f32 to vector<64x20xf32>
    %210 = arith.maximumf %208, %209 : vector<64x20xf32>
    %211 = vector.extract_strided_slice %210 {offsets = [0, 0], sizes = [64, 18], strides = [1, 1]} : vector<64x20xf32> to vector<64x18xf32>
    %212 = vector.extract_strided_slice %210 {offsets = [0, 1], sizes = [64, 18], strides = [1, 1]} : vector<64x20xf32> to vector<64x18xf32>
    %213 = arith.maximumf %211, %212 : vector<64x18xf32>
    %214 = vector.extract_strided_slice %210 {offsets = [0, 2], sizes = [64, 18], strides = [1, 1]} : vector<64x20xf32> to vector<64x18xf32>
    %215 = arith.maximumf %213, %214 : vector<64x18xf32>
    %c0_145 = arith.constant 0 : index
    %c0_146 = arith.constant 0 : index
    %216 = vector.load %arg10[%c0_145, %c0_146] : memref<18x384xf32, #tpu.memory_space<vmem>>, vector<18x384xf32>
    %cst_147 = arith.constant dense<0.000000e+00> : vector<64x384xf32>
    %217 = tpu.matmul %215, %216, %cst_147 {dimension_numbers = #tpu.dot_dimension_numbers<[1], [0], [0], [1], [0, 0, 1, 1], [], []>} : vector<64x18xf32>, vector<18x384xf32>, vector<64x384xf32> -> vector<64x384xf32>
    %c0_148 = arith.constant 0 : index
    %c0_149 = arith.constant 0 : index
    %218 = vector.load %arg11[%c0_148, %c0_149] : memref<64x384xf32, #tpu.memory_space<vmem>>, vector<64x384xf32>
    %219 = arith.mulf %217, %218 : vector<64x384xf32>
    %cst_150 = arith.constant dense<0.000000e+00> : vector<384xf32>
    %220 = vector.multi_reduction <add>, %219, %cst_150 [0] : vector<64x384xf32> to vector<384xf32>
    %221 = vector.shape_cast %220 : vector<384xf32> to vector<1x384xf32>
    %c0_151 = arith.constant 0 : index
    %c0_152 = arith.constant 0 : index
    %222 = vector.load %arg12[%c0_151, %c0_152] : memref<384x8xf32, #tpu.memory_space<vmem>>, vector<384x8xf32>
    %cst_153 = arith.constant dense<0.000000e+00> : vector<1x8xf32>
    %223 = tpu.matmul %221, %222, %cst_153 {dimension_numbers = #tpu.dot_dimension_numbers<[1], [0], [0], [1], [0, 0, 1, 1], [], []>} : vector<1x384xf32>, vector<384x8xf32>, vector<1x8xf32> -> vector<1x8xf32>
    %c0_154 = arith.constant 0 : index
    %c0_155 = arith.constant 0 : index
    %224 = vector.load %arg13[%c0_154, %c0_155] : memref<1x8xf32, #tpu.memory_space<vmem>>, vector<1x8xf32>
    %225 = arith.addf %223, %224 : vector<1x8xf32>
    %cst_156 = arith.constant dense<0xFF800000> : vector<1xf32>
    %226 = vector.multi_reduction <maximumf>, %225, %cst_156 [1] : vector<1x8xf32> to vector<1xf32>
    %227 = vector.shape_cast %226 : vector<1xf32> to vector<1x1xf32>
    %228 = vector.broadcast %227 : vector<1x1xf32> to vector<1x8xf32>
    %229 = arith.subf %225, %228 : vector<1x8xf32>
    %230 = math.exp %229 : vector<1x8xf32>
    %cst_157 = arith.constant dense<0.000000e+00> : vector<1xf32>
    %231 = vector.multi_reduction <add>, %230, %cst_157 [1] : vector<1x8xf32> to vector<1xf32>
    %232 = vector.shape_cast %231 : vector<1xf32> to vector<1x1xf32>
    %233 = vector.broadcast %232 : vector<1x1xf32> to vector<1x8xf32>
    %234 = arith.divf %230, %233 : vector<1x8xf32>
    %c0_158 = arith.constant 0 : index
    %c0_159 = arith.constant 0 : index
    %c0_160 = arith.constant 0 : index
    %235 = vector.load %arg14[%c0_158, %c0_159, %c0_160] : memref<1x1x8xf32, #tpu.memory_space<vmem>>, vector<1x1x8xf32>
    %236 = vector.shape_cast %235 : vector<1x1x8xf32> to vector<1x8xf32>
    %237 = vector.shape_cast %234 : vector<1x8xf32> to vector<1x1x8xf32>
    tpu.vector_store %arg14[%c0_158, %c0_159, %c0_160], %237 {strides = array<i32>} : memref<1x1x8xf32, #tpu.memory_space<vmem>>, vector<1x1x8xf32>,
    return
  }
  func.func @transform_0(%arg0: i32) -> (i32, i32, i32) {
    %c0_i32 = arith.constant 0 : i32
    %c0_i32_0 = arith.constant 0 : i32
    %c0_i32_1 = arith.constant 0 : i32
    return %arg0, %c0_i32, %c0_i32_0 : i32, i32, i32
  }
  func.func @transform_1(%arg0: i32) -> (i32, i32) {
    %c0_i32 = arith.constant 0 : i32
    %c0_i32_0 = arith.constant 0 : i32
    %c0_i32_1 = arith.constant 0 : i32
    return %c0_i32, %c0_i32_0 : i32, i32
  }
  func.func @transform_2(%arg0: i32) -> (i32, i32) {
    %c0_i32 = arith.constant 0 : i32
    %c0_i32_0 = arith.constant 0 : i32
    %c0_i32_1 = arith.constant 0 : i32
    return %c0_i32, %c0_i32_0 : i32, i32
  }
  func.func @transform_3(%arg0: i32) -> (i32, i32) {
    %c0_i32 = arith.constant 0 : i32
    %c0_i32_0 = arith.constant 0 : i32
    %c0_i32_1 = arith.constant 0 : i32
    return %c0_i32, %c0_i32_0 : i32, i32
  }
  func.func @transform_4(%arg0: i32) -> (i32, i32, i32) {
    %c0_i32 = arith.constant 0 : i32
    %c0_i32_0 = arith.constant 0 : i32
    %c0_i32_1 = arith.constant 0 : i32
    %c0_i32_2 = arith.constant 0 : i32
    return %c0_i32, %c0_i32_0, %c0_i32_1 : i32, i32, i32
  }
  func.func @transform_5(%arg0: i32) -> (i32, i32) {
    %c0_i32 = arith.constant 0 : i32
    %c0_i32_0 = arith.constant 0 : i32
    %c0_i32_1 = arith.constant 0 : i32
    return %c0_i32, %c0_i32_0 : i32, i32
  }
  func.func @transform_6(%arg0: i32) -> (i32, i32) {
    %c0_i32 = arith.constant 0 : i32
    %c0_i32_0 = arith.constant 0 : i32
    %c0_i32_1 = arith.constant 0 : i32
    return %c0_i32, %c0_i32_0 : i32, i32
  }
  func.func @transform_7(%arg0: i32) -> (i32, i32, i32) {
    %c0_i32 = arith.constant 0 : i32
    %c0_i32_0 = arith.constant 0 : i32
    %c0_i32_1 = arith.constant 0 : i32
    %c0_i32_2 = arith.constant 0 : i32
    return %c0_i32, %c0_i32_0, %c0_i32_1 : i32, i32, i32
  }
  func.func @transform_8(%arg0: i32) -> (i32, i32) {
    %c0_i32 = arith.constant 0 : i32
    %c0_i32_0 = arith.constant 0 : i32
    %c0_i32_1 = arith.constant 0 : i32
    return %c0_i32, %c0_i32_0 : i32, i32
  }
  func.func @transform_9(%arg0: i32) -> (i32, i32) {
    %c0_i32 = arith.constant 0 : i32
    %c0_i32_0 = arith.constant 0 : i32
    %c0_i32_1 = arith.constant 0 : i32
    return %c0_i32, %c0_i32_0 : i32, i32
  }
  func.func @transform_10(%arg0: i32) -> (i32, i32) {
    %c0_i32 = arith.constant 0 : i32
    %c0_i32_0 = arith.constant 0 : i32
    %c0_i32_1 = arith.constant 0 : i32
    return %c0_i32, %c0_i32_0 : i32, i32
  }
  func.func @transform_11(%arg0: i32) -> (i32, i32) {
    %c0_i32 = arith.constant 0 : i32
    %c0_i32_0 = arith.constant 0 : i32
    %c0_i32_1 = arith.constant 0 : i32
    return %c0_i32, %c0_i32_0 : i32, i32
  }
  func.func @transform_12(%arg0: i32) -> (i32, i32) {
    %c0_i32 = arith.constant 0 : i32
    %c0_i32_0 = arith.constant 0 : i32
    %c0_i32_1 = arith.constant 0 : i32
    return %c0_i32, %c0_i32_0 : i32, i32
  }
  func.func @transform_13(%arg0: i32) -> (i32, i32, i32) {
    %c0_i32 = arith.constant 0 : i32
    %c0_i32_0 = arith.constant 0 : i32
    %c0_i32_1 = arith.constant 0 : i32
    return %arg0, %c0_i32, %c0_i32_0 : i32, i32, i32
  }
}

</mosaic_0001>

<llo_original>
// kernel: cnn3layers_forward.1
$region0: #{cnn3layers_forward.1}
  #allocation0 [shape = 'u32[]', space=smem, size = 0x4, offset = 0x4, fixed_abs, tag = 'smem constant byte address 0x4 - core index']
  #allocation1 [shape = 'u32[144,128]{1,0:T(1,128)}', space=vmem, size = 0x12000, scoped, tag = 'internal scratch']
  %s0 = inlined_call_operand.vmem [shape: f32[2,21,380], index: 0, kind: input, shape index: {}]
  %s1 = inlined_call_operand.vmem [shape: f32[64,21], index: 1, kind: input, shape index: {}]
  %s2 = inlined_call_operand.vmem [shape: f32[64,1], index: 2, kind: input, shape index: {}]
  %s3 = inlined_call_operand.hbm [shape: f32[378,126], index: 3, kind: input, shape index: {}]
  %s4 = inlined_call_operand.vmem [shape: f32[19,64,64], index: 4, kind: input, shape index: {}]
  %s5 = inlined_call_operand.vmem [shape: f32[64,1], index: 5, kind: input, shape index: {}]
  %s6 = inlined_call_operand.vmem [shape: f32[106,36], index: 6, kind: input, shape index: {}]
  %s7 = inlined_call_operand.hbm [shape: f32[17,64,64], index: 7, kind: input, shape index: {}]
  %s8 = inlined_call_operand.vmem [shape: f32[64,1], index: 8, kind: input, shape index: {}]
  %s9 = inlined_call_operand.hbm [shape: f32[18,384], index: 9, kind: input, shape index: {}]
  %s10 = inlined_call_operand.vmem [shape: f32[64,384], index: 10, kind: input, shape index: {}]
  %s11 = inlined_call_operand.vmem [shape: f32[384,8], index: 11, kind: input, shape index: {}]
  %s12 = inlined_call_operand.vmem [shape: f32[1,8], index: 12, kind: input, shape index: {}]
  %s13 = inlined_call_operand.hbm [shape: f32[2,1,8], index: 13, kind: output, shape index: {}]
  %s14 = sld [smem:[#allocation0]]
  $region97: #{cnn3layers_forward.1} parent=0
    _
  %s16 = ssub.s32 1, %s14
  %s17 = scalar_select 0, %s16, %s14
  $region1: #{cnn3layers_forward.1} parent=0
    #allocation2 [shape = 'u8[196608]{0}', space=vmem, size = 0x30000, scoped, tag = 'input window, operand 3, single buffered']
    #allocation3 [shape = 's32[2]{0}', space=sflag, size = 0x8, scoped, tag = 'scoped memory for cnn3layers_forward.1']
    #allocation4 [shape = 's32[2]{0}', space=sflag, size = 0x8, scoped, tag = 'scoped memory for cnn3layers_forward.1']
    #allocation5 [shape = 'u8[557056]{0}', space=vmem, size = 0x88000, scoped, tag = 'input window, operand 7, single buffered']
    #allocation6 [shape = 's32[1]{0}', space=sflag, size = 0x4, scoped, tag = 'scoped memory for cnn3layers_forward.1']
    #allocation7 [shape = 'u8[36864]{0}', space=vmem, size = 0x9000, scoped, tag = 'input window, operand 9, single buffered']
    #allocation8 [shape = 'u8[1024]{0}', space=vmem, size = 0x400, scoped, tag = 'output window, operand 0']
    %18 = vsyncpa [#allocation3], 0
    %19 = vsyncpa [#allocation6], 0
    %20 = vsyncpa [#allocation4], 0
    %s21 = scalar_lea.sflag [#allocation4], 1
    %22 = vsyncpa %s21, 0
    loop: start=0, step=1, limit=4
    $region2: #{cnn3layers_forward.1} parent=1 // loop_pre_header
      _
    $region3: #{cnn3layers_forward.1} parent=1 // loop_header
      %s24 = sphi 0, %s28
      %p25 = scmp.ge.s32.totalorder %s24, 4
      %s34 = sphi 0, %s36
      %s37 = sphi 0, %s34
      %s38 = sphi 0, %s37
      %s54 = sphi 0, %s38
      %s58 = sphi 0, %s58
      %s60 = sphi 0, %s58
      %s61 = sphi 0, %s60
      %s75 = sphi 0, %s61
      %s79 = sphi 0, %s79
      %s81 = sphi 0, %s79
      %s82 = sphi 0, %s81
      %s96 = sphi 0, %s82
      %s100 = sphi 0, %s100
      %s102 = sphi 0, %s100
      %s103 = sphi 0, %s102
      %s117 = sphi 0, %s103
      %s121 = sphi 0, %s121
      %s123 = sphi 0, %s121
      %s124 = sphi 0, %s123
      %s138 = sphi 0, %s124
      %s142 = sphi 0, %s142
      %s144 = sphi 0, %s142
      %s145 = sphi 0, %s144
      %s159 = sphi 0, %s145
      %s163 = sphi 0, %s163
      %s165 = sphi 0, %s163
      %s166 = sphi 0, %s165
      %s180 = sphi 0, %s166
      %s184 = sphi 0, %s184
      %s186 = sphi 0, %s184
      %s187 = sphi 0, %s186
      %s201 = sphi 0, %s187
      %s205 = sphi 0, %s205
      %s207 = sphi 0, %s205
      %s208 = sphi 0, %s207
      %s222 = sphi 0, %s208
      %s226 = sphi 0, %s226
      %s228 = sphi 0, %s226
      %s229 = sphi 0, %s228
      %s243 = sphi 0, %s229
      %s247 = sphi 0, %s247
      %s249 = sphi 0, %s247
      %s250 = sphi 0, %s249
      %s264 = sphi 0, %s250
      %s268 = sphi 0, %s268
      %s270 = sphi 0, %s268
      %s271 = sphi 0, %s270
      %s285 = sphi 0, %s271
      %s289 = sphi 0, %s289
      %s291 = sphi 0, %s289
      %s292 = sphi 0, %s291
      %s306 = sphi 0, %s292
      %s312 = sphi 0, %s314
      %s315 = sphi 0, %s312
      %s316 = sphi 0, %s315
      %s332 = sphi 0, %s316
    $region4: #{cnn3layers_forward.1} parent=1 // loop_header_branch
      %27 = sbr.rel (%p25) target = $region8
    $region5: #{cnn3layers_forward.1} parent=1 // loop_body
      %s29 = ssub.s32 %s24, 1
      %s30 = ssub.s32 %s24, 2
      %s31 = sadd.s32 %s24, 1
      %s32 = ssub.s32 %s24, %s31
      %p33 = scmp.eq.s32.totalorder %s32, 0
      %s35 = sadd.s32 %s34, 1
      %s36 = scalar_select %p33, %s34, %s35
      %p39 = pneg %p33
      %p40 = scmp.eq.s32.totalorder %s24, 1
      %p41 = por %p39, %p40
      %p42 = scmp.ne.s32.totalorder %s34, %s37
      %p43 = scmp.eq.s32.totalorder %s24, 0
      %p44 = por %p42, %p43
      %p45 = scmp.ne.s32.totalorder %s34, %s37
      %p46 = scmp.eq.s32.totalorder %s29, 1
      %p47 = por %p45, %p46
      %p48 = scmp.ne.s32.totalorder %s37, %s38
      %p49 = scmp.eq.s32.totalorder %s29, 0
      %p50 = por %p48, %p49
      %p51 = scmp.ne.s32.totalorder %s37, %s38
      %p52 = scmp.eq.s32.totalorder %s30, 1
      %p53 = por %p51, %p52
      %p55 = scmp.ne.s32.totalorder %s38, %s54
      %p56 = scmp.eq.s32.totalorder %s30, 0
      %p57 = por %p55, %p56
      %s59 = sadd.s32 %s58, 1
      %p62 = scmp.eq.s32.totalorder %s24, 1
      %p63 = scmp.ne.s32.totalorder %s58, %s60
      %p64 = scmp.eq.s32.totalorder %s24, 0
      %p65 = por %p63, %p64
      %p66 = scmp.ne.s32.totalorder %s58, %s60
      %p67 = scmp.eq.s32.totalorder %s29, 1
      %p68 = por %p66, %p67
      %p69 = scmp.ne.s32.totalorder %s60, %s61
      %p70 = scmp.eq.s32.totalorder %s29, 0
      %p71 = por %p69, %p70
      %p72 = scmp.ne.s32.totalorder %s60, %s61
      %p73 = scmp.eq.s32.totalorder %s30, 1
      %p74 = por %p72, %p73
      %p76 = scmp.ne.s32.totalorder %s61, %s75
      %p77 = scmp.eq.s32.totalorder %s30, 0
      %p78 = por %p76, %p77
      %s80 = sadd.s32 %s79, 1
      %p83 = scmp.eq.s32.totalorder %s24, 1
      %p84 = scmp.ne.s32.totalorder %s79, %s81
      %p85 = scmp.eq.s32.totalorder %s24, 0
      %p86 = por %p84, %p85
      %p87 = scmp.ne.s32.totalorder %s79, %s81
      %p88 = scmp.eq.s32.totalorder %s29, 1
      %p89 = por %p87, %p88
      %p90 = scmp.ne.s32.totalorder %s81, %s82
      %p91 = scmp.eq.s32.totalorder %s29, 0
      %p92 = por %p90, %p91
      %p93 = scmp.ne.s32.totalorder %s81, %s82
      %p94 = scmp.eq.s32.totalorder %s30, 1
      %p95 = por %p93, %p94
      %p97 = scmp.ne.s32.totalorder %s82, %s96
      %p98 = scmp.eq.s32.totalorder %s30, 0
      %p99 = por %p97, %p98
      %s101 = sadd.s32 %s100, 1
      %p104 = scmp.eq.s32.totalorder %s24, 1
      %p105 = scmp.ne.s32.totalorder %s100, %s102
      %p106 = scmp.eq.s32.totalorder %s24, 0
      %p107 = por %p105, %p106
      %p108 = scmp.ne.s32.totalorder %s100, %s102
      %p109 = scmp.eq.s32.totalorder %s29, 1
      %p110 = por %p108, %p109
      %p111 = scmp.ne.s32.totalorder %s102, %s103
      %p112 = scmp.eq.s32.totalorder %s29, 0
      %p113 = por %p111, %p112
      %p114 = scmp.ne.s32.totalorder %s102, %s103
      %p115 = scmp.eq.s32.totalorder %s30, 1
      %p116 = por %p114, %p115
      %p118 = scmp.ne.s32.totalorder %s103, %s117
      %p119 = scmp.eq.s32.totalorder %s30, 0
      %p120 = por %p118, %p119
      %s122 = sadd.s32 %s121, 1
      %p125 = scmp.eq.s32.totalorder %s24, 1
      %p126 = scmp.ne.s32.totalorder %s121, %s123
      %p127 = scmp.eq.s32.totalorder %s24, 0
      %p128 = por %p126, %p127
      %p129 = scmp.ne.s32.totalorder %s121, %s123
      %p130 = scmp.eq.s32.totalorder %s29, 1
      %p131 = por %p129, %p130
      %p132 = scmp.ne.s32.totalorder %s123, %s124
      %p133 = scmp.eq.s32.totalorder %s29, 0
      %p134 = por %p132, %p133
      %p135 = scmp.ne.s32.totalorder %s123, %s124
      %p136 = scmp.eq.s32.totalorder %s30, 1
      %p137 = por %p135, %p136
      %p139 = scmp.ne.s32.totalorder %s124, %s138
      %p140 = scmp.eq.s32.totalorder %s30, 0
      %p141 = por %p139, %p140
      %s143 = sadd.s32 %s142, 1
      %p146 = scmp.eq.s32.totalorder %s24, 1
      %p147 = scmp.ne.s32.totalorder %s142, %s144
      %p148 = scmp.eq.s32.totalorder %s24, 0
      %p149 = por %p147, %p148
      %p150 = scmp.ne.s32.totalorder %s142, %s144
      %p151 = scmp.eq.s32.totalorder %s29, 1
      %p152 = por %p150, %p151
      %p153 = scmp.ne.s32.totalorder %s144, %s145
      %p154 = scmp.eq.s32.totalorder %s29, 0
      %p155 = por %p153, %p154
      %p156 = scmp.ne.s32.totalorder %s144, %s145
      %p157 = scmp.eq.s32.totalorder %s30, 1
      %p158 = por %p156, %p157
      %p160 = scmp.ne.s32.totalorder %s145, %s159
      %p161 = scmp.eq.s32.totalorder %s30, 0
      %p162 = por %p160, %p161
      %s164 = sadd.s32 %s163, 1
      %p167 = scmp.eq.s32.totalorder %s24, 1
      %p168 = scmp.ne.s32.totalorder %s163, %s165
      %p169 = scmp.eq.s32.totalorder %s24, 0
      %p170 = por %p168, %p169
      %p171 = scmp.ne.s32.totalorder %s163, %s165
      %p172 = scmp.eq.s32.totalorder %s29, 1
      %p173 = por %p171, %p172
      %p174 = scmp.ne.s32.totalorder %s165, %s166
      %p175 = scmp.eq.s32.totalorder %s29, 0
      %p176 = por %p174, %p175
      %p177 = scmp.ne.s32.totalorder %s165, %s166
      %p178 = scmp.eq.s32.totalorder %s30, 1
      %p179 = por %p177, %p178
      %p181 = scmp.ne.s32.totalorder %s166, %s180
      %p182 = scmp.eq.s32.totalorder %s30, 0
      %p183 = por %p181, %p182
      %s185 = sadd.s32 %s184, 1
      %p188 = scmp.eq.s32.totalorder %s24, 1
      %p189 = scmp.ne.s32.totalorder %s184, %s186
      %p190 = scmp.eq.s32.totalorder %s24, 0
      %p191 = por %p189, %p190
      %p192 = scmp.ne.s32.totalorder %s184, %s186
      %p193 = scmp.eq.s32.totalorder %s29, 1
      %p194 = por %p192, %p193
      %p195 = scmp.ne.s32.totalorder %s186, %s187
      %p196 = scmp.eq.s32.totalorder %s29, 0
      %p197 = por %p195, %p196
      %p198 = scmp.ne.s32.totalorder %s186, %s187
      %p199 = scmp.eq.s32.totalorder %s30, 1
      %p200 = por %p198, %p199
      %p202 = scmp.ne.s32.totalorder %s187, %s201
      %p203 = scmp.eq.s32.totalorder %s30, 0
      %p204 = por %p202, %p203
      %s206 = sadd.s32 %s205, 1
      %p209 = scmp.eq.s32.totalorder %s24, 1
      %p210 = scmp.ne.s32.totalorder %s205, %s207
      %p211 = scmp.eq.s32.totalorder %s24, 0
      %p212 = por %p210, %p211
      %p213 = scmp.ne.s32.totalorder %s205, %s207
      %p214 = scmp.eq.s32.totalorder %s29, 1
      %p215 = por %p213, %p214
      %p216 = scmp.ne.s32.totalorder %s207, %s208
      %p217 = scmp.eq.s32.totalorder %s29, 0
      %p218 = por %p216, %p217
      %p219 = scmp.ne.s32.totalorder %s207, %s208
      %p220 = scmp.eq.s32.totalorder %s30, 1
      %p221 = por %p219, %p220
      %p223 = scmp.ne.s32.totalorder %s208, %s222
      %p224 = scmp.eq.s32.totalorder %s30, 0
      %p225 = por %p223, %p224
      %s227 = sadd.s32 %s226, 1
      %p230 = scmp.eq.s32.totalorder %s24, 1
      %p231 = scmp.ne.s32.totalorder %s226, %s228
      %p232 = scmp.eq.s32.totalorder %s24, 0
      %p233 = por %p231, %p232
      %p234 = scmp.ne.s32.totalorder %s226, %s228
      %p235 = scmp.eq.s32.totalorder %s29, 1
      %p236 = por %p234, %p235
      %p237 = scmp.ne.s32.totalorder %s228, %s229
      %p238 = scmp.eq.s32.totalorder %s29, 0
      %p239 = por %p237, %p238
      %p240 = scmp.ne.s32.totalorder %s228, %s229
      %p241 = scmp.eq.s32.totalorder %s30, 1
      %p242 = por %p240, %p241
      %p244 = scmp.ne.s32.totalorder %s229, %s243
      %p245 = scmp.eq.s32.totalorder %s30, 0
      %p246 = por %p244, %p245
      %s248 = sadd.s32 %s247, 1
      %p251 = scmp.eq.s32.totalorder %s24, 1
      %p252 = scmp.ne.s32.totalorder %s247, %s249
      %p253 = scmp.eq.s32.totalorder %s24, 0
      %p254 = por %p252, %p253
      %p255 = scmp.ne.s32.totalorder %s247, %s249
      %p256 = scmp.eq.s32.totalorder %s29, 1
      %p257 = por %p255, %p256
      %p258 = scmp.ne.s32.totalorder %s249, %s250
      %p259 = scmp.eq.s32.totalorder %s29, 0
      %p260 = por %p258, %p259
      %p261 = scmp.ne.s32.totalorder %s249, %s250
      %p262 = scmp.eq.s32.totalorder %s30, 1
      %p263 = por %p261, %p262
      %p265 = scmp.ne.s32.totalorder %s250, %s264
      %p266 = scmp.eq.s32.totalorder %s30, 0
      %p267 = por %p265, %p266
      %s269 = sadd.s32 %s268, 1
      %p272 = scmp.eq.s32.totalorder %s24, 1
      %p273 = scmp.ne.s32.totalorder %s268, %s270
      %p274 = scmp.eq.s32.totalorder %s24, 0
      %p275 = por %p273, %p274
      %p276 = scmp.ne.s32.totalorder %s268, %s270
      %p277 = scmp.eq.s32.totalorder %s29, 1
      %p278 = por %p276, %p277
      %p279 = scmp.ne.s32.totalorder %s270, %s271
      %p280 = scmp.eq.s32.totalorder %s29, 0
      %p281 = por %p279, %p280
      %p282 = scmp.ne.s32.totalorder %s270, %s271
      %p283 = scmp.eq.s32.totalorder %s30, 1
      %p284 = por %p282, %p283
      %p286 = scmp.ne.s32.totalorder %s271, %s285
      %p287 = scmp.eq.s32.totalorder %s30, 0
      %p288 = por %p286, %p287
      %s290 = sadd.s32 %s289, 1
      %p293 = scmp.eq.s32.totalorder %s24, 1
      %p294 = scmp.ne.s32.totalorder %s289, %s291
      %p295 = scmp.eq.s32.totalorder %s24, 0
      %p296 = por %p294, %p295
      %p297 = scmp.ne.s32.totalorder %s289, %s291
      %p298 = scmp.eq.s32.totalorder %s29, 1
      %p299 = por %p297, %p298
      %p300 = scmp.ne.s32.totalorder %s291, %s292
      %p301 = scmp.eq.s32.totalorder %s29, 0
      %p302 = por %p300, %p301
      %p303 = scmp.ne.s32.totalorder %s291, %s292
      %p304 = scmp.eq.s32.totalorder %s30, 1
      %p305 = por %p303, %p304
      %p307 = scmp.ne.s32.totalorder %s292, %s306
      %p308 = scmp.eq.s32.totalorder %s30, 0
      %p309 = por %p307, %p308
      %s310 = ssub.s32 %s24, %s31
      %p311 = scmp.eq.s32.totalorder %s310, 0
      %s313 = sadd.s32 %s312, 1
      %s314 = scalar_select %p311, %s312, %s313
      %p317 = pneg %p311
      %p318 = scmp.eq.s32.totalorder %s24, 1
      %p319 = por %p317, %p318
      %p320 = scmp.ne.s32.totalorder %s312, %s315
      %p321 = scmp.eq.s32.totalorder %s24, 0
      %p322 = por %p320, %p321
      %p323 = scmp.ne.s32.totalorder %s312, %s315
      %p324 = scmp.eq.s32.totalorder %s29, 1
      %p325 = por %p323, %p324
      %p326 = scmp.ne.s32.totalorder %s315, %s316
      %p327 = scmp.eq.s32.totalorder %s29, 0
      %p328 = por %p326, %p327
      %p329 = scmp.ne.s32.totalorder %s315, %s316
      %p330 = scmp.eq.s32.totalorder %s30, 1
      %p331 = por %p329, %p330
      %p333 = scmp.ne.s32.totalorder %s316, %s332
      %p334 = scmp.eq.s32.totalorder %s30, 0
      %p335 = por %p333, %p334
      %p336 = scmp.le.s32.totalorder 1, %s24
      %p337 = scmp.lt.s32.totalorder %s24, 3
      %p338 = pnand %p336, %p337
      %p339 = pneg %p338
      // Predicated region
      $region9: #{cnn3layers_forward.1} parent=5 // pred_check
        _
      $region10: #{cnn3layers_forward.1} parent=5 // pred_check_branch
        %341 = sbr.rel (%p338) target = $region12
      $region11: #{cnn3layers_forward.1} parent=5 // pred_region
        %s342 = ssub.s32 %s24, 1
        // Predicated region
        $region13: #{cnn3layers_forward.1} parent=11 // pred_check
          %p343 = pneg %p71
        $region14: #{cnn3layers_forward.1} parent=11 // pred_check_branch
          %345 = sbr.rel (%p343) target = $region16
        $region15: #{cnn3layers_forward.1} parent=11 // pred_region
          _
        $region16: #{cnn3layers_forward.1} parent=11 // pred_fallthru
          _
        // Predicated region
        $region17: #{cnn3layers_forward.1} parent=11 // pred_check
          %p346 = pneg %p92
        $region18: #{cnn3layers_forward.1} parent=11 // pred_check_branch
          %348 = sbr.rel (%p346) target = $region20
        $region19: #{cnn3layers_forward.1} parent=11 // pred_region
          _
        $region20: #{cnn3layers_forward.1} parent=11 // pred_fallthru
          _
        // Predicated region
        $region21: #{cnn3layers_forward.1} parent=11 // pred_check
          %p349 = pneg %p113
        $region22: #{cnn3layers_forward.1} parent=11 // pred_check_branch
          %351 = sbr.rel (%p349) target = $region24
        $region23: #{cnn3layers_forward.1} parent=11 // pred_region
          %s353 = ssub.s32 6144, 6144
          %354 = vsyncadd [#allocation3], %s353
          %s355 = sshll.u32 [#allocation2], 4
          %s356 = int_to_ptr.vmem [resolvable:$true] %s355
          %361 = dma.hbm_to_vmem [thread:$0]  %s3, 6144, %s356, [#allocation3], 128, 128, 8
        $region24: #{cnn3layers_forward.1} parent=11 // pred_fallthru
          _
        // Predicated region
        $region25: #{cnn3layers_forward.1} parent=11 // pred_check
          %p362 = pneg %p134
        $region26: #{cnn3layers_forward.1} parent=11 // pred_check_branch
          %364 = sbr.rel (%p362) target = $region28
        $region27: #{cnn3layers_forward.1} parent=11 // pred_region
          _
        $region28: #{cnn3layers_forward.1} parent=11 // pred_fallthru
          _
        // Predicated region
        $region29: #{cnn3layers_forward.1} parent=11 // pred_check
          %p365 = pneg %p155
        $region30: #{cnn3layers_forward.1} parent=11 // pred_check_branch
          %367 = sbr.rel (%p365) target = $region32
        $region31: #{cnn3layers_forward.1} parent=11 // pred_region
          _
        $region32: #{cnn3layers_forward.1} parent=11 // pred_fallthru
          _
        // Predicated region
        $region33: #{cnn3layers_forward.1} parent=11 // pred_check
          %p368 = pneg %p176
        $region34: #{cnn3layers_forward.1} parent=11 // pred_check_branch
          %370 = sbr.rel (%p368) target = $region36
        $region35: #{cnn3layers_forward.1} parent=11 // pred_region
          _
        $region36: #{cnn3layers_forward.1} parent=11 // pred_fallthru
          _
        // Predicated region
        $region37: #{cnn3layers_forward.1} parent=11 // pred_check
          %p371 = pneg %p197
        $region38: #{cnn3layers_forward.1} parent=11 // pred_check_branch
          %373 = sbr.rel (%p371) target = $region40
        $region39: #{cnn3layers_forward.1} parent=11 // pred_region
          %s375 = ssub.s32 17408, 17408
          %376 = vsyncadd [#allocation6], %s375
          %s377 = sshll.u32 [#allocation5], 4
          %s378 = int_to_ptr.vmem [resolvable:$true] %s377
          %383 = dma.hbm_to_vmem [thread:$0]  %s7, 17408, %s378, [#allocation6], 128, 128, 8
        $region40: #{cnn3layers_forward.1} parent=11 // pred_fallthru
          _
        // Predicated region
        $region41: #{cnn3layers_forward.1} parent=11 // pred_check
          %p384 = pneg %p218
        $region42: #{cnn3layers_forward.1} parent=11 // pred_check_branch
          %386 = sbr.rel (%p384) target = $region44
        $region43: #{cnn3layers_forward.1} parent=11 // pred_region
          _
        $region44: #{cnn3layers_forward.1} parent=11 // pred_fallthru
          _
        // Predicated region
        $region45: #{cnn3layers_forward.1} parent=11 // pred_check
          %p387 = pneg %p239
        $region46: #{cnn3layers_forward.1} parent=11 // pred_check_branch
          %389 = sbr.rel (%p387) target = $region48
        $region47: #{cnn3layers_forward.1} parent=11 // pred_region
          %s391 = ssub.s32 1152, 1152
          %392 = vsyncadd [#allocation6], %s391
          %s393 = sshll.u32 [#allocation7], 4
          %s394 = int_to_ptr.vmem [resolvable:$true] %s393
          %399 = dma.hbm_to_vmem [thread:$0]  %s9, 1152, %s394, [#allocation6], 384, 384, 24
        $region48: #{cnn3layers_forward.1} parent=11 // pred_fallthru
          _
        // Predicated region
        $region49: #{cnn3layers_forward.1} parent=11 // pred_check
          %p400 = pneg %p260
        $region50: #{cnn3layers_forward.1} parent=11 // pred_check_branch
          %402 = sbr.rel (%p400) target = $region52
        $region51: #{cnn3layers_forward.1} parent=11 // pred_region
          _
        $region52: #{cnn3layers_forward.1} parent=11 // pred_fallthru
          _
        // Predicated region
        $region53: #{cnn3layers_forward.1} parent=11 // pred_check
          %p403 = pneg %p281
        $region54: #{cnn3layers_forward.1} parent=11 // pred_check_branch
          %405 = sbr.rel (%p403) target = $region56
        $region55: #{cnn3layers_forward.1} parent=11 // pred_region
          _
        $region56: #{cnn3layers_forward.1} parent=11 // pred_fallthru
          _
        // Predicated region
        $region57: #{cnn3layers_forward.1} parent=11 // pred_check
          %p406 = pneg %p302
        $region58: #{cnn3layers_forward.1} parent=11 // pred_check_branch
          %408 = sbr.rel (%p406) target = $region60
        $region59: #{cnn3layers_forward.1} parent=11 // pred_region
          _
        $region60: #{cnn3layers_forward.1} parent=11 // pred_fallthru
          _
      $region12: #{cnn3layers_forward.1} parent=5 // pred_fallthru
        _
      %p409 = scmp.lt.s32.totalorder %s24, 2
      // Predicated region
      $region61: #{cnn3layers_forward.1} parent=5 // pred_check
        %p410 = pneg %p409
      $region62: #{cnn3layers_forward.1} parent=5 // pred_check_branch
        %412 = sbr.rel (%p410) target = $region64
      $region63: #{cnn3layers_forward.1} parent=5 // pred_region
        // Predicated region
        $region65: #{cnn3layers_forward.1} parent=63 // pred_check
          %p413 = pneg %p44
        $region66: #{cnn3layers_forward.1} parent=63 // pred_check_branch
          %415 = sbr.rel (%p413) target = $region68
        $region67: #{cnn3layers_forward.1} parent=63 // pred_region
          %p416 = scmp.lt.s32.totalorder %s24, 1
          %s417 = scalar_select %p416, %s24, 1
          %s418 = smul.addr %s417, 9
          %s419 = smul.addr %s418, 8
          %s420 = scalar_lea.vmem %s0, %s419
        $region68: #{cnn3layers_forward.1} parent=63 // pred_fallthru
          _
      $region64: #{cnn3layers_forward.1} parent=5 // pred_fallthru
        _
      %p421 = scmp.le.s32.totalorder 1, %s24
      %p422 = scmp.lt.s32.totalorder %s24, 3
      %p423 = pnand %p421, %p422
      %p424 = pneg %p423
      // Predicated region
      $region69: #{cnn3layers_forward.1} parent=5 // pred_check
        _
      $region70: #{cnn3layers_forward.1} parent=5 // pred_check_branch
        %426 = sbr.rel (%p423) target = $region72
      $region71: #{cnn3layers_forward.1} parent=5 // pred_region
        %s427 = ssub.s32 %s24, 1
        // Predicated region
        $region73: #{cnn3layers_forward.1} parent=71 // pred_check
          %p428 = pneg %p113
        $region74: #{cnn3layers_forward.1} parent=71 // pred_check_branch
          %430 = sbr.rel (%p428) target = $region76
        $region75: #{cnn3layers_forward.1} parent=71 // pred_region
          %431 = dma.done [#allocation3], 6144
        $region76: #{cnn3layers_forward.1} parent=71 // pred_fallthru
          _
        // Predicated region
        $region77: #{cnn3layers_forward.1} parent=71 // pred_check
          %p432 = pneg %p197
        $region78: #{cnn3layers_forward.1} parent=71 // pred_check_branch
          %434 = sbr.rel (%p432) target = $region80
        $region79: #{cnn3layers_forward.1} parent=71 // pred_region
          %435 = dma.done [#allocation6], 17408
        $region80: #{cnn3layers_forward.1} parent=71 // pred_fallthru
          _
        // Predicated region
        $region81: #{cnn3layers_forward.1} parent=71 // pred_check
          %p436 = pneg %p239
        $region82: #{cnn3layers_forward.1} parent=71 // pred_check_branch
          %438 = sbr.rel (%p436) target = $region84
        $region83: #{cnn3layers_forward.1} parent=71 // pred_region
          %439 = dma.done [#allocation6], 1152
        $region84: #{cnn3layers_forward.1} parent=71 // pred_fallthru
          _
        %p440 = scmp.lt.s32.totalorder %s29, 1
        %s441 = scalar_select %p440, %s29, 1
        %s442 = smul.addr %s441, 9
        %s443 = smul.addr %s442, 8
        %s444 = scalar_lea.vmem %s0, %s443
        %p445 = pneg %p50
        %p446 = pneg %p47
        %p447 = pneg %p71
        %p448 = pneg %p68
        %p449 = pneg %p92
        %p450 = pneg %p89
        %p451 = pneg %p113
        %p452 = pneg %p110
        %p453 = pneg %p134
        %p454 = pneg %p131
        %p455 = pneg %p155
        %p456 = pneg %p152
        %p457 = pneg %p176
        %p458 = pneg %p173
        %p459 = pneg %p197
        %p460 = pneg %p194
        %p461 = pneg %p218
        %p462 = pneg %p215
        %p463 = pneg %p239
        %p464 = pneg %p236
        %p465 = pneg %p260
        %p466 = pneg %p257
        %p467 = pneg %p281
        %p468 = pneg %p278
        %p469 = pneg %p302
        %p470 = pneg %p299
        %p471 = pneg %p328
        %p472 = pneg %p325
        %s473 = sand.u32 %s315, 1
        %s474 = scalar_lea.sflag [#allocation4], %s473
        %s475 = sand.u32 %s315, 1
        %s476 = scalar_lea.vmem [#allocation8], %s475
        %p477 = scmp.lt.s32.totalorder %s29, 1
        %s478 = scalar_select %p477, %s29, 1
        %s479 = smul.addr %s478, 9
        %s480 = smul.addr %s479, 8
        %s481 = scalar_lea.vmem %s0, %s480
        %v482 = vld [vmem:[%s1] sm:$0xff]
        %v483 = vld [vmem:[%s1 + $0x8] sm:$0xff]
        %v484 = vld [vmem:[%s1 + $0x10] sm:$0xff]
        %v485 = vld [vmem:[%s1 + $0x18] sm:$0xff]
        %v486 = vld [vmem:[%s1 + $0x20] sm:$0xff]
        %v487 = vld [vmem:[%s1 + $0x28] sm:$0xff]
        %v488 = vld [vmem:[%s1 + $0x30] sm:$0xff]
        %v489 = vld [vmem:[%s1 + $0x38] sm:$0xff]
        %v490 = vld [vmem:[%s481] sm:$0xff]
        %v491 = vld [vmem:[%s481 + $0x8] sm:$0xff]
        %v492 = vld [vmem:[%s481 + $0x10] sm:$0xff]
        %v493 = vld [vmem:[%s481 + $0x18] sm:$0xff]
        %v494 = vld [vmem:[%s481 + $0x20] sm:$0xff]
        %v495 = vld [vmem:[%s481 + $0x28] sm:$0xff]
        %v496 = vld [vmem:[%s481 + $0x30] sm:$0x1f]
        %v497 = vld [vmem:[%s481 + $0x38] sm:$0x1f]
        %v498 = vld [vmem:[%s481 + $0x40] sm:$0x1f]
        %v499 = vld [vmem:[%s2] sm:$0xff]
        %v500 = vld [vmem:[%s2 + $0x8] sm:$0xff]
        %v501 = vld [vmem:[%s2 + $0x10] sm:$0xff]
        %v502 = vld [vmem:[%s2 + $0x18] sm:$0xff]
        %v503 = vld [vmem:[%s2 + $0x20] sm:$0xff]
        %v504 = vld [vmem:[%s2 + $0x28] sm:$0xff]
        %v505 = vld [vmem:[%s2 + $0x30] sm:$0xff]
        %v506 = vld [vmem:[%s2 + $0x38] sm:$0xff]
        %508 = vset.pattern.permute.xlu0 0
        %509 = vperm.xlu0 %508, %v499
        %v510 = vpop.permute.xlu0 %509
        %513 = vset.pattern.permute.xlu0 0
        %514 = vperm.xlu0 %513, %v500
        %v515 = vpop.permute.xlu0 %514
        %518 = vset.pattern.permute.xlu0 0
        %519 = vperm.xlu0 %518, %v501
        %v520 = vpop.permute.xlu0 %519
        %523 = vset.pattern.permute.xlu0 0
        %524 = vperm.xlu0 %523, %v502
        %v525 = vpop.permute.xlu0 %524
        %528 = vset.pattern.permute.xlu0 0
        %529 = vperm.xlu0 %528, %v503
        %v530 = vpop.permute.xlu0 %529
        %533 = vset.pattern.permute.xlu0 0
        %534 = vperm.xlu0 %533, %v504
        %v535 = vpop.permute.xlu0 %534
        %538 = vset.pattern.permute.xlu0 0
        %539 = vperm.xlu0 %538, %v505
        %v540 = vpop.permute.xlu0 %539
        %543 = vset.pattern.permute.xlu0 0
        %544 = vperm.xlu0 %543, %v506
        %v545 = vpop.permute.xlu0 %544
        %vm547 = vcmask 171008
        %v549 = vsel %vm547, %v482, 0
        %v552 = vsel %vm547, %v483, 0
        %v555 = vsel %vm547, %v484, 0
        %v558 = vsel %vm547, %v485, 0
        %v561 = vsel %vm547, %v486, 0
        %v564 = vsel %vm547, %v487, 0
        %v567 = vsel %vm547, %v488, 0
        %v570 = vsel %vm547, %v489, 0
        %vm572 = vcmask 1044480
        %v574 = vsel %vm572, %v496, 0
        %v577 = vsel %vm572, %v497, 0
        %v580 = vsel %vm572, %v498, 0
        %582 = vmatprep.subr.mxu0 %v491
        %583 = vmatpush1.msra.mxu0 %v490
        %584 = vmatprep.subr.mxu0 %v494
        %585 = vmatpush1.msra.mxu0 %v493
        %586 = vmatprep.subr.mxu0 %v577
        %587 = vmatpush1.msra.mxu0 %v574
        %588 = vmatprep.subr.mxu0 0.0
        %589 = vmatpush1.msra.mxu0 0.0
        %590 = vmatprep.subr.mxu0 0.0
        %591 = vmatpush1.msra.mxu0 0.0
        %592 = vmatprep.subr.mxu0 0.0
        %593 = vmatpush1.msra.mxu0 0.0
        %594 = vmatprep.subr.mxu0 0.0
        %595 = vmatpush1.msra.mxu0 0.0
        %596 = vmatprep.subr.mxu0 0.0
        %597 = vmatpush1.msra.mxu0 0.0
        %598 = vmatprep.subr.mxu0 0.0
        %599 = vmatpush1.msra.mxu0 0.0
        %600 = vmatprep.subr.mxu0 0.0
        %601 = vmatpush1.msra.mxu0 0.0
        %602 = vmatprep.subr.mxu0 0.0
        %603 = vmatpush1.msra.mxu0 0.0
        %604 = vmatprep.subr.mxu0 0.0
        %605 = vmatpush1.msra.mxu0 0.0
        %606 = vmatprep.subr.mxu0 0.0
        %607 = vmatpush1.msra.mxu0 0.0
        %608 = vmatprep.subr.mxu0 0.0
        %609 = vmatpush1.msra.mxu0 0.0
        %610 = vmatprep.subr.mxu0 0.0
        %611 = vmatpush1.msra.mxu0 0.0
        %612 = vmatprep.subr.mxu0 0.0
        %613 = vmatpush1.msra.mxu0 0.0
        %614 = vmatprep.subr.mxu0 0.0
        %615 = vmatpush1.msra.mxu0 0.0
        %616 = vmatprep.subr.mxu0 0.0
        %617 = vmatpush1.msra.mxu0 0.0
        %618 = vmatprep.subr.mxu0 0.0
        %619 = vmatpush1.msra.mxu0 0.0
        %620 = vmatprep.subr.mxu0 0.0
        %621 = vmatpush1.msra.mxu0 0.0
        %622 = vmatprep.subr.mxu0 0.0
        %623 = vmatpush1.msra.mxu0 0.0
        %624 = vmatprep.subr.mxu0 0.0
        %625 = vmatpush1.msra.mxu0 0.0
        %626 = vmatprep.subr.mxu0 0.0
        %627 = vmatpush1.msra.mxu0 0.0
        %628 = vmatprep.subr.mxu0 0.0
        %629 = vmatpush1.msra.mxu0 0.0
        %630 = vmatprep.subr.mxu0 0.0
        %631 = vmatpush1.msra.mxu0 0.0
        %632 = vmatprep.subr.mxu0 0.0
        %633 = vmatpush1.msra.mxu0 0.0
        %634 = vmatprep.subr.mxu0 0.0
        %635 = vmatpush1.msra.mxu0 0.0
        %636 = vmatprep.subr.mxu0 0.0
        %637 = vmatpush1.msra.mxu0 0.0
        %638 = vmatprep.subr.mxu0 0.0
        %639 = vmatpush1.msra.mxu0 0.0
        %640 = vmatprep.subr.mxu0 0.0
        %641 = vmatpush1.msra.mxu0 0.0
        %642 = vmatprep.subr.mxu0 0.0
        %643 = vmatpush1.msra.mxu0 0.0
        %644 = vmatprep.subr.mxu0 0.0
        %645 = vmatpush1.msra.mxu0 0.0
        %646 = vmatprep.mubr.f32.mxu0 0.0
        %647 = vmatmul.mubr.f32.gmra.mrb[0].mxu0 %v549
        %v648 = vpop.f32.mrb[0].mxu0
        %v649 = vadd.f32 %v510, %v648
        %v650 = vpop.f32.mrb[0].mxu0
        %v651 = vadd.f32 %v510, %v650
        %652 = vmatprep.mubr.f32.mxu0 0.0
        %653 = vmatmul.mubr.f32.gmra.mrb[0].mxu0 %v552
        %v654 = vpop.f32.mrb[0].mxu0
        %v655 = vadd.f32 %v515, %v654
        %v656 = vpop.f32.mrb[0].mxu0
        %v657 = vadd.f32 %v515, %v656
        %658 = vmatprep.mubr.f32.mxu0 0.0
        %659 = vmatmul.mubr.f32.gmra.mrb[0].mxu0 %v555
        %v660 = vpop.f32.mrb[0].mxu0
        %v661 = vadd.f32 %v520, %v660
        %v662 = vpop.f32.mrb[0].mxu0
        %v663 = vadd.f32 %v520, %v662
        %664 = vmatprep.mubr.f32.mxu0 0.0
        %665 = vmatmul.mubr.f32.gmra.mrb[0].mxu0 %v558
        %v666 = vpop.f32.mrb[0].mxu0
        %v667 = vadd.f32 %v525, %v666
        %v668 = vpop.f32.mrb[0].mxu0
        %v669 = vadd.f32 %v525, %v668
        %670 = vmatprep.mubr.f32.mxu0 0.0
        %671 = vmatmul.mubr.f32.gmra.mrb[0].mxu0 %v561
        %v672 = vpop.f32.mrb[0].mxu0
        %v673 = vadd.f32 %v530, %v672
        %v674 = vpop.f32.mrb[0].mxu0
        %v675 = vadd.f32 %v530, %v674
        %676 = vmatprep.mubr.f32.mxu0 0.0
        %677 = vmatmul.mubr.f32.gmra.mrb[0].mxu0 %v564
        %v678 = vpop.f32.mrb[0].mxu0
        %v679 = vadd.f32 %v535, %v678
        %v680 = vpop.f32.mrb[0].mxu0
        %v681 = vadd.f32 %v535, %v680
        %682 = vmatprep.mubr.f32.mxu0 0.0
        %683 = vmatmul.mubr.f32.gmra.mrb[0].mxu0 %v567
        %v684 = vpop.f32.mrb[0].mxu0
        %v685 = vadd.f32 %v540, %v684
        %v686 = vpop.f32.mrb[0].mxu0
        %v687 = vadd.f32 %v540, %v686
        %688 = vmatprep.mubr.f32.mxu0 0.0
        %689 = vmatmul.mubr.f32.gmra.mrb[0].mxu0 %v570
        %v690 = vpop.f32.mrb[0].mxu0
        %v691 = vadd.f32 %v545, %v690
        %v692 = vpop.f32.mrb[0].mxu0
        %v693 = vadd.f32 %v545, %v692
        %694 = vdwg.mxu0
        %695 = vmatprep.subr.mxu0 0.0
        %696 = vmatpush1.msra.mxu0 %v492
        %697 = vmatprep.subr.mxu0 0.0
        %698 = vmatpush1.msra.mxu0 %v495
        %699 = vmatprep.subr.mxu0 0.0
        %700 = vmatpush1.msra.mxu0 %v580
        %701 = vmatprep.subr.mxu0 0.0
        %702 = vmatpush1.msra.mxu0 0.0
        %703 = vmatprep.subr.mxu0 0.0
        %704 = vmatpush1.msra.mxu0 0.0
        %705 = vmatprep.subr.mxu0 0.0
        %706 = vmatpush1.msra.mxu0 0.0
        %707 = vmatprep.subr.mxu0 0.0
        %708 = vmatpush1.msra.mxu0 0.0
        %709 = vmatprep.subr.mxu0 0.0
        %710 = vmatpush1.msra.mxu0 0.0
        %711 = vmatprep.subr.mxu0 0.0
        %712 = vmatpush1.msra.mxu0 0.0
        %713 = vmatprep.subr.mxu0 0.0
        %714 = vmatpush1.msra.mxu0 0.0
        %715 = vmatprep.subr.mxu0 0.0
        %716 = vmatpush1.msra.mxu0 0.0
        %717 = vmatprep.subr.mxu0 0.0
        %718 = vmatpush1.msra.mxu0 0.0
        %719 = vmatprep.subr.mxu0 0.0
        %720 = vmatpush1.msra.mxu0 0.0
        %721 = vmatprep.subr.mxu0 0.0
        %722 = vmatpush1.msra.mxu0 0.0
        %723 = vmatprep.subr.mxu0 0.0
        %724 = vmatpush1.msra.mxu0 0.0
        %725 = vmatprep.subr.mxu0 0.0
        %726 = vmatpush1.msra.mxu0 0.0
        %727 = vmatprep.subr.mxu0 0.0
        %728 = vmatpush1.msra.mxu0 0.0
        %729 = vmatprep.subr.mxu0 0.0
        %730 = vmatpush1.msra.mxu0 0.0
        %731 = vmatprep.subr.mxu0 0.0
        %732 = vmatpush1.msra.mxu0 0.0
        %733 = vmatprep.subr.mxu0 0.0
        %734 = vmatpush1.msra.mxu0 0.0
        %735 = vmatprep.subr.mxu0 0.0
        %736 = vmatpush1.msra.mxu0 0.0
        %737 = vmatprep.subr.mxu0 0.0
        %738 = vmatpush1.msra.mxu0 0.0
        %739 = vmatprep.subr.mxu0 0.0
        %740 = vmatpush1.msra.mxu0 0.0
        %741 = vmatprep.subr.mxu0 0.0
        %742 = vmatpush1.msra.mxu0 0.0
        %743 = vmatprep.subr.mxu0 0.0
        %744 = vmatpush1.msra.mxu0 0.0
        %745 = vmatprep.subr.mxu0 0.0
        %746 = vmatpush1.msra.mxu0 0.0
        %747 = vmatprep.subr.mxu0 0.0
        %748 = vmatpush1.msra.mxu0 0.0
        %749 = vmatprep.subr.mxu0 0.0
        %750 = vmatpush1.msra.mxu0 0.0
        %751 = vmatprep.subr.mxu0 0.0
        %752 = vmatpush1.msra.mxu0 0.0
        %753 = vmatprep.subr.mxu0 0.0
        %754 = vmatpush1.msra.mxu0 0.0
        %755 = vmatprep.subr.mxu0 0.0
        %756 = vmatpush1.msra.mxu0 0.0
        %757 = vmatprep.subr.mxu0 0.0
        %758 = vmatpush1.msra.mxu0 0.0
        %759 = vmatprep.mubr.f32.mxu0 0.0
        %760 = vmatmul.mubr.f32.gmra.mrb[0].mxu0 %v549
        %v761 = vpop.f32.mrb[0].mxu0
        %v762 = vadd.f32 %v510, %v761
        %v763 = vpop.f32.mrb[0].mxu0
        %764 = vmatprep.mubr.f32.mxu0 0.0
        %765 = vmatmul.mubr.f32.gmra.mrb[0].mxu0 %v552
        %v766 = vpop.f32.mrb[0].mxu0
        %v767 = vadd.f32 %v515, %v766
        %v768 = vpop.f32.mrb[0].mxu0
        %769 = vmatprep.mubr.f32.mxu0 0.0
        %770 = vmatmul.mubr.f32.gmra.mrb[0].mxu0 %v555
        %v771 = vpop.f32.mrb[0].mxu0
        %v772 = vadd.f32 %v520, %v771
        %v773 = vpop.f32.mrb[0].mxu0
        %774 = vmatprep.mubr.f32.mxu0 0.0
        %775 = vmatmul.mubr.f32.gmra.mrb[0].mxu0 %v558
        %v776 = vpop.f32.mrb[0].mxu0
        %v777 = vadd.f32 %v525, %v776
        %v778 = vpop.f32.mrb[0].mxu0
        %779 = vmatprep.mubr.f32.mxu0 0.0
        %780 = vmatmul.mubr.f32.gmra.mrb[0].mxu0 %v561
        %v781 = vpop.f32.mrb[0].mxu0
        %v782 = vadd.f32 %v530, %v781
        %v783 = vpop.f32.mrb[0].mxu0
        %784 = vmatprep.mubr.f32.mxu0 0.0
        %785 = vmatmul.mubr.f32.gmra.mrb[0].mxu0 %v564
        %v786 = vpop.f32.mrb[0].mxu0
        %v787 = vadd.f32 %v535, %v786
        %v788 = vpop.f32.mrb[0].mxu0
        %789 = vmatprep.mubr.f32.mxu0 0.0
        %790 = vmatmul.mubr.f32.gmra.mrb[0].mxu0 %v567
        %v791 = vpop.f32.mrb[0].mxu0
        %v792 = vadd.f32 %v540, %v791
        %v793 = vpop.f32.mrb[0].mxu0
        %794 = vmatprep.mubr.f32.mxu0 0.0
        %795 = vmatmul.mubr.f32.gmra.mrb[0].mxu0 %v570
        %v796 = vpop.f32.mrb[0].mxu0
        %v797 = vadd.f32 %v545, %v796
        %v798 = vpop.f32.mrb[0].mxu0
        %799 = vdwg.mxu0
        %v800 = vmax.f32 %v649, 0.0
        %v801 = vmax.f32 %v651, 0.0
        %v802 = vmax.f32 %v762, 0.0
        %v803 = vmax.f32 %v655, 0.0
        %v804 = vmax.f32 %v657, 0.0
        %v805 = vmax.f32 %v767, 0.0
        %v806 = vmax.f32 %v661, 0.0
        %v807 = vmax.f32 %v663, 0.0
        %v808 = vmax.f32 %v772, 0.0
        %v809 = vmax.f32 %v667, 0.0
        %v810 = vmax.f32 %v669, 0.0
        %v811 = vmax.f32 %v777, 0.0
        %v812 = vmax.f32 %v673, 0.0
        %v813 = vmax.f32 %v675, 0.0
        %v814 = vmax.f32 %v782, 0.0
        %v815 = vmax.f32 %v679, 0.0
        %v816 = vmax.f32 %v681, 0.0
        %v817 = vmax.f32 %v787, 0.0
        %v818 = vmax.f32 %v685, 0.0
        %v819 = vmax.f32 %v687, 0.0
        %v820 = vmax.f32 %v792, 0.0
        %v821 = vmax.f32 %v691, 0.0
        %v822 = vmax.f32 %v693, 0.0
        %v823 = vmax.f32 %v797, 0.0
        %848 = vrot.lane.b32.xlu0 %v800, 127
        %v849 = vpop.permute.xlu0 %848
        %850 = vrot.lane.b32.xlu0 %v801, 127
        %v851 = vpop.permute.xlu0 %850
        %852 = vrot.lane.b32.xlu0 %v802, 127
        %v853 = vpop.permute.xlu0 %852
        %854 = vrot.lane.b32.xlu0 %v803, 127
        %v855 = vpop.permute.xlu0 %854
        %856 = vrot.lane.b32.xlu0 %v804, 127
        %v857 = vpop.permute.xlu0 %856
        %858 = vrot.lane.b32.xlu0 %v805, 127
        %v859 = vpop.permute.xlu0 %858
        %860 = vrot.lane.b32.xlu0 %v806, 127
        %v861 = vpop.permute.xlu0 %860
        %862 = vrot.lane.b32.xlu0 %v807, 127
        %v863 = vpop.permute.xlu0 %862
        %864 = vrot.lane.b32.xlu0 %v808, 127
        %v865 = vpop.permute.xlu0 %864
        %866 = vrot.lane.b32.xlu0 %v809, 127
        %v867 = vpop.permute.xlu0 %866
        %868 = vrot.lane.b32.xlu0 %v810, 127
        %v869 = vpop.permute.xlu0 %868
        %870 = vrot.lane.b32.xlu0 %v811, 127
        %v871 = vpop.permute.xlu0 %870
        %872 = vrot.lane.b32.xlu0 %v812, 127
        %v873 = vpop.permute.xlu0 %872
        %874 = vrot.lane.b32.xlu0 %v813, 127
        %v875 = vpop.permute.xlu0 %874
        %876 = vrot.lane.b32.xlu0 %v814, 127
        %v877 = vpop.permute.xlu0 %876
        %878 = vrot.lane.b32.xlu0 %v815, 127
        %v879 = vpop.permute.xlu0 %878
        %880 = vrot.lane.b32.xlu0 %v816, 127
        %v881 = vpop.permute.xlu0 %880
        %882 = vrot.lane.b32.xlu0 %v817, 127
        %v883 = vpop.permute.xlu0 %882
        %884 = vrot.lane.b32.xlu0 %v818, 127
        %v885 = vpop.permute.xlu0 %884
        %886 = vrot.lane.b32.xlu0 %v819, 127
        %v887 = vpop.permute.xlu0 %886
        %888 = vrot.lane.b32.xlu0 %v820, 127
        %v889 = vpop.permute.xlu0 %888
        %890 = vrot.lane.b32.xlu0 %v821, 127
        %v891 = vpop.permute.xlu0 %890
        %892 = vrot.lane.b32.xlu0 %v822, 127
        %v893 = vpop.permute.xlu0 %892
        %894 = vrot.lane.b32.xlu0 %v823, 127
        %v895 = vpop.permute.xlu0 %894
        %vm896 = vcmask 1039360
        %v897 = vsel %vm896, %v849, %v851
        %v898 = vsel %vm896, %v851, %v853
        %v899 = vsel %vm896, %v855, %v857
        %v900 = vsel %vm896, %v857, %v859
        %v901 = vsel %vm896, %v861, %v863
        %v902 = vsel %vm896, %v863, %v865
        %v903 = vsel %vm896, %v867, %v869
        %v904 = vsel %vm896, %v869, %v871
        %v905 = vsel %vm896, %v873, %v875
        %v906 = vsel %vm896, %v875, %v877
        %v907 = vsel %vm896, %v879, %v881
        %v908 = vsel %vm896, %v881, %v883
        %v909 = vsel %vm896, %v885, %v887
        %v910 = vsel %vm896, %v887, %v889
        %v911 = vsel %vm896, %v891, %v893
        %v912 = vsel %vm896, %v893, %v895
        %v937 = vmax.f32 %v800, %v897
        %v938 = vmax.f32 %v801, %v898
        %v939 = vmax.f32 %v802, %v853
        %v940 = vmax.f32 %v803, %v899
        %v941 = vmax.f32 %v804, %v900
        %v942 = vmax.f32 %v805, %v859
        %v943 = vmax.f32 %v806, %v901
        %v944 = vmax.f32 %v807, %v902
        %v945 = vmax.f32 %v808, %v865
        %v946 = vmax.f32 %v809, %v903
        %v947 = vmax.f32 %v810, %v904
        %v948 = vmax.f32 %v811, %v871
        %v949 = vmax.f32 %v812, %v905
        %v950 = vmax.f32 %v813, %v906
        %v951 = vmax.f32 %v814, %v877
        %v952 = vmax.f32 %v815, %v907
        %v953 = vmax.f32 %v816, %v908
        %v954 = vmax.f32 %v817, %v883
        %v955 = vmax.f32 %v818, %v909
        %v956 = vmax.f32 %v819, %v910
        %v957 = vmax.f32 %v820, %v889
        %v958 = vmax.f32 %v821, %v911
        %v959 = vmax.f32 %v822, %v912
        %v960 = vmax.f32 %v823, %v895
        %961 = vrot.lane.b32.xlu0 %v800, 126
        %v962 = vpop.permute.xlu0 %961
        %963 = vrot.lane.b32.xlu0 %v801, 126
        %v964 = vpop.permute.xlu0 %963
        %965 = vrot.lane.b32.xlu0 %v802, 126
        %v966 = vpop.permute.xlu0 %965
        %967 = vrot.lane.b32.xlu0 %v803, 126
        %v968 = vpop.permute.xlu0 %967
        %969 = vrot.lane.b32.xlu0 %v804, 126
        %v970 = vpop.permute.xlu0 %969
        %971 = vrot.lane.b32.xlu0 %v805, 126
        %v972 = vpop.permute.xlu0 %971
        %973 = vrot.lane.b32.xlu0 %v806, 126
        %v974 = vpop.permute.xlu0 %973
        %975 = vrot.lane.b32.xlu0 %v807, 126
        %v976 = vpop.permute.xlu0 %975
        %977 = vrot.lane.b32.xlu0 %v808, 126
        %v978 = vpop.permute.xlu0 %977
        %979 = vrot.lane.b32.xlu0 %v809, 126
        %v980 = vpop.permute.xlu0 %979
        %981 = vrot.lane.b32.xlu0 %v810, 126
        %v982 = vpop.permute.xlu0 %981
        %983 = vrot.lane.b32.xlu0 %v811, 126
        %v984 = vpop.permute.xlu0 %983
        %985 = vrot.lane.b32.xlu0 %v812, 126
        %v986 = vpop.permute.xlu0 %985
        %987 = vrot.lane.b32.xlu0 %v813, 126
        %v988 = vpop.permute.xlu0 %987
        %989 = vrot.lane.b32.xlu0 %v814, 126
        %v990 = vpop.permute.xlu0 %989
        %991 = vrot.lane.b32.xlu0 %v815, 126
        %v992 = vpop.permute.xlu0 %991
        %993 = vrot.lane.b32.xlu0 %v816, 126
        %v994 = vpop.permute.xlu0 %993
        %995 = vrot.lane.b32.xlu0 %v817, 126
        %v996 = vpop.permute.xlu0 %995
        %997 = vrot.lane.b32.xlu0 %v818, 126
        %v998 = vpop.permute.xlu0 %997
        %999 = vrot.lane.b32.xlu0 %v819, 126
        %v1000 = vpop.permute.xlu0 %999
        %1001 = vrot.lane.b32.xlu0 %v820, 126
        %v1002 = vpop.permute.xlu0 %1001
        %1003 = vrot.lane.b32.xlu0 %v821, 126
        %v1004 = vpop.permute.xlu0 %1003
        %1005 = vrot.lane.b32.xlu0 %v822, 126
        %v1006 = vpop.permute.xlu0 %1005
        %1007 = vrot.lane.b32.xlu0 %v823, 126
        %v1008 = vpop.permute.xlu0 %1007
        %vm1009 = vcmask 1031168
        %v1010 = vsel %vm1009, %v962, %v964
        %v1011 = vsel %vm1009, %v964, %v966
        %v1012 = vsel %vm1009, %v968, %v970
        %v1013 = vsel %vm1009, %v970, %v972
        %v1014 = vsel %vm1009, %v974, %v976
        %v1015 = vsel %vm1009, %v976, %v978
        %v1016 = vsel %vm1009, %v980, %v982
        %v1017 = vsel %vm1009, %v982, %v984
        %v1018 = vsel %vm1009, %v986, %v988
        %v1019 = vsel %vm1009, %v988, %v990
        %v1020 = vsel %vm1009, %v992, %v994
        %v1021 = vsel %vm1009, %v994, %v996
        %v1022 = vsel %vm1009, %v998, %v1000
        %v1023 = vsel %vm1009, %v1000, %v1002
        %v1024 = vsel %vm1009, %v1004, %v1006
        %v1025 = vsel %vm1009, %v1006, %v1008
        %v1050 = vmax.f32 %v937, %v1010
        %v1051 = vmax.f32 %v938, %v1011
        %v1052 = vmax.f32 %v939, %v966
        %v1053 = vmax.f32 %v940, %v1012
        %v1054 = vmax.f32 %v941, %v1013
        %v1055 = vmax.f32 %v942, %v972
        %v1056 = vmax.f32 %v943, %v1014
        %v1057 = vmax.f32 %v944, %v1015
        %v1058 = vmax.f32 %v945, %v978
        %v1059 = vmax.f32 %v946, %v1016
        %v1060 = vmax.f32 %v947, %v1017
        %v1061 = vmax.f32 %v948, %v984
        %v1062 = vmax.f32 %v949, %v1018
        %v1063 = vmax.f32 %v950, %v1019
        %v1064 = vmax.f32 %v951, %v990
        %v1065 = vmax.f32 %v952, %v1020
        %v1066 = vmax.f32 %v953, %v1021
        %v1067 = vmax.f32 %v954, %v996
        %v1068 = vmax.f32 %v955, %v1022
        %v1069 = vmax.f32 %v956, %v1023
        %v1070 = vmax.f32 %v957, %v1002
        %v1071 = vmax.f32 %v958, %v1024
        %v1072 = vmax.f32 %v959, %v1025
        %v1073 = vmax.f32 %v960, %v1008
        %v1074 = vld [vmem:[#allocation2] sm:$0xff]
        %v1075 = vld [vmem:[#allocation2 + $0x8] sm:$0xff]
        %v1076 = vld [vmem:[#allocation2 + $0x10] sm:$0xff]
        %v1077 = vld [vmem:[#allocation2 + $0x18] sm:$0xff]
        %v1078 = vld [vmem:[#allocation2 + $0x20] sm:$0xff]
        %v1079 = vld [vmem:[#allocation2 + $0x28] sm:$0xff]
        %v1080 = vld [vmem:[#allocation2 + $0x30] sm:$0xff]
        %v1081 = vld [vmem:[#allocation2 + $0x38] sm:$0xff]
        %v1082 = vld [vmem:[#allocation2 + $0x40] sm:$0xff]
        %v1083 = vld [vmem:[#allocation2 + $0x48] sm:$0xff]
        %v1084 = vld [vmem:[#allocation2 + $0x50] sm:$0xff]
        %v1085 = vld [vmem:[#allocation2 + $0x58] sm:$0xff]
        %v1086 = vld [vmem:[#allocation2 + $0x60] sm:$0xff]
        %v1087 = vld [vmem:[#allocation2 + $0x68] sm:$0xff]
        %v1088 = vld [vmem:[#allocation2 + $0x70] sm:$0xff]
        %v1089 = vld [vmem:[#allocation2 + $0x78] sm:$0xff]
        %v1090 = vld [vmem:[#allocation2 + $0x80] sm:$0xff]
        %v1091 = vld [vmem:[#allocation2 + $0x88] sm:$0xff]
        %v1092 = vld [vmem:[#allocation2 + $0x90] sm:$0xff]
        %v1093 = vld [vmem:[#allocation2 + $0x98] sm:$0xff]
        %v1094 = vld [vmem:[#allocation2 + $0xa0] sm:$0xff]
        %v1095 = vld [vmem:[#allocation2 + $0xa8] sm:$0xff]
        %v1096 = vld [vmem:[#allocation2 + $0xb0] sm:$0xff]
        %v1097 = vld [vmem:[#allocation2 + $0xb8] sm:$0xff]
        %v1098 = vld [vmem:[#allocation2 + $0xc0] sm:$0xff]
        %v1099 = vld [vmem:[#allocation2 + $0xc8] sm:$0xff]
        %v1100 = vld [vmem:[#allocation2 + $0xd0] sm:$0xff]
        %v1101 = vld [vmem:[#allocation2 + $0xd8] sm:$0xff]
        %v1102 = vld [vmem:[#allocation2 + $0xe0] sm:$0xff]
        %v1103 = vld [vmem:[#allocation2 + $0xe8] sm:$0xff]
        %v1104 = vld [vmem:[#allocation2 + $0xf0] sm:$0xff]
        %v1105 = vld [vmem:[#allocation2 + $0xf8] sm:$0xff]
        %v1106 = vld [vmem:[#allocation2 + $0x100] sm:$0xff]
        %v1107 = vld [vmem:[#allocation2 + $0x108] sm:$0xff]
        %v1108 = vld [vmem:[#allocation2 + $0x110] sm:$0xff]
        %v1109 = vld [vmem:[#allocation2 + $0x118] sm:$0xff]
        %v1110 = vld [vmem:[#allocation2 + $0x120] sm:$0xff]
        %v1111 = vld [vmem:[#allocation2 + $0x128] sm:$0xff]
        %v1112 = vld [vmem:[#allocation2 + $0x130] sm:$0xff]
        %v1113 = vld [vmem:[#allocation2 + $0x138] sm:$0xff]
        %v1114 = vld [vmem:[#allocation2 + $0x140] sm:$0xff]
        %v1115 = vld [vmem:[#allocation2 + $0x148] sm:$0xff]
        %v1116 = vld [vmem:[#allocation2 + $0x150] sm:$0xff]
        %v1117 = vld [vmem:[#allocation2 + $0x158] sm:$0xff]
        %v1118 = vld [vmem:[#allocation2 + $0x160] sm:$0xff]
        %v1119 = vld [vmem:[#allocation2 + $0x168] sm:$0xff]
        %v1120 = vld [vmem:[#allocation2 + $0x170] sm:$0xff]
        %v1121 = vld [vmem:[#allocation2 + $0x178] sm:$0x3]
        %vm1122 = vcmask 998400
        %v1124 = vsel %vm1122, %v1052, 0
        %v1127 = vsel %vm1122, %v1055, 0
        %v1130 = vsel %vm1122, %v1058, 0
        %v1133 = vsel %vm1122, %v1061, 0
        %v1136 = vsel %vm1122, %v1064, 0
        %v1139 = vsel %vm1122, %v1067, 0
        %v1142 = vsel %vm1122, %v1070, 0
        %v1145 = vsel %vm1122, %v1073, 0
        %vm1147 = vcmask 1041408
        %v1149 = vsel %vm1147, %v1121, 0
        %1151 = vmatprep.subr.mxu0 0.0
        %1152 = vmatpush1.msra.mxu0 %v1074
        %1153 = vmatprep.subr.mxu0 0.0
        %1154 = vmatpush1.msra.mxu0 %v1075
        %1155 = vmatprep.subr.mxu0 0.0
        %1156 = vmatpush1.msra.mxu0 %v1076
        %1157 = vmatprep.subr.mxu0 0.0
        %1158 = vmatpush1.msra.mxu0 %v1077
        %1159 = vmatprep.subr.mxu0 0.0
        %1160 = vmatpush1.msra.mxu0 %v1078
        %1161 = vmatprep.subr.mxu0 0.0
        %1162 = vmatpush1.msra.mxu0 %v1079
        %1163 = vmatprep.subr.mxu0 0.0
        %1164 = vmatpush1.msra.mxu0 %v1080
        %1165 = vmatprep.subr.mxu0 0.0
        %1166 = vmatpush1.msra.mxu0 %v1081
        %1167 = vmatprep.subr.mxu0 0.0
        %1168 = vmatpush1.msra.mxu0 %v1082
        %1169 = vmatprep.subr.mxu0 0.0
        %1170 = vmatpush1.msra.mxu0 %v1083
        %1171 = vmatprep.subr.mxu0 0.0
        %1172 = vmatpush1.msra.mxu0 %v1084
        %1173 = vmatprep.subr.mxu0 0.0
        %1174 = vmatpush1.msra.mxu0 %v1085
        %1175 = vmatprep.subr.mxu0 0.0
        %1176 = vmatpush1.msra.mxu0 %v1086
        %1177 = vmatprep.subr.mxu0 0.0
        %1178 = vmatpush1.msra.mxu0 %v1087
        %1179 = vmatprep.subr.mxu0 0.0
        %1180 = vmatpush1.msra.mxu0 %v1088
        %1181 = vmatprep.subr.mxu0 0.0
        %1182 = vmatpush1.msra.mxu0 %v1089
        %1183 = vmatprep.subr.mxu0 0.0
        %1184 = vmatpush1.msra.mxu0 %v1090
        %1185 = vmatprep.subr.mxu0 0.0
        %1186 = vmatpush1.msra.mxu0 %v1091
        %1187 = vmatprep.subr.mxu0 0.0
        %1188 = vmatpush1.msra.mxu0 %v1092
        %1189 = vmatprep.subr.mxu0 0.0
        %1190 = vmatpush1.msra.mxu0 %v1093
        %1191 = vmatprep.subr.mxu0 0.0
        %1192 = vmatpush1.msra.mxu0 %v1094
        %1193 = vmatprep.subr.mxu0 0.0
        %1194 = vmatpush1.msra.mxu0 %v1095
        %1195 = vmatprep.subr.mxu0 0.0
        %1196 = vmatpush1.msra.mxu0 %v1096
        %1197 = vmatprep.subr.mxu0 0.0
        %1198 = vmatpush1.msra.mxu0 %v1097
        %1199 = vmatprep.subr.mxu0 0.0
        %1200 = vmatpush1.msra.mxu0 %v1098
        %1201 = vmatprep.subr.mxu0 0.0
        %1202 = vmatpush1.msra.mxu0 %v1099
        %1203 = vmatprep.subr.mxu0 0.0
        %1204 = vmatpush1.msra.mxu0 %v1100
        %1205 = vmatprep.subr.mxu0 0.0
        %1206 = vmatpush1.msra.mxu0 %v1101
        %1207 = vmatprep.subr.mxu0 0.0
        %1208 = vmatpush1.msra.mxu0 %v1102
        %1209 = vmatprep.subr.mxu0 0.0
        %1210 = vmatpush1.msra.mxu0 %v1103
        %1211 = vmatprep.subr.mxu0 0.0
        %1212 = vmatpush1.msra.mxu0 %v1104
        %1213 = vmatprep.subr.mxu0 0.0
        %1214 = vmatpush1.msra.mxu0 %v1105
        %1215 = vmatprep.mubr.f32.mxu0 %v1051
        %1216 = vmatmul.mubr.f32.gmra.mrb[0].mxu0 %v1050
        %v1217 = vpop.f32.mrb[0].mxu0
        %v1218 = vadd.f32 0.0, %v1217
        %v1219 = vpop.f32.mrb[0].mxu0
        %1220 = vmatprep.mubr.f32.mxu0 %v1054
        %1221 = vmatmul.mubr.f32.gmra.mrb[0].mxu0 %v1053
        %v1222 = vpop.f32.mrb[0].mxu0
        %v1223 = vadd.f32 0.0, %v1222
        %v1224 = vpop.f32.mrb[0].mxu0
        %1225 = vmatprep.mubr.f32.mxu0 %v1057
        %1226 = vmatmul.mubr.f32.gmra.mrb[0].mxu0 %v1056
        %v1227 = vpop.f32.mrb[0].mxu0
        %v1228 = vadd.f32 0.0, %v1227
        %v1229 = vpop.f32.mrb[0].mxu0
        %1230 = vmatprep.mubr.f32.mxu0 %v1060
        %1231 = vmatmul.mubr.f32.gmra.mrb[0].mxu0 %v1059
        %v1232 = vpop.f32.mrb[0].mxu0
        %v1233 = vadd.f32 0.0, %v1232
        %v1234 = vpop.f32.mrb[0].mxu0
        %1235 = vmatprep.mubr.f32.mxu0 %v1063
        %1236 = vmatmul.mubr.f32.gmra.mrb[0].mxu0 %v1062
        %v1237 = vpop.f32.mrb[0].mxu0
        %v1238 = vadd.f32 0.0, %v1237
        %v1239 = vpop.f32.mrb[0].mxu0
        %1240 = vmatprep.mubr.f32.mxu0 %v1066
        %1241 = vmatmul.mubr.f32.gmra.mrb[0].mxu0 %v1065
        %v1242 = vpop.f32.mrb[0].mxu0
        %v1243 = vadd.f32 0.0, %v1242
        %v1244 = vpop.f32.mrb[0].mxu0
        %1245 = vmatprep.mubr.f32.mxu0 %v1069
        %1246 = vmatmul.mubr.f32.gmra.mrb[0].mxu0 %v1068
        %v1247 = vpop.f32.mrb[0].mxu0
        %v1248 = vadd.f32 0.0, %v1247
        %v1249 = vpop.f32.mrb[0].mxu0
        %1250 = vmatprep.mubr.f32.mxu0 %v1072
        %1251 = vmatmul.mubr.f32.gmra.mrb[0].mxu0 %v1071
        %v1252 = vpop.f32.mrb[0].mxu0
        %v1253 = vadd.f32 0.0, %v1252
        %v1254 = vpop.f32.mrb[0].mxu0
        %1255 = vdwg.mxu0
        %1256 = vmatprep.subr.mxu0 0.0
        %1257 = vmatpush1.msra.mxu0 %v1106
        %1258 = vmatprep.subr.mxu0 0.0
        %1259 = vmatpush1.msra.mxu0 %v1107
        %1260 = vmatprep.subr.mxu0 0.0
        %1261 = vmatpush1.msra.mxu0 %v1108
        %1262 = vmatprep.subr.mxu0 0.0
        %1263 = vmatpush1.msra.mxu0 %v1109
        %1264 = vmatprep.subr.mxu0 0.0
        %1265 = vmatpush1.msra.mxu0 %v1110
        %1266 = vmatprep.subr.mxu0 0.0
        %1267 = vmatpush1.msra.mxu0 %v1111
        %1268 = vmatprep.subr.mxu0 0.0
        %1269 = vmatpush1.msra.mxu0 %v1112
        %1270 = vmatprep.subr.mxu0 0.0
        %1271 = vmatpush1.msra.mxu0 %v1113
        %1272 = vmatprep.subr.mxu0 0.0
        %1273 = vmatpush1.msra.mxu0 %v1114
        %1274 = vmatprep.subr.mxu0 0.0
        %1275 = vmatpush1.msra.mxu0 %v1115
        %1276 = vmatprep.subr.mxu0 0.0
        %1277 = vmatpush1.msra.mxu0 %v1116
        %1278 = vmatprep.subr.mxu0 0.0
        %1279 = vmatpush1.msra.mxu0 %v1117
        %1280 = vmatprep.subr.mxu0 0.0
        %1281 = vmatpush1.msra.mxu0 %v1118
        %1282 = vmatprep.subr.mxu0 0.0
        %1283 = vmatpush1.msra.mxu0 %v1119
        %1284 = vmatprep.subr.mxu0 0.0
        %1285 = vmatpush1.msra.mxu0 %v1120
        %1286 = vmatprep.subr.mxu0 0.0
        %1287 = vmatpush1.msra.mxu0 %v1149
        %1288 = vmatprep.subr.mxu0 0.0
        %1289 = vmatpush1.msra.mxu0 0.0
        %1290 = vmatprep.subr.mxu0 0.0
        %1291 = vmatpush1.msra.mxu0 0.0
        %1292 = vmatprep.subr.mxu0 0.0
        %1293 = vmatpush1.msra.mxu0 0.0
        %1294 = vmatprep.subr.mxu0 0.0
        %1295 = vmatpush1.msra.mxu0 0.0
        %1296 = vmatprep.subr.mxu0 0.0
        %1297 = vmatpush1.msra.mxu0 0.0
        %1298 = vmatprep.subr.mxu0 0.0
        %1299 = vmatpush1.msra.mxu0 0.0
        %1300 = vmatprep.subr.mxu0 0.0
        %1301 = vmatpush1.msra.mxu0 0.0
        %1302 = vmatprep.subr.mxu0 0.0
        %1303 = vmatpush1.msra.mxu0 0.0
        %1304 = vmatprep.subr.mxu0 0.0
        %1305 = vmatpush1.msra.mxu0 0.0
        %1306 = vmatprep.subr.mxu0 0.0
        %1307 = vmatpush1.msra.mxu0 0.0
        %1308 = vmatprep.subr.mxu0 0.0
        %1309 = vmatpush1.msra.mxu0 0.0
        %1310 = vmatprep.subr.mxu0 0.0
        %1311 = vmatpush1.msra.mxu0 0.0
        %1312 = vmatprep.subr.mxu0 0.0
        %1313 = vmatpush1.msra.mxu0 0.0
        %1314 = vmatprep.subr.mxu0 0.0
        %1315 = vmatpush1.msra.mxu0 0.0
        %1316 = vmatprep.subr.mxu0 0.0
        %1317 = vmatpush1.msra.mxu0 0.0
        %1318 = vmatprep.subr.mxu0 0.0
        %1319 = vmatpush1.msra.mxu0 0.0
        %1320 = vmatprep.mubr.f32.mxu0 0.0
        %1321 = vmatmul.mubr.f32.gmra.mrb[0].mxu0 %v1124
        %v1322 = vpop.f32.mrb[0].mxu0
        %v1323 = vadd.f32 %v1218, %v1322
        %v1324 = vpop.f32.mrb[0].mxu0
        %1325 = vmatprep.mubr.f32.mxu0 0.0
        %1326 = vmatmul.mubr.f32.gmra.mrb[0].mxu0 %v1127
        %v1327 = vpop.f32.mrb[0].mxu0
        %v1328 = vadd.f32 %v1223, %v1327
        %v1329 = vpop.f32.mrb[0].mxu0
        %1330 = vmatprep.mubr.f32.mxu0 0.0
        %1331 = vmatmul.mubr.f32.gmra.mrb[0].mxu0 %v1130
        %v1332 = vpop.f32.mrb[0].mxu0
        %v1333 = vadd.f32 %v1228, %v1332
        %v1334 = vpop.f32.mrb[0].mxu0
        %1335 = vmatprep.mubr.f32.mxu0 0.0
        %1336 = vmatmul.mubr.f32.gmra.mrb[0].mxu0 %v1133
        %v1337 = vpop.f32.mrb[0].mxu0
        %v1338 = vadd.f32 %v1233, %v1337
        %v1339 = vpop.f32.mrb[0].mxu0
        %1340 = vmatprep.mubr.f32.mxu0 0.0
        %1341 = vmatmul.mubr.f32.gmra.mrb[0].mxu0 %v1136
        %v1342 = vpop.f32.mrb[0].mxu0
        %v1343 = vadd.f32 %v1238, %v1342
        %v1344 = vpop.f32.mrb[0].mxu0
        %1345 = vmatprep.mubr.f32.mxu0 0.0
        %1346 = vmatmul.mubr.f32.gmra.mrb[0].mxu0 %v1139
        %v1347 = vpop.f32.mrb[0].mxu0
        %v1348 = vadd.f32 %v1243, %v1347
        %v1349 = vpop.f32.mrb[0].mxu0
        %1350 = vmatprep.mubr.f32.mxu0 0.0
        %1351 = vmatmul.mubr.f32.gmra.mrb[0].mxu0 %v1142
        %v1352 = vpop.f32.mrb[0].mxu0
        %v1353 = vadd.f32 %v1248, %v1352
        %v1354 = vpop.f32.mrb[0].mxu0
        %1355 = vmatprep.mubr.f32.mxu0 0.0
        %1356 = vmatmul.mubr.f32.gmra.mrb[0].mxu0 %v1145
        %v1357 = vpop.f32.mrb[0].mxu0
        %v1358 = vadd.f32 %v1253, %v1357
        %v1359 = vpop.f32.mrb[0].mxu0
        %1360 = vdwg.mxu0
        %v1361 = vld [vmem:[%s5] sm:$0xff]
        %v1362 = vld [vmem:[%s5 + $0x8] sm:$0xff]
        %v1363 = vld [vmem:[%s5 + $0x10] sm:$0xff]
        %v1364 = vld [vmem:[%s5 + $0x18] sm:$0xff]
        %v1365 = vld [vmem:[%s5 + $0x20] sm:$0xff]
        %v1366 = vld [vmem:[%s5 + $0x28] sm:$0xff]
        %v1367 = vld [vmem:[%s5 + $0x30] sm:$0xff]
        %v1368 = vld [vmem:[%s5 + $0x38] sm:$0xff]
        %v1369 = vld [vmem:[%s4] sm:$0xff]
        %v1370 = vld [vmem:[%s4 + $0x8] sm:$0xff]
        %v1371 = vld [vmem:[%s4 + $0x10] sm:$0xff]
        %v1372 = vld [vmem:[%s4 + $0x18] sm:$0xff]
        %v1373 = vld [vmem:[%s4 + $0x20] sm:$0xff]
        %v1374 = vld [vmem:[%s4 + $0x28] sm:$0xff]
        %v1375 = vld [vmem:[%s4 + $0x30] sm:$0xff]
        %v1376 = vld [vmem:[%s4 + $0x38] sm:$0xff]
        %s1377 = scalar_lea.vmem %s4, 64
        %v1378 = vld [vmem:[%s1377] sm:$0xff]
        %v1379 = vld [vmem:[%s1377 + $0x8] sm:$0xff]
        %v1380 = vld [vmem:[%s1377 + $0x10] sm:$0xff]
        %v1381 = vld [vmem:[%s1377 + $0x18] sm:$0xff]
        %v1382 = vld [vmem:[%s1377 + $0x20] sm:$0xff]
        %v1383 = vld [vmem:[%s1377 + $0x28] sm:$0xff]
        %v1384 = vld [vmem:[%s1377 + $0x30] sm:$0xff]
        %v1385 = vld [vmem:[%s1377 + $0x38] sm:$0xff]
        %1394 = vrot.lane.b32.xlu0 %v1323, 127
        %v1395 = vpop.permute.xlu0 %1394
        %1396 = vrot.lane.b32.xlu0 %v1328, 127
        %v1397 = vpop.permute.xlu0 %1396
        %1398 = vrot.lane.b32.xlu0 %v1333, 127
        %v1399 = vpop.permute.xlu0 %1398
        %1400 = vrot.lane.b32.xlu0 %v1338, 127
        %v1401 = vpop.permute.xlu0 %1400
        %1402 = vrot.lane.b32.xlu0 %v1343, 127
        %v1403 = vpop.permute.xlu0 %1402
        %1404 = vrot.lane.b32.xlu0 %v1348, 127
        %v1405 = vpop.permute.xlu0 %1404
        %1406 = vrot.lane.b32.xlu0 %v1353, 127
        %v1407 = vpop.permute.xlu0 %1406
        %1408 = vrot.lane.b32.xlu0 %v1358, 127
        %v1409 = vpop.permute.xlu0 %1408
        %vm1418 = vcmask 523264
        %v1420 = vsel %vm1418, %v1378, 0
        %v1423 = vsel %vm1418, %v1379, 0
        %v1426 = vsel %vm1418, %v1380, 0
        %v1429 = vsel %vm1418, %v1381, 0
        %v1432 = vsel %vm1418, %v1382, 0
        %v1435 = vsel %vm1418, %v1383, 0
        %v1438 = vsel %vm1418, %v1384, 0
        %v1441 = vsel %vm1418, %v1385, 0
        %1443 = vmatprep.subr.mxu0 0.0
        %1444 = vmatpush1.msra.mxu0 %v1395
        %1445 = vmatprep.subr.mxu0 0.0
        %1446 = vmatpush1.msra.mxu0 %v1397
        %1447 = vmatprep.subr.mxu0 0.0
        %1448 = vmatpush1.msra.mxu0 %v1399
        %1449 = vmatprep.subr.mxu0 0.0
        %1450 = vmatpush1.msra.mxu0 %v1401
        %1451 = vmatprep.subr.mxu0 0.0
        %1452 = vmatpush1.msra.mxu0 %v1403
        %1453 = vmatprep.subr.mxu0 0.0
        %1454 = vmatpush1.msra.mxu0 %v1405
        %1455 = vmatprep.subr.mxu0 0.0
        %1456 = vmatpush1.msra.mxu0 %v1407
        %1457 = vmatprep.subr.mxu0 0.0
        %1458 = vmatpush1.msra.mxu0 %v1409
        %1459 = vmatprep.subr.mxu0 0.0
        %1460 = vmatpush1.msra.mxu0 0.0
        %1461 = vmatprep.subr.mxu0 0.0
        %1462 = vmatpush1.msra.mxu0 0.0
        %1463 = vmatprep.subr.mxu0 0.0
        %1464 = vmatpush1.msra.mxu0 0.0
        %1465 = vmatprep.subr.mxu0 0.0
        %1466 = vmatpush1.msra.mxu0 0.0
        %1467 = vmatprep.subr.mxu0 0.0
        %1468 = vmatpush1.msra.mxu0 0.0
        %1469 = vmatprep.subr.mxu0 0.0
        %1470 = vmatpush1.msra.mxu0 0.0
        %1471 = vmatprep.subr.mxu0 0.0
        %1472 = vmatpush1.msra.mxu0 0.0
        %1473 = vmatprep.subr.mxu0 0.0
        %1474 = vmatpush1.msra.mxu0 0.0
        %1475 = vmatprep.subr.mxu0 0.0
        %1476 = vmatpush1.msra.mxu0 0.0
        %1477 = vmatprep.subr.mxu0 0.0
        %1478 = vmatpush1.msra.mxu0 0.0
        %1479 = vmatprep.subr.mxu0 0.0
        %1480 = vmatpush1.msra.mxu0 0.0
        %1481 = vmatprep.subr.mxu0 0.0
        %1482 = vmatpush1.msra.mxu0 0.0
        %1483 = vmatprep.subr.mxu0 0.0
        %1484 = vmatpush1.msra.mxu0 0.0
        %1485 = vmatprep.subr.mxu0 0.0
        %1486 = vmatpush1.msra.mxu0 0.0
        %1487 = vmatprep.subr.mxu0 0.0
        %1488 = vmatpush1.msra.mxu0 0.0
        %1489 = vmatprep.subr.mxu0 0.0
        %1490 = vmatpush1.msra.mxu0 0.0
        %1491 = vmatprep.subr.mxu0 0.0
        %1492 = vmatpush1.msra.mxu0 0.0
        %1493 = vmatprep.subr.mxu0 0.0
        %1494 = vmatpush1.msra.mxu0 0.0
        %1495 = vmatprep.subr.mxu0 0.0
        %1496 = vmatpush1.msra.mxu0 0.0
        %1497 = vmatprep.subr.mxu0 0.0
        %1498 = vmatpush1.msra.mxu0 0.0
        %1499 = vmatprep.subr.mxu0 0.0
        %1500 = vmatpush1.msra.mxu0 0.0
        %1501 = vmatprep.subr.mxu0 0.0
        %1502 = vmatpush1.msra.mxu0 0.0
        %1503 = vmatprep.subr.mxu0 0.0
        %1504 = vmatpush1.msra.mxu0 0.0
        %1505 = vmatprep.subr.mxu0 0.0
        %1506 = vmatpush1.msra.mxu0 0.0
        %1507 = vmatprep.mubr.f32.mxu0 0.0
        %1508 = vmatmul.mubr.f32.gmra.mrb[0].mxu0 %v1420
        %v1509 = vpop.f32.mrb[0].mxu0
        %v1510 = vadd.f32 0.0, %v1509
        %v1511 = vpop.f32.mrb[0].mxu0
        %1512 = vmatprep.mubr.f32.mxu0 0.0
        %1513 = vmatmul.mubr.f32.gmra.mrb[0].mxu0 %v1423
        %v1514 = vpop.f32.mrb[0].mxu0
        %v1515 = vadd.f32 0.0, %v1514
        %v1516 = vpop.f32.mrb[0].mxu0
        %1517 = vmatprep.mubr.f32.mxu0 0.0
        %1518 = vmatmul.mubr.f32.gmra.mrb[0].mxu0 %v1426
        %v1519 = vpop.f32.mrb[0].mxu0
        %v1520 = vadd.f32 0.0, %v1519
        %v1521 = vpop.f32.mrb[0].mxu0
        %1522 = vmatprep.mubr.f32.mxu0 0.0
        %1523 = vmatmul.mubr.f32.gmra.mrb[0].mxu0 %v1429
        %v1524 = vpop.f32.mrb[0].mxu0
        %v1525 = vadd.f32 0.0, %v1524
        %v1526 = vpop.f32.mrb[0].mxu0
        %1527 = vmatprep.mubr.f32.mxu0 0.0
        %1528 = vmatmul.mubr.f32.gmra.mrb[0].mxu0 %v1432
        %v1529 = vpop.f32.mrb[0].mxu0
        %v1530 = vadd.f32 0.0, %v1529
        %v1531 = vpop.f32.mrb[0].mxu0
        %1532 = vmatprep.mubr.f32.mxu0 0.0
        %1533 = vmatmul.mubr.f32.gmra.mrb[0].mxu0 %v1435
        %v1534 = vpop.f32.mrb[0].mxu0
        %v1535 = vadd.f32 0.0, %v1534
        %v1536 = vpop.f32.mrb[0].mxu0
        %1537 = vmatprep.mubr.f32.mxu0 0.0
        %1538 = vmatmul.mubr.f32.gmra.mrb[0].mxu0 %v1438
        %v1539 = vpop.f32.mrb[0].mxu0
        %v1540 = vadd.f32 0.0, %v1539
        %v1541 = vpop.f32.mrb[0].mxu0
        %1542 = vmatprep.mubr.f32.mxu0 0.0
        %1543 = vmatmul.mubr.f32.gmra.mrb[0].mxu0 %v1441
        %v1544 = vpop.f32.mrb[0].mxu0
        %v1545 = vadd.f32 0.0, %v1544
        %v1546 = vpop.f32.mrb[0].mxu0
        %1547 = vdwg.mxu0
        %v1549 = vsel %vm1418, %v1369, 0
        %v1552 = vsel %vm1418, %v1370, 0
        %v1555 = vsel %vm1418, %v1371, 0
        %v1558 = vsel %vm1418, %v1372, 0
        %v1561 = vsel %vm1418, %v1373, 0
        %v1564 = vsel %vm1418, %v1374, 0
        %v1567 = vsel %vm1418, %v1375, 0
        %v1570 = vsel %vm1418, %v1376, 0
        %1572 = vmatprep.subr.mxu0 0.0
        %1573 = vmatpush1.msra.mxu0 %v1323
        %1574 = vmatprep.subr.mxu0 0.0
        %1575 = vmatpush1.msra.mxu0 %v1328
        %1576 = vmatprep.subr.mxu0 0.0
        %1577 = vmatpush1.msra.mxu0 %v1333
        %1578 = vmatprep.subr.mxu0 0.0
        %1579 = vmatpush1.msra.mxu0 %v1338
        %1580 = vmatprep.subr.mxu0 0.0
        %1581 = vmatpush1.msra.mxu0 %v1343
        %1582 = vmatprep.subr.mxu0 0.0
        %1583 = vmatpush1.msra.mxu0 %v1348
        %1584 = vmatprep.subr.mxu0 0.0
        %1585 = vmatpush1.msra.mxu0 %v1353
        %1586 = vmatprep.subr.mxu0 0.0
        %1587 = vmatpush1.msra.mxu0 %v1358
        %1588 = vmatprep.subr.mxu0 0.0
        %1589 = vmatpush1.msra.mxu0 0.0
        %1590 = vmatprep.subr.mxu0 0.0
        %1591 = vmatpush1.msra.mxu0 0.0
        %1592 = vmatprep.subr.mxu0 0.0
        %1593 = vmatpush1.msra.mxu0 0.0
        %1594 = vmatprep.subr.mxu0 0.0
        %1595 = vmatpush1.msra.mxu0 0.0
        %1596 = vmatprep.subr.mxu0 0.0
        %1597 = vmatpush1.msra.mxu0 0.0
        %1598 = vmatprep.subr.mxu0 0.0
        %1599 = vmatpush1.msra.mxu0 0.0
        %1600 = vmatprep.subr.mxu0 0.0
        %1601 = vmatpush1.msra.mxu0 0.0
        %1602 = vmatprep.subr.mxu0 0.0
        %1603 = vmatpush1.msra.mxu0 0.0
        %1604 = vmatprep.subr.mxu0 0.0
        %1605 = vmatpush1.msra.mxu0 0.0
        %1606 = vmatprep.subr.mxu0 0.0
        %1607 = vmatpush1.msra.mxu0 0.0
        %1608 = vmatprep.subr.mxu0 0.0
        %1609 = vmatpush1.msra.mxu0 0.0
        %1610 = vmatprep.subr.mxu0 0.0
        %1611 = vmatpush1.msra.mxu0 0.0
        %1612 = vmatprep.subr.mxu0 0.0
        %1613 = vmatpush1.msra.mxu0 0.0
        %1614 = vmatprep.subr.mxu0 0.0
        %1615 = vmatpush1.msra.mxu0 0.0
        %1616 = vmatprep.subr.mxu0 0.0
        %1617 = vmatpush1.msra.mxu0 0.0
        %1618 = vmatprep.subr.mxu0 0.0
        %1619 = vmatpush1.msra.mxu0 0.0
        %1620 = vmatprep.subr.mxu0 0.0
        %1621 = vmatpush1.msra.mxu0 0.0
        %1622 = vmatprep.subr.mxu0 0.0
        %1623 = vmatpush1.msra.mxu0 0.0
        %1624 = vmatprep.subr.mxu0 0.0
        %1625 = vmatpush1.msra.mxu0 0.0
        %1626 = vmatprep.subr.mxu0 0.0
        %1627 = vmatpush1.msra.mxu0 0.0
        %1628 = vmatprep.subr.mxu0 0.0
        %1629 = vmatpush1.msra.mxu0 0.0
        %1630 = vmatprep.subr.mxu0 0.0
        %1631 = vmatpush1.msra.mxu0 0.0
        %1632 = vmatprep.subr.mxu0 0.0
        %1633 = vmatpush1.msra.mxu0 0.0
        %1634 = vmatprep.subr.mxu0 0.0
        %1635 = vmatpush1.msra.mxu0 0.0
        %1636 = vmatprep.mubr.f32.mxu0 0.0
        %1637 = vmatmul.mubr.f32.gmra.mrb[0].mxu0 %v1549
        %v1638 = vpop.f32.mrb[0].mxu0
        %v1639 = vadd.f32 %v1510, %v1638
        %v1640 = vpop.f32.mrb[0].mxu0
        %1641 = vmatprep.mubr.f32.mxu0 0.0
        %1642 = vmatmul.mubr.f32.gmra.mrb[0].mxu0 %v1552
        %v1643 = vpop.f32.mrb[0].mxu0
        %v1644 = vadd.f32 %v1515, %v1643
        %v1645 = vpop.f32.mrb[0].mxu0
        %1646 = vmatprep.mubr.f32.mxu0 0.0
        %1647 = vmatmul.mubr.f32.gmra.mrb[0].mxu0 %v1555
        %v1648 = vpop.f32.mrb[0].mxu0
        %v1649 = vadd.f32 %v1520, %v1648
        %v1650 = vpop.f32.mrb[0].mxu0
        %1651 = vmatprep.mubr.f32.mxu0 0.0
        %1652 = vmatmul.mubr.f32.gmra.mrb[0].mxu0 %v1558
        %v1653 = vpop.f32.mrb[0].mxu0
        %v1654 = vadd.f32 %v1525, %v1653
        %v1655 = vpop.f32.mrb[0].mxu0
        %1656 = vmatprep.mubr.f32.mxu0 0.0
        %1657 = vmatmul.mubr.f32.gmra.mrb[0].mxu0 %v1561
        %v1658 = vpop.f32.mrb[0].mxu0
        %v1659 = vadd.f32 %v1530, %v1658
        %v1660 = vpop.f32.mrb[0].mxu0
        %1661 = vmatprep.mubr.f32.mxu0 0.0
        %1662 = vmatmul.mubr.f32.gmra.mrb[0].mxu0 %v1564
        %v1663 = vpop.f32.mrb[0].mxu0
        %v1664 = vadd.f32 %v1535, %v1663
        %v1665 = vpop.f32.mrb[0].mxu0
        %1666 = vmatprep.mubr.f32.mxu0 0.0
        %1667 = vmatmul.mubr.f32.gmra.mrb[0].mxu0 %v1567
        %v1668 = vpop.f32.mrb[0].mxu0
        %v1669 = vadd.f32 %v1540, %v1668
        %v1670 = vpop.f32.mrb[0].mxu0
        %1671 = vmatprep.mubr.f32.mxu0 0.0
        %1672 = vmatmul.mubr.f32.gmra.mrb[0].mxu0 %v1570
        %v1673 = vpop.f32.mrb[0].mxu0
        %v1674 = vadd.f32 %v1545, %v1673
        %v1675 = vpop.f32.mrb[0].mxu0
        %1676 = vdwg.mxu0
        %s1677 = scalar_lea.vmem %s4, 128
        %v1678 = vld [vmem:[%s1677] sm:$0xff]
        %v1679 = vld [vmem:[%s1677 + $0x8] sm:$0xff]
        %v1680 = vld [vmem:[%s1677 + $0x10] sm:$0xff]
        %v1681 = vld [vmem:[%s1677 + $0x18] sm:$0xff]
        %v1682 = vld [vmem:[%s1677 + $0x20] sm:$0xff]
        %v1683 = vld [vmem:[%s1677 + $0x28] sm:$0xff]
        %v1684 = vld [vmem:[%s1677 + $0x30] sm:$0xff]
        %v1685 = vld [vmem:[%s1677 + $0x38] sm:$0xff]
        %1686 = vrot.lane.b32.xlu0 %v1323, 126
        %v1687 = vpop.permute.xlu0 %1686
        %1688 = vrot.lane.b32.xlu0 %v1328, 126
        %v1689 = vpop.permute.xlu0 %1688
        %1690 = vrot.lane.b32.xlu0 %v1333, 126
        %v1691 = vpop.permute.xlu0 %1690
        %1692 = vrot.lane.b32.xlu0 %v1338, 126
        %v1693 = vpop.permute.xlu0 %1692
        %1694 = vrot.lane.b32.xlu0 %v1343, 126
        %v1695 = vpop.permute.xlu0 %1694
        %1696 = vrot.lane.b32.xlu0 %v1348, 126
        %v1697 = vpop.permute.xlu0 %1696
        %1698 = vrot.lane.b32.xlu0 %v1353, 126
        %v1699 = vpop.permute.xlu0 %1698
        %1700 = vrot.lane.b32.xlu0 %v1358, 126
        %v1701 = vpop.permute.xlu0 %1700
        %v1711 = vsel %vm1418, %v1678, 0
        %v1714 = vsel %vm1418, %v1679, 0
        %v1717 = vsel %vm1418, %v1680, 0
        %v1720 = vsel %vm1418, %v1681, 0
        %v1723 = vsel %vm1418, %v1682, 0
        %v1726 = vsel %vm1418, %v1683, 0
        %v1729 = vsel %vm1418, %v1684, 0
        %v1732 = vsel %vm1418, %v1685, 0
        %1734 = vmatprep.subr.mxu0 0.0
        %1735 = vmatpush1.msra.mxu0 %v1687
        %1736 = vmatprep.subr.mxu0 0.0
        %1737 = vmatpush1.msra.mxu0 %v1689
        %1738 = vmatprep.subr.mxu0 0.0
        %1739 = vmatpush1.msra.mxu0 %v1691
        %1740 = vmatprep.subr.mxu0 0.0
        %1741 = vmatpush1.msra.mxu0 %v1693
        %1742 = vmatprep.subr.mxu0 0.0
        %1743 = vmatpush1.msra.mxu0 %v1695
        %1744 = vmatprep.subr.mxu0 0.0
        %1745 = vmatpush1.msra.mxu0 %v1697
        %1746 = vmatprep.subr.mxu0 0.0
        %1747 = vmatpush1.msra.mxu0 %v1699
        %1748 = vmatprep.subr.mxu0 0.0
        %1749 = vmatpush1.msra.mxu0 %v1701
        %1750 = vmatprep.subr.mxu0 0.0
        %1751 = vmatpush1.msra.mxu0 0.0
        %1752 = vmatprep.subr.mxu0 0.0
        %1753 = vmatpush1.msra.mxu0 0.0
        %1754 = vmatprep.subr.mxu0 0.0
        %1755 = vmatpush1.msra.mxu0 0.0
        %1756 = vmatprep.subr.mxu0 0.0
        %1757 = vmatpush1.msra.mxu0 0.0
        %1758 = vmatprep.subr.mxu0 0.0
        %1759 = vmatpush1.msra.mxu0 0.0
        %1760 = vmatprep.subr.mxu0 0.0
        %1761 = vmatpush1.msra.mxu0 0.0
        %1762 = vmatprep.subr.mxu0 0.0
        %1763 = vmatpush1.msra.mxu0 0.0
        %1764 = vmatprep.subr.mxu0 0.0
        %1765 = vmatpush1.msra.mxu0 0.0
        %1766 = vmatprep.subr.mxu0 0.0
        %1767 = vmatpush1.msra.mxu0 0.0
        %1768 = vmatprep.subr.mxu0 0.0
        %1769 = vmatpush1.msra.mxu0 0.0
        %1770 = vmatprep.subr.mxu0 0.0
        %1771 = vmatpush1.msra.mxu0 0.0
        %1772 = vmatprep.subr.mxu0 0.0
        %1773 = vmatpush1.msra.mxu0 0.0
        %1774 = vmatprep.subr.mxu0 0.0
        %1775 = vmatpush1.msra.mxu0 0.0
        %1776 = vmatprep.subr.mxu0 0.0
        %1777 = vmatpush1.msra.mxu0 0.0
        %1778 = vmatprep.subr.mxu0 0.0
        %1779 = vmatpush1.msra.mxu0 0.0
        %1780 = vmatprep.subr.mxu0 0.0
        %1781 = vmatpush1.msra.mxu0 0.0
        %1782 = vmatprep.subr.mxu0 0.0
        %1783 = vmatpush1.msra.mxu0 0.0
        %1784 = vmatprep.subr.mxu0 0.0
        %1785 = vmatpush1.msra.mxu0 0.0
        %1786 = vmatprep.subr.mxu0 0.0
        %1787 = vmatpush1.msra.mxu0 0.0
        %1788 = vmatprep.subr.mxu0 0.0
        %1789 = vmatpush1.msra.mxu0 0.0
        %1790 = vmatprep.subr.mxu0 0.0
        %1791 = vmatpush1.msra.mxu0 0.0
        %1792 = vmatprep.subr.mxu0 0.0
        %1793 = vmatpush1.msra.mxu0 0.0
        %1794 = vmatprep.subr.mxu0 0.0
        %1795 = vmatpush1.msra.mxu0 0.0
        %1796 = vmatprep.subr.mxu0 0.0
        %1797 = vmatpush1.msra.mxu0 0.0
        %1798 = vmatprep.mubr.f32.mxu0 0.0
        %1799 = vmatmul.mubr.f32.gmra.mrb[0].mxu0 %v1711
        %v1800 = vpop.f32.mrb[0].mxu0
        %v1801 = vadd.f32 0.0, %v1800
        %v1802 = vpop.f32.mrb[0].mxu0
        %1803 = vmatprep.mubr.f32.mxu0 0.0
        %1804 = vmatmul.mubr.f32.gmra.mrb[0].mxu0 %v1714
        %v1805 = vpop.f32.mrb[0].mxu0
        %v1806 = vadd.f32 0.0, %v1805
        %v1807 = vpop.f32.mrb[0].mxu0
        %1808 = vmatprep.mubr.f32.mxu0 0.0
        %1809 = vmatmul.mubr.f32.gmra.mrb[0].mxu0 %v1717
        %v1810 = vpop.f32.mrb[0].mxu0
        %v1811 = vadd.f32 0.0, %v1810
        %v1812 = vpop.f32.mrb[0].mxu0
        %1813 = vmatprep.mubr.f32.mxu0 0.0
        %1814 = vmatmul.mubr.f32.gmra.mrb[0].mxu0 %v1720
        %v1815 = vpop.f32.mrb[0].mxu0
        %v1816 = vadd.f32 0.0, %v1815
        %v1817 = vpop.f32.mrb[0].mxu0
        %1818 = vmatprep.mubr.f32.mxu0 0.0
        %1819 = vmatmul.mubr.f32.gmra.mrb[0].mxu0 %v1723
        %v1820 = vpop.f32.mrb[0].mxu0
        %v1821 = vadd.f32 0.0, %v1820
        %v1822 = vpop.f32.mrb[0].mxu0
        %1823 = vmatprep.mubr.f32.mxu0 0.0
        %1824 = vmatmul.mubr.f32.gmra.mrb[0].mxu0 %v1726
        %v1825 = vpop.f32.mrb[0].mxu0
        %v1826 = vadd.f32 0.0, %v1825
        %v1827 = vpop.f32.mrb[0].mxu0
        %1828 = vmatprep.mubr.f32.mxu0 0.0
        %1829 = vmatmul.mubr.f32.gmra.mrb[0].mxu0 %v1729
        %v1830 = vpop.f32.mrb[0].mxu0
        %v1831 = vadd.f32 0.0, %v1830
        %v1832 = vpop.f32.mrb[0].mxu0
        %1833 = vmatprep.mubr.f32.mxu0 0.0
        %1834 = vmatmul.mubr.f32.gmra.mrb[0].mxu0 %v1732
        %v1835 = vpop.f32.mrb[0].mxu0
        %v1836 = vadd.f32 0.0, %v1835
        %v1837 = vpop.f32.mrb[0].mxu0
        %1838 = vdwg.mxu0
        %v1839 = vadd.f32 %v1639, %v1801
        %v1840 = vadd.f32 %v1644, %v1806
        %v1841 = vadd.f32 %v1649, %v1811
        %v1842 = vadd.f32 %v1654, %v1816
        %v1843 = vadd.f32 %v1659, %v1821
        %v1844 = vadd.f32 %v1664, %v1826
        %v1845 = vadd.f32 %v1669, %v1831
        %v1846 = vadd.f32 %v1674, %v1836
        %s1847 = scalar_lea.vmem %s4, 192
        %v1848 = vld [vmem:[%s1847] sm:$0xff]
        %v1849 = vld [vmem:[%s1847 + $0x8] sm:$0xff]
        %v1850 = vld [vmem:[%s1847 + $0x10] sm:$0xff]
        %v1851 = vld [vmem:[%s1847 + $0x18] sm:$0xff]
        %v1852 = vld [vmem:[%s1847 + $0x20] sm:$0xff]
        %v1853 = vld [vmem:[%s1847 + $0x28] sm:$0xff]
        %v1854 = vld [vmem:[%s1847 + $0x30] sm:$0xff]
        %v1855 = vld [vmem:[%s1847 + $0x38] sm:$0xff]
        %1856 = vrot.lane.b32.xlu0 %v1323, 125
        %v1857 = vpop.permute.xlu0 %1856
        %1858 = vrot.lane.b32.xlu0 %v1328, 125
        %v1859 = vpop.permute.xlu0 %1858
        %1860 = vrot.lane.b32.xlu0 %v1333, 125
        %v1861 = vpop.permute.xlu0 %1860
        %1862 = vrot.lane.b32.xlu0 %v1338, 125
        %v1863 = vpop.permute.xlu0 %1862
        %1864 = vrot.lane.b32.xlu0 %v1343, 125
        %v1865 = vpop.permute.xlu0 %1864
        %1866 = vrot.lane.b32.xlu0 %v1348, 125
        %v1867 = vpop.permute.xlu0 %1866
        %1868 = vrot.lane.b32.xlu0 %v1353, 125
        %v1869 = vpop.permute.xlu0 %1868
        %1870 = vrot.lane.b32.xlu0 %v1358, 125
        %v1871 = vpop.permute.xlu0 %1870
        %v1881 = vsel %vm1418, %v1848, 0
        %v1884 = vsel %vm1418, %v1849, 0
        %v1887 = vsel %vm1418, %v1850, 0
        %v1890 = vsel %vm1418, %v1851, 0
        %v1893 = vsel %vm1418, %v1852, 0
        %v1896 = vsel %vm1418, %v1853, 0
        %v1899 = vsel %vm1418, %v1854, 0
        %v1902 = vsel %vm1418, %v1855, 0
        %1904 = vmatprep.subr.mxu0 0.0
        %1905 = vmatpush1.msra.mxu0 %v1857
        %1906 = vmatprep.subr.mxu0 0.0
        %1907 = vmatpush1.msra.mxu0 %v1859
        %1908 = vmatprep.subr.mxu0 0.0
        %1909 = vmatpush1.msra.mxu0 %v1861
        %1910 = vmatprep.subr.mxu0 0.0
        %1911 = vmatpush1.msra.mxu0 %v1863
        %1912 = vmatprep.subr.mxu0 0.0
        %1913 = vmatpush1.msra.mxu0 %v1865
        %1914 = vmatprep.subr.mxu0 0.0
        %1915 = vmatpush1.msra.mxu0 %v1867
        %1916 = vmatprep.subr.mxu0 0.0
        %1917 = vmatpush1.msra.mxu0 %v1869
        %1918 = vmatprep.subr.mxu0 0.0
        %1919 = vmatpush1.msra.mxu0 %v1871
        %1920 = vmatprep.subr.mxu0 0.0
        %1921 = vmatpush1.msra.mxu0 0.0
        %1922 = vmatprep.subr.mxu0 0.0
        %1923 = vmatpush1.msra.mxu0 0.0
        %1924 = vmatprep.subr.mxu0 0.0
        %1925 = vmatpush1.msra.mxu0 0.0
        %1926 = vmatprep.subr.mxu0 0.0
        %1927 = vmatpush1.msra.mxu0 0.0
        %1928 = vmatprep.subr.mxu0 0.0
        %1929 = vmatpush1.msra.mxu0 0.0
        %1930 = vmatprep.subr.mxu0 0.0
        %1931 = vmatpush1.msra.mxu0 0.0
        %1932 = vmatprep.subr.mxu0 0.0
        %1933 = vmatpush1.msra.mxu0 0.0
        %1934 = vmatprep.subr.mxu0 0.0
        %1935 = vmatpush1.msra.mxu0 0.0
        %1936 = vmatprep.subr.mxu0 0.0
        %1937 = vmatpush1.msra.mxu0 0.0
        %1938 = vmatprep.subr.mxu0 0.0
        %1939 = vmatpush1.msra.mxu0 0.0
        %1940 = vmatprep.subr.mxu0 0.0
        %1941 = vmatpush1.msra.mxu0 0.0
        %1942 = vmatprep.subr.mxu0 0.0
        %1943 = vmatpush1.msra.mxu0 0.0
        %1944 = vmatprep.subr.mxu0 0.0
        %1945 = vmatpush1.msra.mxu0 0.0
        %1946 = vmatprep.subr.mxu0 0.0
        %1947 = vmatpush1.msra.mxu0 0.0
        %1948 = vmatprep.subr.mxu0 0.0
        %1949 = vmatpush1.msra.mxu0 0.0
        %1950 = vmatprep.subr.mxu0 0.0
        %1951 = vmatpush1.msra.mxu0 0.0
        %1952 = vmatprep.subr.mxu0 0.0
        %1953 = vmatpush1.msra.mxu0 0.0
        %1954 = vmatprep.subr.mxu0 0.0
        %1955 = vmatpush1.msra.mxu0 0.0
        %1956 = vmatprep.subr.mxu0 0.0
        %1957 = vmatpush1.msra.mxu0 0.0
        %1958 = vmatprep.subr.mxu0 0.0
        %1959 = vmatpush1.msra.mxu0 0.0
        %1960 = vmatprep.subr.mxu0 0.0
        %1961 = vmatpush1.msra.mxu0 0.0
        %1962 = vmatprep.subr.mxu0 0.0
        %1963 = vmatpush1.msra.mxu0 0.0
        %1964 = vmatprep.subr.mxu0 0.0
        %1965 = vmatpush1.msra.mxu0 0.0
        %1966 = vmatprep.subr.mxu0 0.0
        %1967 = vmatpush1.msra.mxu0 0.0
        %1968 = vmatprep.mubr.f32.mxu0 0.0
        %1969 = vmatmul.mubr.f32.gmra.mrb[0].mxu0 %v1881
        %v1970 = vpop.f32.mrb[0].mxu0
        %v1971 = vadd.f32 0.0, %v1970
        %v1972 = vpop.f32.mrb[0].mxu0
        %1973 = vmatprep.mubr.f32.mxu0 0.0
        %1974 = vmatmul.mubr.f32.gmra.mrb[0].mxu0 %v1884
        %v1975 = vpop.f32.mrb[0].mxu0
        %v1976 = vadd.f32 0.0, %v1975
        %v1977 = vpop.f32.mrb[0].mxu0
        %1978 = vmatprep.mubr.f32.mxu0 0.0
        %1979 = vmatmul.mubr.f32.gmra.mrb[0].mxu0 %v1887
        %v1980 = vpop.f32.mrb[0].mxu0
        %v1981 = vadd.f32 0.0, %v1980
        %v1982 = vpop.f32.mrb[0].mxu0
        %1983 = vmatprep.mubr.f32.mxu0 0.0
        %1984 = vmatmul.mubr.f32.gmra.mrb[0].mxu0 %v1890
        %v1985 = vpop.f32.mrb[0].mxu0
        %v1986 = vadd.f32 0.0, %v1985
        %v1987 = vpop.f32.mrb[0].mxu0
        %1988 = vmatprep.mubr.f32.mxu0 0.0
        %1989 = vmatmul.mubr.f32.gmra.mrb[0].mxu0 %v1893
        %v1990 = vpop.f32.mrb[0].mxu0
        %v1991 = vadd.f32 0.0, %v1990
        %v1992 = vpop.f32.mrb[0].mxu0
        %1993 = vmatprep.mubr.f32.mxu0 0.0
        %1994 = vmatmul.mubr.f32.gmra.mrb[0].mxu0 %v1896
        %v1995 = vpop.f32.mrb[0].mxu0
        %v1996 = vadd.f32 0.0, %v1995
        %v1997 = vpop.f32.mrb[0].mxu0
        %1998 = vmatprep.mubr.f32.mxu0 0.0
        %1999 = vmatmul.mubr.f32.gmra.mrb[0].mxu0 %v1899
        %v2000 = vpop.f32.mrb[0].mxu0
        %v2001 = vadd.f32 0.0, %v2000
        %v2002 = vpop.f32.mrb[0].mxu0
        %2003 = vmatprep.mubr.f32.mxu0 0.0
        %2004 = vmatmul.mubr.f32.gmra.mrb[0].mxu0 %v1902
        %v2005 = vpop.f32.mrb[0].mxu0
        %v2006 = vadd.f32 0.0, %v2005
        %v2007 = vpop.f32.mrb[0].mxu0
        %2008 = vdwg.mxu0
        %v2009 = vadd.f32 %v1839, %v1971
        %v2010 = vadd.f32 %v1840, %v1976
        %v2011 = vadd.f32 %v1841, %v1981
        %v2012 = vadd.f32 %v1842, %v1986
        %v2013 = vadd.f32 %v1843, %v1991
        %v2014 = vadd.f32 %v1844, %v1996
        %v2015 = vadd.f32 %v1845, %v2001
        %v2016 = vadd.f32 %v1846, %v2006
        %s2017 = scalar_lea.vmem %s4, 256
        %v2018 = vld [vmem:[%s2017] sm:$0xff]
        %v2019 = vld [vmem:[%s2017 + $0x8] sm:$0xff]
        %v2020 = vld [vmem:[%s2017 + $0x10] sm:$0xff]
        %v2021 = vld [vmem:[%s2017 + $0x18] sm:$0xff]
        %v2022 = vld [vmem:[%s2017 + $0x20] sm:$0xff]
        %v2023 = vld [vmem:[%s2017 + $0x28] sm:$0xff]
        %v2024 = vld [vmem:[%s2017 + $0x30] sm:$0xff]
        %v2025 = vld [vmem:[%s2017 + $0x38] sm:$0xff]
        %2026 = vrot.lane.b32.xlu0 %v1323, 124
        %v2027 = vpop.permute.xlu0 %2026
        %2028 = vrot.lane.b32.xlu0 %v1328, 124
        %v2029 = vpop.permute.xlu0 %2028
        %2030 = vrot.lane.b32.xlu0 %v1333, 124
        %v2031 = vpop.permute.xlu0 %2030
        %2032 = vrot.lane.b32.xlu0 %v1338, 124
        %v2033 = vpop.permute.xlu0 %2032
        %2034 = vrot.lane.b32.xlu0 %v1343, 124
        %v2035 = vpop.permute.xlu0 %2034
        %2036 = vrot.lane.b32.xlu0 %v1348, 124
        %v2037 = vpop.permute.xlu0 %2036
        %2038 = vrot.lane.b32.xlu0 %v1353, 124
        %v2039 = vpop.permute.xlu0 %2038
        %2040 = vrot.lane.b32.xlu0 %v1358, 124
        %v2041 = vpop.permute.xlu0 %2040
        %v2051 = vsel %vm1418, %v2018, 0
        %v2054 = vsel %vm1418, %v2019, 0
        %v2057 = vsel %vm1418, %v2020, 0
        %v2060 = vsel %vm1418, %v2021, 0
        %v2063 = vsel %vm1418, %v2022, 0
        %v2066 = vsel %vm1418, %v2023, 0
        %v2069 = vsel %vm1418, %v2024, 0
        %v2072 = vsel %vm1418, %v2025, 0
        %2074 = vmatprep.subr.mxu0 0.0
        %2075 = vmatpush1.msra.mxu0 %v2027
        %2076 = vmatprep.subr.mxu0 0.0
        %2077 = vmatpush1.msra.mxu0 %v2029
        %2078 = vmatprep.subr.mxu0 0.0
        %2079 = vmatpush1.msra.mxu0 %v2031
        %2080 = vmatprep.subr.mxu0 0.0
        %2081 = vmatpush1.msra.mxu0 %v2033
        %2082 = vmatprep.subr.mxu0 0.0
        %2083 = vmatpush1.msra.mxu0 %v2035
        %2084 = vmatprep.subr.mxu0 0.0
        %2085 = vmatpush1.msra.mxu0 %v2037
        %2086 = vmatprep.subr.mxu0 0.0
        %2087 = vmatpush1.msra.mxu0 %v2039
        %2088 = vmatprep.subr.mxu0 0.0
        %2089 = vmatpush1.msra.mxu0 %v2041
        %2090 = vmatprep.subr.mxu0 0.0
        %2091 = vmatpush1.msra.mxu0 0.0
        %2092 = vmatprep.subr.mxu0 0.0
        %2093 = vmatpush1.msra.mxu0 0.0
        %2094 = vmatprep.subr.mxu0 0.0
        %2095 = vmatpush1.msra.mxu0 0.0
        %2096 = vmatprep.subr.mxu0 0.0
        %2097 = vmatpush1.msra.mxu0 0.0
        %2098 = vmatprep.subr.mxu0 0.0
        %2099 = vmatpush1.msra.mxu0 0.0
        %2100 = vmatprep.subr.mxu0 0.0
        %2101 = vmatpush1.msra.mxu0 0.0
        %2102 = vmatprep.subr.mxu0 0.0
        %2103 = vmatpush1.msra.mxu0 0.0
        %2104 = vmatprep.subr.mxu0 0.0
        %2105 = vmatpush1.msra.mxu0 0.0
        %2106 = vmatprep.subr.mxu0 0.0
        %2107 = vmatpush1.msra.mxu0 0.0
        %2108 = vmatprep.subr.mxu0 0.0
        %2109 = vmatpush1.msra.mxu0 0.0
        %2110 = vmatprep.subr.mxu0 0.0
        %2111 = vmatpush1.msra.mxu0 0.0
        %2112 = vmatprep.subr.mxu0 0.0
        %2113 = vmatpush1.msra.mxu0 0.0
        %2114 = vmatprep.subr.mxu0 0.0
        %2115 = vmatpush1.msra.mxu0 0.0
        %2116 = vmatprep.subr.mxu0 0.0
        %2117 = vmatpush1.msra.mxu0 0.0
        %2118 = vmatprep.subr.mxu0 0.0
        %2119 = vmatpush1.msra.mxu0 0.0
        %2120 = vmatprep.subr.mxu0 0.0
        %2121 = vmatpush1.msra.mxu0 0.0
        %2122 = vmatprep.subr.mxu0 0.0
        %2123 = vmatpush1.msra.mxu0 0.0
        %2124 = vmatprep.subr.mxu0 0.0
        %2125 = vmatpush1.msra.mxu0 0.0
        %2126 = vmatprep.subr.mxu0 0.0
        %2127 = vmatpush1.msra.mxu0 0.0
        %2128 = vmatprep.subr.mxu0 0.0
        %2129 = vmatpush1.msra.mxu0 0.0
        %2130 = vmatprep.subr.mxu0 0.0
        %2131 = vmatpush1.msra.mxu0 0.0
        %2132 = vmatprep.subr.mxu0 0.0
        %2133 = vmatpush1.msra.mxu0 0.0
        %2134 = vmatprep.subr.mxu0 0.0
        %2135 = vmatpush1.msra.mxu0 0.0
        %2136 = vmatprep.subr.mxu0 0.0
        %2137 = vmatpush1.msra.mxu0 0.0
        %2138 = vmatprep.mubr.f32.mxu0 0.0
        %2139 = vmatmul.mubr.f32.gmra.mrb[0].mxu0 %v2051
        %v2140 = vpop.f32.mrb[0].mxu0
        %v2141 = vadd.f32 0.0, %v2140
        %v2142 = vpop.f32.mrb[0].mxu0
        %2143 = vmatprep.mubr.f32.mxu0 0.0
        %2144 = vmatmul.mubr.f32.gmra.mrb[0].mxu0 %v2054
        %v2145 = vpop.f32.mrb[0].mxu0
        %v2146 = vadd.f32 0.0, %v2145
        %v2147 = vpop.f32.mrb[0].mxu0
        %2148 = vmatprep.mubr.f32.mxu0 0.0
        %2149 = vmatmul.mubr.f32.gmra.mrb[0].mxu0 %v2057
        %v2150 = vpop.f32.mrb[0].mxu0
        %v2151 = vadd.f32 0.0, %v2150
        %v2152 = vpop.f32.mrb[0].mxu0
        %2153 = vmatprep.mubr.f32.mxu0 0.0
        %2154 = vmatmul.mubr.f32.gmra.mrb[0].mxu0 %v2060
        %v2155 = vpop.f32.mrb[0].mxu0
        %v2156 = vadd.f32 0.0, %v2155
        %v2157 = vpop.f32.mrb[0].mxu0
        %2158 = vmatprep.mubr.f32.mxu0 0.0
        %2159 = vmatmul.mubr.f32.gmra.mrb[0].mxu0 %v2063
        %v2160 = vpop.f32.mrb[0].mxu0
        %v2161 = vadd.f32 0.0, %v2160
        %v2162 = vpop.f32.mrb[0].mxu0
        %2163 = vmatprep.mubr.f32.mxu0 0.0
        %2164 = vmatmul.mubr.f32.gmra.mrb[0].mxu0 %v2066
        %v2165 = vpop.f32.mrb[0].mxu0
        %v2166 = vadd.f32 0.0, %v2165
        %v2167 = vpop.f32.mrb[0].mxu0
        %2168 = vmatprep.mubr.f32.mxu0 0.0
        %2169 = vmatmul.mubr.f32.gmra.mrb[0].mxu0 %v2069
        %v2170 = vpop.f32.mrb[0].mxu0
        %v2171 = vadd.f32 0.0, %v2170
        %v2172 = vpop.f32.mrb[0].mxu0
        %2173 = vmatprep.mubr.f32.mxu0 0.0
        %2174 = vmatmul.mubr.f32.gmra.mrb[0].mxu0 %v2072
        %v2175 = vpop.f32.mrb[0].mxu0
        %v2176 = vadd.f32 0.0, %v2175
        %v2177 = vpop.f32.mrb[0].mxu0
        %2178 = vdwg.mxu0
        %v2179 = vadd.f32 %v2009, %v2141
        %v2180 = vadd.f32 %v2010, %v2146
        %v2181 = vadd.f32 %v2011, %v2151
        %v2182 = vadd.f32 %v2012, %v2156
        %v2183 = vadd.f32 %v2013, %v2161
        %v2184 = vadd.f32 %v2014, %v2166
        %v2185 = vadd.f32 %v2015, %v2171
        %v2186 = vadd.f32 %v2016, %v2176
        %s2187 = scalar_lea.vmem %s4, 320
        %v2188 = vld [vmem:[%s2187] sm:$0xff]
        %v2189 = vld [vmem:[%s2187 + $0x8] sm:$0xff]
        %v2190 = vld [vmem:[%s2187 + $0x10] sm:$0xff]
        %v2191 = vld [vmem:[%s2187 + $0x18] sm:$0xff]
        %v2192 = vld [vmem:[%s2187 + $0x20] sm:$0xff]
        %v2193 = vld [vmem:[%s2187 + $0x28] sm:$0xff]
        %v2194 = vld [vmem:[%s2187 + $0x30] sm:$0xff]
        %v2195 = vld [vmem:[%s2187 + $0x38] sm:$0xff]
        %2196 = vrot.lane.b32.xlu0 %v1323, 123
        %v2197 = vpop.permute.xlu0 %2196
        %2198 = vrot.lane.b32.xlu0 %v1328, 123
        %v2199 = vpop.permute.xlu0 %2198
        %2200 = vrot.lane.b32.xlu0 %v1333, 123
        %v2201 = vpop.permute.xlu0 %2200
        %2202 = vrot.lane.b32.xlu0 %v1338, 123
        %v2203 = vpop.permute.xlu0 %2202
        %2204 = vrot.lane.b32.xlu0 %v1343, 123
        %v2205 = vpop.permute.xlu0 %2204
        %2206 = vrot.lane.b32.xlu0 %v1348, 123
        %v2207 = vpop.permute.xlu0 %2206
        %2208 = vrot.lane.b32.xlu0 %v1353, 123
        %v2209 = vpop.permute.xlu0 %2208
        %2210 = vrot.lane.b32.xlu0 %v1358, 123
        %v2211 = vpop.permute.xlu0 %2210
        %v2221 = vsel %vm1418, %v2188, 0
        %v2224 = vsel %vm1418, %v2189, 0
        %v2227 = vsel %vm1418, %v2190, 0
        %v2230 = vsel %vm1418, %v2191, 0
        %v2233 = vsel %vm1418, %v2192, 0
        %v2236 = vsel %vm1418, %v2193, 0
        %v2239 = vsel %vm1418, %v2194, 0
        %v2242 = vsel %vm1418, %v2195, 0
        %2244 = vmatprep.subr.mxu0 0.0
        %2245 = vmatpush1.msra.mxu0 %v2197
        %2246 = vmatprep.subr.mxu0 0.0
        %2247 = vmatpush1.msra.mxu0 %v2199
        %2248 = vmatprep.subr.mxu0 0.0
        %2249 = vmatpush1.msra.mxu0 %v2201
        %2250 = vmatprep.subr.mxu0 0.0
        %2251 = vmatpush1.msra.mxu0 %v2203
        %2252 = vmatprep.subr.mxu0 0.0
        %2253 = vmatpush1.msra.mxu0 %v2205
        %2254 = vmatprep.subr.mxu0 0.0
        %2255 = vmatpush1.msra.mxu0 %v2207
        %2256 = vmatprep.subr.mxu0 0.0
        %2257 = vmatpush1.msra.mxu0 %v2209
        %2258 = vmatprep.subr.mxu0 0.0
        %2259 = vmatpush1.msra.mxu0 %v2211
        %2260 = vmatprep.subr.mxu0 0.0
        %2261 = vmatpush1.msra.mxu0 0.0
        %2262 = vmatprep.subr.mxu0 0.0
        %2263 = vmatpush1.msra.mxu0 0.0
        %2264 = vmatprep.subr.mxu0 0.0
        %2265 = vmatpush1.msra.mxu0 0.0
        %2266 = vmatprep.subr.mxu0 0.0
        %2267 = vmatpush1.msra.mxu0 0.0
        %2268 = vmatprep.subr.mxu0 0.0
        %2269 = vmatpush1.msra.mxu0 0.0
        %2270 = vmatprep.subr.mxu0 0.0
        %2271 = vmatpush1.msra.mxu0 0.0
        %2272 = vmatprep.subr.mxu0 0.0
        %2273 = vmatpush1.msra.mxu0 0.0
        %2274 = vmatprep.subr.mxu0 0.0
        %2275 = vmatpush1.msra.mxu0 0.0
        %2276 = vmatprep.subr.mxu0 0.0
        %2277 = vmatpush1.msra.mxu0 0.0
        %2278 = vmatprep.subr.mxu0 0.0
        %2279 = vmatpush1.msra.mxu0 0.0
        %2280 = vmatprep.subr.mxu0 0.0
        %2281 = vmatpush1.msra.mxu0 0.0
        %2282 = vmatprep.subr.mxu0 0.0
        %2283 = vmatpush1.msra.mxu0 0.0
        %2284 = vmatprep.subr.mxu0 0.0
        %2285 = vmatpush1.msra.mxu0 0.0
        %2286 = vmatprep.subr.mxu0 0.0
        %2287 = vmatpush1.msra.mxu0 0.0
        %2288 = vmatprep.subr.mxu0 0.0
        %2289 = vmatpush1.msra.mxu0 0.0
        %2290 = vmatprep.subr.mxu0 0.0
        %2291 = vmatpush1.msra.mxu0 0.0
        %2292 = vmatprep.subr.mxu0 0.0
        %2293 = vmatpush1.msra.mxu0 0.0
        %2294 = vmatprep.subr.mxu0 0.0
        %2295 = vmatpush1.msra.mxu0 0.0
        %2296 = vmatprep.subr.mxu0 0.0
        %2297 = vmatpush1.msra.mxu0 0.0
        %2298 = vmatprep.subr.mxu0 0.0
        %2299 = vmatpush1.msra.mxu0 0.0
        %2300 = vmatprep.subr.mxu0 0.0
        %2301 = vmatpush1.msra.mxu0 0.0
        %2302 = vmatprep.subr.mxu0 0.0
        %2303 = vmatpush1.msra.mxu0 0.0
        %2304 = vmatprep.subr.mxu0 0.0
        %2305 = vmatpush1.msra.mxu0 0.0
        %2306 = vmatprep.subr.mxu0 0.0
        %2307 = vmatpush1.msra.mxu0 0.0
        %2308 = vmatprep.mubr.f32.mxu0 0.0
        %2309 = vmatmul.mubr.f32.gmra.mrb[0].mxu0 %v2221
        %v2310 = vpop.f32.mrb[0].mxu0
        %v2311 = vadd.f32 0.0, %v2310
        %v2312 = vpop.f32.mrb[0].mxu0
        %2313 = vmatprep.mubr.f32.mxu0 0.0
        %2314 = vmatmul.mubr.f32.gmra.mrb[0].mxu0 %v2224
        %v2315 = vpop.f32.mrb[0].mxu0
        %v2316 = vadd.f32 0.0, %v2315
        %v2317 = vpop.f32.mrb[0].mxu0
        %2318 = vmatprep.mubr.f32.mxu0 0.0
        %2319 = vmatmul.mubr.f32.gmra.mrb[0].mxu0 %v2227
        %v2320 = vpop.f32.mrb[0].mxu0
        %v2321 = vadd.f32 0.0, %v2320
        %v2322 = vpop.f32.mrb[0].mxu0
        %2323 = vmatprep.mubr.f32.mxu0 0.0
        %2324 = vmatmul.mubr.f32.gmra.mrb[0].mxu0 %v2230
        %v2325 = vpop.f32.mrb[0].mxu0
        %v2326 = vadd.f32 0.0, %v2325
        %v2327 = vpop.f32.mrb[0].mxu0
        %2328 = vmatprep.mubr.f32.mxu0 0.0
        %2329 = vmatmul.mubr.f32.gmra.mrb[0].mxu0 %v2233
        %v2330 = vpop.f32.mrb[0].mxu0
        %v2331 = vadd.f32 0.0, %v2330
        %v2332 = vpop.f32.mrb[0].mxu0
        %2333 = vmatprep.mubr.f32.mxu0 0.0
        %2334 = vmatmul.mubr.f32.gmra.mrb[0].mxu0 %v2236
        %v2335 = vpop.f32.mrb[0].mxu0
        %v2336 = vadd.f32 0.0, %v2335
        %v2337 = vpop.f32.mrb[0].mxu0
        %2338 = vmatprep.mubr.f32.mxu0 0.0
        %2339 = vmatmul.mubr.f32.gmra.mrb[0].mxu0 %v2239
        %v2340 = vpop.f32.mrb[0].mxu0
        %v2341 = vadd.f32 0.0, %v2340
        %v2342 = vpop.f32.mrb[0].mxu0
        %2343 = vmatprep.mubr.f32.mxu0 0.0
        %2344 = vmatmul.mubr.f32.gmra.mrb[0].mxu0 %v2242
        %v2345 = vpop.f32.mrb[0].mxu0
        %v2346 = vadd.f32 0.0, %v2345
        %v2347 = vpop.f32.mrb[0].mxu0
        %2348 = vdwg.mxu0
        %v2349 = vadd.f32 %v2179, %v2311
        %v2350 = vadd.f32 %v2180, %v2316
        %v2351 = vadd.f32 %v2181, %v2321
        %v2352 = vadd.f32 %v2182, %v2326
        %v2353 = vadd.f32 %v2183, %v2331
        %v2354 = vadd.f32 %v2184, %v2336
        %v2355 = vadd.f32 %v2185, %v2341
        %v2356 = vadd.f32 %v2186, %v2346
        %s2357 = scalar_lea.vmem %s4, 384
        %v2358 = vld [vmem:[%s2357] sm:$0xff]
        %v2359 = vld [vmem:[%s2357 + $0x8] sm:$0xff]
        %v2360 = vld [vmem:[%s2357 + $0x10] sm:$0xff]
        %v2361 = vld [vmem:[%s2357 + $0x18] sm:$0xff]
        %v2362 = vld [vmem:[%s2357 + $0x20] sm:$0xff]
        %v2363 = vld [vmem:[%s2357 + $0x28] sm:$0xff]
        %v2364 = vld [vmem:[%s2357 + $0x30] sm:$0xff]
        %v2365 = vld [vmem:[%s2357 + $0x38] sm:$0xff]
        %2366 = vrot.lane.b32.xlu0 %v1323, 122
        %v2367 = vpop.permute.xlu0 %2366
        %2368 = vrot.lane.b32.xlu0 %v1328, 122
        %v2369 = vpop.permute.xlu0 %2368
        %2370 = vrot.lane.b32.xlu0 %v1333, 122
        %v2371 = vpop.permute.xlu0 %2370
        %2372 = vrot.lane.b32.xlu0 %v1338, 122
        %v2373 = vpop.permute.xlu0 %2372
        %2374 = vrot.lane.b32.xlu0 %v1343, 122
        %v2375 = vpop.permute.xlu0 %2374
        %2376 = vrot.lane.b32.xlu0 %v1348, 122
        %v2377 = vpop.permute.xlu0 %2376
        %2378 = vrot.lane.b32.xlu0 %v1353, 122
        %v2379 = vpop.permute.xlu0 %2378
        %2380 = vrot.lane.b32.xlu0 %v1358, 122
        %v2381 = vpop.permute.xlu0 %2380
        %v2391 = vsel %vm1418, %v2358, 0
        %v2394 = vsel %vm1418, %v2359, 0
        %v2397 = vsel %vm1418, %v2360, 0
        %v2400 = vsel %vm1418, %v2361, 0
        %v2403 = vsel %vm1418, %v2362, 0
        %v2406 = vsel %vm1418, %v2363, 0
        %v2409 = vsel %vm1418, %v2364, 0
        %v2412 = vsel %vm1418, %v2365, 0
        %2414 = vmatprep.subr.mxu0 0.0
        %2415 = vmatpush1.msra.mxu0 %v2367
        %2416 = vmatprep.subr.mxu0 0.0
        %2417 = vmatpush1.msra.mxu0 %v2369
        %2418 = vmatprep.subr.mxu0 0.0
        %2419 = vmatpush1.msra.mxu0 %v2371
        %2420 = vmatprep.subr.mxu0 0.0
        %2421 = vmatpush1.msra.mxu0 %v2373
        %2422 = vmatprep.subr.mxu0 0.0
        %2423 = vmatpush1.msra.mxu0 %v2375
        %2424 = vmatprep.subr.mxu0 0.0
        %2425 = vmatpush1.msra.mxu0 %v2377
        %2426 = vmatprep.subr.mxu0 0.0
        %2427 = vmatpush1.msra.mxu0 %v2379
        %2428 = vmatprep.subr.mxu0 0.0
        %2429 = vmatpush1.msra.mxu0 %v2381
        %2430 = vmatprep.subr.mxu0 0.0
        %2431 = vmatpush1.msra.mxu0 0.0
        %2432 = vmatprep.subr.mxu0 0.0
        %2433 = vmatpush1.msra.mxu0 0.0
        %2434 = vmatprep.subr.mxu0 0.0
        %2435 = vmatpush1.msra.mxu0 0.0
        %2436 = vmatprep.subr.mxu0 0.0
        %2437 = vmatpush1.msra.mxu0 0.0
        %2438 = vmatprep.subr.mxu0 0.0
        %2439 = vmatpush1.msra.mxu0 0.0
        %2440 = vmatprep.subr.mxu0 0.0
        %2441 = vmatpush1.msra.mxu0 0.0
        %2442 = vmatprep.subr.mxu0 0.0
        %2443 = vmatpush1.msra.mxu0 0.0
        %2444 = vmatprep.subr.mxu0 0.0
        %2445 = vmatpush1.msra.mxu0 0.0
        %2446 = vmatprep.subr.mxu0 0.0
        %2447 = vmatpush1.msra.mxu0 0.0
        %2448 = vmatprep.subr.mxu0 0.0
        %2449 = vmatpush1.msra.mxu0 0.0
        %2450 = vmatprep.subr.mxu0 0.0
        %2451 = vmatpush1.msra.mxu0 0.0
        %2452 = vmatprep.subr.mxu0 0.0
        %2453 = vmatpush1.msra.mxu0 0.0
        %2454 = vmatprep.subr.mxu0 0.0
        %2455 = vmatpush1.msra.mxu0 0.0
        %2456 = vmatprep.subr.mxu0 0.0
        %2457 = vmatpush1.msra.mxu0 0.0
        %2458 = vmatprep.subr.mxu0 0.0
        %2459 = vmatpush1.msra.mxu0 0.0
        %2460 = vmatprep.subr.mxu0 0.0
        %2461 = vmatpush1.msra.mxu0 0.0
        %2462 = vmatprep.subr.mxu0 0.0
        %2463 = vmatpush1.msra.mxu0 0.0
        %2464 = vmatprep.subr.mxu0 0.0
        %2465 = vmatpush1.msra.mxu0 0.0
        %2466 = vmatprep.subr.mxu0 0.0
        %2467 = vmatpush1.msra.mxu0 0.0
        %2468 = vmatprep.subr.mxu0 0.0
        %2469 = vmatpush1.msra.mxu0 0.0
        %2470 = vmatprep.subr.mxu0 0.0
        %2471 = vmatpush1.msra.mxu0 0.0
        %2472 = vmatprep.subr.mxu0 0.0
        %2473 = vmatpush1.msra.mxu0 0.0
        %2474 = vmatprep.subr.mxu0 0.0
        %2475 = vmatpush1.msra.mxu0 0.0
        %2476 = vmatprep.subr.mxu0 0.0
        %2477 = vmatpush1.msra.mxu0 0.0
        %2478 = vmatprep.mubr.f32.mxu0 0.0
        %2479 = vmatmul.mubr.f32.gmra.mrb[0].mxu0 %v2391
        %v2480 = vpop.f32.mrb[0].mxu0
        %v2481 = vadd.f32 0.0, %v2480
        %v2482 = vpop.f32.mrb[0].mxu0
        %2483 = vmatprep.mubr.f32.mxu0 0.0
        %2484 = vmatmul.mubr.f32.gmra.mrb[0].mxu0 %v2394
        %v2485 = vpop.f32.mrb[0].mxu0
        %v2486 = vadd.f32 0.0, %v2485
        %v2487 = vpop.f32.mrb[0].mxu0
        %2488 = vmatprep.mubr.f32.mxu0 0.0
        %2489 = vmatmul.mubr.f32.gmra.mrb[0].mxu0 %v2397
        %v2490 = vpop.f32.mrb[0].mxu0
        %v2491 = vadd.f32 0.0, %v2490
        %v2492 = vpop.f32.mrb[0].mxu0
        %2493 = vmatprep.mubr.f32.mxu0 0.0
        %2494 = vmatmul.mubr.f32.gmra.mrb[0].mxu0 %v2400
        %v2495 = vpop.f32.mrb[0].mxu0
        %v2496 = vadd.f32 0.0, %v2495
        %v2497 = vpop.f32.mrb[0].mxu0
        %2498 = vmatprep.mubr.f32.mxu0 0.0
        %2499 = vmatmul.mubr.f32.gmra.mrb[0].mxu0 %v2403
        %v2500 = vpop.f32.mrb[0].mxu0
        %v2501 = vadd.f32 0.0, %v2500
        %v2502 = vpop.f32.mrb[0].mxu0
        %2503 = vmatprep.mubr.f32.mxu0 0.0
        %2504 = vmatmul.mubr.f32.gmra.mrb[0].mxu0 %v2406
        %v2505 = vpop.f32.mrb[0].mxu0
        %v2506 = vadd.f32 0.0, %v2505
        %v2507 = vpop.f32.mrb[0].mxu0
        %2508 = vmatprep.mubr.f32.mxu0 0.0
        %2509 = vmatmul.mubr.f32.gmra.mrb[0].mxu0 %v2409
        %v2510 = vpop.f32.mrb[0].mxu0
        %v2511 = vadd.f32 0.0, %v2510
        %v2512 = vpop.f32.mrb[0].mxu0
        %2513 = vmatprep.mubr.f32.mxu0 0.0
        %2514 = vmatmul.mubr.f32.gmra.mrb[0].mxu0 %v2412
        %v2515 = vpop.f32.mrb[0].mxu0
        %v2516 = vadd.f32 0.0, %v2515
        %v2517 = vpop.f32.mrb[0].mxu0
        %2518 = vdwg.mxu0
        %v2519 = vadd.f32 %v2349, %v2481
        %v2520 = vadd.f32 %v2350, %v2486
        %v2521 = vadd.f32 %v2351, %v2491
        %v2522 = vadd.f32 %v2352, %v2496
        %v2523 = vadd.f32 %v2353, %v2501
        %v2524 = vadd.f32 %v2354, %v2506
        %v2525 = vadd.f32 %v2355, %v2511
        %v2526 = vadd.f32 %v2356, %v2516
        %s2527 = scalar_lea.vmem %s4, 448
        %v2528 = vld [vmem:[%s2527] sm:$0xff]
        %v2529 = vld [vmem:[%s2527 + $0x8] sm:$0xff]
        %v2530 = vld [vmem:[%s2527 + $0x10] sm:$0xff]
        %v2531 = vld [vmem:[%s2527 + $0x18] sm:$0xff]
        %v2532 = vld [vmem:[%s2527 + $0x20] sm:$0xff]
        %v2533 = vld [vmem:[%s2527 + $0x28] sm:$0xff]
        %v2534 = vld [vmem:[%s2527 + $0x30] sm:$0xff]
        %v2535 = vld [vmem:[%s2527 + $0x38] sm:$0xff]
        %2536 = vrot.lane.b32.xlu0 %v1323, 121
        %v2537 = vpop.permute.xlu0 %2536
        %2538 = vrot.lane.b32.xlu0 %v1328, 121
        %v2539 = vpop.permute.xlu0 %2538
        %2540 = vrot.lane.b32.xlu0 %v1333, 121
        %v2541 = vpop.permute.xlu0 %2540
        %2542 = vrot.lane.b32.xlu0 %v1338, 121
        %v2543 = vpop.permute.xlu0 %2542
        %2544 = vrot.lane.b32.xlu0 %v1343, 121
        %v2545 = vpop.permute.xlu0 %2544
        %2546 = vrot.lane.b32.xlu0 %v1348, 121
        %v2547 = vpop.permute.xlu0 %2546
        %2548 = vrot.lane.b32.xlu0 %v1353, 121
        %v2549 = vpop.permute.xlu0 %2548
        %2550 = vrot.lane.b32.xlu0 %v1358, 121
        %v2551 = vpop.permute.xlu0 %2550
        %v2561 = vsel %vm1418, %v2528, 0
        %v2564 = vsel %vm1418, %v2529, 0
        %v2567 = vsel %vm1418, %v2530, 0
        %v2570 = vsel %vm1418, %v2531, 0
        %v2573 = vsel %vm1418, %v2532, 0
        %v2576 = vsel %vm1418, %v2533, 0
        %v2579 = vsel %vm1418, %v2534, 0
        %v2582 = vsel %vm1418, %v2535, 0
        %2584 = vmatprep.subr.mxu0 0.0
        %2585 = vmatpush1.msra.mxu0 %v2537
        %2586 = vmatprep.subr.mxu0 0.0
        %2587 = vmatpush1.msra.mxu0 %v2539
        %2588 = vmatprep.subr.mxu0 0.0
        %2589 = vmatpush1.msra.mxu0 %v2541
        %2590 = vmatprep.subr.mxu0 0.0
        %2591 = vmatpush1.msra.mxu0 %v2543
        %2592 = vmatprep.subr.mxu0 0.0
        %2593 = vmatpush1.msra.mxu0 %v2545
        %2594 = vmatprep.subr.mxu0 0.0
        %2595 = vmatpush1.msra.mxu0 %v2547
        %2596 = vmatprep.subr.mxu0 0.0
        %2597 = vmatpush1.msra.mxu0 %v2549
        %2598 = vmatprep.subr.mxu0 0.0
        %2599 = vmatpush1.msra.mxu0 %v2551
        %2600 = vmatprep.subr.mxu0 0.0
        %2601 = vmatpush1.msra.mxu0 0.0
        %2602 = vmatprep.subr.mxu0 0.0
        %2603 = vmatpush1.msra.mxu0 0.0
        %2604 = vmatprep.subr.mxu0 0.0
        %2605 = vmatpush1.msra.mxu0 0.0
        %2606 = vmatprep.subr.mxu0 0.0
        %2607 = vmatpush1.msra.mxu0 0.0
        %2608 = vmatprep.subr.mxu0 0.0
        %2609 = vmatpush1.msra.mxu0 0.0
        %2610 = vmatprep.subr.mxu0 0.0
        %2611 = vmatpush1.msra.mxu0 0.0
        %2612 = vmatprep.subr.mxu0 0.0
        %2613 = vmatpush1.msra.mxu0 0.0
        %2614 = vmatprep.subr.mxu0 0.0
        %2615 = vmatpush1.msra.mxu0 0.0
        %2616 = vmatprep.subr.mxu0 0.0
        %2617 = vmatpush1.msra.mxu0 0.0
        %2618 = vmatprep.subr.mxu0 0.0
        %2619 = vmatpush1.msra.mxu0 0.0
        %2620 = vmatprep.subr.mxu0 0.0
        %2621 = vmatpush1.msra.mxu0 0.0
        %2622 = vmatprep.subr.mxu0 0.0
        %2623 = vmatpush1.msra.mxu0 0.0
        %2624 = vmatprep.subr.mxu0 0.0
        %2625 = vmatpush1.msra.mxu0 0.0
        %2626 = vmatprep.subr.mxu0 0.0
        %2627 = vmatpush1.msra.mxu0 0.0
        %2628 = vmatprep.subr.mxu0 0.0
        %2629 = vmatpush1.msra.mxu0 0.0
        %2630 = vmatprep.subr.mxu0 0.0
        %2631 = vmatpush1.msra.mxu0 0.0
        %2632 = vmatprep.subr.mxu0 0.0
        %2633 = vmatpush1.msra.mxu0 0.0
        %2634 = vmatprep.subr.mxu0 0.0
        %2635 = vmatpush1.msra.mxu0 0.0
        %2636 = vmatprep.subr.mxu0 0.0
        %2637 = vmatpush1.msra.mxu0 0.0
        %2638 = vmatprep.subr.mxu0 0.0
        %2639 = vmatpush1.msra.mxu0 0.0
        %2640 = vmatprep.subr.mxu0 0.0
        %2641 = vmatpush1.msra.mxu0 0.0
        %2642 = vmatprep.subr.mxu0 0.0
        %2643 = vmatpush1.msra.mxu0 0.0
        %2644 = vmatprep.subr.mxu0 0.0
        %2645 = vmatpush1.msra.mxu0 0.0
        %2646 = vmatprep.subr.mxu0 0.0
        %2647 = vmatpush1.msra.mxu0 0.0
        %2648 = vmatprep.mubr.f32.mxu0 0.0
        %2649 = vmatmul.mubr.f32.gmra.mrb[0].mxu0 %v2561
        %v2650 = vpop.f32.mrb[0].mxu0
        %v2651 = vadd.f32 0.0, %v2650
        %v2652 = vpop.f32.mrb[0].mxu0
        %2653 = vmatprep.mubr.f32.mxu0 0.0
        %2654 = vmatmul.mubr.f32.gmra.mrb[0].mxu0 %v2564
        %v2655 = vpop.f32.mrb[0].mxu0
        %v2656 = vadd.f32 0.0, %v2655
        %v2657 = vpop.f32.mrb[0].mxu0
        %2658 = vmatprep.mubr.f32.mxu0 0.0
        %2659 = vmatmul.mubr.f32.gmra.mrb[0].mxu0 %v2567
        %v2660 = vpop.f32.mrb[0].mxu0
        %v2661 = vadd.f32 0.0, %v2660
        %v2662 = vpop.f32.mrb[0].mxu0
        %2663 = vmatprep.mubr.f32.mxu0 0.0
        %2664 = vmatmul.mubr.f32.gmra.mrb[0].mxu0 %v2570
        %v2665 = vpop.f32.mrb[0].mxu0
        %v2666 = vadd.f32 0.0, %v2665
        %v2667 = vpop.f32.mrb[0].mxu0
        %2668 = vmatprep.mubr.f32.mxu0 0.0
        %2669 = vmatmul.mubr.f32.gmra.mrb[0].mxu0 %v2573
        %v2670 = vpop.f32.mrb[0].mxu0
        %v2671 = vadd.f32 0.0, %v2670
        %v2672 = vpop.f32.mrb[0].mxu0
        %2673 = vmatprep.mubr.f32.mxu0 0.0
        %2674 = vmatmul.mubr.f32.gmra.mrb[0].mxu0 %v2576
        %v2675 = vpop.f32.mrb[0].mxu0
        %v2676 = vadd.f32 0.0, %v2675
        %v2677 = vpop.f32.mrb[0].mxu0
        %2678 = vmatprep.mubr.f32.mxu0 0.0
        %2679 = vmatmul.mubr.f32.gmra.mrb[0].mxu0 %v2579
        %v2680 = vpop.f32.mrb[0].mxu0
        %v2681 = vadd.f32 0.0, %v2680
        %v2682 = vpop.f32.mrb[0].mxu0
        %2683 = vmatprep.mubr.f32.mxu0 0.0
        %2684 = vmatmul.mubr.f32.gmra.mrb[0].mxu0 %v2582
        %v2685 = vpop.f32.mrb[0].mxu0
        %v2686 = vadd.f32 0.0, %v2685
        %v2687 = vpop.f32.mrb[0].mxu0
        %2688 = vdwg.mxu0
        %v2689 = vadd.f32 %v2519, %v2651
        %v2690 = vadd.f32 %v2520, %v2656
        %v2691 = vadd.f32 %v2521, %v2661
        %v2692 = vadd.f32 %v2522, %v2666
        %v2693 = vadd.f32 %v2523, %v2671
        %v2694 = vadd.f32 %v2524, %v2676
        %v2695 = vadd.f32 %v2525, %v2681
        %v2696 = vadd.f32 %v2526, %v2686
        %s2697 = scalar_lea.vmem %s4, 512
        %v2698 = vld [vmem:[%s2697] sm:$0xff]
        %v2699 = vld [vmem:[%s2697 + $0x8] sm:$0xff]
        %v2700 = vld [vmem:[%s2697 + $0x10] sm:$0xff]
        %v2701 = vld [vmem:[%s2697 + $0x18] sm:$0xff]
        %v2702 = vld [vmem:[%s2697 + $0x20] sm:$0xff]
        %v2703 = vld [vmem:[%s2697 + $0x28] sm:$0xff]
        %v2704 = vld [vmem:[%s2697 + $0x30] sm:$0xff]
        %v2705 = vld [vmem:[%s2697 + $0x38] sm:$0xff]
        %2706 = vrot.lane.b32.xlu0 %v1323, 120
        %v2707 = vpop.permute.xlu0 %2706
        %2708 = vrot.lane.b32.xlu0 %v1328, 120
        %v2709 = vpop.permute.xlu0 %2708
        %2710 = vrot.lane.b32.xlu0 %v1333, 120
        %v2711 = vpop.permute.xlu0 %2710
        %2712 = vrot.lane.b32.xlu0 %v1338, 120
        %v2713 = vpop.permute.xlu0 %2712
        %2714 = vrot.lane.b32.xlu0 %v1343, 120
        %v2715 = vpop.permute.xlu0 %2714
        %2716 = vrot.lane.b32.xlu0 %v1348, 120
        %v2717 = vpop.permute.xlu0 %2716
        %2718 = vrot.lane.b32.xlu0 %v1353, 120
        %v2719 = vpop.permute.xlu0 %2718
        %2720 = vrot.lane.b32.xlu0 %v1358, 120
        %v2721 = vpop.permute.xlu0 %2720
        %v2731 = vsel %vm1418, %v2698, 0
        %v2734 = vsel %vm1418, %v2699, 0
        %v2737 = vsel %vm1418, %v2700, 0
        %v2740 = vsel %vm1418, %v2701, 0
        %v2743 = vsel %vm1418, %v2702, 0
        %v2746 = vsel %vm1418, %v2703, 0
        %v2749 = vsel %vm1418, %v2704, 0
        %v2752 = vsel %vm1418, %v2705, 0
        %2754 = vmatprep.subr.mxu0 0.0
        %2755 = vmatpush1.msra.mxu0 %v2707
        %2756 = vmatprep.subr.mxu0 0.0
        %2757 = vmatpush1.msra.mxu0 %v2709
        %2758 = vmatprep.subr.mxu0 0.0
        %2759 = vmatpush1.msra.mxu0 %v2711
        %2760 = vmatprep.subr.mxu0 0.0
        %2761 = vmatpush1.msra.mxu0 %v2713
        %2762 = vmatprep.subr.mxu0 0.0
        %2763 = vmatpush1.msra.mxu0 %v2715
        %2764 = vmatprep.subr.mxu0 0.0
        %2765 = vmatpush1.msra.mxu0 %v2717
        %2766 = vmatprep.subr.mxu0 0.0
        %2767 = vmatpush1.msra.mxu0 %v2719
        %2768 = vmatprep.subr.mxu0 0.0
        %2769 = vmatpush1.msra.mxu0 %v2721
        %2770 = vmatprep.subr.mxu0 0.0
        %2771 = vmatpush1.msra.mxu0 0.0
        %2772 = vmatprep.subr.mxu0 0.0
        %2773 = vmatpush1.msra.mxu0 0.0
        %2774 = vmatprep.subr.mxu0 0.0
        %2775 = vmatpush1.msra.mxu0 0.0
        %2776 = vmatprep.subr.mxu0 0.0
        %2777 = vmatpush1.msra.mxu0 0.0
        %2778 = vmatprep.subr.mxu0 0.0
        %2779 = vmatpush1.msra.mxu0 0.0
        %2780 = vmatprep.subr.mxu0 0.0
        %2781 = vmatpush1.msra.mxu0 0.0
        %2782 = vmatprep.subr.mxu0 0.0
        %2783 = vmatpush1.msra.mxu0 0.0
        %2784 = vmatprep.subr.mxu0 0.0
        %2785 = vmatpush1.msra.mxu0 0.0
        %2786 = vmatprep.subr.mxu0 0.0
        %2787 = vmatpush1.msra.mxu0 0.0
        %2788 = vmatprep.subr.mxu0 0.0
        %2789 = vmatpush1.msra.mxu0 0.0
        %2790 = vmatprep.subr.mxu0 0.0
        %2791 = vmatpush1.msra.mxu0 0.0
        %2792 = vmatprep.subr.mxu0 0.0
        %2793 = vmatpush1.msra.mxu0 0.0
        %2794 = vmatprep.subr.mxu0 0.0
        %2795 = vmatpush1.msra.mxu0 0.0
        %2796 = vmatprep.subr.mxu0 0.0
        %2797 = vmatpush1.msra.mxu0 0.0
        %2798 = vmatprep.subr.mxu0 0.0
        %2799 = vmatpush1.msra.mxu0 0.0
        %2800 = vmatprep.subr.mxu0 0.0
        %2801 = vmatpush1.msra.mxu0 0.0
        %2802 = vmatprep.subr.mxu0 0.0
        %2803 = vmatpush1.msra.mxu0 0.0
        %2804 = vmatprep.subr.mxu0 0.0
        %2805 = vmatpush1.msra.mxu0 0.0
        %2806 = vmatprep.subr.mxu0 0.0
        %2807 = vmatpush1.msra.mxu0 0.0
        %2808 = vmatprep.subr.mxu0 0.0
        %2809 = vmatpush1.msra.mxu0 0.0
        %2810 = vmatprep.subr.mxu0 0.0
        %2811 = vmatpush1.msra.mxu0 0.0
        %2812 = vmatprep.subr.mxu0 0.0
        %2813 = vmatpush1.msra.mxu0 0.0
        %2814 = vmatprep.subr.mxu0 0.0
        %2815 = vmatpush1.msra.mxu0 0.0
        %2816 = vmatprep.subr.mxu0 0.0
        %2817 = vmatpush1.msra.mxu0 0.0
        %2818 = vmatprep.mubr.f32.mxu0 0.0
        %2819 = vmatmul.mubr.f32.gmra.mrb[0].mxu0 %v2731
        %v2820 = vpop.f32.mrb[0].mxu0
        %v2821 = vadd.f32 0.0, %v2820
        %v2822 = vpop.f32.mrb[0].mxu0
        %2823 = vmatprep.mubr.f32.mxu0 0.0
        %2824 = vmatmul.mubr.f32.gmra.mrb[0].mxu0 %v2734
        %v2825 = vpop.f32.mrb[0].mxu0
        %v2826 = vadd.f32 0.0, %v2825
        %v2827 = vpop.f32.mrb[0].mxu0
        %2828 = vmatprep.mubr.f32.mxu0 0.0
        %2829 = vmatmul.mubr.f32.gmra.mrb[0].mxu0 %v2737
        %v2830 = vpop.f32.mrb[0].mxu0
        %v2831 = vadd.f32 0.0, %v2830
        %v2832 = vpop.f32.mrb[0].mxu0
        %2833 = vmatprep.mubr.f32.mxu0 0.0
        %2834 = vmatmul.mubr.f32.gmra.mrb[0].mxu0 %v2740
        %v2835 = vpop.f32.mrb[0].mxu0
        %v2836 = vadd.f32 0.0, %v2835
        %v2837 = vpop.f32.mrb[0].mxu0
        %2838 = vmatprep.mubr.f32.mxu0 0.0
        %2839 = vmatmul.mubr.f32.gmra.mrb[0].mxu0 %v2743
        %v2840 = vpop.f32.mrb[0].mxu0
        %v2841 = vadd.f32 0.0, %v2840
        %v2842 = vpop.f32.mrb[0].mxu0
        %2843 = vmatprep.mubr.f32.mxu0 0.0
        %2844 = vmatmul.mubr.f32.gmra.mrb[0].mxu0 %v2746
        %v2845 = vpop.f32.mrb[0].mxu0
        %v2846 = vadd.f32 0.0, %v2845
        %v2847 = vpop.f32.mrb[0].mxu0
        %2848 = vmatprep.mubr.f32.mxu0 0.0
        %2849 = vmatmul.mubr.f32.gmra.mrb[0].mxu0 %v2749
        %v2850 = vpop.f32.mrb[0].mxu0
        %v2851 = vadd.f32 0.0, %v2850
        %v2852 = vpop.f32.mrb[0].mxu0
        %2853 = vmatprep.mubr.f32.mxu0 0.0
        %2854 = vmatmul.mubr.f32.gmra.mrb[0].mxu0 %v2752
        %v2855 = vpop.f32.mrb[0].mxu0
        %v2856 = vadd.f32 0.0, %v2855
        %v2857 = vpop.f32.mrb[0].mxu0
        %2858 = vdwg.mxu0
        %v2859 = vadd.f32 %v2689, %v2821
        %v2860 = vadd.f32 %v2690, %v2826
        %v2861 = vadd.f32 %v2691, %v2831
        %v2862 = vadd.f32 %v2692, %v2836
        %v2863 = vadd.f32 %v2693, %v2841
        %v2864 = vadd.f32 %v2694, %v2846
        %v2865 = vadd.f32 %v2695, %v2851
        %v2866 = vadd.f32 %v2696, %v2856
        %s2867 = scalar_lea.vmem %s4, 576
        %v2868 = vld [vmem:[%s2867] sm:$0xff]
        %v2869 = vld [vmem:[%s2867 + $0x8] sm:$0xff]
        %v2870 = vld [vmem:[%s2867 + $0x10] sm:$0xff]
        %v2871 = vld [vmem:[%s2867 + $0x18] sm:$0xff]
        %v2872 = vld [vmem:[%s2867 + $0x20] sm:$0xff]
        %v2873 = vld [vmem:[%s2867 + $0x28] sm:$0xff]
        %v2874 = vld [vmem:[%s2867 + $0x30] sm:$0xff]
        %v2875 = vld [vmem:[%s2867 + $0x38] sm:$0xff]
        %2876 = vrot.lane.b32.xlu0 %v1323, 119
        %v2877 = vpop.permute.xlu0 %2876
        %2878 = vrot.lane.b32.xlu0 %v1328, 119
        %v2879 = vpop.permute.xlu0 %2878
        %2880 = vrot.lane.b32.xlu0 %v1333, 119
        %v2881 = vpop.permute.xlu0 %2880
        %2882 = vrot.lane.b32.xlu0 %v1338, 119
        %v2883 = vpop.permute.xlu0 %2882
        %2884 = vrot.lane.b32.xlu0 %v1343, 119
        %v2885 = vpop.permute.xlu0 %2884
        %2886 = vrot.lane.b32.xlu0 %v1348, 119
        %v2887 = vpop.permute.xlu0 %2886
        %2888 = vrot.lane.b32.xlu0 %v1353, 119
        %v2889 = vpop.permute.xlu0 %2888
        %2890 = vrot.lane.b32.xlu0 %v1358, 119
        %v2891 = vpop.permute.xlu0 %2890
        %v2901 = vsel %vm1418, %v2868, 0
        %v2904 = vsel %vm1418, %v2869, 0
        %v2907 = vsel %vm1418, %v2870, 0
        %v2910 = vsel %vm1418, %v2871, 0
        %v2913 = vsel %vm1418, %v2872, 0
        %v2916 = vsel %vm1418, %v2873, 0
        %v2919 = vsel %vm1418, %v2874, 0
        %v2922 = vsel %vm1418, %v2875, 0
        %2924 = vmatprep.subr.mxu0 0.0
        %2925 = vmatpush1.msra.mxu0 %v2877
        %2926 = vmatprep.subr.mxu0 0.0
        %2927 = vmatpush1.msra.mxu0 %v2879
        %2928 = vmatprep.subr.mxu0 0.0
        %2929 = vmatpush1.msra.mxu0 %v2881
        %2930 = vmatprep.subr.mxu0 0.0
        %2931 = vmatpush1.msra.mxu0 %v2883
        %2932 = vmatprep.subr.mxu0 0.0
        %2933 = vmatpush1.msra.mxu0 %v2885
        %2934 = vmatprep.subr.mxu0 0.0
        %2935 = vmatpush1.msra.mxu0 %v2887
        %2936 = vmatprep.subr.mxu0 0.0
        %2937 = vmatpush1.msra.mxu0 %v2889
        %2938 = vmatprep.subr.mxu0 0.0
        %2939 = vmatpush1.msra.mxu0 %v2891
        %2940 = vmatprep.subr.mxu0 0.0
        %2941 = vmatpush1.msra.mxu0 0.0
        %2942 = vmatprep.subr.mxu0 0.0
        %2943 = vmatpush1.msra.mxu0 0.0
        %2944 = vmatprep.subr.mxu0 0.0
        %2945 = vmatpush1.msra.mxu0 0.0
        %2946 = vmatprep.subr.mxu0 0.0
        %2947 = vmatpush1.msra.mxu0 0.0
        %2948 = vmatprep.subr.mxu0 0.0
        %2949 = vmatpush1.msra.mxu0 0.0
        %2950 = vmatprep.subr.mxu0 0.0
        %2951 = vmatpush1.msra.mxu0 0.0
        %2952 = vmatprep.subr.mxu0 0.0
        %2953 = vmatpush1.msra.mxu0 0.0
        %2954 = vmatprep.subr.mxu0 0.0
        %2955 = vmatpush1.msra.mxu0 0.0
        %2956 = vmatprep.subr.mxu0 0.0
        %2957 = vmatpush1.msra.mxu0 0.0
        %2958 = vmatprep.subr.mxu0 0.0
        %2959 = vmatpush1.msra.mxu0 0.0
        %2960 = vmatprep.subr.mxu0 0.0
        %2961 = vmatpush1.msra.mxu0 0.0
        %2962 = vmatprep.subr.mxu0 0.0
        %2963 = vmatpush1.msra.mxu0 0.0
        %2964 = vmatprep.subr.mxu0 0.0
        %2965 = vmatpush1.msra.mxu0 0.0
        %2966 = vmatprep.subr.mxu0 0.0
        %2967 = vmatpush1.msra.mxu0 0.0
        %2968 = vmatprep.subr.mxu0 0.0
        %2969 = vmatpush1.msra.mxu0 0.0
        %2970 = vmatprep.subr.mxu0 0.0
        %2971 = vmatpush1.msra.mxu0 0.0
        %2972 = vmatprep.subr.mxu0 0.0
        %2973 = vmatpush1.msra.mxu0 0.0
        %2974 = vmatprep.subr.mxu0 0.0
        %2975 = vmatpush1.msra.mxu0 0.0
        %2976 = vmatprep.subr.mxu0 0.0
        %2977 = vmatpush1.msra.mxu0 0.0
        %2978 = vmatprep.subr.mxu0 0.0
        %2979 = vmatpush1.msra.mxu0 0.0
        %2980 = vmatprep.subr.mxu0 0.0
        %2981 = vmatpush1.msra.mxu0 0.0
        %2982 = vmatprep.subr.mxu0 0.0
        %2983 = vmatpush1.msra.mxu0 0.0
        %2984 = vmatprep.subr.mxu0 0.0
        %2985 = vmatpush1.msra.mxu0 0.0
        %2986 = vmatprep.subr.mxu0 0.0
        %2987 = vmatpush1.msra.mxu0 0.0
        %2988 = vmatprep.mubr.f32.mxu0 0.0
        %2989 = vmatmul.mubr.f32.gmra.mrb[0].mxu0 %v2901
        %v2990 = vpop.f32.mrb[0].mxu0
        %v2991 = vadd.f32 0.0, %v2990
        %v2992 = vpop.f32.mrb[0].mxu0
        %2993 = vmatprep.mubr.f32.mxu0 0.0
        %2994 = vmatmul.mubr.f32.gmra.mrb[0].mxu0 %v2904
        %v2995 = vpop.f32.mrb[0].mxu0
        %v2996 = vadd.f32 0.0, %v2995
        %v2997 = vpop.f32.mrb[0].mxu0
        %2998 = vmatprep.mubr.f32.mxu0 0.0
        %2999 = vmatmul.mubr.f32.gmra.mrb[0].mxu0 %v2907
        %v3000 = vpop.f32.mrb[0].mxu0
        %v3001 = vadd.f32 0.0, %v3000
        %v3002 = vpop.f32.mrb[0].mxu0
        %3003 = vmatprep.mubr.f32.mxu0 0.0
        %3004 = vmatmul.mubr.f32.gmra.mrb[0].mxu0 %v2910
        %v3005 = vpop.f32.mrb[0].mxu0
        %v3006 = vadd.f32 0.0, %v3005
        %v3007 = vpop.f32.mrb[0].mxu0
        %3008 = vmatprep.mubr.f32.mxu0 0.0
        %3009 = vmatmul.mubr.f32.gmra.mrb[0].mxu0 %v2913
        %v3010 = vpop.f32.mrb[0].mxu0
        %v3011 = vadd.f32 0.0, %v3010
        %v3012 = vpop.f32.mrb[0].mxu0
        %3013 = vmatprep.mubr.f32.mxu0 0.0
        %3014 = vmatmul.mubr.f32.gmra.mrb[0].mxu0 %v2916
        %v3015 = vpop.f32.mrb[0].mxu0
        %v3016 = vadd.f32 0.0, %v3015
        %v3017 = vpop.f32.mrb[0].mxu0
        %3018 = vmatprep.mubr.f32.mxu0 0.0
        %3019 = vmatmul.mubr.f32.gmra.mrb[0].mxu0 %v2919
        %v3020 = vpop.f32.mrb[0].mxu0
        %v3021 = vadd.f32 0.0, %v3020
        %v3022 = vpop.f32.mrb[0].mxu0
        %3023 = vmatprep.mubr.f32.mxu0 0.0
        %3024 = vmatmul.mubr.f32.gmra.mrb[0].mxu0 %v2922
        %v3025 = vpop.f32.mrb[0].mxu0
        %v3026 = vadd.f32 0.0, %v3025
        %v3027 = vpop.f32.mrb[0].mxu0
        %3028 = vdwg.mxu0
        %v3029 = vadd.f32 %v2859, %v2991
        %v3030 = vadd.f32 %v2860, %v2996
        %v3031 = vadd.f32 %v2861, %v3001
        %v3032 = vadd.f32 %v2862, %v3006
        %v3033 = vadd.f32 %v2863, %v3011
        %v3034 = vadd.f32 %v2864, %v3016
        %v3035 = vadd.f32 %v2865, %v3021
        %v3036 = vadd.f32 %v2866, %v3026
        %s3037 = scalar_lea.vmem %s4, 640
        %v3038 = vld [vmem:[%s3037] sm:$0xff]
        %v3039 = vld [vmem:[%s3037 + $0x8] sm:$0xff]
        %v3040 = vld [vmem:[%s3037 + $0x10] sm:$0xff]
        %v3041 = vld [vmem:[%s3037 + $0x18] sm:$0xff]
        %v3042 = vld [vmem:[%s3037 + $0x20] sm:$0xff]
        %v3043 = vld [vmem:[%s3037 + $0x28] sm:$0xff]
        %v3044 = vld [vmem:[%s3037 + $0x30] sm:$0xff]
        %v3045 = vld [vmem:[%s3037 + $0x38] sm:$0xff]
        %3046 = vrot.lane.b32.xlu0 %v1323, 118
        %v3047 = vpop.permute.xlu0 %3046
        %3048 = vrot.lane.b32.xlu0 %v1328, 118
        %v3049 = vpop.permute.xlu0 %3048
        %3050 = vrot.lane.b32.xlu0 %v1333, 118
        %v3051 = vpop.permute.xlu0 %3050
        %3052 = vrot.lane.b32.xlu0 %v1338, 118
        %v3053 = vpop.permute.xlu0 %3052
        %3054 = vrot.lane.b32.xlu0 %v1343, 118
        %v3055 = vpop.permute.xlu0 %3054
        %3056 = vrot.lane.b32.xlu0 %v1348, 118
        %v3057 = vpop.permute.xlu0 %3056
        %3058 = vrot.lane.b32.xlu0 %v1353, 118
        %v3059 = vpop.permute.xlu0 %3058
        %3060 = vrot.lane.b32.xlu0 %v1358, 118
        %v3061 = vpop.permute.xlu0 %3060
        %v3071 = vsel %vm1418, %v3038, 0
        %v3074 = vsel %vm1418, %v3039, 0
        %v3077 = vsel %vm1418, %v3040, 0
        %v3080 = vsel %vm1418, %v3041, 0
        %v3083 = vsel %vm1418, %v3042, 0
        %v3086 = vsel %vm1418, %v3043, 0
        %v3089 = vsel %vm1418, %v3044, 0
        %v3092 = vsel %vm1418, %v3045, 0
        %3094 = vmatprep.subr.mxu0 0.0
        %3095 = vmatpush1.msra.mxu0 %v3047
        %3096 = vmatprep.subr.mxu0 0.0
        %3097 = vmatpush1.msra.mxu0 %v3049
        %3098 = vmatprep.subr.mxu0 0.0
        %3099 = vmatpush1.msra.mxu0 %v3051
        %3100 = vmatprep.subr.mxu0 0.0
        %3101 = vmatpush1.msra.mxu0 %v3053
        %3102 = vmatprep.subr.mxu0 0.0
        %3103 = vmatpush1.msra.mxu0 %v3055
        %3104 = vmatprep.subr.mxu0 0.0
        %3105 = vmatpush1.msra.mxu0 %v3057
        %3106 = vmatprep.subr.mxu0 0.0
        %3107 = vmatpush1.msra.mxu0 %v3059
        %3108 = vmatprep.subr.mxu0 0.0
        %3109 = vmatpush1.msra.mxu0 %v3061
        %3110 = vmatprep.subr.mxu0 0.0
        %3111 = vmatpush1.msra.mxu0 0.0
        %3112 = vmatprep.subr.mxu0 0.0
        %3113 = vmatpush1.msra.mxu0 0.0
        %3114 = vmatprep.subr.mxu0 0.0
        %3115 = vmatpush1.msra.mxu0 0.0
        %3116 = vmatprep.subr.mxu0 0.0
        %3117 = vmatpush1.msra.mxu0 0.0
        %3118 = vmatprep.subr.mxu0 0.0
        %3119 = vmatpush1.msra.mxu0 0.0
        %3120 = vmatprep.subr.mxu0 0.0
        %3121 = vmatpush1.msra.mxu0 0.0
        %3122 = vmatprep.subr.mxu0 0.0
        %3123 = vmatpush1.msra.mxu0 0.0
        %3124 = vmatprep.subr.mxu0 0.0
        %3125 = vmatpush1.msra.mxu0 0.0
        %3126 = vmatprep.subr.mxu0 0.0
        %3127 = vmatpush1.msra.mxu0 0.0
        %3128 = vmatprep.subr.mxu0 0.0
        %3129 = vmatpush1.msra.mxu0 0.0
        %3130 = vmatprep.subr.mxu0 0.0
        %3131 = vmatpush1.msra.mxu0 0.0
        %3132 = vmatprep.subr.mxu0 0.0
        %3133 = vmatpush1.msra.mxu0 0.0
        %3134 = vmatprep.subr.mxu0 0.0
        %3135 = vmatpush1.msra.mxu0 0.0
        %3136 = vmatprep.subr.mxu0 0.0
        %3137 = vmatpush1.msra.mxu0 0.0
        %3138 = vmatprep.subr.mxu0 0.0
        %3139 = vmatpush1.msra.mxu0 0.0
        %3140 = vmatprep.subr.mxu0 0.0
        %3141 = vmatpush1.msra.mxu0 0.0
        %3142 = vmatprep.subr.mxu0 0.0
        %3143 = vmatpush1.msra.mxu0 0.0
        %3144 = vmatprep.subr.mxu0 0.0
        %3145 = vmatpush1.msra.mxu0 0.0
        %3146 = vmatprep.subr.mxu0 0.0
        %3147 = vmatpush1.msra.mxu0 0.0
        %3148 = vmatprep.subr.mxu0 0.0
        %3149 = vmatpush1.msra.mxu0 0.0
        %3150 = vmatprep.subr.mxu0 0.0
        %3151 = vmatpush1.msra.mxu0 0.0
        %3152 = vmatprep.subr.mxu0 0.0
        %3153 = vmatpush1.msra.mxu0 0.0
        %3154 = vmatprep.subr.mxu0 0.0
        %3155 = vmatpush1.msra.mxu0 0.0
        %3156 = vmatprep.subr.mxu0 0.0
        %3157 = vmatpush1.msra.mxu0 0.0
        %3158 = vmatprep.mubr.f32.mxu0 0.0
        %3159 = vmatmul.mubr.f32.gmra.mrb[0].mxu0 %v3071
        %v3160 = vpop.f32.mrb[0].mxu0
        %v3161 = vadd.f32 0.0, %v3160
        %v3162 = vpop.f32.mrb[0].mxu0
        %3163 = vmatprep.mubr.f32.mxu0 0.0
        %3164 = vmatmul.mubr.f32.gmra.mrb[0].mxu0 %v3074
        %v3165 = vpop.f32.mrb[0].mxu0
        %v3166 = vadd.f32 0.0, %v3165
        %v3167 = vpop.f32.mrb[0].mxu0
        %3168 = vmatprep.mubr.f32.mxu0 0.0
        %3169 = vmatmul.mubr.f32.gmra.mrb[0].mxu0 %v3077
        %v3170 = vpop.f32.mrb[0].mxu0
        %v3171 = vadd.f32 0.0, %v3170
        %v3172 = vpop.f32.mrb[0].mxu0
        %3173 = vmatprep.mubr.f32.mxu0 0.0
        %3174 = vmatmul.mubr.f32.gmra.mrb[0].mxu0 %v3080
        %v3175 = vpop.f32.mrb[0].mxu0
        %v3176 = vadd.f32 0.0, %v3175
        %v3177 = vpop.f32.mrb[0].mxu0
        %3178 = vmatprep.mubr.f32.mxu0 0.0
        %3179 = vmatmul.mubr.f32.gmra.mrb[0].mxu0 %v3083
        %v3180 = vpop.f32.mrb[0].mxu0
        %v3181 = vadd.f32 0.0, %v3180
        %v3182 = vpop.f32.mrb[0].mxu0
        %3183 = vmatprep.mubr.f32.mxu0 0.0
        %3184 = vmatmul.mubr.f32.gmra.mrb[0].mxu0 %v3086
        %v3185 = vpop.f32.mrb[0].mxu0
        %v3186 = vadd.f32 0.0, %v3185
        %v3187 = vpop.f32.mrb[0].mxu0
        %3188 = vmatprep.mubr.f32.mxu0 0.0
        %3189 = vmatmul.mubr.f32.gmra.mrb[0].mxu0 %v3089
        %v3190 = vpop.f32.mrb[0].mxu0
        %v3191 = vadd.f32 0.0, %v3190
        %v3192 = vpop.f32.mrb[0].mxu0
        %3193 = vmatprep.mubr.f32.mxu0 0.0
        %3194 = vmatmul.mubr.f32.gmra.mrb[0].mxu0 %v3092
        %v3195 = vpop.f32.mrb[0].mxu0
        %v3196 = vadd.f32 0.0, %v3195
        %v3197 = vpop.f32.mrb[0].mxu0
        %3198 = vdwg.mxu0
        %v3199 = vadd.f32 %v3029, %v3161
        %v3200 = vadd.f32 %v3030, %v3166
        %v3201 = vadd.f32 %v3031, %v3171
        %v3202 = vadd.f32 %v3032, %v3176
        %v3203 = vadd.f32 %v3033, %v3181
        %v3204 = vadd.f32 %v3034, %v3186
        %v3205 = vadd.f32 %v3035, %v3191
        %v3206 = vadd.f32 %v3036, %v3196
        %s3207 = scalar_lea.vmem %s4, 704
        %v3208 = vld [vmem:[%s3207] sm:$0xff]
        %v3209 = vld [vmem:[%s3207 + $0x8] sm:$0xff]
        %v3210 = vld [vmem:[%s3207 + $0x10] sm:$0xff]
        %v3211 = vld [vmem:[%s3207 + $0x18] sm:$0xff]
        %v3212 = vld [vmem:[%s3207 + $0x20] sm:$0xff]
        %v3213 = vld [vmem:[%s3207 + $0x28] sm:$0xff]
        %v3214 = vld [vmem:[%s3207 + $0x30] sm:$0xff]
        %v3215 = vld [vmem:[%s3207 + $0x38] sm:$0xff]
        %3216 = vrot.lane.b32.xlu0 %v1323, 117
        %v3217 = vpop.permute.xlu0 %3216
        %3218 = vrot.lane.b32.xlu0 %v1328, 117
        %v3219 = vpop.permute.xlu0 %3218
        %3220 = vrot.lane.b32.xlu0 %v1333, 117
        %v3221 = vpop.permute.xlu0 %3220
        %3222 = vrot.lane.b32.xlu0 %v1338, 117
        %v3223 = vpop.permute.xlu0 %3222
        %3224 = vrot.lane.b32.xlu0 %v1343, 117
        %v3225 = vpop.permute.xlu0 %3224
        %3226 = vrot.lane.b32.xlu0 %v1348, 117
        %v3227 = vpop.permute.xlu0 %3226
        %3228 = vrot.lane.b32.xlu0 %v1353, 117
        %v3229 = vpop.permute.xlu0 %3228
        %3230 = vrot.lane.b32.xlu0 %v1358, 117
        %v3231 = vpop.permute.xlu0 %3230
        %v3241 = vsel %vm1418, %v3208, 0
        %v3244 = vsel %vm1418, %v3209, 0
        %v3247 = vsel %vm1418, %v3210, 0
        %v3250 = vsel %vm1418, %v3211, 0
        %v3253 = vsel %vm1418, %v3212, 0
        %v3256 = vsel %vm1418, %v3213, 0
        %v3259 = vsel %vm1418, %v3214, 0
        %v3262 = vsel %vm1418, %v3215, 0
        %3264 = vmatprep.subr.mxu0 0.0
        %3265 = vmatpush1.msra.mxu0 %v3217
        %3266 = vmatprep.subr.mxu0 0.0
        %3267 = vmatpush1.msra.mxu0 %v3219
        %3268 = vmatprep.subr.mxu0 0.0
        %3269 = vmatpush1.msra.mxu0 %v3221
        %3270 = vmatprep.subr.mxu0 0.0
        %3271 = vmatpush1.msra.mxu0 %v3223
        %3272 = vmatprep.subr.mxu0 0.0
        %3273 = vmatpush1.msra.mxu0 %v3225
        %3274 = vmatprep.subr.mxu0 0.0
        %3275 = vmatpush1.msra.mxu0 %v3227
        %3276 = vmatprep.subr.mxu0 0.0
        %3277 = vmatpush1.msra.mxu0 %v3229
        %3278 = vmatprep.subr.mxu0 0.0
        %3279 = vmatpush1.msra.mxu0 %v3231
        %3280 = vmatprep.subr.mxu0 0.0
        %3281 = vmatpush1.msra.mxu0 0.0
        %3282 = vmatprep.subr.mxu0 0.0
        %3283 = vmatpush1.msra.mxu0 0.0
        %3284 = vmatprep.subr.mxu0 0.0
        %3285 = vmatpush1.msra.mxu0 0.0
        %3286 = vmatprep.subr.mxu0 0.0
        %3287 = vmatpush1.msra.mxu0 0.0
        %3288 = vmatprep.subr.mxu0 0.0
        %3289 = vmatpush1.msra.mxu0 0.0
        %3290 = vmatprep.subr.mxu0 0.0
        %3291 = vmatpush1.msra.mxu0 0.0
        %3292 = vmatprep.subr.mxu0 0.0
        %3293 = vmatpush1.msra.mxu0 0.0
        %3294 = vmatprep.subr.mxu0 0.0
        %3295 = vmatpush1.msra.mxu0 0.0
        %3296 = vmatprep.subr.mxu0 0.0
        %3297 = vmatpush1.msra.mxu0 0.0
        %3298 = vmatprep.subr.mxu0 0.0
        %3299 = vmatpush1.msra.mxu0 0.0
        %3300 = vmatprep.subr.mxu0 0.0
        %3301 = vmatpush1.msra.mxu0 0.0
        %3302 = vmatprep.subr.mxu0 0.0
        %3303 = vmatpush1.msra.mxu0 0.0
        %3304 = vmatprep.subr.mxu0 0.0
        %3305 = vmatpush1.msra.mxu0 0.0
        %3306 = vmatprep.subr.mxu0 0.0
        %3307 = vmatpush1.msra.mxu0 0.0
        %3308 = vmatprep.subr.mxu0 0.0
        %3309 = vmatpush1.msra.mxu0 0.0
        %3310 = vmatprep.subr.mxu0 0.0
        %3311 = vmatpush1.msra.mxu0 0.0
        %3312 = vmatprep.subr.mxu0 0.0
        %3313 = vmatpush1.msra.mxu0 0.0
        %3314 = vmatprep.subr.mxu0 0.0
        %3315 = vmatpush1.msra.mxu0 0.0
        %3316 = vmatprep.subr.mxu0 0.0
        %3317 = vmatpush1.msra.mxu0 0.0
        %3318 = vmatprep.subr.mxu0 0.0
        %3319 = vmatpush1.msra.mxu0 0.0
        %3320 = vmatprep.subr.mxu0 0.0
        %3321 = vmatpush1.msra.mxu0 0.0
        %3322 = vmatprep.subr.mxu0 0.0
        %3323 = vmatpush1.msra.mxu0 0.0
        %3324 = vmatprep.subr.mxu0 0.0
        %3325 = vmatpush1.msra.mxu0 0.0
        %3326 = vmatprep.subr.mxu0 0.0
        %3327 = vmatpush1.msra.mxu0 0.0
        %3328 = vmatprep.mubr.f32.mxu0 0.0
        %3329 = vmatmul.mubr.f32.gmra.mrb[0].mxu0 %v3241
        %v3330 = vpop.f32.mrb[0].mxu0
        %v3331 = vadd.f32 0.0, %v3330
        %v3332 = vpop.f32.mrb[0].mxu0
        %3333 = vmatprep.mubr.f32.mxu0 0.0
        %3334 = vmatmul.mubr.f32.gmra.mrb[0].mxu0 %v3244
        %v3335 = vpop.f32.mrb[0].mxu0
        %v3336 = vadd.f32 0.0, %v3335
        %v3337 = vpop.f32.mrb[0].mxu0
        %3338 = vmatprep.mubr.f32.mxu0 0.0
        %3339 = vmatmul.mubr.f32.gmra.mrb[0].mxu0 %v3247
        %v3340 = vpop.f32.mrb[0].mxu0
        %v3341 = vadd.f32 0.0, %v3340
        %v3342 = vpop.f32.mrb[0].mxu0
        %3343 = vmatprep.mubr.f32.mxu0 0.0
        %3344 = vmatmul.mubr.f32.gmra.mrb[0].mxu0 %v3250
        %v3345 = vpop.f32.mrb[0].mxu0
        %v3346 = vadd.f32 0.0, %v3345
        %v3347 = vpop.f32.mrb[0].mxu0
        %3348 = vmatprep.mubr.f32.mxu0 0.0
        %3349 = vmatmul.mubr.f32.gmra.mrb[0].mxu0 %v3253
        %v3350 = vpop.f32.mrb[0].mxu0
        %v3351 = vadd.f32 0.0, %v3350
        %v3352 = vpop.f32.mrb[0].mxu0
        %3353 = vmatprep.mubr.f32.mxu0 0.0
        %3354 = vmatmul.mubr.f32.gmra.mrb[0].mxu0 %v3256
        %v3355 = vpop.f32.mrb[0].mxu0
        %v3356 = vadd.f32 0.0, %v3355
        %v3357 = vpop.f32.mrb[0].mxu0
        %3358 = vmatprep.mubr.f32.mxu0 0.0
        %3359 = vmatmul.mubr.f32.gmra.mrb[0].mxu0 %v3259
        %v3360 = vpop.f32.mrb[0].mxu0
        %v3361 = vadd.f32 0.0, %v3360
        %v3362 = vpop.f32.mrb[0].mxu0
        %3363 = vmatprep.mubr.f32.mxu0 0.0
        %3364 = vmatmul.mubr.f32.gmra.mrb[0].mxu0 %v3262
        %v3365 = vpop.f32.mrb[0].mxu0
        %v3366 = vadd.f32 0.0, %v3365
        %v3367 = vpop.f32.mrb[0].mxu0
        %3368 = vdwg.mxu0
        %v3369 = vadd.f32 %v3199, %v3331
        %v3370 = vadd.f32 %v3200, %v3336
        %v3371 = vadd.f32 %v3201, %v3341
        %v3372 = vadd.f32 %v3202, %v3346
        %v3373 = vadd.f32 %v3203, %v3351
        %v3374 = vadd.f32 %v3204, %v3356
        %v3375 = vadd.f32 %v3205, %v3361
        %v3376 = vadd.f32 %v3206, %v3366
        %s3377 = scalar_lea.vmem %s4, 768
        %v3378 = vld [vmem:[%s3377] sm:$0xff]
        %v3379 = vld [vmem:[%s3377 + $0x8] sm:$0xff]
        %v3380 = vld [vmem:[%s3377 + $0x10] sm:$0xff]
        %v3381 = vld [vmem:[%s3377 + $0x18] sm:$0xff]
        %v3382 = vld [vmem:[%s3377 + $0x20] sm:$0xff]
        %v3383 = vld [vmem:[%s3377 + $0x28] sm:$0xff]
        %v3384 = vld [vmem:[%s3377 + $0x30] sm:$0xff]
        %v3385 = vld [vmem:[%s3377 + $0x38] sm:$0xff]
        %3386 = vrot.lane.b32.xlu0 %v1323, 116
        %v3387 = vpop.permute.xlu0 %3386
        %3388 = vrot.lane.b32.xlu0 %v1328, 116
        %v3389 = vpop.permute.xlu0 %3388
        %3390 = vrot.lane.b32.xlu0 %v1333, 116
        %v3391 = vpop.permute.xlu0 %3390
        %3392 = vrot.lane.b32.xlu0 %v1338, 116
        %v3393 = vpop.permute.xlu0 %3392
        %3394 = vrot.lane.b32.xlu0 %v1343, 116
        %v3395 = vpop.permute.xlu0 %3394
        %3396 = vrot.lane.b32.xlu0 %v1348, 116
        %v3397 = vpop.permute.xlu0 %3396
        %3398 = vrot.lane.b32.xlu0 %v1353, 116
        %v3399 = vpop.permute.xlu0 %3398
        %3400 = vrot.lane.b32.xlu0 %v1358, 116
        %v3401 = vpop.permute.xlu0 %3400
        %v3411 = vsel %vm1418, %v3378, 0
        %v3414 = vsel %vm1418, %v3379, 0
        %v3417 = vsel %vm1418, %v3380, 0
        %v3420 = vsel %vm1418, %v3381, 0
        %v3423 = vsel %vm1418, %v3382, 0
        %v3426 = vsel %vm1418, %v3383, 0
        %v3429 = vsel %vm1418, %v3384, 0
        %v3432 = vsel %vm1418, %v3385, 0
        %3434 = vmatprep.subr.mxu0 0.0
        %3435 = vmatpush1.msra.mxu0 %v3387
        %3436 = vmatprep.subr.mxu0 0.0
        %3437 = vmatpush1.msra.mxu0 %v3389
        %3438 = vmatprep.subr.mxu0 0.0
        %3439 = vmatpush1.msra.mxu0 %v3391
        %3440 = vmatprep.subr.mxu0 0.0
        %3441 = vmatpush1.msra.mxu0 %v3393
        %3442 = vmatprep.subr.mxu0 0.0
        %3443 = vmatpush1.msra.mxu0 %v3395
        %3444 = vmatprep.subr.mxu0 0.0
        %3445 = vmatpush1.msra.mxu0 %v3397
        %3446 = vmatprep.subr.mxu0 0.0
        %3447 = vmatpush1.msra.mxu0 %v3399
        %3448 = vmatprep.subr.mxu0 0.0
        %3449 = vmatpush1.msra.mxu0 %v3401
        %3450 = vmatprep.subr.mxu0 0.0
        %3451 = vmatpush1.msra.mxu0 0.0
        %3452 = vmatprep.subr.mxu0 0.0
        %3453 = vmatpush1.msra.mxu0 0.0
        %3454 = vmatprep.subr.mxu0 0.0
        %3455 = vmatpush1.msra.mxu0 0.0
        %3456 = vmatprep.subr.mxu0 0.0
        %3457 = vmatpush1.msra.mxu0 0.0
        %3458 = vmatprep.subr.mxu0 0.0
        %3459 = vmatpush1.msra.mxu0 0.0
        %3460 = vmatprep.subr.mxu0 0.0
        %3461 = vmatpush1.msra.mxu0 0.0
        %3462 = vmatprep.subr.mxu0 0.0
        %3463 = vmatpush1.msra.mxu0 0.0
        %3464 = vmatprep.subr.mxu0 0.0
        %3465 = vmatpush1.msra.mxu0 0.0
        %3466 = vmatprep.subr.mxu0 0.0
        %3467 = vmatpush1.msra.mxu0 0.0
        %3468 = vmatprep.subr.mxu0 0.0
        %3469 = vmatpush1.msra.mxu0 0.0
        %3470 = vmatprep.subr.mxu0 0.0
        %3471 = vmatpush1.msra.mxu0 0.0
        %3472 = vmatprep.subr.mxu0 0.0
        %3473 = vmatpush1.msra.mxu0 0.0
        %3474 = vmatprep.subr.mxu0 0.0
        %3475 = vmatpush1.msra.mxu0 0.0
        %3476 = vmatprep.subr.mxu0 0.0
        %3477 = vmatpush1.msra.mxu0 0.0
        %3478 = vmatprep.subr.mxu0 0.0
        %3479 = vmatpush1.msra.mxu0 0.0
        %3480 = vmatprep.subr.mxu0 0.0
        %3481 = vmatpush1.msra.mxu0 0.0
        %3482 = vmatprep.subr.mxu0 0.0
        %3483 = vmatpush1.msra.mxu0 0.0
        %3484 = vmatprep.subr.mxu0 0.0
        %3485 = vmatpush1.msra.mxu0 0.0
        %3486 = vmatprep.subr.mxu0 0.0
        %3487 = vmatpush1.msra.mxu0 0.0
        %3488 = vmatprep.subr.mxu0 0.0
        %3489 = vmatpush1.msra.mxu0 0.0
        %3490 = vmatprep.subr.mxu0 0.0
        %3491 = vmatpush1.msra.mxu0 0.0
        %3492 = vmatprep.subr.mxu0 0.0
        %3493 = vmatpush1.msra.mxu0 0.0
        %3494 = vmatprep.subr.mxu0 0.0
        %3495 = vmatpush1.msra.mxu0 0.0
        %3496 = vmatprep.subr.mxu0 0.0
        %3497 = vmatpush1.msra.mxu0 0.0
        %3498 = vmatprep.mubr.f32.mxu0 0.0
        %3499 = vmatmul.mubr.f32.gmra.mrb[0].mxu0 %v3411
        %v3500 = vpop.f32.mrb[0].mxu0
        %v3501 = vadd.f32 0.0, %v3500
        %v3502 = vpop.f32.mrb[0].mxu0
        %3503 = vmatprep.mubr.f32.mxu0 0.0
        %3504 = vmatmul.mubr.f32.gmra.mrb[0].mxu0 %v3414
        %v3505 = vpop.f32.mrb[0].mxu0
        %v3506 = vadd.f32 0.0, %v3505
        %v3507 = vpop.f32.mrb[0].mxu0
        %3508 = vmatprep.mubr.f32.mxu0 0.0
        %3509 = vmatmul.mubr.f32.gmra.mrb[0].mxu0 %v3417
        %v3510 = vpop.f32.mrb[0].mxu0
        %v3511 = vadd.f32 0.0, %v3510
        %v3512 = vpop.f32.mrb[0].mxu0
        %3513 = vmatprep.mubr.f32.mxu0 0.0
        %3514 = vmatmul.mubr.f32.gmra.mrb[0].mxu0 %v3420
        %v3515 = vpop.f32.mrb[0].mxu0
        %v3516 = vadd.f32 0.0, %v3515
        %v3517 = vpop.f32.mrb[0].mxu0
        %3518 = vmatprep.mubr.f32.mxu0 0.0
        %3519 = vmatmul.mubr.f32.gmra.mrb[0].mxu0 %v3423
        %v3520 = vpop.f32.mrb[0].mxu0
        %v3521 = vadd.f32 0.0, %v3520
        %v3522 = vpop.f32.mrb[0].mxu0
        %3523 = vmatprep.mubr.f32.mxu0 0.0
        %3524 = vmatmul.mubr.f32.gmra.mrb[0].mxu0 %v3426
        %v3525 = vpop.f32.mrb[0].mxu0
        %v3526 = vadd.f32 0.0, %v3525
        %v3527 = vpop.f32.mrb[0].mxu0
        %3528 = vmatprep.mubr.f32.mxu0 0.0
        %3529 = vmatmul.mubr.f32.gmra.mrb[0].mxu0 %v3429
        %v3530 = vpop.f32.mrb[0].mxu0
        %v3531 = vadd.f32 0.0, %v3530
        %v3532 = vpop.f32.mrb[0].mxu0
        %3533 = vmatprep.mubr.f32.mxu0 0.0
        %3534 = vmatmul.mubr.f32.gmra.mrb[0].mxu0 %v3432
        %v3535 = vpop.f32.mrb[0].mxu0
        %v3536 = vadd.f32 0.0, %v3535
        %v3537 = vpop.f32.mrb[0].mxu0
        %3538 = vdwg.mxu0
        %v3539 = vadd.f32 %v3369, %v3501
        %v3540 = vadd.f32 %v3370, %v3506
        %v3541 = vadd.f32 %v3371, %v3511
        %v3542 = vadd.f32 %v3372, %v3516
        %v3543 = vadd.f32 %v3373, %v3521
        %v3544 = vadd.f32 %v3374, %v3526
        %v3545 = vadd.f32 %v3375, %v3531
        %v3546 = vadd.f32 %v3376, %v3536
        %s3547 = scalar_lea.vmem %s4, 832
        %v3548 = vld [vmem:[%s3547] sm:$0xff]
        %v3549 = vld [vmem:[%s3547 + $0x8] sm:$0xff]
        %v3550 = vld [vmem:[%s3547 + $0x10] sm:$0xff]
        %v3551 = vld [vmem:[%s3547 + $0x18] sm:$0xff]
        %v3552 = vld [vmem:[%s3547 + $0x20] sm:$0xff]
        %v3553 = vld [vmem:[%s3547 + $0x28] sm:$0xff]
        %v3554 = vld [vmem:[%s3547 + $0x30] sm:$0xff]
        %v3555 = vld [vmem:[%s3547 + $0x38] sm:$0xff]
        %3556 = vrot.lane.b32.xlu0 %v1323, 115
        %v3557 = vpop.permute.xlu0 %3556
        %3558 = vrot.lane.b32.xlu0 %v1328, 115
        %v3559 = vpop.permute.xlu0 %3558
        %3560 = vrot.lane.b32.xlu0 %v1333, 115
        %v3561 = vpop.permute.xlu0 %3560
        %3562 = vrot.lane.b32.xlu0 %v1338, 115
        %v3563 = vpop.permute.xlu0 %3562
        %3564 = vrot.lane.b32.xlu0 %v1343, 115
        %v3565 = vpop.permute.xlu0 %3564
        %3566 = vrot.lane.b32.xlu0 %v1348, 115
        %v3567 = vpop.permute.xlu0 %3566
        %3568 = vrot.lane.b32.xlu0 %v1353, 115
        %v3569 = vpop.permute.xlu0 %3568
        %3570 = vrot.lane.b32.xlu0 %v1358, 115
        %v3571 = vpop.permute.xlu0 %3570
        %v3581 = vsel %vm1418, %v3548, 0
        %v3584 = vsel %vm1418, %v3549, 0
        %v3587 = vsel %vm1418, %v3550, 0
        %v3590 = vsel %vm1418, %v3551, 0
        %v3593 = vsel %vm1418, %v3552, 0
        %v3596 = vsel %vm1418, %v3553, 0
        %v3599 = vsel %vm1418, %v3554, 0
        %v3602 = vsel %vm1418, %v3555, 0
        %3604 = vmatprep.subr.mxu0 0.0
        %3605 = vmatpush1.msra.mxu0 %v3557
        %3606 = vmatprep.subr.mxu0 0.0
        %3607 = vmatpush1.msra.mxu0 %v3559
        %3608 = vmatprep.subr.mxu0 0.0
        %3609 = vmatpush1.msra.mxu0 %v3561
        %3610 = vmatprep.subr.mxu0 0.0
        %3611 = vmatpush1.msra.mxu0 %v3563
        %3612 = vmatprep.subr.mxu0 0.0
        %3613 = vmatpush1.msra.mxu0 %v3565
        %3614 = vmatprep.subr.mxu0 0.0
        %3615 = vmatpush1.msra.mxu0 %v3567
        %3616 = vmatprep.subr.mxu0 0.0
        %3617 = vmatpush1.msra.mxu0 %v3569
        %3618 = vmatprep.subr.mxu0 0.0
        %3619 = vmatpush1.msra.mxu0 %v3571
        %3620 = vmatprep.subr.mxu0 0.0
        %3621 = vmatpush1.msra.mxu0 0.0
        %3622 = vmatprep.subr.mxu0 0.0
        %3623 = vmatpush1.msra.mxu0 0.0
        %3624 = vmatprep.subr.mxu0 0.0
        %3625 = vmatpush1.msra.mxu0 0.0
        %3626 = vmatprep.subr.mxu0 0.0
        %3627 = vmatpush1.msra.mxu0 0.0
        %3628 = vmatprep.subr.mxu0 0.0
        %3629 = vmatpush1.msra.mxu0 0.0
        %3630 = vmatprep.subr.mxu0 0.0
        %3631 = vmatpush1.msra.mxu0 0.0
        %3632 = vmatprep.subr.mxu0 0.0
        %3633 = vmatpush1.msra.mxu0 0.0
        %3634 = vmatprep.subr.mxu0 0.0
        %3635 = vmatpush1.msra.mxu0 0.0
        %3636 = vmatprep.subr.mxu0 0.0
        %3637 = vmatpush1.msra.mxu0 0.0
        %3638 = vmatprep.subr.mxu0 0.0
        %3639 = vmatpush1.msra.mxu0 0.0
        %3640 = vmatprep.subr.mxu0 0.0
        %3641 = vmatpush1.msra.mxu0 0.0
        %3642 = vmatprep.subr.mxu0 0.0
        %3643 = vmatpush1.msra.mxu0 0.0
        %3644 = vmatprep.subr.mxu0 0.0
        %3645 = vmatpush1.msra.mxu0 0.0
        %3646 = vmatprep.subr.mxu0 0.0
        %3647 = vmatpush1.msra.mxu0 0.0
        %3648 = vmatprep.subr.mxu0 0.0
        %3649 = vmatpush1.msra.mxu0 0.0
        %3650 = vmatprep.subr.mxu0 0.0
        %3651 = vmatpush1.msra.mxu0 0.0
        %3652 = vmatprep.subr.mxu0 0.0
        %3653 = vmatpush1.msra.mxu0 0.0
        %3654 = vmatprep.subr.mxu0 0.0
        %3655 = vmatpush1.msra.mxu0 0.0
        %3656 = vmatprep.subr.mxu0 0.0
        %3657 = vmatpush1.msra.mxu0 0.0
        %3658 = vmatprep.subr.mxu0 0.0
        %3659 = vmatpush1.msra.mxu0 0.0
        %3660 = vmatprep.subr.mxu0 0.0
        %3661 = vmatpush1.msra.mxu0 0.0
        %3662 = vmatprep.subr.mxu0 0.0
        %3663 = vmatpush1.msra.mxu0 0.0
        %3664 = vmatprep.subr.mxu0 0.0
        %3665 = vmatpush1.msra.mxu0 0.0
        %3666 = vmatprep.subr.mxu0 0.0
        %3667 = vmatpush1.msra.mxu0 0.0
        %3668 = vmatprep.mubr.f32.mxu0 0.0
        %3669 = vmatmul.mubr.f32.gmra.mrb[0].mxu0 %v3581
        %v3670 = vpop.f32.mrb[0].mxu0
        %v3671 = vadd.f32 0.0, %v3670
        %v3672 = vpop.f32.mrb[0].mxu0
        %3673 = vmatprep.mubr.f32.mxu0 0.0
        %3674 = vmatmul.mubr.f32.gmra.mrb[0].mxu0 %v3584
        %v3675 = vpop.f32.mrb[0].mxu0
        %v3676 = vadd.f32 0.0, %v3675
        %v3677 = vpop.f32.mrb[0].mxu0
        %3678 = vmatprep.mubr.f32.mxu0 0.0
        %3679 = vmatmul.mubr.f32.gmra.mrb[0].mxu0 %v3587
        %v3680 = vpop.f32.mrb[0].mxu0
        %v3681 = vadd.f32 0.0, %v3680
        %v3682 = vpop.f32.mrb[0].mxu0
        %3683 = vmatprep.mubr.f32.mxu0 0.0
        %3684 = vmatmul.mubr.f32.gmra.mrb[0].mxu0 %v3590
        %v3685 = vpop.f32.mrb[0].mxu0
        %v3686 = vadd.f32 0.0, %v3685
        %v3687 = vpop.f32.mrb[0].mxu0
        %3688 = vmatprep.mubr.f32.mxu0 0.0
        %3689 = vmatmul.mubr.f32.gmra.mrb[0].mxu0 %v3593
        %v3690 = vpop.f32.mrb[0].mxu0
        %v3691 = vadd.f32 0.0, %v3690
        %v3692 = vpop.f32.mrb[0].mxu0
        %3693 = vmatprep.mubr.f32.mxu0 0.0
        %3694 = vmatmul.mubr.f32.gmra.mrb[0].mxu0 %v3596
        %v3695 = vpop.f32.mrb[0].mxu0
        %v3696 = vadd.f32 0.0, %v3695
        %v3697 = vpop.f32.mrb[0].mxu0
        %3698 = vmatprep.mubr.f32.mxu0 0.0
        %3699 = vmatmul.mubr.f32.gmra.mrb[0].mxu0 %v3599
        %v3700 = vpop.f32.mrb[0].mxu0
        %v3701 = vadd.f32 0.0, %v3700
        %v3702 = vpop.f32.mrb[0].mxu0
        %3703 = vmatprep.mubr.f32.mxu0 0.0
        %3704 = vmatmul.mubr.f32.gmra.mrb[0].mxu0 %v3602
        %v3705 = vpop.f32.mrb[0].mxu0
        %v3706 = vadd.f32 0.0, %v3705
        %v3707 = vpop.f32.mrb[0].mxu0
        %3708 = vdwg.mxu0
        %v3709 = vadd.f32 %v3539, %v3671
        %v3710 = vadd.f32 %v3540, %v3676
        %v3711 = vadd.f32 %v3541, %v3681
        %v3712 = vadd.f32 %v3542, %v3686
        %v3713 = vadd.f32 %v3543, %v3691
        %v3714 = vadd.f32 %v3544, %v3696
        %v3715 = vadd.f32 %v3545, %v3701
        %v3716 = vadd.f32 %v3546, %v3706
        %s3717 = scalar_lea.vmem %s4, 896
        %v3718 = vld [vmem:[%s3717] sm:$0xff]
        %v3719 = vld [vmem:[%s3717 + $0x8] sm:$0xff]
        %v3720 = vld [vmem:[%s3717 + $0x10] sm:$0xff]
        %v3721 = vld [vmem:[%s3717 + $0x18] sm:$0xff]
        %v3722 = vld [vmem:[%s3717 + $0x20] sm:$0xff]
        %v3723 = vld [vmem:[%s3717 + $0x28] sm:$0xff]
        %v3724 = vld [vmem:[%s3717 + $0x30] sm:$0xff]
        %v3725 = vld [vmem:[%s3717 + $0x38] sm:$0xff]
        %3726 = vrot.lane.b32.xlu0 %v1323, 114
        %v3727 = vpop.permute.xlu0 %3726
        %3728 = vrot.lane.b32.xlu0 %v1328, 114
        %v3729 = vpop.permute.xlu0 %3728
        %3730 = vrot.lane.b32.xlu0 %v1333, 114
        %v3731 = vpop.permute.xlu0 %3730
        %3732 = vrot.lane.b32.xlu0 %v1338, 114
        %v3733 = vpop.permute.xlu0 %3732
        %3734 = vrot.lane.b32.xlu0 %v1343, 114
        %v3735 = vpop.permute.xlu0 %3734
        %3736 = vrot.lane.b32.xlu0 %v1348, 114
        %v3737 = vpop.permute.xlu0 %3736
        %3738 = vrot.lane.b32.xlu0 %v1353, 114
        %v3739 = vpop.permute.xlu0 %3738
        %3740 = vrot.lane.b32.xlu0 %v1358, 114
        %v3741 = vpop.permute.xlu0 %3740
        %v3751 = vsel %vm1418, %v3718, 0
        %v3754 = vsel %vm1418, %v3719, 0
        %v3757 = vsel %vm1418, %v3720, 0
        %v3760 = vsel %vm1418, %v3721, 0
        %v3763 = vsel %vm1418, %v3722, 0
        %v3766 = vsel %vm1418, %v3723, 0
        %v3769 = vsel %vm1418, %v3724, 0
        %v3772 = vsel %vm1418, %v3725, 0
        %3774 = vmatprep.subr.mxu0 0.0
        %3775 = vmatpush1.msra.mxu0 %v3727
        %3776 = vmatprep.subr.mxu0 0.0
        %3777 = vmatpush1.msra.mxu0 %v3729
        %3778 = vmatprep.subr.mxu0 0.0
        %3779 = vmatpush1.msra.mxu0 %v3731
        %3780 = vmatprep.subr.mxu0 0.0
        %3781 = vmatpush1.msra.mxu0 %v3733
        %3782 = vmatprep.subr.mxu0 0.0
        %3783 = vmatpush1.msra.mxu0 %v3735
        %3784 = vmatprep.subr.mxu0 0.0
        %3785 = vmatpush1.msra.mxu0 %v3737
        %3786 = vmatprep.subr.mxu0 0.0
        %3787 = vmatpush1.msra.mxu0 %v3739
        %3788 = vmatprep.subr.mxu0 0.0
        %3789 = vmatpush1.msra.mxu0 %v3741
        %3790 = vmatprep.subr.mxu0 0.0
        %3791 = vmatpush1.msra.mxu0 0.0
        %3792 = vmatprep.subr.mxu0 0.0
        %3793 = vmatpush1.msra.mxu0 0.0
        %3794 = vmatprep.subr.mxu0 0.0
        %3795 = vmatpush1.msra.mxu0 0.0
        %3796 = vmatprep.subr.mxu0 0.0
        %3797 = vmatpush1.msra.mxu0 0.0
        %3798 = vmatprep.subr.mxu0 0.0
        %3799 = vmatpush1.msra.mxu0 0.0
        %3800 = vmatprep.subr.mxu0 0.0
        %3801 = vmatpush1.msra.mxu0 0.0
        %3802 = vmatprep.subr.mxu0 0.0
        %3803 = vmatpush1.msra.mxu0 0.0
        %3804 = vmatprep.subr.mxu0 0.0
        %3805 = vmatpush1.msra.mxu0 0.0
        %3806 = vmatprep.subr.mxu0 0.0
        %3807 = vmatpush1.msra.mxu0 0.0
        %3808 = vmatprep.subr.mxu0 0.0
        %3809 = vmatpush1.msra.mxu0 0.0
        %3810 = vmatprep.subr.mxu0 0.0
        %3811 = vmatpush1.msra.mxu0 0.0
        %3812 = vmatprep.subr.mxu0 0.0
        %3813 = vmatpush1.msra.mxu0 0.0
        %3814 = vmatprep.subr.mxu0 0.0
        %3815 = vmatpush1.msra.mxu0 0.0
        %3816 = vmatprep.subr.mxu0 0.0
        %3817 = vmatpush1.msra.mxu0 0.0
        %3818 = vmatprep.subr.mxu0 0.0
        %3819 = vmatpush1.msra.mxu0 0.0
        %3820 = vmatprep.subr.mxu0 0.0
        %3821 = vmatpush1.msra.mxu0 0.0
        %3822 = vmatprep.subr.mxu0 0.0
        %3823 = vmatpush1.msra.mxu0 0.0
        %3824 = vmatprep.subr.mxu0 0.0
        %3825 = vmatpush1.msra.mxu0 0.0
        %3826 = vmatprep.subr.mxu0 0.0
        %3827 = vmatpush1.msra.mxu0 0.0
        %3828 = vmatprep.subr.mxu0 0.0
        %3829 = vmatpush1.msra.mxu0 0.0
        %3830 = vmatprep.subr.mxu0 0.0
        %3831 = vmatpush1.msra.mxu0 0.0
        %3832 = vmatprep.subr.mxu0 0.0
        %3833 = vmatpush1.msra.mxu0 0.0
        %3834 = vmatprep.subr.mxu0 0.0
        %3835 = vmatpush1.msra.mxu0 0.0
        %3836 = vmatprep.subr.mxu0 0.0
        %3837 = vmatpush1.msra.mxu0 0.0
        %3838 = vmatprep.mubr.f32.mxu0 0.0
        %3839 = vmatmul.mubr.f32.gmra.mrb[0].mxu0 %v3751
        %v3840 = vpop.f32.mrb[0].mxu0
        %v3841 = vadd.f32 0.0, %v3840
        %v3842 = vpop.f32.mrb[0].mxu0
        %3843 = vmatprep.mubr.f32.mxu0 0.0
        %3844 = vmatmul.mubr.f32.gmra.mrb[0].mxu0 %v3754
        %v3845 = vpop.f32.mrb[0].mxu0
        %v3846 = vadd.f32 0.0, %v3845
        %v3847 = vpop.f32.mrb[0].mxu0
        %3848 = vmatprep.mubr.f32.mxu0 0.0
        %3849 = vmatmul.mubr.f32.gmra.mrb[0].mxu0 %v3757
        %v3850 = vpop.f32.mrb[0].mxu0
        %v3851 = vadd.f32 0.0, %v3850
        %v3852 = vpop.f32.mrb[0].mxu0
        %3853 = vmatprep.mubr.f32.mxu0 0.0
        %3854 = vmatmul.mubr.f32.gmra.mrb[0].mxu0 %v3760
        %v3855 = vpop.f32.mrb[0].mxu0
        %v3856 = vadd.f32 0.0, %v3855
        %v3857 = vpop.f32.mrb[0].mxu0
        %3858 = vmatprep.mubr.f32.mxu0 0.0
        %3859 = vmatmul.mubr.f32.gmra.mrb[0].mxu0 %v3763
        %v3860 = vpop.f32.mrb[0].mxu0
        %v3861 = vadd.f32 0.0, %v3860
        %v3862 = vpop.f32.mrb[0].mxu0
        %3863 = vmatprep.mubr.f32.mxu0 0.0
        %3864 = vmatmul.mubr.f32.gmra.mrb[0].mxu0 %v3766
        %v3865 = vpop.f32.mrb[0].mxu0
        %v3866 = vadd.f32 0.0, %v3865
        %v3867 = vpop.f32.mrb[0].mxu0
        %3868 = vmatprep.mubr.f32.mxu0 0.0
        %3869 = vmatmul.mubr.f32.gmra.mrb[0].mxu0 %v3769
        %v3870 = vpop.f32.mrb[0].mxu0
        %v3871 = vadd.f32 0.0, %v3870
        %v3872 = vpop.f32.mrb[0].mxu0
        %3873 = vmatprep.mubr.f32.mxu0 0.0
        %3874 = vmatmul.mubr.f32.gmra.mrb[0].mxu0 %v3772
        %v3875 = vpop.f32.mrb[0].mxu0
        %v3876 = vadd.f32 0.0, %v3875
        %v3877 = vpop.f32.mrb[0].mxu0
        %3878 = vdwg.mxu0
        %v3879 = vadd.f32 %v3709, %v3841
        %v3880 = vadd.f32 %v3710, %v3846
        %v3881 = vadd.f32 %v3711, %v3851
        %v3882 = vadd.f32 %v3712, %v3856
        %v3883 = vadd.f32 %v3713, %v3861
        %v3884 = vadd.f32 %v3714, %v3866
        %v3885 = vadd.f32 %v3715, %v3871
        %v3886 = vadd.f32 %v3716, %v3876
        %s3887 = scalar_lea.vmem %s4, 960
        %v3888 = vld [vmem:[%s3887] sm:$0xff]
        %v3889 = vld [vmem:[%s3887 + $0x8] sm:$0xff]
        %v3890 = vld [vmem:[%s3887 + $0x10] sm:$0xff]
        %v3891 = vld [vmem:[%s3887 + $0x18] sm:$0xff]
        %v3892 = vld [vmem:[%s3887 + $0x20] sm:$0xff]
        %v3893 = vld [vmem:[%s3887 + $0x28] sm:$0xff]
        %v3894 = vld [vmem:[%s3887 + $0x30] sm:$0xff]
        %v3895 = vld [vmem:[%s3887 + $0x38] sm:$0xff]
        %3896 = vrot.lane.b32.xlu0 %v1323, 113
        %v3897 = vpop.permute.xlu0 %3896
        %3898 = vrot.lane.b32.xlu0 %v1328, 113
        %v3899 = vpop.permute.xlu0 %3898
        %3900 = vrot.lane.b32.xlu0 %v1333, 113
        %v3901 = vpop.permute.xlu0 %3900
        %3902 = vrot.lane.b32.xlu0 %v1338, 113
        %v3903 = vpop.permute.xlu0 %3902
        %3904 = vrot.lane.b32.xlu0 %v1343, 113
        %v3905 = vpop.permute.xlu0 %3904
        %3906 = vrot.lane.b32.xlu0 %v1348, 113
        %v3907 = vpop.permute.xlu0 %3906
        %3908 = vrot.lane.b32.xlu0 %v1353, 113
        %v3909 = vpop.permute.xlu0 %3908
        %3910 = vrot.lane.b32.xlu0 %v1358, 113
        %v3911 = vpop.permute.xlu0 %3910
        %v3921 = vsel %vm1418, %v3888, 0
        %v3924 = vsel %vm1418, %v3889, 0
        %v3927 = vsel %vm1418, %v3890, 0
        %v3930 = vsel %vm1418, %v3891, 0
        %v3933 = vsel %vm1418, %v3892, 0
        %v3936 = vsel %vm1418, %v3893, 0
        %v3939 = vsel %vm1418, %v3894, 0
        %v3942 = vsel %vm1418, %v3895, 0
        %3944 = vmatprep.subr.mxu0 0.0
        %3945 = vmatpush1.msra.mxu0 %v3897
        %3946 = vmatprep.subr.mxu0 0.0
        %3947 = vmatpush1.msra.mxu0 %v3899
        %3948 = vmatprep.subr.mxu0 0.0
        %3949 = vmatpush1.msra.mxu0 %v3901
        %3950 = vmatprep.subr.mxu0 0.0
        %3951 = vmatpush1.msra.mxu0 %v3903
        %3952 = vmatprep.subr.mxu0 0.0
        %3953 = vmatpush1.msra.mxu0 %v3905
        %3954 = vmatprep.subr.mxu0 0.0
        %3955 = vmatpush1.msra.mxu0 %v3907
        %3956 = vmatprep.subr.mxu0 0.0
        %3957 = vmatpush1.msra.mxu0 %v3909
        %3958 = vmatprep.subr.mxu0 0.0
        %3959 = vmatpush1.msra.mxu0 %v3911
        %3960 = vmatprep.subr.mxu0 0.0
        %3961 = vmatpush1.msra.mxu0 0.0
        %3962 = vmatprep.subr.mxu0 0.0
        %3963 = vmatpush1.msra.mxu0 0.0
        %3964 = vmatprep.subr.mxu0 0.0
        %3965 = vmatpush1.msra.mxu0 0.0
        %3966 = vmatprep.subr.mxu0 0.0
        %3967 = vmatpush1.msra.mxu0 0.0
        %3968 = vmatprep.subr.mxu0 0.0
        %3969 = vmatpush1.msra.mxu0 0.0
        %3970 = vmatprep.subr.mxu0 0.0
        %3971 = vmatpush1.msra.mxu0 0.0
        %3972 = vmatprep.subr.mxu0 0.0
        %3973 = vmatpush1.msra.mxu0 0.0
        %3974 = vmatprep.subr.mxu0 0.0
        %3975 = vmatpush1.msra.mxu0 0.0
        %3976 = vmatprep.subr.mxu0 0.0
        %3977 = vmatpush1.msra.mxu0 0.0
        %3978 = vmatprep.subr.mxu0 0.0
        %3979 = vmatpush1.msra.mxu0 0.0
        %3980 = vmatprep.subr.mxu0 0.0
        %3981 = vmatpush1.msra.mxu0 0.0
        %3982 = vmatprep.subr.mxu0 0.0
        %3983 = vmatpush1.msra.mxu0 0.0
        %3984 = vmatprep.subr.mxu0 0.0
        %3985 = vmatpush1.msra.mxu0 0.0
        %3986 = vmatprep.subr.mxu0 0.0
        %3987 = vmatpush1.msra.mxu0 0.0
        %3988 = vmatprep.subr.mxu0 0.0
        %3989 = vmatpush1.msra.mxu0 0.0
        %3990 = vmatprep.subr.mxu0 0.0
        %3991 = vmatpush1.msra.mxu0 0.0
        %3992 = vmatprep.subr.mxu0 0.0
        %3993 = vmatpush1.msra.mxu0 0.0
        %3994 = vmatprep.subr.mxu0 0.0
        %3995 = vmatpush1.msra.mxu0 0.0
        %3996 = vmatprep.subr.mxu0 0.0
        %3997 = vmatpush1.msra.mxu0 0.0
        %3998 = vmatprep.subr.mxu0 0.0
        %3999 = vmatpush1.msra.mxu0 0.0
        %4000 = vmatprep.subr.mxu0 0.0
        %4001 = vmatpush1.msra.mxu0 0.0
        %4002 = vmatprep.subr.mxu0 0.0
        %4003 = vmatpush1.msra.mxu0 0.0
        %4004 = vmatprep.subr.mxu0 0.0
        %4005 = vmatpush1.msra.mxu0 0.0
        %4006 = vmatprep.subr.mxu0 0.0
        %4007 = vmatpush1.msra.mxu0 0.0
        %4008 = vmatprep.mubr.f32.mxu0 0.0
        %4009 = vmatmul.mubr.f32.gmra.mrb[0].mxu0 %v3921
        %v4010 = vpop.f32.mrb[0].mxu0
        %v4011 = vadd.f32 0.0, %v4010
        %v4012 = vpop.f32.mrb[0].mxu0
        %4013 = vmatprep.mubr.f32.mxu0 0.0
        %4014 = vmatmul.mubr.f32.gmra.mrb[0].mxu0 %v3924
        %v4015 = vpop.f32.mrb[0].mxu0
        %v4016 = vadd.f32 0.0, %v4015
        %v4017 = vpop.f32.mrb[0].mxu0
        %4018 = vmatprep.mubr.f32.mxu0 0.0
        %4019 = vmatmul.mubr.f32.gmra.mrb[0].mxu0 %v3927
        %v4020 = vpop.f32.mrb[0].mxu0
        %v4021 = vadd.f32 0.0, %v4020
        %v4022 = vpop.f32.mrb[0].mxu0
        %4023 = vmatprep.mubr.f32.mxu0 0.0
        %4024 = vmatmul.mubr.f32.gmra.mrb[0].mxu0 %v3930
        %v4025 = vpop.f32.mrb[0].mxu0
        %v4026 = vadd.f32 0.0, %v4025
        %v4027 = vpop.f32.mrb[0].mxu0
        %4028 = vmatprep.mubr.f32.mxu0 0.0
        %4029 = vmatmul.mubr.f32.gmra.mrb[0].mxu0 %v3933
        %v4030 = vpop.f32.mrb[0].mxu0
        %v4031 = vadd.f32 0.0, %v4030
        %v4032 = vpop.f32.mrb[0].mxu0
        %4033 = vmatprep.mubr.f32.mxu0 0.0
        %4034 = vmatmul.mubr.f32.gmra.mrb[0].mxu0 %v3936
        %v4035 = vpop.f32.mrb[0].mxu0
        %v4036 = vadd.f32 0.0, %v4035
        %v4037 = vpop.f32.mrb[0].mxu0
        %4038 = vmatprep.mubr.f32.mxu0 0.0
        %4039 = vmatmul.mubr.f32.gmra.mrb[0].mxu0 %v3939
        %v4040 = vpop.f32.mrb[0].mxu0
        %v4041 = vadd.f32 0.0, %v4040
        %v4042 = vpop.f32.mrb[0].mxu0
        %4043 = vmatprep.mubr.f32.mxu0 0.0
        %4044 = vmatmul.mubr.f32.gmra.mrb[0].mxu0 %v3942
        %v4045 = vpop.f32.mrb[0].mxu0
        %v4046 = vadd.f32 0.0, %v4045
        %v4047 = vpop.f32.mrb[0].mxu0
        %4048 = vdwg.mxu0
        %v4049 = vadd.f32 %v3879, %v4011
        %v4050 = vadd.f32 %v3880, %v4016
        %v4051 = vadd.f32 %v3881, %v4021
        %v4052 = vadd.f32 %v3882, %v4026
        %v4053 = vadd.f32 %v3883, %v4031
        %v4054 = vadd.f32 %v3884, %v4036
        %v4055 = vadd.f32 %v3885, %v4041
        %v4056 = vadd.f32 %v3886, %v4046
        %s4057 = scalar_lea.vmem %s4, 1024
        %v4058 = vld [vmem:[%s4057] sm:$0xff]
        %v4059 = vld [vmem:[%s4057 + $0x8] sm:$0xff]
        %v4060 = vld [vmem:[%s4057 + $0x10] sm:$0xff]
        %v4061 = vld [vmem:[%s4057 + $0x18] sm:$0xff]
        %v4062 = vld [vmem:[%s4057 + $0x20] sm:$0xff]
        %v4063 = vld [vmem:[%s4057 + $0x28] sm:$0xff]
        %v4064 = vld [vmem:[%s4057 + $0x30] sm:$0xff]
        %v4065 = vld [vmem:[%s4057 + $0x38] sm:$0xff]
        %4066 = vrot.lane.b32.xlu0 %v1323, 112
        %v4067 = vpop.permute.xlu0 %4066
        %4068 = vrot.lane.b32.xlu0 %v1328, 112
        %v4069 = vpop.permute.xlu0 %4068
        %4070 = vrot.lane.b32.xlu0 %v1333, 112
        %v4071 = vpop.permute.xlu0 %4070
        %4072 = vrot.lane.b32.xlu0 %v1338, 112
        %v4073 = vpop.permute.xlu0 %4072
        %4074 = vrot.lane.b32.xlu0 %v1343, 112
        %v4075 = vpop.permute.xlu0 %4074
        %4076 = vrot.lane.b32.xlu0 %v1348, 112
        %v4077 = vpop.permute.xlu0 %4076
        %4078 = vrot.lane.b32.xlu0 %v1353, 112
        %v4079 = vpop.permute.xlu0 %4078
        %4080 = vrot.lane.b32.xlu0 %v1358, 112
        %v4081 = vpop.permute.xlu0 %4080
        %v4091 = vsel %vm1418, %v4058, 0
        %v4094 = vsel %vm1418, %v4059, 0
        %v4097 = vsel %vm1418, %v4060, 0
        %v4100 = vsel %vm1418, %v4061, 0
        %v4103 = vsel %vm1418, %v4062, 0
        %v4106 = vsel %vm1418, %v4063, 0
        %v4109 = vsel %vm1418, %v4064, 0
        %v4112 = vsel %vm1418, %v4065, 0
        %4114 = vmatprep.subr.mxu0 0.0
        %4115 = vmatpush1.msra.mxu0 %v4067
        %4116 = vmatprep.subr.mxu0 0.0
        %4117 = vmatpush1.msra.mxu0 %v4069
        %4118 = vmatprep.subr.mxu0 0.0
        %4119 = vmatpush1.msra.mxu0 %v4071
        %4120 = vmatprep.subr.mxu0 0.0
        %4121 = vmatpush1.msra.mxu0 %v4073
        %4122 = vmatprep.subr.mxu0 0.0
        %4123 = vmatpush1.msra.mxu0 %v4075
        %4124 = vmatprep.subr.mxu0 0.0
        %4125 = vmatpush1.msra.mxu0 %v4077
        %4126 = vmatprep.subr.mxu0 0.0
        %4127 = vmatpush1.msra.mxu0 %v4079
        %4128 = vmatprep.subr.mxu0 0.0
        %4129 = vmatpush1.msra.mxu0 %v4081
        %4130 = vmatprep.subr.mxu0 0.0
        %4131 = vmatpush1.msra.mxu0 0.0
        %4132 = vmatprep.subr.mxu0 0.0
        %4133 = vmatpush1.msra.mxu0 0.0
        %4134 = vmatprep.subr.mxu0 0.0
        %4135 = vmatpush1.msra.mxu0 0.0
        %4136 = vmatprep.subr.mxu0 0.0
        %4137 = vmatpush1.msra.mxu0 0.0
        %4138 = vmatprep.subr.mxu0 0.0
        %4139 = vmatpush1.msra.mxu0 0.0
        %4140 = vmatprep.subr.mxu0 0.0
        %4141 = vmatpush1.msra.mxu0 0.0
        %4142 = vmatprep.subr.mxu0 0.0
        %4143 = vmatpush1.msra.mxu0 0.0
        %4144 = vmatprep.subr.mxu0 0.0
        %4145 = vmatpush1.msra.mxu0 0.0
        %4146 = vmatprep.subr.mxu0 0.0
        %4147 = vmatpush1.msra.mxu0 0.0
        %4148 = vmatprep.subr.mxu0 0.0
        %4149 = vmatpush1.msra.mxu0 0.0
        %4150 = vmatprep.subr.mxu0 0.0
        %4151 = vmatpush1.msra.mxu0 0.0
        %4152 = vmatprep.subr.mxu0 0.0
        %4153 = vmatpush1.msra.mxu0 0.0
        %4154 = vmatprep.subr.mxu0 0.0
        %4155 = vmatpush1.msra.mxu0 0.0
        %4156 = vmatprep.subr.mxu0 0.0
        %4157 = vmatpush1.msra.mxu0 0.0
        %4158 = vmatprep.subr.mxu0 0.0
        %4159 = vmatpush1.msra.mxu0 0.0
        %4160 = vmatprep.subr.mxu0 0.0
        %4161 = vmatpush1.msra.mxu0 0.0
        %4162 = vmatprep.subr.mxu0 0.0
        %4163 = vmatpush1.msra.mxu0 0.0
        %4164 = vmatprep.subr.mxu0 0.0
        %4165 = vmatpush1.msra.mxu0 0.0
        %4166 = vmatprep.subr.mxu0 0.0
        %4167 = vmatpush1.msra.mxu0 0.0
        %4168 = vmatprep.subr.mxu0 0.0
        %4169 = vmatpush1.msra.mxu0 0.0
        %4170 = vmatprep.subr.mxu0 0.0
        %4171 = vmatpush1.msra.mxu0 0.0
        %4172 = vmatprep.subr.mxu0 0.0
        %4173 = vmatpush1.msra.mxu0 0.0
        %4174 = vmatprep.subr.mxu0 0.0
        %4175 = vmatpush1.msra.mxu0 0.0
        %4176 = vmatprep.subr.mxu0 0.0
        %4177 = vmatpush1.msra.mxu0 0.0
        %4178 = vmatprep.mubr.f32.mxu0 0.0
        %4179 = vmatmul.mubr.f32.gmra.mrb[0].mxu0 %v4091
        %v4180 = vpop.f32.mrb[0].mxu0
        %v4181 = vadd.f32 0.0, %v4180
        %v4182 = vpop.f32.mrb[0].mxu0
        %4183 = vmatprep.mubr.f32.mxu0 0.0
        %4184 = vmatmul.mubr.f32.gmra.mrb[0].mxu0 %v4094
        %v4185 = vpop.f32.mrb[0].mxu0
        %v4186 = vadd.f32 0.0, %v4185
        %v4187 = vpop.f32.mrb[0].mxu0
        %4188 = vmatprep.mubr.f32.mxu0 0.0
        %4189 = vmatmul.mubr.f32.gmra.mrb[0].mxu0 %v4097
        %v4190 = vpop.f32.mrb[0].mxu0
        %v4191 = vadd.f32 0.0, %v4190
        %v4192 = vpop.f32.mrb[0].mxu0
        %4193 = vmatprep.mubr.f32.mxu0 0.0
        %4194 = vmatmul.mubr.f32.gmra.mrb[0].mxu0 %v4100
        %v4195 = vpop.f32.mrb[0].mxu0
        %v4196 = vadd.f32 0.0, %v4195
        %v4197 = vpop.f32.mrb[0].mxu0
        %4198 = vmatprep.mubr.f32.mxu0 0.0
        %4199 = vmatmul.mubr.f32.gmra.mrb[0].mxu0 %v4103
        %v4200 = vpop.f32.mrb[0].mxu0
        %v4201 = vadd.f32 0.0, %v4200
        %v4202 = vpop.f32.mrb[0].mxu0
        %4203 = vmatprep.mubr.f32.mxu0 0.0
        %4204 = vmatmul.mubr.f32.gmra.mrb[0].mxu0 %v4106
        %v4205 = vpop.f32.mrb[0].mxu0
        %v4206 = vadd.f32 0.0, %v4205
        %v4207 = vpop.f32.mrb[0].mxu0
        %4208 = vmatprep.mubr.f32.mxu0 0.0
        %4209 = vmatmul.mubr.f32.gmra.mrb[0].mxu0 %v4109
        %v4210 = vpop.f32.mrb[0].mxu0
        %v4211 = vadd.f32 0.0, %v4210
        %v4212 = vpop.f32.mrb[0].mxu0
        %4213 = vmatprep.mubr.f32.mxu0 0.0
        %4214 = vmatmul.mubr.f32.gmra.mrb[0].mxu0 %v4112
        %v4215 = vpop.f32.mrb[0].mxu0
        %v4216 = vadd.f32 0.0, %v4215
        %v4217 = vpop.f32.mrb[0].mxu0
        %4218 = vdwg.mxu0
        %v4219 = vadd.f32 %v4049, %v4181
        %v4220 = vadd.f32 %v4050, %v4186
        %v4221 = vadd.f32 %v4051, %v4191
        %v4222 = vadd.f32 %v4052, %v4196
        %v4223 = vadd.f32 %v4053, %v4201
        %v4224 = vadd.f32 %v4054, %v4206
        %v4225 = vadd.f32 %v4055, %v4211
        %v4226 = vadd.f32 %v4056, %v4216
        %s4227 = scalar_lea.vmem %s4, 1088
        %v4228 = vld [vmem:[%s4227] sm:$0xff]
        %v4229 = vld [vmem:[%s4227 + $0x8] sm:$0xff]
        %v4230 = vld [vmem:[%s4227 + $0x10] sm:$0xff]
        %v4231 = vld [vmem:[%s4227 + $0x18] sm:$0xff]
        %v4232 = vld [vmem:[%s4227 + $0x20] sm:$0xff]
        %v4233 = vld [vmem:[%s4227 + $0x28] sm:$0xff]
        %v4234 = vld [vmem:[%s4227 + $0x30] sm:$0xff]
        %v4235 = vld [vmem:[%s4227 + $0x38] sm:$0xff]
        %4236 = vrot.lane.b32.xlu0 %v1323, 111
        %v4237 = vpop.permute.xlu0 %4236
        %4238 = vrot.lane.b32.xlu0 %v1328, 111
        %v4239 = vpop.permute.xlu0 %4238
        %4240 = vrot.lane.b32.xlu0 %v1333, 111
        %v4241 = vpop.permute.xlu0 %4240
        %4242 = vrot.lane.b32.xlu0 %v1338, 111
        %v4243 = vpop.permute.xlu0 %4242
        %4244 = vrot.lane.b32.xlu0 %v1343, 111
        %v4245 = vpop.permute.xlu0 %4244
        %4246 = vrot.lane.b32.xlu0 %v1348, 111
        %v4247 = vpop.permute.xlu0 %4246
        %4248 = vrot.lane.b32.xlu0 %v1353, 111
        %v4249 = vpop.permute.xlu0 %4248
        %4250 = vrot.lane.b32.xlu0 %v1358, 111
        %v4251 = vpop.permute.xlu0 %4250
        %v4261 = vsel %vm1418, %v4228, 0
        %v4264 = vsel %vm1418, %v4229, 0
        %v4267 = vsel %vm1418, %v4230, 0
        %v4270 = vsel %vm1418, %v4231, 0
        %v4273 = vsel %vm1418, %v4232, 0
        %v4276 = vsel %vm1418, %v4233, 0
        %v4279 = vsel %vm1418, %v4234, 0
        %v4282 = vsel %vm1418, %v4235, 0
        %4284 = vmatprep.subr.mxu0 0.0
        %4285 = vmatpush1.msra.mxu0 %v4237
        %4286 = vmatprep.subr.mxu0 0.0
        %4287 = vmatpush1.msra.mxu0 %v4239
        %4288 = vmatprep.subr.mxu0 0.0
        %4289 = vmatpush1.msra.mxu0 %v4241
        %4290 = vmatprep.subr.mxu0 0.0
        %4291 = vmatpush1.msra.mxu0 %v4243
        %4292 = vmatprep.subr.mxu0 0.0
        %4293 = vmatpush1.msra.mxu0 %v4245
        %4294 = vmatprep.subr.mxu0 0.0
        %4295 = vmatpush1.msra.mxu0 %v4247
        %4296 = vmatprep.subr.mxu0 0.0
        %4297 = vmatpush1.msra.mxu0 %v4249
        %4298 = vmatprep.subr.mxu0 0.0
        %4299 = vmatpush1.msra.mxu0 %v4251
        %4300 = vmatprep.subr.mxu0 0.0
        %4301 = vmatpush1.msra.mxu0 0.0
        %4302 = vmatprep.subr.mxu0 0.0
        %4303 = vmatpush1.msra.mxu0 0.0
        %4304 = vmatprep.subr.mxu0 0.0
        %4305 = vmatpush1.msra.mxu0 0.0
        %4306 = vmatprep.subr.mxu0 0.0
        %4307 = vmatpush1.msra.mxu0 0.0
        %4308 = vmatprep.subr.mxu0 0.0
        %4309 = vmatpush1.msra.mxu0 0.0
        %4310 = vmatprep.subr.mxu0 0.0
        %4311 = vmatpush1.msra.mxu0 0.0
        %4312 = vmatprep.subr.mxu0 0.0
        %4313 = vmatpush1.msra.mxu0 0.0
        %4314 = vmatprep.subr.mxu0 0.0
        %4315 = vmatpush1.msra.mxu0 0.0
        %4316 = vmatprep.subr.mxu0 0.0
        %4317 = vmatpush1.msra.mxu0 0.0
        %4318 = vmatprep.subr.mxu0 0.0
        %4319 = vmatpush1.msra.mxu0 0.0
        %4320 = vmatprep.subr.mxu0 0.0
        %4321 = vmatpush1.msra.mxu0 0.0
        %4322 = vmatprep.subr.mxu0 0.0
        %4323 = vmatpush1.msra.mxu0 0.0
        %4324 = vmatprep.subr.mxu0 0.0
        %4325 = vmatpush1.msra.mxu0 0.0
        %4326 = vmatprep.subr.mxu0 0.0
        %4327 = vmatpush1.msra.mxu0 0.0
        %4328 = vmatprep.subr.mxu0 0.0
        %4329 = vmatpush1.msra.mxu0 0.0
        %4330 = vmatprep.subr.mxu0 0.0
        %4331 = vmatpush1.msra.mxu0 0.0
        %4332 = vmatprep.subr.mxu0 0.0
        %4333 = vmatpush1.msra.mxu0 0.0
        %4334 = vmatprep.subr.mxu0 0.0
        %4335 = vmatpush1.msra.mxu0 0.0
        %4336 = vmatprep.subr.mxu0 0.0
        %4337 = vmatpush1.msra.mxu0 0.0
        %4338 = vmatprep.subr.mxu0 0.0
        %4339 = vmatpush1.msra.mxu0 0.0
        %4340 = vmatprep.subr.mxu0 0.0
        %4341 = vmatpush1.msra.mxu0 0.0
        %4342 = vmatprep.subr.mxu0 0.0
        %4343 = vmatpush1.msra.mxu0 0.0
        %4344 = vmatprep.subr.mxu0 0.0
        %4345 = vmatpush1.msra.mxu0 0.0
        %4346 = vmatprep.subr.mxu0 0.0
        %4347 = vmatpush1.msra.mxu0 0.0
        %4348 = vmatprep.mubr.f32.mxu0 0.0
        %4349 = vmatmul.mubr.f32.gmra.mrb[0].mxu0 %v4261
        %v4350 = vpop.f32.mrb[0].mxu0
        %v4351 = vadd.f32 0.0, %v4350
        %v4352 = vpop.f32.mrb[0].mxu0
        %4353 = vmatprep.mubr.f32.mxu0 0.0
        %4354 = vmatmul.mubr.f32.gmra.mrb[0].mxu0 %v4264
        %v4355 = vpop.f32.mrb[0].mxu0
        %v4356 = vadd.f32 0.0, %v4355
        %v4357 = vpop.f32.mrb[0].mxu0
        %4358 = vmatprep.mubr.f32.mxu0 0.0
        %4359 = vmatmul.mubr.f32.gmra.mrb[0].mxu0 %v4267
        %v4360 = vpop.f32.mrb[0].mxu0
        %v4361 = vadd.f32 0.0, %v4360
        %v4362 = vpop.f32.mrb[0].mxu0
        %4363 = vmatprep.mubr.f32.mxu0 0.0
        %4364 = vmatmul.mubr.f32.gmra.mrb[0].mxu0 %v4270
        %v4365 = vpop.f32.mrb[0].mxu0
        %v4366 = vadd.f32 0.0, %v4365
        %v4367 = vpop.f32.mrb[0].mxu0
        %4368 = vmatprep.mubr.f32.mxu0 0.0
        %4369 = vmatmul.mubr.f32.gmra.mrb[0].mxu0 %v4273
        %v4370 = vpop.f32.mrb[0].mxu0
        %v4371 = vadd.f32 0.0, %v4370
        %v4372 = vpop.f32.mrb[0].mxu0
        %4373 = vmatprep.mubr.f32.mxu0 0.0
        %4374 = vmatmul.mubr.f32.gmra.mrb[0].mxu0 %v4276
        %v4375 = vpop.f32.mrb[0].mxu0
        %v4376 = vadd.f32 0.0, %v4375
        %v4377 = vpop.f32.mrb[0].mxu0
        %4378 = vmatprep.mubr.f32.mxu0 0.0
        %4379 = vmatmul.mubr.f32.gmra.mrb[0].mxu0 %v4279
        %v4380 = vpop.f32.mrb[0].mxu0
        %v4381 = vadd.f32 0.0, %v4380
        %v4382 = vpop.f32.mrb[0].mxu0
        %4383 = vmatprep.mubr.f32.mxu0 0.0
        %4384 = vmatmul.mubr.f32.gmra.mrb[0].mxu0 %v4282
        %v4385 = vpop.f32.mrb[0].mxu0
        %v4386 = vadd.f32 0.0, %v4385
        %v4387 = vpop.f32.mrb[0].mxu0
        %4388 = vdwg.mxu0
        %v4389 = vadd.f32 %v4219, %v4351
        %v4390 = vadd.f32 %v4220, %v4356
        %v4391 = vadd.f32 %v4221, %v4361
        %v4392 = vadd.f32 %v4222, %v4366
        %v4393 = vadd.f32 %v4223, %v4371
        %v4394 = vadd.f32 %v4224, %v4376
        %v4395 = vadd.f32 %v4225, %v4381
        %v4396 = vadd.f32 %v4226, %v4386
        %s4397 = scalar_lea.vmem %s4, 1152
        %v4398 = vld [vmem:[%s4397] sm:$0xff]
        %v4399 = vld [vmem:[%s4397 + $0x8] sm:$0xff]
        %v4400 = vld [vmem:[%s4397 + $0x10] sm:$0xff]
        %v4401 = vld [vmem:[%s4397 + $0x18] sm:$0xff]
        %v4402 = vld [vmem:[%s4397 + $0x20] sm:$0xff]
        %v4403 = vld [vmem:[%s4397 + $0x28] sm:$0xff]
        %v4404 = vld [vmem:[%s4397 + $0x30] sm:$0xff]
        %v4405 = vld [vmem:[%s4397 + $0x38] sm:$0xff]
        %4406 = vrot.lane.b32.xlu0 %v1323, 110
        %v4407 = vpop.permute.xlu0 %4406
        %4408 = vrot.lane.b32.xlu0 %v1328, 110
        %v4409 = vpop.permute.xlu0 %4408
        %4410 = vrot.lane.b32.xlu0 %v1333, 110
        %v4411 = vpop.permute.xlu0 %4410
        %4412 = vrot.lane.b32.xlu0 %v1338, 110
        %v4413 = vpop.permute.xlu0 %4412
        %4414 = vrot.lane.b32.xlu0 %v1343, 110
        %v4415 = vpop.permute.xlu0 %4414
        %4416 = vrot.lane.b32.xlu0 %v1348, 110
        %v4417 = vpop.permute.xlu0 %4416
        %4418 = vrot.lane.b32.xlu0 %v1353, 110
        %v4419 = vpop.permute.xlu0 %4418
        %4420 = vrot.lane.b32.xlu0 %v1358, 110
        %v4421 = vpop.permute.xlu0 %4420
        %v4431 = vsel %vm1418, %v4398, 0
        %v4434 = vsel %vm1418, %v4399, 0
        %v4437 = vsel %vm1418, %v4400, 0
        %v4440 = vsel %vm1418, %v4401, 0
        %v4443 = vsel %vm1418, %v4402, 0
        %v4446 = vsel %vm1418, %v4403, 0
        %v4449 = vsel %vm1418, %v4404, 0
        %v4452 = vsel %vm1418, %v4405, 0
        %4454 = vmatprep.subr.mxu0 0.0
        %4455 = vmatpush1.msra.mxu0 %v4407
        %4456 = vmatprep.subr.mxu0 0.0
        %4457 = vmatpush1.msra.mxu0 %v4409
        %4458 = vmatprep.subr.mxu0 0.0
        %4459 = vmatpush1.msra.mxu0 %v4411
        %4460 = vmatprep.subr.mxu0 0.0
        %4461 = vmatpush1.msra.mxu0 %v4413
        %4462 = vmatprep.subr.mxu0 0.0
        %4463 = vmatpush1.msra.mxu0 %v4415
        %4464 = vmatprep.subr.mxu0 0.0
        %4465 = vmatpush1.msra.mxu0 %v4417
        %4466 = vmatprep.subr.mxu0 0.0
        %4467 = vmatpush1.msra.mxu0 %v4419
        %4468 = vmatprep.subr.mxu0 0.0
        %4469 = vmatpush1.msra.mxu0 %v4421
        %4470 = vmatprep.subr.mxu0 0.0
        %4471 = vmatpush1.msra.mxu0 0.0
        %4472 = vmatprep.subr.mxu0 0.0
        %4473 = vmatpush1.msra.mxu0 0.0
        %4474 = vmatprep.subr.mxu0 0.0
        %4475 = vmatpush1.msra.mxu0 0.0
        %4476 = vmatprep.subr.mxu0 0.0
        %4477 = vmatpush1.msra.mxu0 0.0
        %4478 = vmatprep.subr.mxu0 0.0
        %4479 = vmatpush1.msra.mxu0 0.0
        %4480 = vmatprep.subr.mxu0 0.0
        %4481 = vmatpush1.msra.mxu0 0.0
        %4482 = vmatprep.subr.mxu0 0.0
        %4483 = vmatpush1.msra.mxu0 0.0
        %4484 = vmatprep.subr.mxu0 0.0
        %4485 = vmatpush1.msra.mxu0 0.0
        %4486 = vmatprep.subr.mxu0 0.0
        %4487 = vmatpush1.msra.mxu0 0.0
        %4488 = vmatprep.subr.mxu0 0.0
        %4489 = vmatpush1.msra.mxu0 0.0
        %4490 = vmatprep.subr.mxu0 0.0
        %4491 = vmatpush1.msra.mxu0 0.0
        %4492 = vmatprep.subr.mxu0 0.0
        %4493 = vmatpush1.msra.mxu0 0.0
        %4494 = vmatprep.subr.mxu0 0.0
        %4495 = vmatpush1.msra.mxu0 0.0
        %4496 = vmatprep.subr.mxu0 0.0
        %4497 = vmatpush1.msra.mxu0 0.0
        %4498 = vmatprep.subr.mxu0 0.0
        %4499 = vmatpush1.msra.mxu0 0.0
        %4500 = vmatprep.subr.mxu0 0.0
        %4501 = vmatpush1.msra.mxu0 0.0
        %4502 = vmatprep.subr.mxu0 0.0
        %4503 = vmatpush1.msra.mxu0 0.0
        %4504 = vmatprep.subr.mxu0 0.0
        %4505 = vmatpush1.msra.mxu0 0.0
        %4506 = vmatprep.subr.mxu0 0.0
        %4507 = vmatpush1.msra.mxu0 0.0
        %4508 = vmatprep.subr.mxu0 0.0
        %4509 = vmatpush1.msra.mxu0 0.0
        %4510 = vmatprep.subr.mxu0 0.0
        %4511 = vmatpush1.msra.mxu0 0.0
        %4512 = vmatprep.subr.mxu0 0.0
        %4513 = vmatpush1.msra.mxu0 0.0
        %4514 = vmatprep.subr.mxu0 0.0
        %4515 = vmatpush1.msra.mxu0 0.0
        %4516 = vmatprep.subr.mxu0 0.0
        %4517 = vmatpush1.msra.mxu0 0.0
        %4518 = vmatprep.mubr.f32.mxu0 0.0
        %4519 = vmatmul.mubr.f32.gmra.mrb[0].mxu0 %v4431
        %v4520 = vpop.f32.mrb[0].mxu0
        %v4521 = vadd.f32 0.0, %v4520
        %v4522 = vpop.f32.mrb[0].mxu0
        %4523 = vmatprep.mubr.f32.mxu0 0.0
        %4524 = vmatmul.mubr.f32.gmra.mrb[0].mxu0 %v4434
        %v4525 = vpop.f32.mrb[0].mxu0
        %v4526 = vadd.f32 0.0, %v4525
        %v4527 = vpop.f32.mrb[0].mxu0
        %4528 = vmatprep.mubr.f32.mxu0 0.0
        %4529 = vmatmul.mubr.f32.gmra.mrb[0].mxu0 %v4437
        %v4530 = vpop.f32.mrb[0].mxu0
        %v4531 = vadd.f32 0.0, %v4530
        %v4532 = vpop.f32.mrb[0].mxu0
        %4533 = vmatprep.mubr.f32.mxu0 0.0
        %4534 = vmatmul.mubr.f32.gmra.mrb[0].mxu0 %v4440
        %v4535 = vpop.f32.mrb[0].mxu0
        %v4536 = vadd.f32 0.0, %v4535
        %v4537 = vpop.f32.mrb[0].mxu0
        %4538 = vmatprep.mubr.f32.mxu0 0.0
        %4539 = vmatmul.mubr.f32.gmra.mrb[0].mxu0 %v4443
        %v4540 = vpop.f32.mrb[0].mxu0
        %v4541 = vadd.f32 0.0, %v4540
        %v4542 = vpop.f32.mrb[0].mxu0
        %4543 = vmatprep.mubr.f32.mxu0 0.0
        %4544 = vmatmul.mubr.f32.gmra.mrb[0].mxu0 %v4446
        %v4545 = vpop.f32.mrb[0].mxu0
        %v4546 = vadd.f32 0.0, %v4545
        %v4547 = vpop.f32.mrb[0].mxu0
        %4548 = vmatprep.mubr.f32.mxu0 0.0
        %4549 = vmatmul.mubr.f32.gmra.mrb[0].mxu0 %v4449
        %v4550 = vpop.f32.mrb[0].mxu0
        %v4551 = vadd.f32 0.0, %v4550
        %v4552 = vpop.f32.mrb[0].mxu0
        %4553 = vmatprep.mubr.f32.mxu0 0.0
        %4554 = vmatmul.mubr.f32.gmra.mrb[0].mxu0 %v4452
        %v4555 = vpop.f32.mrb[0].mxu0
        %v4556 = vadd.f32 0.0, %v4555
        %v4557 = vpop.f32.mrb[0].mxu0
        %4558 = vdwg.mxu0
        %v4559 = vadd.f32 %v4389, %v4521
        %v4560 = vadd.f32 %v4390, %v4526
        %v4561 = vadd.f32 %v4391, %v4531
        %v4562 = vadd.f32 %v4392, %v4536
        %v4563 = vadd.f32 %v4393, %v4541
        %v4564 = vadd.f32 %v4394, %v4546
        %v4565 = vadd.f32 %v4395, %v4551
        %v4566 = vadd.f32 %v4396, %v4556
        %4568 = vset.pattern.permute.xlu0 0
        %4569 = vperm.xlu0 %4568, %v1361
        %v4570 = vpop.permute.xlu0 %4569
        %4573 = vset.pattern.permute.xlu0 0
        %4574 = vperm.xlu0 %4573, %v1362
        %v4575 = vpop.permute.xlu0 %4574
        %4578 = vset.pattern.permute.xlu0 0
        %4579 = vperm.xlu0 %4578, %v1363
        %v4580 = vpop.permute.xlu0 %4579
        %4583 = vset.pattern.permute.xlu0 0
        %4584 = vperm.xlu0 %4583, %v1364
        %v4585 = vpop.permute.xlu0 %4584
        %4588 = vset.pattern.permute.xlu0 0
        %4589 = vperm.xlu0 %4588, %v1365
        %v4590 = vpop.permute.xlu0 %4589
        %4593 = vset.pattern.permute.xlu0 0
        %4594 = vperm.xlu0 %4593, %v1366
        %v4595 = vpop.permute.xlu0 %4594
        %4598 = vset.pattern.permute.xlu0 0
        %4599 = vperm.xlu0 %4598, %v1367
        %v4600 = vpop.permute.xlu0 %4599
        %4603 = vset.pattern.permute.xlu0 0
        %4604 = vperm.xlu0 %4603, %v1368
        %v4605 = vpop.permute.xlu0 %4604
        %v4607 = vadd.f32 %v4559, %v4570
        %v4608 = vadd.f32 %v4560, %v4575
        %v4609 = vadd.f32 %v4561, %v4580
        %v4610 = vadd.f32 %v4562, %v4585
        %v4611 = vadd.f32 %v4563, %v4590
        %v4612 = vadd.f32 %v4564, %v4595
        %v4613 = vadd.f32 %v4565, %v4600
        %v4614 = vadd.f32 %v4566, %v4605
        %v4615 = vmax.f32 %v4607, 0.0
        %v4616 = vmax.f32 %v4608, 0.0
        %v4617 = vmax.f32 %v4609, 0.0
        %v4618 = vmax.f32 %v4610, 0.0
        %v4619 = vmax.f32 %v4611, 0.0
        %v4620 = vmax.f32 %v4612, 0.0
        %v4621 = vmax.f32 %v4613, 0.0
        %v4622 = vmax.f32 %v4614, 0.0
        %4631 = vrot.lane.b32.xlu0 %v4615, 127
        %v4632 = vpop.permute.xlu0 %4631
        %4633 = vrot.lane.b32.xlu0 %v4616, 127
        %v4634 = vpop.permute.xlu0 %4633
        %4635 = vrot.lane.b32.xlu0 %v4617, 127
        %v4636 = vpop.permute.xlu0 %4635
        %4637 = vrot.lane.b32.xlu0 %v4618, 127
        %v4638 = vpop.permute.xlu0 %4637
        %4639 = vrot.lane.b32.xlu0 %v4619, 127
        %v4640 = vpop.permute.xlu0 %4639
        %4641 = vrot.lane.b32.xlu0 %v4620, 127
        %v4642 = vpop.permute.xlu0 %4641
        %4643 = vrot.lane.b32.xlu0 %v4621, 127
        %v4644 = vpop.permute.xlu0 %4643
        %4645 = vrot.lane.b32.xlu0 %v4622, 127
        %v4646 = vpop.permute.xlu0 %4645
        %v4655 = vmax.f32 %v4615, %v4632
        %v4656 = vmax.f32 %v4616, %v4634
        %v4657 = vmax.f32 %v4617, %v4636
        %v4658 = vmax.f32 %v4618, %v4638
        %v4659 = vmax.f32 %v4619, %v4640
        %v4660 = vmax.f32 %v4620, %v4642
        %v4661 = vmax.f32 %v4621, %v4644
        %v4662 = vmax.f32 %v4622, %v4646
        %4663 = vrot.lane.b32.xlu0 %v4615, 126
        %v4664 = vpop.permute.xlu0 %4663
        %4665 = vrot.lane.b32.xlu0 %v4616, 126
        %v4666 = vpop.permute.xlu0 %4665
        %4667 = vrot.lane.b32.xlu0 %v4617, 126
        %v4668 = vpop.permute.xlu0 %4667
        %4669 = vrot.lane.b32.xlu0 %v4618, 126
        %v4670 = vpop.permute.xlu0 %4669
        %4671 = vrot.lane.b32.xlu0 %v4619, 126
        %v4672 = vpop.permute.xlu0 %4671
        %4673 = vrot.lane.b32.xlu0 %v4620, 126
        %v4674 = vpop.permute.xlu0 %4673
        %4675 = vrot.lane.b32.xlu0 %v4621, 126
        %v4676 = vpop.permute.xlu0 %4675
        %4677 = vrot.lane.b32.xlu0 %v4622, 126
        %v4678 = vpop.permute.xlu0 %4677
        %v4687 = vmax.f32 %v4655, %v4664
        %v4688 = vmax.f32 %v4656, %v4666
        %v4689 = vmax.f32 %v4657, %v4668
        %v4690 = vmax.f32 %v4658, %v4670
        %v4691 = vmax.f32 %v4659, %v4672
        %v4692 = vmax.f32 %v4660, %v4674
        %v4693 = vmax.f32 %v4661, %v4676
        %v4694 = vmax.f32 %v4662, %v4678
        %v4695 = vld [vmem:[%s6] sm:$0xff]
        %v4696 = vld [vmem:[%s6 + $0x8] sm:$0xff]
        %v4697 = vld [vmem:[%s6 + $0x10] sm:$0xff]
        %v4698 = vld [vmem:[%s6 + $0x18] sm:$0xff]
        %v4699 = vld [vmem:[%s6 + $0x20] sm:$0xff]
        %v4700 = vld [vmem:[%s6 + $0x28] sm:$0xff]
        %v4701 = vld [vmem:[%s6 + $0x30] sm:$0xff]
        %v4702 = vld [vmem:[%s6 + $0x38] sm:$0xff]
        %v4703 = vld [vmem:[%s6 + $0x40] sm:$0xff]
        %v4704 = vld [vmem:[%s6 + $0x48] sm:$0xff]
        %v4705 = vld [vmem:[%s6 + $0x50] sm:$0xff]
        %v4706 = vld [vmem:[%s6 + $0x58] sm:$0xff]
        %v4707 = vld [vmem:[%s6 + $0x60] sm:$0xff]
        %v4708 = vld [vmem:[%s6 + $0x68] sm:$0x3]
        %vm4709 = vcmask 867328
        %v4711 = vsel %vm4709, %v4687, 0
        %v4714 = vsel %vm4709, %v4688, 0
        %v4717 = vsel %vm4709, %v4689, 0
        %v4720 = vsel %vm4709, %v4690, 0
        %v4723 = vsel %vm4709, %v4691, 0
        %v4726 = vsel %vm4709, %v4692, 0
        %v4729 = vsel %vm4709, %v4693, 0
        %v4732 = vsel %vm4709, %v4694, 0
        %v4735 = vsel %vm1147, %v4708, 0
        %4737 = vmatprep.subr.mxu0 0.0
        %4738 = vmatpush1.msra.mxu0 %v4695
        %4739 = vmatprep.subr.mxu0 0.0
        %4740 = vmatpush1.msra.mxu0 %v4696
        %4741 = vmatprep.subr.mxu0 0.0
        %4742 = vmatpush1.msra.mxu0 %v4697
        %4743 = vmatprep.subr.mxu0 0.0
        %4744 = vmatpush1.msra.mxu0 %v4698
        %4745 = vmatprep.subr.mxu0 0.0
        %4746 = vmatpush1.msra.mxu0 %v4699
        %4747 = vmatprep.subr.mxu0 0.0
        %4748 = vmatpush1.msra.mxu0 %v4700
        %4749 = vmatprep.subr.mxu0 0.0
        %4750 = vmatpush1.msra.mxu0 %v4701
        %4751 = vmatprep.subr.mxu0 0.0
        %4752 = vmatpush1.msra.mxu0 %v4702
        %4753 = vmatprep.subr.mxu0 0.0
        %4754 = vmatpush1.msra.mxu0 %v4703
        %4755 = vmatprep.subr.mxu0 0.0
        %4756 = vmatpush1.msra.mxu0 %v4704
        %4757 = vmatprep.subr.mxu0 0.0
        %4758 = vmatpush1.msra.mxu0 %v4705
        %4759 = vmatprep.subr.mxu0 0.0
        %4760 = vmatpush1.msra.mxu0 %v4706
        %4761 = vmatprep.subr.mxu0 0.0
        %4762 = vmatpush1.msra.mxu0 %v4707
        %4763 = vmatprep.subr.mxu0 0.0
        %4764 = vmatpush1.msra.mxu0 %v4735
        %4765 = vmatprep.subr.mxu0 0.0
        %4766 = vmatpush1.msra.mxu0 0.0
        %4767 = vmatprep.subr.mxu0 0.0
        %4768 = vmatpush1.msra.mxu0 0.0
        %4769 = vmatprep.subr.mxu0 0.0
        %4770 = vmatpush1.msra.mxu0 0.0
        %4771 = vmatprep.subr.mxu0 0.0
        %4772 = vmatpush1.msra.mxu0 0.0
        %4773 = vmatprep.subr.mxu0 0.0
        %4774 = vmatpush1.msra.mxu0 0.0
        %4775 = vmatprep.subr.mxu0 0.0
        %4776 = vmatpush1.msra.mxu0 0.0
        %4777 = vmatprep.subr.mxu0 0.0
        %4778 = vmatpush1.msra.mxu0 0.0
        %4779 = vmatprep.subr.mxu0 0.0
        %4780 = vmatpush1.msra.mxu0 0.0
        %4781 = vmatprep.subr.mxu0 0.0
        %4782 = vmatpush1.msra.mxu0 0.0
        %4783 = vmatprep.subr.mxu0 0.0
        %4784 = vmatpush1.msra.mxu0 0.0
        %4785 = vmatprep.subr.mxu0 0.0
        %4786 = vmatpush1.msra.mxu0 0.0
        %4787 = vmatprep.subr.mxu0 0.0
        %4788 = vmatpush1.msra.mxu0 0.0
        %4789 = vmatprep.subr.mxu0 0.0
        %4790 = vmatpush1.msra.mxu0 0.0
        %4791 = vmatprep.subr.mxu0 0.0
        %4792 = vmatpush1.msra.mxu0 0.0
        %4793 = vmatprep.subr.mxu0 0.0
        %4794 = vmatpush1.msra.mxu0 0.0
        %4795 = vmatprep.subr.mxu0 0.0
        %4796 = vmatpush1.msra.mxu0 0.0
        %4797 = vmatprep.subr.mxu0 0.0
        %4798 = vmatpush1.msra.mxu0 0.0
        %4799 = vmatprep.subr.mxu0 0.0
        %4800 = vmatpush1.msra.mxu0 0.0
        %4801 = vmatprep.mubr.f32.mxu0 0.0
        %4802 = vmatmul.mubr.f32.gmra.mrb[0].mxu0 %v4711
        %v4803 = vpop.f32.mrb[0].mxu0
        %v4804 = vadd.f32 0.0, %v4803
        %v4805 = vpop.f32.mrb[0].mxu0
        %4806 = vmatprep.mubr.f32.mxu0 0.0
        %4807 = vmatmul.mubr.f32.gmra.mrb[0].mxu0 %v4714
        %v4808 = vpop.f32.mrb[0].mxu0
        %v4809 = vadd.f32 0.0, %v4808
        %v4810 = vpop.f32.mrb[0].mxu0
        %4811 = vmatprep.mubr.f32.mxu0 0.0
        %4812 = vmatmul.mubr.f32.gmra.mrb[0].mxu0 %v4717
        %v4813 = vpop.f32.mrb[0].mxu0
        %v4814 = vadd.f32 0.0, %v4813
        %v4815 = vpop.f32.mrb[0].mxu0
        %4816 = vmatprep.mubr.f32.mxu0 0.0
        %4817 = vmatmul.mubr.f32.gmra.mrb[0].mxu0 %v4720
        %v4818 = vpop.f32.mrb[0].mxu0
        %v4819 = vadd.f32 0.0, %v4818
        %v4820 = vpop.f32.mrb[0].mxu0
        %4821 = vmatprep.mubr.f32.mxu0 0.0
        %4822 = vmatmul.mubr.f32.gmra.mrb[0].mxu0 %v4723
        %v4823 = vpop.f32.mrb[0].mxu0
        %v4824 = vadd.f32 0.0, %v4823
        %v4825 = vpop.f32.mrb[0].mxu0
        %4826 = vmatprep.mubr.f32.mxu0 0.0
        %4827 = vmatmul.mubr.f32.gmra.mrb[0].mxu0 %v4726
        %v4828 = vpop.f32.mrb[0].mxu0
        %v4829 = vadd.f32 0.0, %v4828
        %v4830 = vpop.f32.mrb[0].mxu0
        %4831 = vmatprep.mubr.f32.mxu0 0.0
        %4832 = vmatmul.mubr.f32.gmra.mrb[0].mxu0 %v4729
        %v4833 = vpop.f32.mrb[0].mxu0
        %v4834 = vadd.f32 0.0, %v4833
        %v4835 = vpop.f32.mrb[0].mxu0
        %4836 = vmatprep.mubr.f32.mxu0 0.0
        %4837 = vmatmul.mubr.f32.gmra.mrb[0].mxu0 %v4732
        %v4838 = vpop.f32.mrb[0].mxu0
        %v4839 = vadd.f32 0.0, %v4838
        %v4840 = vpop.f32.mrb[0].mxu0
        %4841 = vdwg.mxu0
        %v4842 = vld [vmem:[%s8] sm:$0xff]
        %v4843 = vld [vmem:[%s8 + $0x8] sm:$0xff]
        %v4844 = vld [vmem:[%s8 + $0x10] sm:$0xff]
        %v4845 = vld [vmem:[%s8 + $0x18] sm:$0xff]
        %v4846 = vld [vmem:[%s8 + $0x20] sm:$0xff]
        %v4847 = vld [vmem:[%s8 + $0x28] sm:$0xff]
        %v4848 = vld [vmem:[%s8 + $0x30] sm:$0xff]
        %v4849 = vld [vmem:[%s8 + $0x38] sm:$0xff]
        %v4850 = vld [vmem:[#allocation5] sm:$0xff]
        %v4851 = vld [vmem:[#allocation5 + $0x8] sm:$0xff]
        %v4852 = vld [vmem:[#allocation5 + $0x10] sm:$0xff]
        %v4853 = vld [vmem:[#allocation5 + $0x18] sm:$0xff]
        %v4854 = vld [vmem:[#allocation5 + $0x20] sm:$0xff]
        %v4855 = vld [vmem:[#allocation5 + $0x28] sm:$0xff]
        %v4856 = vld [vmem:[#allocation5 + $0x30] sm:$0xff]
        %v4857 = vld [vmem:[#allocation5 + $0x38] sm:$0xff]
        %s4858 = scalar_lea.vmem [#allocation5], 64
        %v4859 = vld [vmem:[%s4858] sm:$0xff]
        %v4860 = vld [vmem:[%s4858 + $0x8] sm:$0xff]
        %v4861 = vld [vmem:[%s4858 + $0x10] sm:$0xff]
        %v4862 = vld [vmem:[%s4858 + $0x18] sm:$0xff]
        %v4863 = vld [vmem:[%s4858 + $0x20] sm:$0xff]
        %v4864 = vld [vmem:[%s4858 + $0x28] sm:$0xff]
        %v4865 = vld [vmem:[%s4858 + $0x30] sm:$0xff]
        %v4866 = vld [vmem:[%s4858 + $0x38] sm:$0xff]
        %4875 = vrot.lane.b32.xlu0 %v4804, 127
        %v4876 = vpop.permute.xlu0 %4875
        %4877 = vrot.lane.b32.xlu0 %v4809, 127
        %v4878 = vpop.permute.xlu0 %4877
        %4879 = vrot.lane.b32.xlu0 %v4814, 127
        %v4880 = vpop.permute.xlu0 %4879
        %4881 = vrot.lane.b32.xlu0 %v4819, 127
        %v4882 = vpop.permute.xlu0 %4881
        %4883 = vrot.lane.b32.xlu0 %v4824, 127
        %v4884 = vpop.permute.xlu0 %4883
        %4885 = vrot.lane.b32.xlu0 %v4829, 127
        %v4886 = vpop.permute.xlu0 %4885
        %4887 = vrot.lane.b32.xlu0 %v4834, 127
        %v4888 = vpop.permute.xlu0 %4887
        %4889 = vrot.lane.b32.xlu0 %v4839, 127
        %v4890 = vpop.permute.xlu0 %4889
        %v4900 = vsel %vm1418, %v4859, 0
        %v4903 = vsel %vm1418, %v4860, 0
        %v4906 = vsel %vm1418, %v4861, 0
        %v4909 = vsel %vm1418, %v4862, 0
        %v4912 = vsel %vm1418, %v4863, 0
        %v4915 = vsel %vm1418, %v4864, 0
        %v4918 = vsel %vm1418, %v4865, 0
        %v4921 = vsel %vm1418, %v4866, 0
        %4923 = vmatprep.subr.mxu0 0.0
        %4924 = vmatpush1.msra.mxu0 %v4876
        %4925 = vmatprep.subr.mxu0 0.0
        %4926 = vmatpush1.msra.mxu0 %v4878
        %4927 = vmatprep.subr.mxu0 0.0
        %4928 = vmatpush1.msra.mxu0 %v4880
        %4929 = vmatprep.subr.mxu0 0.0
        %4930 = vmatpush1.msra.mxu0 %v4882
        %4931 = vmatprep.subr.mxu0 0.0
        %4932 = vmatpush1.msra.mxu0 %v4884
        %4933 = vmatprep.subr.mxu0 0.0
        %4934 = vmatpush1.msra.mxu0 %v4886
        %4935 = vmatprep.subr.mxu0 0.0
        %4936 = vmatpush1.msra.mxu0 %v4888
        %4937 = vmatprep.subr.mxu0 0.0
        %4938 = vmatpush1.msra.mxu0 %v4890
        %4939 = vmatprep.subr.mxu0 0.0
        %4940 = vmatpush1.msra.mxu0 0.0
        %4941 = vmatprep.subr.mxu0 0.0
        %4942 = vmatpush1.msra.mxu0 0.0
        %4943 = vmatprep.subr.mxu0 0.0
        %4944 = vmatpush1.msra.mxu0 0.0
        %4945 = vmatprep.subr.mxu0 0.0
        %4946 = vmatpush1.msra.mxu0 0.0
        %4947 = vmatprep.subr.mxu0 0.0
        %4948 = vmatpush1.msra.mxu0 0.0
        %4949 = vmatprep.subr.mxu0 0.0
        %4950 = vmatpush1.msra.mxu0 0.0
        %4951 = vmatprep.subr.mxu0 0.0
        %4952 = vmatpush1.msra.mxu0 0.0
        %4953 = vmatprep.subr.mxu0 0.0
        %4954 = vmatpush1.msra.mxu0 0.0
        %4955 = vmatprep.subr.mxu0 0.0
        %4956 = vmatpush1.msra.mxu0 0.0
        %4957 = vmatprep.subr.mxu0 0.0
        %4958 = vmatpush1.msra.mxu0 0.0
        %4959 = vmatprep.subr.mxu0 0.0
        %4960 = vmatpush1.msra.mxu0 0.0
        %4961 = vmatprep.subr.mxu0 0.0
        %4962 = vmatpush1.msra.mxu0 0.0
        %4963 = vmatprep.subr.mxu0 0.0
        %4964 = vmatpush1.msra.mxu0 0.0
        %4965 = vmatprep.subr.mxu0 0.0
        %4966 = vmatpush1.msra.mxu0 0.0
        %4967 = vmatprep.subr.mxu0 0.0
        %4968 = vmatpush1.msra.mxu0 0.0
        %4969 = vmatprep.subr.mxu0 0.0
        %4970 = vmatpush1.msra.mxu0 0.0
        %4971 = vmatprep.subr.mxu0 0.0
        %4972 = vmatpush1.msra.mxu0 0.0
        %4973 = vmatprep.subr.mxu0 0.0
        %4974 = vmatpush1.msra.mxu0 0.0
        %4975 = vmatprep.subr.mxu0 0.0
        %4976 = vmatpush1.msra.mxu0 0.0
        %4977 = vmatprep.subr.mxu0 0.0
        %4978 = vmatpush1.msra.mxu0 0.0
        %4979 = vmatprep.subr.mxu0 0.0
        %4980 = vmatpush1.msra.mxu0 0.0
        %4981 = vmatprep.subr.mxu0 0.0
        %4982 = vmatpush1.msra.mxu0 0.0
        %4983 = vmatprep.subr.mxu0 0.0
        %4984 = vmatpush1.msra.mxu0 0.0
        %4985 = vmatprep.subr.mxu0 0.0
        %4986 = vmatpush1.msra.mxu0 0.0
        %4987 = vmatprep.mubr.f32.mxu0 0.0
        %4988 = vmatmul.mubr.f32.gmra.mrb[0].mxu0 %v4900
        %v4989 = vpop.f32.mrb[0].mxu0
        %v4990 = vadd.f32 0.0, %v4989
        %v4991 = vpop.f32.mrb[0].mxu0
        %4992 = vmatprep.mubr.f32.mxu0 0.0
        %4993 = vmatmul.mubr.f32.gmra.mrb[0].mxu0 %v4903
        %v4994 = vpop.f32.mrb[0].mxu0
        %v4995 = vadd.f32 0.0, %v4994
        %v4996 = vpop.f32.mrb[0].mxu0
        %4997 = vmatprep.mubr.f32.mxu0 0.0
        %4998 = vmatmul.mubr.f32.gmra.mrb[0].mxu0 %v4906
        %v4999 = vpop.f32.mrb[0].mxu0
        %v5000 = vadd.f32 0.0, %v4999
        %v5001 = vpop.f32.mrb[0].mxu0
        %5002 = vmatprep.mubr.f32.mxu0 0.0
        %5003 = vmatmul.mubr.f32.gmra.mrb[0].mxu0 %v4909
        %v5004 = vpop.f32.mrb[0].mxu0
        %v5005 = vadd.f32 0.0, %v5004
        %v5006 = vpop.f32.mrb[0].mxu0
        %5007 = vmatprep.mubr.f32.mxu0 0.0
        %5008 = vmatmul.mubr.f32.gmra.mrb[0].mxu0 %v4912
        %v5009 = vpop.f32.mrb[0].mxu0
        %v5010 = vadd.f32 0.0, %v5009
        %v5011 = vpop.f32.mrb[0].mxu0
        %5012 = vmatprep.mubr.f32.mxu0 0.0
        %5013 = vmatmul.mubr.f32.gmra.mrb[0].mxu0 %v4915
        %v5014 = vpop.f32.mrb[0].mxu0
        %v5015 = vadd.f32 0.0, %v5014
        %v5016 = vpop.f32.mrb[0].mxu0
        %5017 = vmatprep.mubr.f32.mxu0 0.0
        %5018 = vmatmul.mubr.f32.gmra.mrb[0].mxu0 %v4918
        %v5019 = vpop.f32.mrb[0].mxu0
        %v5020 = vadd.f32 0.0, %v5019
        %v5021 = vpop.f32.mrb[0].mxu0
        %5022 = vmatprep.mubr.f32.mxu0 0.0
        %5023 = vmatmul.mubr.f32.gmra.mrb[0].mxu0 %v4921
        %v5024 = vpop.f32.mrb[0].mxu0
        %v5025 = vadd.f32 0.0, %v5024
        %v5026 = vpop.f32.mrb[0].mxu0
        %5027 = vdwg.mxu0
        %v5029 = vsel %vm1418, %v4850, 0
        %v5032 = vsel %vm1418, %v4851, 0
        %v5035 = vsel %vm1418, %v4852, 0
        %v5038 = vsel %vm1418, %v4853, 0
        %v5041 = vsel %vm1418, %v4854, 0
        %v5044 = vsel %vm1418, %v4855, 0
        %v5047 = vsel %vm1418, %v4856, 0
        %v5050 = vsel %vm1418, %v4857, 0
        %5052 = vmatprep.subr.mxu0 0.0
        %5053 = vmatpush1.msra.mxu0 %v4804
        %5054 = vmatprep.subr.mxu0 0.0
        %5055 = vmatpush1.msra.mxu0 %v4809
        %5056 = vmatprep.subr.mxu0 0.0
        %5057 = vmatpush1.msra.mxu0 %v4814
        %5058 = vmatprep.subr.mxu0 0.0
        %5059 = vmatpush1.msra.mxu0 %v4819
        %5060 = vmatprep.subr.mxu0 0.0
        %5061 = vmatpush1.msra.mxu0 %v4824
        %5062 = vmatprep.subr.mxu0 0.0
        %5063 = vmatpush1.msra.mxu0 %v4829
        %5064 = vmatprep.subr.mxu0 0.0
        %5065 = vmatpush1.msra.mxu0 %v4834
        %5066 = vmatprep.subr.mxu0 0.0
        %5067 = vmatpush1.msra.mxu0 %v4839
        %5068 = vmatprep.subr.mxu0 0.0
        %5069 = vmatpush1.msra.mxu0 0.0
        %5070 = vmatprep.subr.mxu0 0.0
        %5071 = vmatpush1.msra.mxu0 0.0
        %5072 = vmatprep.subr.mxu0 0.0
        %5073 = vmatpush1.msra.mxu0 0.0
        %5074 = vmatprep.subr.mxu0 0.0
        %5075 = vmatpush1.msra.mxu0 0.0
        %5076 = vmatprep.subr.mxu0 0.0
        %5077 = vmatpush1.msra.mxu0 0.0
        %5078 = vmatprep.subr.mxu0 0.0
        %5079 = vmatpush1.msra.mxu0 0.0
        %5080 = vmatprep.subr.mxu0 0.0
        %5081 = vmatpush1.msra.mxu0 0.0
        %5082 = vmatprep.subr.mxu0 0.0
        %5083 = vmatpush1.msra.mxu0 0.0
        %5084 = vmatprep.subr.mxu0 0.0
        %5085 = vmatpush1.msra.mxu0 0.0
        %5086 = vmatprep.subr.mxu0 0.0
        %5087 = vmatpush1.msra.mxu0 0.0
        %5088 = vmatprep.subr.mxu0 0.0
        %5089 = vmatpush1.msra.mxu0 0.0
        %5090 = vmatprep.subr.mxu0 0.0
        %5091 = vmatpush1.msra.mxu0 0.0
        %5092 = vmatprep.subr.mxu0 0.0
        %5093 = vmatpush1.msra.mxu0 0.0
        %5094 = vmatprep.subr.mxu0 0.0
        %5095 = vmatpush1.msra.mxu0 0.0
        %5096 = vmatprep.subr.mxu0 0.0
        %5097 = vmatpush1.msra.mxu0 0.0
        %5098 = vmatprep.subr.mxu0 0.0
        %5099 = vmatpush1.msra.mxu0 0.0
        %5100 = vmatprep.subr.mxu0 0.0
        %5101 = vmatpush1.msra.mxu0 0.0
        %5102 = vmatprep.subr.mxu0 0.0
        %5103 = vmatpush1.msra.mxu0 0.0
        %5104 = vmatprep.subr.mxu0 0.0
        %5105 = vmatpush1.msra.mxu0 0.0
        %5106 = vmatprep.subr.mxu0 0.0
        %5107 = vmatpush1.msra.mxu0 0.0
        %5108 = vmatprep.subr.mxu0 0.0
        %5109 = vmatpush1.msra.mxu0 0.0
        %5110 = vmatprep.subr.mxu0 0.0
        %5111 = vmatpush1.msra.mxu0 0.0
        %5112 = vmatprep.subr.mxu0 0.0
        %5113 = vmatpush1.msra.mxu0 0.0
        %5114 = vmatprep.subr.mxu0 0.0
        %5115 = vmatpush1.msra.mxu0 0.0
        %5116 = vmatprep.mubr.f32.mxu0 0.0
        %5117 = vmatmul.mubr.f32.gmra.mrb[0].mxu0 %v5029
        %v5118 = vpop.f32.mrb[0].mxu0
        %v5119 = vadd.f32 %v4990, %v5118
        %v5120 = vpop.f32.mrb[0].mxu0
        %5121 = vmatprep.mubr.f32.mxu0 0.0
        %5122 = vmatmul.mubr.f32.gmra.mrb[0].mxu0 %v5032
        %v5123 = vpop.f32.mrb[0].mxu0
        %v5124 = vadd.f32 %v4995, %v5123
        %v5125 = vpop.f32.mrb[0].mxu0
        %5126 = vmatprep.mubr.f32.mxu0 0.0
        %5127 = vmatmul.mubr.f32.gmra.mrb[0].mxu0 %v5035
        %v5128 = vpop.f32.mrb[0].mxu0
        %v5129 = vadd.f32 %v5000, %v5128
        %v5130 = vpop.f32.mrb[0].mxu0
        %5131 = vmatprep.mubr.f32.mxu0 0.0
        %5132 = vmatmul.mubr.f32.gmra.mrb[0].mxu0 %v5038
        %v5133 = vpop.f32.mrb[0].mxu0
        %v5134 = vadd.f32 %v5005, %v5133
        %v5135 = vpop.f32.mrb[0].mxu0
        %5136 = vmatprep.mubr.f32.mxu0 0.0
        %5137 = vmatmul.mubr.f32.gmra.mrb[0].mxu0 %v5041
        %v5138 = vpop.f32.mrb[0].mxu0
        %v5139 = vadd.f32 %v5010, %v5138
        %v5140 = vpop.f32.mrb[0].mxu0
        %5141 = vmatprep.mubr.f32.mxu0 0.0
        %5142 = vmatmul.mubr.f32.gmra.mrb[0].mxu0 %v5044
        %v5143 = vpop.f32.mrb[0].mxu0
        %v5144 = vadd.f32 %v5015, %v5143
        %v5145 = vpop.f32.mrb[0].mxu0
        %5146 = vmatprep.mubr.f32.mxu0 0.0
        %5147 = vmatmul.mubr.f32.gmra.mrb[0].mxu0 %v5047
        %v5148 = vpop.f32.mrb[0].mxu0
        %v5149 = vadd.f32 %v5020, %v5148
        %v5150 = vpop.f32.mrb[0].mxu0
        %5151 = vmatprep.mubr.f32.mxu0 0.0
        %5152 = vmatmul.mubr.f32.gmra.mrb[0].mxu0 %v5050
        %v5153 = vpop.f32.mrb[0].mxu0
        %v5154 = vadd.f32 %v5025, %v5153
        %v5155 = vpop.f32.mrb[0].mxu0
        %5156 = vdwg.mxu0
        %s5157 = scalar_lea.vmem [#allocation5], 128
        %v5158 = vld [vmem:[%s5157] sm:$0xff]
        %v5159 = vld [vmem:[%s5157 + $0x8] sm:$0xff]
        %v5160 = vld [vmem:[%s5157 + $0x10] sm:$0xff]
        %v5161 = vld [vmem:[%s5157 + $0x18] sm:$0xff]
        %v5162 = vld [vmem:[%s5157 + $0x20] sm:$0xff]
        %v5163 = vld [vmem:[%s5157 + $0x28] sm:$0xff]
        %v5164 = vld [vmem:[%s5157 + $0x30] sm:$0xff]
        %v5165 = vld [vmem:[%s5157 + $0x38] sm:$0xff]
        %5166 = vrot.lane.b32.xlu0 %v4804, 126
        %v5167 = vpop.permute.xlu0 %5166
        %5168 = vrot.lane.b32.xlu0 %v4809, 126
        %v5169 = vpop.permute.xlu0 %5168
        %5170 = vrot.lane.b32.xlu0 %v4814, 126
        %v5171 = vpop.permute.xlu0 %5170
        %5172 = vrot.lane.b32.xlu0 %v4819, 126
        %v5173 = vpop.permute.xlu0 %5172
        %5174 = vrot.lane.b32.xlu0 %v4824, 126
        %v5175 = vpop.permute.xlu0 %5174
        %5176 = vrot.lane.b32.xlu0 %v4829, 126
        %v5177 = vpop.permute.xlu0 %5176
        %5178 = vrot.lane.b32.xlu0 %v4834, 126
        %v5179 = vpop.permute.xlu0 %5178
        %5180 = vrot.lane.b32.xlu0 %v4839, 126
        %v5181 = vpop.permute.xlu0 %5180
        %v5191 = vsel %vm1418, %v5158, 0
        %v5194 = vsel %vm1418, %v5159, 0
        %v5197 = vsel %vm1418, %v5160, 0
        %v5200 = vsel %vm1418, %v5161, 0
        %v5203 = vsel %vm1418, %v5162, 0
        %v5206 = vsel %vm1418, %v5163, 0
        %v5209 = vsel %vm1418, %v5164, 0
        %v5212 = vsel %vm1418, %v5165, 0
        %5214 = vmatprep.subr.mxu0 0.0
        %5215 = vmatpush1.msra.mxu0 %v5167
        %5216 = vmatprep.subr.mxu0 0.0
        %5217 = vmatpush1.msra.mxu0 %v5169
        %5218 = vmatprep.subr.mxu0 0.0
        %5219 = vmatpush1.msra.mxu0 %v5171
        %5220 = vmatprep.subr.mxu0 0.0
        %5221 = vmatpush1.msra.mxu0 %v5173
        %5222 = vmatprep.subr.mxu0 0.0
        %5223 = vmatpush1.msra.mxu0 %v5175
        %5224 = vmatprep.subr.mxu0 0.0
        %5225 = vmatpush1.msra.mxu0 %v5177
        %5226 = vmatprep.subr.mxu0 0.0
        %5227 = vmatpush1.msra.mxu0 %v5179
        %5228 = vmatprep.subr.mxu0 0.0
        %5229 = vmatpush1.msra.mxu0 %v5181
        %5230 = vmatprep.subr.mxu0 0.0
        %5231 = vmatpush1.msra.mxu0 0.0
        %5232 = vmatprep.subr.mxu0 0.0
        %5233 = vmatpush1.msra.mxu0 0.0
        %5234 = vmatprep.subr.mxu0 0.0
        %5235 = vmatpush1.msra.mxu0 0.0
        %5236 = vmatprep.subr.mxu0 0.0
        %5237 = vmatpush1.msra.mxu0 0.0
        %5238 = vmatprep.subr.mxu0 0.0
        %5239 = vmatpush1.msra.mxu0 0.0
        %5240 = vmatprep.subr.mxu0 0.0
        %5241 = vmatpush1.msra.mxu0 0.0
        %5242 = vmatprep.subr.mxu0 0.0
        %5243 = vmatpush1.msra.mxu0 0.0
        %5244 = vmatprep.subr.mxu0 0.0
        %5245 = vmatpush1.msra.mxu0 0.0
        %5246 = vmatprep.subr.mxu0 0.0
        %5247 = vmatpush1.msra.mxu0 0.0
        %5248 = vmatprep.subr.mxu0 0.0
        %5249 = vmatpush1.msra.mxu0 0.0
        %5250 = vmatprep.subr.mxu0 0.0
        %5251 = vmatpush1.msra.mxu0 0.0
        %5252 = vmatprep.subr.mxu0 0.0
        %5253 = vmatpush1.msra.mxu0 0.0
        %5254 = vmatprep.subr.mxu0 0.0
        %5255 = vmatpush1.msra.mxu0 0.0
        %5256 = vmatprep.subr.mxu0 0.0
        %5257 = vmatpush1.msra.mxu0 0.0
        %5258 = vmatprep.subr.mxu0 0.0
        %5259 = vmatpush1.msra.mxu0 0.0
        %5260 = vmatprep.subr.mxu0 0.0
        %5261 = vmatpush1.msra.mxu0 0.0
        %5262 = vmatprep.subr.mxu0 0.0
        %5263 = vmatpush1.msra.mxu0 0.0
        %5264 = vmatprep.subr.mxu0 0.0
        %5265 = vmatpush1.msra.mxu0 0.0
        %5266 = vmatprep.subr.mxu0 0.0
        %5267 = vmatpush1.msra.mxu0 0.0
        %5268 = vmatprep.subr.mxu0 0.0
        %5269 = vmatpush1.msra.mxu0 0.0
        %5270 = vmatprep.subr.mxu0 0.0
        %5271 = vmatpush1.msra.mxu0 0.0
        %5272 = vmatprep.subr.mxu0 0.0
        %5273 = vmatpush1.msra.mxu0 0.0
        %5274 = vmatprep.subr.mxu0 0.0
        %5275 = vmatpush1.msra.mxu0 0.0
        %5276 = vmatprep.subr.mxu0 0.0
        %5277 = vmatpush1.msra.mxu0 0.0
        %5278 = vmatprep.mubr.f32.mxu0 0.0
        %5279 = vmatmul.mubr.f32.gmra.mrb[0].mxu0 %v5191
        %v5280 = vpop.f32.mrb[0].mxu0
        %v5281 = vadd.f32 0.0, %v5280
        %v5282 = vpop.f32.mrb[0].mxu0
        %5283 = vmatprep.mubr.f32.mxu0 0.0
        %5284 = vmatmul.mubr.f32.gmra.mrb[0].mxu0 %v5194
        %v5285 = vpop.f32.mrb[0].mxu0
        %v5286 = vadd.f32 0.0, %v5285
        %v5287 = vpop.f32.mrb[0].mxu0
        %5288 = vmatprep.mubr.f32.mxu0 0.0
        %5289 = vmatmul.mubr.f32.gmra.mrb[0].mxu0 %v5197
        %v5290 = vpop.f32.mrb[0].mxu0
        %v5291 = vadd.f32 0.0, %v5290
        %v5292 = vpop.f32.mrb[0].mxu0
        %5293 = vmatprep.mubr.f32.mxu0 0.0
        %5294 = vmatmul.mubr.f32.gmra.mrb[0].mxu0 %v5200
        %v5295 = vpop.f32.mrb[0].mxu0
        %v5296 = vadd.f32 0.0, %v5295
        %v5297 = vpop.f32.mrb[0].mxu0
        %5298 = vmatprep.mubr.f32.mxu0 0.0
        %5299 = vmatmul.mubr.f32.gmra.mrb[0].mxu0 %v5203
        %v5300 = vpop.f32.mrb[0].mxu0
        %v5301 = vadd.f32 0.0, %v5300
        %v5302 = vpop.f32.mrb[0].mxu0
        %5303 = vmatprep.mubr.f32.mxu0 0.0
        %5304 = vmatmul.mubr.f32.gmra.mrb[0].mxu0 %v5206
        %v5305 = vpop.f32.mrb[0].mxu0
        %v5306 = vadd.f32 0.0, %v5305
        %v5307 = vpop.f32.mrb[0].mxu0
        %5308 = vmatprep.mubr.f32.mxu0 0.0
        %5309 = vmatmul.mubr.f32.gmra.mrb[0].mxu0 %v5209
        %v5310 = vpop.f32.mrb[0].mxu0
        %v5311 = vadd.f32 0.0, %v5310
        %v5312 = vpop.f32.mrb[0].mxu0
        %5313 = vmatprep.mubr.f32.mxu0 0.0
        %5314 = vmatmul.mubr.f32.gmra.mrb[0].mxu0 %v5212
        %v5315 = vpop.f32.mrb[0].mxu0
        %v5316 = vadd.f32 0.0, %v5315
        %v5317 = vpop.f32.mrb[0].mxu0
        %5318 = vdwg.mxu0
        %v5319 = vadd.f32 %v5119, %v5281
        %v5320 = vadd.f32 %v5124, %v5286
        %v5321 = vadd.f32 %v5129, %v5291
        %v5322 = vadd.f32 %v5134, %v5296
        %v5323 = vadd.f32 %v5139, %v5301
        %v5324 = vadd.f32 %v5144, %v5306
        %v5325 = vadd.f32 %v5149, %v5311
        %v5326 = vadd.f32 %v5154, %v5316
        %s5327 = scalar_lea.vmem [#allocation5], 192
        %v5328 = vld [vmem:[%s5327] sm:$0xff]
        %v5329 = vld [vmem:[%s5327 + $0x8] sm:$0xff]
        %v5330 = vld [vmem:[%s5327 + $0x10] sm:$0xff]
        %v5331 = vld [vmem:[%s5327 + $0x18] sm:$0xff]
        %v5332 = vld [vmem:[%s5327 + $0x20] sm:$0xff]
        %v5333 = vld [vmem:[%s5327 + $0x28] sm:$0xff]
        %v5334 = vld [vmem:[%s5327 + $0x30] sm:$0xff]
        %v5335 = vld [vmem:[%s5327 + $0x38] sm:$0xff]
        %5336 = vrot.lane.b32.xlu0 %v4804, 125
        %v5337 = vpop.permute.xlu0 %5336
        %5338 = vrot.lane.b32.xlu0 %v4809, 125
        %v5339 = vpop.permute.xlu0 %5338
        %5340 = vrot.lane.b32.xlu0 %v4814, 125
        %v5341 = vpop.permute.xlu0 %5340
        %5342 = vrot.lane.b32.xlu0 %v4819, 125
        %v5343 = vpop.permute.xlu0 %5342
        %5344 = vrot.lane.b32.xlu0 %v4824, 125
        %v5345 = vpop.permute.xlu0 %5344
        %5346 = vrot.lane.b32.xlu0 %v4829, 125
        %v5347 = vpop.permute.xlu0 %5346
        %5348 = vrot.lane.b32.xlu0 %v4834, 125
        %v5349 = vpop.permute.xlu0 %5348
        %5350 = vrot.lane.b32.xlu0 %v4839, 125
        %v5351 = vpop.permute.xlu0 %5350
        %v5361 = vsel %vm1418, %v5328, 0
        %v5364 = vsel %vm1418, %v5329, 0
        %v5367 = vsel %vm1418, %v5330, 0
        %v5370 = vsel %vm1418, %v5331, 0
        %v5373 = vsel %vm1418, %v5332, 0
        %v5376 = vsel %vm1418, %v5333, 0
        %v5379 = vsel %vm1418, %v5334, 0
        %v5382 = vsel %vm1418, %v5335, 0
        %5384 = vmatprep.subr.mxu0 0.0
        %5385 = vmatpush1.msra.mxu0 %v5337
        %5386 = vmatprep.subr.mxu0 0.0
        %5387 = vmatpush1.msra.mxu0 %v5339
        %5388 = vmatprep.subr.mxu0 0.0
        %5389 = vmatpush1.msra.mxu0 %v5341
        %5390 = vmatprep.subr.mxu0 0.0
        %5391 = vmatpush1.msra.mxu0 %v5343
        %5392 = vmatprep.subr.mxu0 0.0
        %5393 = vmatpush1.msra.mxu0 %v5345
        %5394 = vmatprep.subr.mxu0 0.0
        %5395 = vmatpush1.msra.mxu0 %v5347
        %5396 = vmatprep.subr.mxu0 0.0
        %5397 = vmatpush1.msra.mxu0 %v5349
        %5398 = vmatprep.subr.mxu0 0.0
        %5399 = vmatpush1.msra.mxu0 %v5351
        %5400 = vmatprep.subr.mxu0 0.0
        %5401 = vmatpush1.msra.mxu0 0.0
        %5402 = vmatprep.subr.mxu0 0.0
        %5403 = vmatpush1.msra.mxu0 0.0
        %5404 = vmatprep.subr.mxu0 0.0
        %5405 = vmatpush1.msra.mxu0 0.0
        %5406 = vmatprep.subr.mxu0 0.0
        %5407 = vmatpush1.msra.mxu0 0.0
        %5408 = vmatprep.subr.mxu0 0.0
        %5409 = vmatpush1.msra.mxu0 0.0
        %5410 = vmatprep.subr.mxu0 0.0
        %5411 = vmatpush1.msra.mxu0 0.0
        %5412 = vmatprep.subr.mxu0 0.0
        %5413 = vmatpush1.msra.mxu0 0.0
        %5414 = vmatprep.subr.mxu0 0.0
        %5415 = vmatpush1.msra.mxu0 0.0
        %5416 = vmatprep.subr.mxu0 0.0
        %5417 = vmatpush1.msra.mxu0 0.0
        %5418 = vmatprep.subr.mxu0 0.0
        %5419 = vmatpush1.msra.mxu0 0.0
        %5420 = vmatprep.subr.mxu0 0.0
        %5421 = vmatpush1.msra.mxu0 0.0
        %5422 = vmatprep.subr.mxu0 0.0
        %5423 = vmatpush1.msra.mxu0 0.0
        %5424 = vmatprep.subr.mxu0 0.0
        %5425 = vmatpush1.msra.mxu0 0.0
        %5426 = vmatprep.subr.mxu0 0.0
        %5427 = vmatpush1.msra.mxu0 0.0
        %5428 = vmatprep.subr.mxu0 0.0
        %5429 = vmatpush1.msra.mxu0 0.0
        %5430 = vmatprep.subr.mxu0 0.0
        %5431 = vmatpush1.msra.mxu0 0.0
        %5432 = vmatprep.subr.mxu0 0.0
        %5433 = vmatpush1.msra.mxu0 0.0
        %5434 = vmatprep.subr.mxu0 0.0
        %5435 = vmatpush1.msra.mxu0 0.0
        %5436 = vmatprep.subr.mxu0 0.0
        %5437 = vmatpush1.msra.mxu0 0.0
        %5438 = vmatprep.subr.mxu0 0.0
        %5439 = vmatpush1.msra.mxu0 0.0
        %5440 = vmatprep.subr.mxu0 0.0
        %5441 = vmatpush1.msra.mxu0 0.0
        %5442 = vmatprep.subr.mxu0 0.0
        %5443 = vmatpush1.msra.mxu0 0.0
        %5444 = vmatprep.subr.mxu0 0.0
        %5445 = vmatpush1.msra.mxu0 0.0
        %5446 = vmatprep.subr.mxu0 0.0
        %5447 = vmatpush1.msra.mxu0 0.0
        %5448 = vmatprep.mubr.f32.mxu0 0.0
        %5449 = vmatmul.mubr.f32.gmra.mrb[0].mxu0 %v5361
        %v5450 = vpop.f32.mrb[0].mxu0
        %v5451 = vadd.f32 0.0, %v5450
        %v5452 = vpop.f32.mrb[0].mxu0
        %5453 = vmatprep.mubr.f32.mxu0 0.0
        %5454 = vmatmul.mubr.f32.gmra.mrb[0].mxu0 %v5364
        %v5455 = vpop.f32.mrb[0].mxu0
        %v5456 = vadd.f32 0.0, %v5455
        %v5457 = vpop.f32.mrb[0].mxu0
        %5458 = vmatprep.mubr.f32.mxu0 0.0
        %5459 = vmatmul.mubr.f32.gmra.mrb[0].mxu0 %v5367
        %v5460 = vpop.f32.mrb[0].mxu0
        %v5461 = vadd.f32 0.0, %v5460
        %v5462 = vpop.f32.mrb[0].mxu0
        %5463 = vmatprep.mubr.f32.mxu0 0.0
        %5464 = vmatmul.mubr.f32.gmra.mrb[0].mxu0 %v5370
        %v5465 = vpop.f32.mrb[0].mxu0
        %v5466 = vadd.f32 0.0, %v5465
        %v5467 = vpop.f32.mrb[0].mxu0
        %5468 = vmatprep.mubr.f32.mxu0 0.0
        %5469 = vmatmul.mubr.f32.gmra.mrb[0].mxu0 %v5373
        %v5470 = vpop.f32.mrb[0].mxu0
        %v5471 = vadd.f32 0.0, %v5470
        %v5472 = vpop.f32.mrb[0].mxu0
        %5473 = vmatprep.mubr.f32.mxu0 0.0
        %5474 = vmatmul.mubr.f32.gmra.mrb[0].mxu0 %v5376
        %v5475 = vpop.f32.mrb[0].mxu0
        %v5476 = vadd.f32 0.0, %v5475
        %v5477 = vpop.f32.mrb[0].mxu0
        %5478 = vmatprep.mubr.f32.mxu0 0.0
        %5479 = vmatmul.mubr.f32.gmra.mrb[0].mxu0 %v5379
        %v5480 = vpop.f32.mrb[0].mxu0
        %v5481 = vadd.f32 0.0, %v5480
        %v5482 = vpop.f32.mrb[0].mxu0
        %5483 = vmatprep.mubr.f32.mxu0 0.0
        %5484 = vmatmul.mubr.f32.gmra.mrb[0].mxu0 %v5382
        %v5485 = vpop.f32.mrb[0].mxu0
        %v5486 = vadd.f32 0.0, %v5485
        %v5487 = vpop.f32.mrb[0].mxu0
        %5488 = vdwg.mxu0
        %v5489 = vadd.f32 %v5319, %v5451
        %v5490 = vadd.f32 %v5320, %v5456
        %v5491 = vadd.f32 %v5321, %v5461
        %v5492 = vadd.f32 %v5322, %v5466
        %v5493 = vadd.f32 %v5323, %v5471
        %v5494 = vadd.f32 %v5324, %v5476
        %v5495 = vadd.f32 %v5325, %v5481
        %v5496 = vadd.f32 %v5326, %v5486
        %s5497 = scalar_lea.vmem [#allocation5], 256
        %v5498 = vld [vmem:[%s5497] sm:$0xff]
        %v5499 = vld [vmem:[%s5497 + $0x8] sm:$0xff]
        %v5500 = vld [vmem:[%s5497 + $0x10] sm:$0xff]
        %v5501 = vld [vmem:[%s5497 + $0x18] sm:$0xff]
        %v5502 = vld [vmem:[%s5497 + $0x20] sm:$0xff]
        %v5503 = vld [vmem:[%s5497 + $0x28] sm:$0xff]
        %v5504 = vld [vmem:[%s5497 + $0x30] sm:$0xff]
        %v5505 = vld [vmem:[%s5497 + $0x38] sm:$0xff]
        %5506 = vrot.lane.b32.xlu0 %v4804, 124
        %v5507 = vpop.permute.xlu0 %5506
        %5508 = vrot.lane.b32.xlu0 %v4809, 124
        %v5509 = vpop.permute.xlu0 %5508
        %5510 = vrot.lane.b32.xlu0 %v4814, 124
        %v5511 = vpop.permute.xlu0 %5510
        %5512 = vrot.lane.b32.xlu0 %v4819, 124
        %v5513 = vpop.permute.xlu0 %5512
        %5514 = vrot.lane.b32.xlu0 %v4824, 124
        %v5515 = vpop.permute.xlu0 %5514
        %5516 = vrot.lane.b32.xlu0 %v4829, 124
        %v5517 = vpop.permute.xlu0 %5516
        %5518 = vrot.lane.b32.xlu0 %v4834, 124
        %v5519 = vpop.permute.xlu0 %5518
        %5520 = vrot.lane.b32.xlu0 %v4839, 124
        %v5521 = vpop.permute.xlu0 %5520
        %v5531 = vsel %vm1418, %v5498, 0
        %v5534 = vsel %vm1418, %v5499, 0
        %v5537 = vsel %vm1418, %v5500, 0
        %v5540 = vsel %vm1418, %v5501, 0
        %v5543 = vsel %vm1418, %v5502, 0
        %v5546 = vsel %vm1418, %v5503, 0
        %v5549 = vsel %vm1418, %v5504, 0
        %v5552 = vsel %vm1418, %v5505, 0
        %5554 = vmatprep.subr.mxu0 0.0
        %5555 = vmatpush1.msra.mxu0 %v5507
        %5556 = vmatprep.subr.mxu0 0.0
        %5557 = vmatpush1.msra.mxu0 %v5509
        %5558 = vmatprep.subr.mxu0 0.0
        %5559 = vmatpush1.msra.mxu0 %v5511
        %5560 = vmatprep.subr.mxu0 0.0
        %5561 = vmatpush1.msra.mxu0 %v5513
        %5562 = vmatprep.subr.mxu0 0.0
        %5563 = vmatpush1.msra.mxu0 %v5515
        %5564 = vmatprep.subr.mxu0 0.0
        %5565 = vmatpush1.msra.mxu0 %v5517
        %5566 = vmatprep.subr.mxu0 0.0
        %5567 = vmatpush1.msra.mxu0 %v5519
        %5568 = vmatprep.subr.mxu0 0.0
        %5569 = vmatpush1.msra.mxu0 %v5521
        %5570 = vmatprep.subr.mxu0 0.0
        %5571 = vmatpush1.msra.mxu0 0.0
        %5572 = vmatprep.subr.mxu0 0.0
        %5573 = vmatpush1.msra.mxu0 0.0
        %5574 = vmatprep.subr.mxu0 0.0
        %5575 = vmatpush1.msra.mxu0 0.0
        %5576 = vmatprep.subr.mxu0 0.0
        %5577 = vmatpush1.msra.mxu0 0.0
        %5578 = vmatprep.subr.mxu0 0.0
        %5579 = vmatpush1.msra.mxu0 0.0
        %5580 = vmatprep.subr.mxu0 0.0
        %5581 = vmatpush1.msra.mxu0 0.0
        %5582 = vmatprep.subr.mxu0 0.0
        %5583 = vmatpush1.msra.mxu0 0.0
        %5584 = vmatprep.subr.mxu0 0.0
        %5585 = vmatpush1.msra.mxu0 0.0
        %5586 = vmatprep.subr.mxu0 0.0
        %5587 = vmatpush1.msra.mxu0 0.0
        %5588 = vmatprep.subr.mxu0 0.0
        %5589 = vmatpush1.msra.mxu0 0.0
        %5590 = vmatprep.subr.mxu0 0.0
        %5591 = vmatpush1.msra.mxu0 0.0
        %5592 = vmatprep.subr.mxu0 0.0
        %5593 = vmatpush1.msra.mxu0 0.0
        %5594 = vmatprep.subr.mxu0 0.0
        %5595 = vmatpush1.msra.mxu0 0.0
        %5596 = vmatprep.subr.mxu0 0.0
        %5597 = vmatpush1.msra.mxu0 0.0
        %5598 = vmatprep.subr.mxu0 0.0
        %5599 = vmatpush1.msra.mxu0 0.0
        %5600 = vmatprep.subr.mxu0 0.0
        %5601 = vmatpush1.msra.mxu0 0.0
        %5602 = vmatprep.subr.mxu0 0.0
        %5603 = vmatpush1.msra.mxu0 0.0
        %5604 = vmatprep.subr.mxu0 0.0
        %5605 = vmatpush1.msra.mxu0 0.0
        %5606 = vmatprep.subr.mxu0 0.0
        %5607 = vmatpush1.msra.mxu0 0.0
        %5608 = vmatprep.subr.mxu0 0.0
        %5609 = vmatpush1.msra.mxu0 0.0
        %5610 = vmatprep.subr.mxu0 0.0
        %5611 = vmatpush1.msra.mxu0 0.0
        %5612 = vmatprep.subr.mxu0 0.0
        %5613 = vmatpush1.msra.mxu0 0.0
        %5614 = vmatprep.subr.mxu0 0.0
        %5615 = vmatpush1.msra.mxu0 0.0
        %5616 = vmatprep.subr.mxu0 0.0
        %5617 = vmatpush1.msra.mxu0 0.0
        %5618 = vmatprep.mubr.f32.mxu0 0.0
        %5619 = vmatmul.mubr.f32.gmra.mrb[0].mxu0 %v5531
        %v5620 = vpop.f32.mrb[0].mxu0
        %v5621 = vadd.f32 0.0, %v5620
        %v5622 = vpop.f32.mrb[0].mxu0
        %5623 = vmatprep.mubr.f32.mxu0 0.0
        %5624 = vmatmul.mubr.f32.gmra.mrb[0].mxu0 %v5534
        %v5625 = vpop.f32.mrb[0].mxu0
        %v5626 = vadd.f32 0.0, %v5625
        %v5627 = vpop.f32.mrb[0].mxu0
        %5628 = vmatprep.mubr.f32.mxu0 0.0
        %5629 = vmatmul.mubr.f32.gmra.mrb[0].mxu0 %v5537
        %v5630 = vpop.f32.mrb[0].mxu0
        %v5631 = vadd.f32 0.0, %v5630
        %v5632 = vpop.f32.mrb[0].mxu0
        %5633 = vmatprep.mubr.f32.mxu0 0.0
        %5634 = vmatmul.mubr.f32.gmra.mrb[0].mxu0 %v5540
        %v5635 = vpop.f32.mrb[0].mxu0
        %v5636 = vadd.f32 0.0, %v5635
        %v5637 = vpop.f32.mrb[0].mxu0
        %5638 = vmatprep.mubr.f32.mxu0 0.0
        %5639 = vmatmul.mubr.f32.gmra.mrb[0].mxu0 %v5543
        %v5640 = vpop.f32.mrb[0].mxu0
        %v5641 = vadd.f32 0.0, %v5640
        %v5642 = vpop.f32.mrb[0].mxu0
        %5643 = vmatprep.mubr.f32.mxu0 0.0
        %5644 = vmatmul.mubr.f32.gmra.mrb[0].mxu0 %v5546
        %v5645 = vpop.f32.mrb[0].mxu0
        %v5646 = vadd.f32 0.0, %v5645
        %v5647 = vpop.f32.mrb[0].mxu0
        %5648 = vmatprep.mubr.f32.mxu0 0.0
        %5649 = vmatmul.mubr.f32.gmra.mrb[0].mxu0 %v5549
        %v5650 = vpop.f32.mrb[0].mxu0
        %v5651 = vadd.f32 0.0, %v5650
        %v5652 = vpop.f32.mrb[0].mxu0
        %5653 = vmatprep.mubr.f32.mxu0 0.0
        %5654 = vmatmul.mubr.f32.gmra.mrb[0].mxu0 %v5552
        %v5655 = vpop.f32.mrb[0].mxu0
        %v5656 = vadd.f32 0.0, %v5655
        %v5657 = vpop.f32.mrb[0].mxu0
        %5658 = vdwg.mxu0
        %v5659 = vadd.f32 %v5489, %v5621
        %v5660 = vadd.f32 %v5490, %v5626
        %v5661 = vadd.f32 %v5491, %v5631
        %v5662 = vadd.f32 %v5492, %v5636
        %v5663 = vadd.f32 %v5493, %v5641
        %v5664 = vadd.f32 %v5494, %v5646
        %v5665 = vadd.f32 %v5495, %v5651
        %v5666 = vadd.f32 %v5496, %v5656
        %s5667 = scalar_lea.vmem [#allocation5], 320
        %v5668 = vld [vmem:[%s5667] sm:$0xff]
        %v5669 = vld [vmem:[%s5667 + $0x8] sm:$0xff]
        %v5670 = vld [vmem:[%s5667 + $0x10] sm:$0xff]
        %v5671 = vld [vmem:[%s5667 + $0x18] sm:$0xff]
        %v5672 = vld [vmem:[%s5667 + $0x20] sm:$0xff]
        %v5673 = vld [vmem:[%s5667 + $0x28] sm:$0xff]
        %v5674 = vld [vmem:[%s5667 + $0x30] sm:$0xff]
        %v5675 = vld [vmem:[%s5667 + $0x38] sm:$0xff]
        %5676 = vrot.lane.b32.xlu0 %v4804, 123
        %v5677 = vpop.permute.xlu0 %5676
        %5678 = vrot.lane.b32.xlu0 %v4809, 123
        %v5679 = vpop.permute.xlu0 %5678
        %5680 = vrot.lane.b32.xlu0 %v4814, 123
        %v5681 = vpop.permute.xlu0 %5680
        %5682 = vrot.lane.b32.xlu0 %v4819, 123
        %v5683 = vpop.permute.xlu0 %5682
        %5684 = vrot.lane.b32.xlu0 %v4824, 123
        %v5685 = vpop.permute.xlu0 %5684
        %5686 = vrot.lane.b32.xlu0 %v4829, 123
        %v5687 = vpop.permute.xlu0 %5686
        %5688 = vrot.lane.b32.xlu0 %v4834, 123
        %v5689 = vpop.permute.xlu0 %5688
        %5690 = vrot.lane.b32.xlu0 %v4839, 123
        %v5691 = vpop.permute.xlu0 %5690
        %v5701 = vsel %vm1418, %v5668, 0
        %v5704 = vsel %vm1418, %v5669, 0
        %v5707 = vsel %vm1418, %v5670, 0
        %v5710 = vsel %vm1418, %v5671, 0
        %v5713 = vsel %vm1418, %v5672, 0
        %v5716 = vsel %vm1418, %v5673, 0
        %v5719 = vsel %vm1418, %v5674, 0
        %v5722 = vsel %vm1418, %v5675, 0
        %5724 = vmatprep.subr.mxu0 0.0
        %5725 = vmatpush1.msra.mxu0 %v5677
        %5726 = vmatprep.subr.mxu0 0.0
        %5727 = vmatpush1.msra.mxu0 %v5679
        %5728 = vmatprep.subr.mxu0 0.0
        %5729 = vmatpush1.msra.mxu0 %v5681
        %5730 = vmatprep.subr.mxu0 0.0
        %5731 = vmatpush1.msra.mxu0 %v5683
        %5732 = vmatprep.subr.mxu0 0.0
        %5733 = vmatpush1.msra.mxu0 %v5685
        %5734 = vmatprep.subr.mxu0 0.0
        %5735 = vmatpush1.msra.mxu0 %v5687
        %5736 = vmatprep.subr.mxu0 0.0
        %5737 = vmatpush1.msra.mxu0 %v5689
        %5738 = vmatprep.subr.mxu0 0.0
        %5739 = vmatpush1.msra.mxu0 %v5691
        %5740 = vmatprep.subr.mxu0 0.0
        %5741 = vmatpush1.msra.mxu0 0.0
        %5742 = vmatprep.subr.mxu0 0.0
        %5743 = vmatpush1.msra.mxu0 0.0
        %5744 = vmatprep.subr.mxu0 0.0
        %5745 = vmatpush1.msra.mxu0 0.0
        %5746 = vmatprep.subr.mxu0 0.0
        %5747 = vmatpush1.msra.mxu0 0.0
        %5748 = vmatprep.subr.mxu0 0.0
        %5749 = vmatpush1.msra.mxu0 0.0
        %5750 = vmatprep.subr.mxu0 0.0
        %5751 = vmatpush1.msra.mxu0 0.0
        %5752 = vmatprep.subr.mxu0 0.0
        %5753 = vmatpush1.msra.mxu0 0.0
        %5754 = vmatprep.subr.mxu0 0.0
        %5755 = vmatpush1.msra.mxu0 0.0
        %5756 = vmatprep.subr.mxu0 0.0
        %5757 = vmatpush1.msra.mxu0 0.0
        %5758 = vmatprep.subr.mxu0 0.0
        %5759 = vmatpush1.msra.mxu0 0.0
        %5760 = vmatprep.subr.mxu0 0.0
        %5761 = vmatpush1.msra.mxu0 0.0
        %5762 = vmatprep.subr.mxu0 0.0
        %5763 = vmatpush1.msra.mxu0 0.0
        %5764 = vmatprep.subr.mxu0 0.0
        %5765 = vmatpush1.msra.mxu0 0.0
        %5766 = vmatprep.subr.mxu0 0.0
        %5767 = vmatpush1.msra.mxu0 0.0
        %5768 = vmatprep.subr.mxu0 0.0
        %5769 = vmatpush1.msra.mxu0 0.0
        %5770 = vmatprep.subr.mxu0 0.0
        %5771 = vmatpush1.msra.mxu0 0.0
        %5772 = vmatprep.subr.mxu0 0.0
        %5773 = vmatpush1.msra.mxu0 0.0
        %5774 = vmatprep.subr.mxu0 0.0
        %5775 = vmatpush1.msra.mxu0 0.0
        %5776 = vmatprep.subr.mxu0 0.0
        %5777 = vmatpush1.msra.mxu0 0.0
        %5778 = vmatprep.subr.mxu0 0.0
        %5779 = vmatpush1.msra.mxu0 0.0
        %5780 = vmatprep.subr.mxu0 0.0
        %5781 = vmatpush1.msra.mxu0 0.0
        %5782 = vmatprep.subr.mxu0 0.0
        %5783 = vmatpush1.msra.mxu0 0.0
        %5784 = vmatprep.subr.mxu0 0.0
        %5785 = vmatpush1.msra.mxu0 0.0
        %5786 = vmatprep.subr.mxu0 0.0
        %5787 = vmatpush1.msra.mxu0 0.0
        %5788 = vmatprep.mubr.f32.mxu0 0.0
        %5789 = vmatmul.mubr.f32.gmra.mrb[0].mxu0 %v5701
        %v5790 = vpop.f32.mrb[0].mxu0
        %v5791 = vadd.f32 0.0, %v5790
        %v5792 = vpop.f32.mrb[0].mxu0
        %5793 = vmatprep.mubr.f32.mxu0 0.0
        %5794 = vmatmul.mubr.f32.gmra.mrb[0].mxu0 %v5704
        %v5795 = vpop.f32.mrb[0].mxu0
        %v5796 = vadd.f32 0.0, %v5795
        %v5797 = vpop.f32.mrb[0].mxu0
        %5798 = vmatprep.mubr.f32.mxu0 0.0
        %5799 = vmatmul.mubr.f32.gmra.mrb[0].mxu0 %v5707
        %v5800 = vpop.f32.mrb[0].mxu0
        %v5801 = vadd.f32 0.0, %v5800
        %v5802 = vpop.f32.mrb[0].mxu0
        %5803 = vmatprep.mubr.f32.mxu0 0.0
        %5804 = vmatmul.mubr.f32.gmra.mrb[0].mxu0 %v5710
        %v5805 = vpop.f32.mrb[0].mxu0
        %v5806 = vadd.f32 0.0, %v5805
        %v5807 = vpop.f32.mrb[0].mxu0
        %5808 = vmatprep.mubr.f32.mxu0 0.0
        %5809 = vmatmul.mubr.f32.gmra.mrb[0].mxu0 %v5713
        %v5810 = vpop.f32.mrb[0].mxu0
        %v5811 = vadd.f32 0.0, %v5810
        %v5812 = vpop.f32.mrb[0].mxu0
        %5813 = vmatprep.mubr.f32.mxu0 0.0
        %5814 = vmatmul.mubr.f32.gmra.mrb[0].mxu0 %v5716
        %v5815 = vpop.f32.mrb[0].mxu0
        %v5816 = vadd.f32 0.0, %v5815
        %v5817 = vpop.f32.mrb[0].mxu0
        %5818 = vmatprep.mubr.f32.mxu0 0.0
        %5819 = vmatmul.mubr.f32.gmra.mrb[0].mxu0 %v5719
        %v5820 = vpop.f32.mrb[0].mxu0
        %v5821 = vadd.f32 0.0, %v5820
        %v5822 = vpop.f32.mrb[0].mxu0
        %5823 = vmatprep.mubr.f32.mxu0 0.0
        %5824 = vmatmul.mubr.f32.gmra.mrb[0].mxu0 %v5722
        %v5825 = vpop.f32.mrb[0].mxu0
        %v5826 = vadd.f32 0.0, %v5825
        %v5827 = vpop.f32.mrb[0].mxu0
        %5828 = vdwg.mxu0
        %v5829 = vadd.f32 %v5659, %v5791
        %v5830 = vadd.f32 %v5660, %v5796
        %v5831 = vadd.f32 %v5661, %v5801
        %v5832 = vadd.f32 %v5662, %v5806
        %v5833 = vadd.f32 %v5663, %v5811
        %v5834 = vadd.f32 %v5664, %v5816
        %v5835 = vadd.f32 %v5665, %v5821
        %v5836 = vadd.f32 %v5666, %v5826
        %s5837 = scalar_lea.vmem [#allocation5], 384
        %v5838 = vld [vmem:[%s5837] sm:$0xff]
        %v5839 = vld [vmem:[%s5837 + $0x8] sm:$0xff]
        %v5840 = vld [vmem:[%s5837 + $0x10] sm:$0xff]
        %v5841 = vld [vmem:[%s5837 + $0x18] sm:$0xff]
        %v5842 = vld [vmem:[%s5837 + $0x20] sm:$0xff]
        %v5843 = vld [vmem:[%s5837 + $0x28] sm:$0xff]
        %v5844 = vld [vmem:[%s5837 + $0x30] sm:$0xff]
        %v5845 = vld [vmem:[%s5837 + $0x38] sm:$0xff]
        %5846 = vrot.lane.b32.xlu0 %v4804, 122
        %v5847 = vpop.permute.xlu0 %5846
        %5848 = vrot.lane.b32.xlu0 %v4809, 122
        %v5849 = vpop.permute.xlu0 %5848
        %5850 = vrot.lane.b32.xlu0 %v4814, 122
        %v5851 = vpop.permute.xlu0 %5850
        %5852 = vrot.lane.b32.xlu0 %v4819, 122
        %v5853 = vpop.permute.xlu0 %5852
        %5854 = vrot.lane.b32.xlu0 %v4824, 122
        %v5855 = vpop.permute.xlu0 %5854
        %5856 = vrot.lane.b32.xlu0 %v4829, 122
        %v5857 = vpop.permute.xlu0 %5856
        %5858 = vrot.lane.b32.xlu0 %v4834, 122
        %v5859 = vpop.permute.xlu0 %5858
        %5860 = vrot.lane.b32.xlu0 %v4839, 122
        %v5861 = vpop.permute.xlu0 %5860
        %v5871 = vsel %vm1418, %v5838, 0
        %v5874 = vsel %vm1418, %v5839, 0
        %v5877 = vsel %vm1418, %v5840, 0
        %v5880 = vsel %vm1418, %v5841, 0
        %v5883 = vsel %vm1418, %v5842, 0
        %v5886 = vsel %vm1418, %v5843, 0
        %v5889 = vsel %vm1418, %v5844, 0
        %v5892 = vsel %vm1418, %v5845, 0
        %5894 = vmatprep.subr.mxu0 0.0
        %5895 = vmatpush1.msra.mxu0 %v5847
        %5896 = vmatprep.subr.mxu0 0.0
        %5897 = vmatpush1.msra.mxu0 %v5849
        %5898 = vmatprep.subr.mxu0 0.0
        %5899 = vmatpush1.msra.mxu0 %v5851
        %5900 = vmatprep.subr.mxu0 0.0
        %5901 = vmatpush1.msra.mxu0 %v5853
        %5902 = vmatprep.subr.mxu0 0.0
        %5903 = vmatpush1.msra.mxu0 %v5855
        %5904 = vmatprep.subr.mxu0 0.0
        %5905 = vmatpush1.msra.mxu0 %v5857
        %5906 = vmatprep.subr.mxu0 0.0
        %5907 = vmatpush1.msra.mxu0 %v5859
        %5908 = vmatprep.subr.mxu0 0.0
        %5909 = vmatpush1.msra.mxu0 %v5861
        %5910 = vmatprep.subr.mxu0 0.0
        %5911 = vmatpush1.msra.mxu0 0.0
        %5912 = vmatprep.subr.mxu0 0.0
        %5913 = vmatpush1.msra.mxu0 0.0
        %5914 = vmatprep.subr.mxu0 0.0
        %5915 = vmatpush1.msra.mxu0 0.0
        %5916 = vmatprep.subr.mxu0 0.0
        %5917 = vmatpush1.msra.mxu0 0.0
        %5918 = vmatprep.subr.mxu0 0.0
        %5919 = vmatpush1.msra.mxu0 0.0
        %5920 = vmatprep.subr.mxu0 0.0
        %5921 = vmatpush1.msra.mxu0 0.0
        %5922 = vmatprep.subr.mxu0 0.0
        %5923 = vmatpush1.msra.mxu0 0.0
        %5924 = vmatprep.subr.mxu0 0.0
        %5925 = vmatpush1.msra.mxu0 0.0
        %5926 = vmatprep.subr.mxu0 0.0
        %5927 = vmatpush1.msra.mxu0 0.0
        %5928 = vmatprep.subr.mxu0 0.0
        %5929 = vmatpush1.msra.mxu0 0.0
        %5930 = vmatprep.subr.mxu0 0.0
        %5931 = vmatpush1.msra.mxu0 0.0
        %5932 = vmatprep.subr.mxu0 0.0
        %5933 = vmatpush1.msra.mxu0 0.0
        %5934 = vmatprep.subr.mxu0 0.0
        %5935 = vmatpush1.msra.mxu0 0.0
        %5936 = vmatprep.subr.mxu0 0.0
        %5937 = vmatpush1.msra.mxu0 0.0
        %5938 = vmatprep.subr.mxu0 0.0
        %5939 = vmatpush1.msra.mxu0 0.0
        %5940 = vmatprep.subr.mxu0 0.0
        %5941 = vmatpush1.msra.mxu0 0.0
        %5942 = vmatprep.subr.mxu0 0.0
        %5943 = vmatpush1.msra.mxu0 0.0
        %5944 = vmatprep.subr.mxu0 0.0
        %5945 = vmatpush1.msra.mxu0 0.0
        %5946 = vmatprep.subr.mxu0 0.0
        %5947 = vmatpush1.msra.mxu0 0.0
        %5948 = vmatprep.subr.mxu0 0.0
        %5949 = vmatpush1.msra.mxu0 0.0
        %5950 = vmatprep.subr.mxu0 0.0
        %5951 = vmatpush1.msra.mxu0 0.0
        %5952 = vmatprep.subr.mxu0 0.0
        %5953 = vmatpush1.msra.mxu0 0.0
        %5954 = vmatprep.subr.mxu0 0.0
        %5955 = vmatpush1.msra.mxu0 0.0
        %5956 = vmatprep.subr.mxu0 0.0
        %5957 = vmatpush1.msra.mxu0 0.0
        %5958 = vmatprep.mubr.f32.mxu0 0.0
        %5959 = vmatmul.mubr.f32.gmra.mrb[0].mxu0 %v5871
        %v5960 = vpop.f32.mrb[0].mxu0
        %v5961 = vadd.f32 0.0, %v5960
        %v5962 = vpop.f32.mrb[0].mxu0
        %5963 = vmatprep.mubr.f32.mxu0 0.0
        %5964 = vmatmul.mubr.f32.gmra.mrb[0].mxu0 %v5874
        %v5965 = vpop.f32.mrb[0].mxu0
        %v5966 = vadd.f32 0.0, %v5965
        %v5967 = vpop.f32.mrb[0].mxu0
        %5968 = vmatprep.mubr.f32.mxu0 0.0
        %5969 = vmatmul.mubr.f32.gmra.mrb[0].mxu0 %v5877
        %v5970 = vpop.f32.mrb[0].mxu0
        %v5971 = vadd.f32 0.0, %v5970
        %v5972 = vpop.f32.mrb[0].mxu0
        %5973 = vmatprep.mubr.f32.mxu0 0.0
        %5974 = vmatmul.mubr.f32.gmra.mrb[0].mxu0 %v5880
        %v5975 = vpop.f32.mrb[0].mxu0
        %v5976 = vadd.f32 0.0, %v5975
        %v5977 = vpop.f32.mrb[0].mxu0
        %5978 = vmatprep.mubr.f32.mxu0 0.0
        %5979 = vmatmul.mubr.f32.gmra.mrb[0].mxu0 %v5883
        %v5980 = vpop.f32.mrb[0].mxu0
        %v5981 = vadd.f32 0.0, %v5980
        %v5982 = vpop.f32.mrb[0].mxu0
        %5983 = vmatprep.mubr.f32.mxu0 0.0
        %5984 = vmatmul.mubr.f32.gmra.mrb[0].mxu0 %v5886
        %v5985 = vpop.f32.mrb[0].mxu0
        %v5986 = vadd.f32 0.0, %v5985
        %v5987 = vpop.f32.mrb[0].mxu0
        %5988 = vmatprep.mubr.f32.mxu0 0.0
        %5989 = vmatmul.mubr.f32.gmra.mrb[0].mxu0 %v5889
        %v5990 = vpop.f32.mrb[0].mxu0
        %v5991 = vadd.f32 0.0, %v5990
        %v5992 = vpop.f32.mrb[0].mxu0
        %5993 = vmatprep.mubr.f32.mxu0 0.0
        %5994 = vmatmul.mubr.f32.gmra.mrb[0].mxu0 %v5892
        %v5995 = vpop.f32.mrb[0].mxu0
        %v5996 = vadd.f32 0.0, %v5995
        %v5997 = vpop.f32.mrb[0].mxu0
        %5998 = vdwg.mxu0
        %v5999 = vadd.f32 %v5829, %v5961
        %v6000 = vadd.f32 %v5830, %v5966
        %v6001 = vadd.f32 %v5831, %v5971
        %v6002 = vadd.f32 %v5832, %v5976
        %v6003 = vadd.f32 %v5833, %v5981
        %v6004 = vadd.f32 %v5834, %v5986
        %v6005 = vadd.f32 %v5835, %v5991
        %v6006 = vadd.f32 %v5836, %v5996
        %s6007 = scalar_lea.vmem [#allocation5], 448
        %v6008 = vld [vmem:[%s6007] sm:$0xff]
        %v6009 = vld [vmem:[%s6007 + $0x8] sm:$0xff]
        %v6010 = vld [vmem:[%s6007 + $0x10] sm:$0xff]
        %v6011 = vld [vmem:[%s6007 + $0x18] sm:$0xff]
        %v6012 = vld [vmem:[%s6007 + $0x20] sm:$0xff]
        %v6013 = vld [vmem:[%s6007 + $0x28] sm:$0xff]
        %v6014 = vld [vmem:[%s6007 + $0x30] sm:$0xff]
        %v6015 = vld [vmem:[%s6007 + $0x38] sm:$0xff]
        %6016 = vrot.lane.b32.xlu0 %v4804, 121
        %v6017 = vpop.permute.xlu0 %6016
        %6018 = vrot.lane.b32.xlu0 %v4809, 121
        %v6019 = vpop.permute.xlu0 %6018
        %6020 = vrot.lane.b32.xlu0 %v4814, 121
        %v6021 = vpop.permute.xlu0 %6020
        %6022 = vrot.lane.b32.xlu0 %v4819, 121
        %v6023 = vpop.permute.xlu0 %6022
        %6024 = vrot.lane.b32.xlu0 %v4824, 121
        %v6025 = vpop.permute.xlu0 %6024
        %6026 = vrot.lane.b32.xlu0 %v4829, 121
        %v6027 = vpop.permute.xlu0 %6026
        %6028 = vrot.lane.b32.xlu0 %v4834, 121
        %v6029 = vpop.permute.xlu0 %6028
        %6030 = vrot.lane.b32.xlu0 %v4839, 121
        %v6031 = vpop.permute.xlu0 %6030
        %v6041 = vsel %vm1418, %v6008, 0
        %v6044 = vsel %vm1418, %v6009, 0
        %v6047 = vsel %vm1418, %v6010, 0
        %v6050 = vsel %vm1418, %v6011, 0
        %v6053 = vsel %vm1418, %v6012, 0
        %v6056 = vsel %vm1418, %v6013, 0
        %v6059 = vsel %vm1418, %v6014, 0
        %v6062 = vsel %vm1418, %v6015, 0
        %6064 = vmatprep.subr.mxu0 0.0
        %6065 = vmatpush1.msra.mxu0 %v6017
        %6066 = vmatprep.subr.mxu0 0.0
        %6067 = vmatpush1.msra.mxu0 %v6019
        %6068 = vmatprep.subr.mxu0 0.0
        %6069 = vmatpush1.msra.mxu0 %v6021
        %6070 = vmatprep.subr.mxu0 0.0
        %6071 = vmatpush1.msra.mxu0 %v6023
        %6072 = vmatprep.subr.mxu0 0.0
        %6073 = vmatpush1.msra.mxu0 %v6025
        %6074 = vmatprep.subr.mxu0 0.0
        %6075 = vmatpush1.msra.mxu0 %v6027
        %6076 = vmatprep.subr.mxu0 0.0
        %6077 = vmatpush1.msra.mxu0 %v6029
        %6078 = vmatprep.subr.mxu0 0.0
        %6079 = vmatpush1.msra.mxu0 %v6031
        %6080 = vmatprep.subr.mxu0 0.0
        %6081 = vmatpush1.msra.mxu0 0.0
        %6082 = vmatprep.subr.mxu0 0.0
        %6083 = vmatpush1.msra.mxu0 0.0
        %6084 = vmatprep.subr.mxu0 0.0
        %6085 = vmatpush1.msra.mxu0 0.0
        %6086 = vmatprep.subr.mxu0 0.0
        %6087 = vmatpush1.msra.mxu0 0.0
        %6088 = vmatprep.subr.mxu0 0.0
        %6089 = vmatpush1.msra.mxu0 0.0
        %6090 = vmatprep.subr.mxu0 0.0
        %6091 = vmatpush1.msra.mxu0 0.0
        %6092 = vmatprep.subr.mxu0 0.0
        %6093 = vmatpush1.msra.mxu0 0.0
        %6094 = vmatprep.subr.mxu0 0.0
        %6095 = vmatpush1.msra.mxu0 0.0
        %6096 = vmatprep.subr.mxu0 0.0
        %6097 = vmatpush1.msra.mxu0 0.0
        %6098 = vmatprep.subr.mxu0 0.0
        %6099 = vmatpush1.msra.mxu0 0.0
        %6100 = vmatprep.subr.mxu0 0.0
        %6101 = vmatpush1.msra.mxu0 0.0
        %6102 = vmatprep.subr.mxu0 0.0
        %6103 = vmatpush1.msra.mxu0 0.0
        %6104 = vmatprep.subr.mxu0 0.0
        %6105 = vmatpush1.msra.mxu0 0.0
        %6106 = vmatprep.subr.mxu0 0.0
        %6107 = vmatpush1.msra.mxu0 0.0
        %6108 = vmatprep.subr.mxu0 0.0
        %6109 = vmatpush1.msra.mxu0 0.0
        %6110 = vmatprep.subr.mxu0 0.0
        %6111 = vmatpush1.msra.mxu0 0.0
        %6112 = vmatprep.subr.mxu0 0.0
        %6113 = vmatpush1.msra.mxu0 0.0
        %6114 = vmatprep.subr.mxu0 0.0
        %6115 = vmatpush1.msra.mxu0 0.0
        %6116 = vmatprep.subr.mxu0 0.0
        %6117 = vmatpush1.msra.mxu0 0.0
        %6118 = vmatprep.subr.mxu0 0.0
        %6119 = vmatpush1.msra.mxu0 0.0
        %6120 = vmatprep.subr.mxu0 0.0
        %6121 = vmatpush1.msra.mxu0 0.0
        %6122 = vmatprep.subr.mxu0 0.0
        %6123 = vmatpush1.msra.mxu0 0.0
        %6124 = vmatprep.subr.mxu0 0.0
        %6125 = vmatpush1.msra.mxu0 0.0
        %6126 = vmatprep.subr.mxu0 0.0
        %6127 = vmatpush1.msra.mxu0 0.0
        %6128 = vmatprep.mubr.f32.mxu0 0.0
        %6129 = vmatmul.mubr.f32.gmra.mrb[0].mxu0 %v6041
        %v6130 = vpop.f32.mrb[0].mxu0
        %v6131 = vadd.f32 0.0, %v6130
        %v6132 = vpop.f32.mrb[0].mxu0
        %6133 = vmatprep.mubr.f32.mxu0 0.0
        %6134 = vmatmul.mubr.f32.gmra.mrb[0].mxu0 %v6044
        %v6135 = vpop.f32.mrb[0].mxu0
        %v6136 = vadd.f32 0.0, %v6135
        %v6137 = vpop.f32.mrb[0].mxu0
        %6138 = vmatprep.mubr.f32.mxu0 0.0
        %6139 = vmatmul.mubr.f32.gmra.mrb[0].mxu0 %v6047
        %v6140 = vpop.f32.mrb[0].mxu0
        %v6141 = vadd.f32 0.0, %v6140
        %v6142 = vpop.f32.mrb[0].mxu0
        %6143 = vmatprep.mubr.f32.mxu0 0.0
        %6144 = vmatmul.mubr.f32.gmra.mrb[0].mxu0 %v6050
        %v6145 = vpop.f32.mrb[0].mxu0
        %v6146 = vadd.f32 0.0, %v6145
        %v6147 = vpop.f32.mrb[0].mxu0
        %6148 = vmatprep.mubr.f32.mxu0 0.0
        %6149 = vmatmul.mubr.f32.gmra.mrb[0].mxu0 %v6053
        %v6150 = vpop.f32.mrb[0].mxu0
        %v6151 = vadd.f32 0.0, %v6150
        %v6152 = vpop.f32.mrb[0].mxu0
        %6153 = vmatprep.mubr.f32.mxu0 0.0
        %6154 = vmatmul.mubr.f32.gmra.mrb[0].mxu0 %v6056
        %v6155 = vpop.f32.mrb[0].mxu0
        %v6156 = vadd.f32 0.0, %v6155
        %v6157 = vpop.f32.mrb[0].mxu0
        %6158 = vmatprep.mubr.f32.mxu0 0.0
        %6159 = vmatmul.mubr.f32.gmra.mrb[0].mxu0 %v6059
        %v6160 = vpop.f32.mrb[0].mxu0
        %v6161 = vadd.f32 0.0, %v6160
        %v6162 = vpop.f32.mrb[0].mxu0
        %6163 = vmatprep.mubr.f32.mxu0 0.0
        %6164 = vmatmul.mubr.f32.gmra.mrb[0].mxu0 %v6062
        %v6165 = vpop.f32.mrb[0].mxu0
        %v6166 = vadd.f32 0.0, %v6165
        %v6167 = vpop.f32.mrb[0].mxu0
        %6168 = vdwg.mxu0
        %v6169 = vadd.f32 %v5999, %v6131
        %v6170 = vadd.f32 %v6000, %v6136
        %v6171 = vadd.f32 %v6001, %v6141
        %v6172 = vadd.f32 %v6002, %v6146
        %v6173 = vadd.f32 %v6003, %v6151
        %v6174 = vadd.f32 %v6004, %v6156
        %v6175 = vadd.f32 %v6005, %v6161
        %v6176 = vadd.f32 %v6006, %v6166
        %s6177 = scalar_lea.vmem [#allocation5], 512
        %v6178 = vld [vmem:[%s6177] sm:$0xff]
        %v6179 = vld [vmem:[%s6177 + $0x8] sm:$0xff]
        %v6180 = vld [vmem:[%s6177 + $0x10] sm:$0xff]
        %v6181 = vld [vmem:[%s6177 + $0x18] sm:$0xff]
        %v6182 = vld [vmem:[%s6177 + $0x20] sm:$0xff]
        %v6183 = vld [vmem:[%s6177 + $0x28] sm:$0xff]
        %v6184 = vld [vmem:[%s6177 + $0x30] sm:$0xff]
        %v6185 = vld [vmem:[%s6177 + $0x38] sm:$0xff]
        %6186 = vrot.lane.b32.xlu0 %v4804, 120
        %v6187 = vpop.permute.xlu0 %6186
        %6188 = vrot.lane.b32.xlu0 %v4809, 120
        %v6189 = vpop.permute.xlu0 %6188
        %6190 = vrot.lane.b32.xlu0 %v4814, 120
        %v6191 = vpop.permute.xlu0 %6190
        %6192 = vrot.lane.b32.xlu0 %v4819, 120
        %v6193 = vpop.permute.xlu0 %6192
        %6194 = vrot.lane.b32.xlu0 %v4824, 120
        %v6195 = vpop.permute.xlu0 %6194
        %6196 = vrot.lane.b32.xlu0 %v4829, 120
        %v6197 = vpop.permute.xlu0 %6196
        %6198 = vrot.lane.b32.xlu0 %v4834, 120
        %v6199 = vpop.permute.xlu0 %6198
        %6200 = vrot.lane.b32.xlu0 %v4839, 120
        %v6201 = vpop.permute.xlu0 %6200
        %v6211 = vsel %vm1418, %v6178, 0
        %v6214 = vsel %vm1418, %v6179, 0
        %v6217 = vsel %vm1418, %v6180, 0
        %v6220 = vsel %vm1418, %v6181, 0
        %v6223 = vsel %vm1418, %v6182, 0
        %v6226 = vsel %vm1418, %v6183, 0
        %v6229 = vsel %vm1418, %v6184, 0
        %v6232 = vsel %vm1418, %v6185, 0
        %6234 = vmatprep.subr.mxu0 0.0
        %6235 = vmatpush1.msra.mxu0 %v6187
        %6236 = vmatprep.subr.mxu0 0.0
        %6237 = vmatpush1.msra.mxu0 %v6189
        %6238 = vmatprep.subr.mxu0 0.0
        %6239 = vmatpush1.msra.mxu0 %v6191
        %6240 = vmatprep.subr.mxu0 0.0
        %6241 = vmatpush1.msra.mxu0 %v6193
        %6242 = vmatprep.subr.mxu0 0.0
        %6243 = vmatpush1.msra.mxu0 %v6195
        %6244 = vmatprep.subr.mxu0 0.0
        %6245 = vmatpush1.msra.mxu0 %v6197
        %6246 = vmatprep.subr.mxu0 0.0
        %6247 = vmatpush1.msra.mxu0 %v6199
        %6248 = vmatprep.subr.mxu0 0.0
        %6249 = vmatpush1.msra.mxu0 %v6201
        %6250 = vmatprep.subr.mxu0 0.0
        %6251 = vmatpush1.msra.mxu0 0.0
        %6252 = vmatprep.subr.mxu0 0.0
        %6253 = vmatpush1.msra.mxu0 0.0
        %6254 = vmatprep.subr.mxu0 0.0
        %6255 = vmatpush1.msra.mxu0 0.0
        %6256 = vmatprep.subr.mxu0 0.0
        %6257 = vmatpush1.msra.mxu0 0.0
        %6258 = vmatprep.subr.mxu0 0.0
        %6259 = vmatpush1.msra.mxu0 0.0
        %6260 = vmatprep.subr.mxu0 0.0
        %6261 = vmatpush1.msra.mxu0 0.0
        %6262 = vmatprep.subr.mxu0 0.0
        %6263 = vmatpush1.msra.mxu0 0.0
        %6264 = vmatprep.subr.mxu0 0.0
        %6265 = vmatpush1.msra.mxu0 0.0
        %6266 = vmatprep.subr.mxu0 0.0
        %6267 = vmatpush1.msra.mxu0 0.0
        %6268 = vmatprep.subr.mxu0 0.0
        %6269 = vmatpush1.msra.mxu0 0.0
        %6270 = vmatprep.subr.mxu0 0.0
        %6271 = vmatpush1.msra.mxu0 0.0
        %6272 = vmatprep.subr.mxu0 0.0
        %6273 = vmatpush1.msra.mxu0 0.0
        %6274 = vmatprep.subr.mxu0 0.0
        %6275 = vmatpush1.msra.mxu0 0.0
        %6276 = vmatprep.subr.mxu0 0.0
        %6277 = vmatpush1.msra.mxu0 0.0
        %6278 = vmatprep.subr.mxu0 0.0
        %6279 = vmatpush1.msra.mxu0 0.0
        %6280 = vmatprep.subr.mxu0 0.0
        %6281 = vmatpush1.msra.mxu0 0.0
        %6282 = vmatprep.subr.mxu0 0.0
        %6283 = vmatpush1.msra.mxu0 0.0
        %6284 = vmatprep.subr.mxu0 0.0
        %6285 = vmatpush1.msra.mxu0 0.0
        %6286 = vmatprep.subr.mxu0 0.0
        %6287 = vmatpush1.msra.mxu0 0.0
        %6288 = vmatprep.subr.mxu0 0.0
        %6289 = vmatpush1.msra.mxu0 0.0
        %6290 = vmatprep.subr.mxu0 0.0
        %6291 = vmatpush1.msra.mxu0 0.0
        %6292 = vmatprep.subr.mxu0 0.0
        %6293 = vmatpush1.msra.mxu0 0.0
        %6294 = vmatprep.subr.mxu0 0.0
        %6295 = vmatpush1.msra.mxu0 0.0
        %6296 = vmatprep.subr.mxu0 0.0
        %6297 = vmatpush1.msra.mxu0 0.0
        %6298 = vmatprep.mubr.f32.mxu0 0.0
        %6299 = vmatmul.mubr.f32.gmra.mrb[0].mxu0 %v6211
        %v6300 = vpop.f32.mrb[0].mxu0
        %v6301 = vadd.f32 0.0, %v6300
        %v6302 = vpop.f32.mrb[0].mxu0
        %6303 = vmatprep.mubr.f32.mxu0 0.0
        %6304 = vmatmul.mubr.f32.gmra.mrb[0].mxu0 %v6214
        %v6305 = vpop.f32.mrb[0].mxu0
        %v6306 = vadd.f32 0.0, %v6305
        %v6307 = vpop.f32.mrb[0].mxu0
        %6308 = vmatprep.mubr.f32.mxu0 0.0
        %6309 = vmatmul.mubr.f32.gmra.mrb[0].mxu0 %v6217
        %v6310 = vpop.f32.mrb[0].mxu0
        %v6311 = vadd.f32 0.0, %v6310
        %v6312 = vpop.f32.mrb[0].mxu0
        %6313 = vmatprep.mubr.f32.mxu0 0.0
        %6314 = vmatmul.mubr.f32.gmra.mrb[0].mxu0 %v6220
        %v6315 = vpop.f32.mrb[0].mxu0
        %v6316 = vadd.f32 0.0, %v6315
        %v6317 = vpop.f32.mrb[0].mxu0
        %6318 = vmatprep.mubr.f32.mxu0 0.0
        %6319 = vmatmul.mubr.f32.gmra.mrb[0].mxu0 %v6223
        %v6320 = vpop.f32.mrb[0].mxu0
        %v6321 = vadd.f32 0.0, %v6320
        %v6322 = vpop.f32.mrb[0].mxu0
        %6323 = vmatprep.mubr.f32.mxu0 0.0
        %6324 = vmatmul.mubr.f32.gmra.mrb[0].mxu0 %v6226
        %v6325 = vpop.f32.mrb[0].mxu0
        %v6326 = vadd.f32 0.0, %v6325
        %v6327 = vpop.f32.mrb[0].mxu0
        %6328 = vmatprep.mubr.f32.mxu0 0.0
        %6329 = vmatmul.mubr.f32.gmra.mrb[0].mxu0 %v6229
        %v6330 = vpop.f32.mrb[0].mxu0
        %v6331 = vadd.f32 0.0, %v6330
        %v6332 = vpop.f32.mrb[0].mxu0
        %6333 = vmatprep.mubr.f32.mxu0 0.0
        %6334 = vmatmul.mubr.f32.gmra.mrb[0].mxu0 %v6232
        %v6335 = vpop.f32.mrb[0].mxu0
        %v6336 = vadd.f32 0.0, %v6335
        %v6337 = vpop.f32.mrb[0].mxu0
        %6338 = vdwg.mxu0
        %v6339 = vadd.f32 %v6169, %v6301
        %v6340 = vadd.f32 %v6170, %v6306
        %v6341 = vadd.f32 %v6171, %v6311
        %v6342 = vadd.f32 %v6172, %v6316
        %v6343 = vadd.f32 %v6173, %v6321
        %v6344 = vadd.f32 %v6174, %v6326
        %v6345 = vadd.f32 %v6175, %v6331
        %v6346 = vadd.f32 %v6176, %v6336
        %s6347 = scalar_lea.vmem [#allocation5], 576
        %v6348 = vld [vmem:[%s6347] sm:$0xff]
        %v6349 = vld [vmem:[%s6347 + $0x8] sm:$0xff]
        %v6350 = vld [vmem:[%s6347 + $0x10] sm:$0xff]
        %v6351 = vld [vmem:[%s6347 + $0x18] sm:$0xff]
        %v6352 = vld [vmem:[%s6347 + $0x20] sm:$0xff]
        %v6353 = vld [vmem:[%s6347 + $0x28] sm:$0xff]
        %v6354 = vld [vmem:[%s6347 + $0x30] sm:$0xff]
        %v6355 = vld [vmem:[%s6347 + $0x38] sm:$0xff]
        %6356 = vrot.lane.b32.xlu0 %v4804, 119
        %v6357 = vpop.permute.xlu0 %6356
        %6358 = vrot.lane.b32.xlu0 %v4809, 119
        %v6359 = vpop.permute.xlu0 %6358
        %6360 = vrot.lane.b32.xlu0 %v4814, 119
        %v6361 = vpop.permute.xlu0 %6360
        %6362 = vrot.lane.b32.xlu0 %v4819, 119
        %v6363 = vpop.permute.xlu0 %6362
        %6364 = vrot.lane.b32.xlu0 %v4824, 119
        %v6365 = vpop.permute.xlu0 %6364
        %6366 = vrot.lane.b32.xlu0 %v4829, 119
        %v6367 = vpop.permute.xlu0 %6366
        %6368 = vrot.lane.b32.xlu0 %v4834, 119
        %v6369 = vpop.permute.xlu0 %6368
        %6370 = vrot.lane.b32.xlu0 %v4839, 119
        %v6371 = vpop.permute.xlu0 %6370
        %v6381 = vsel %vm1418, %v6348, 0
        %v6384 = vsel %vm1418, %v6349, 0
        %v6387 = vsel %vm1418, %v6350, 0
        %v6390 = vsel %vm1418, %v6351, 0
        %v6393 = vsel %vm1418, %v6352, 0
        %v6396 = vsel %vm1418, %v6353, 0
        %v6399 = vsel %vm1418, %v6354, 0
        %v6402 = vsel %vm1418, %v6355, 0
        %6404 = vmatprep.subr.mxu0 0.0
        %6405 = vmatpush1.msra.mxu0 %v6357
        %6406 = vmatprep.subr.mxu0 0.0
        %6407 = vmatpush1.msra.mxu0 %v6359
        %6408 = vmatprep.subr.mxu0 0.0
        %6409 = vmatpush1.msra.mxu0 %v6361
        %6410 = vmatprep.subr.mxu0 0.0
        %6411 = vmatpush1.msra.mxu0 %v6363
        %6412 = vmatprep.subr.mxu0 0.0
        %6413 = vmatpush1.msra.mxu0 %v6365
        %6414 = vmatprep.subr.mxu0 0.0
        %6415 = vmatpush1.msra.mxu0 %v6367
        %6416 = vmatprep.subr.mxu0 0.0
        %6417 = vmatpush1.msra.mxu0 %v6369
        %6418 = vmatprep.subr.mxu0 0.0
        %6419 = vmatpush1.msra.mxu0 %v6371
        %6420 = vmatprep.subr.mxu0 0.0
        %6421 = vmatpush1.msra.mxu0 0.0
        %6422 = vmatprep.subr.mxu0 0.0
        %6423 = vmatpush1.msra.mxu0 0.0
        %6424 = vmatprep.subr.mxu0 0.0
        %6425 = vmatpush1.msra.mxu0 0.0
        %6426 = vmatprep.subr.mxu0 0.0
        %6427 = vmatpush1.msra.mxu0 0.0
        %6428 = vmatprep.subr.mxu0 0.0
        %6429 = vmatpush1.msra.mxu0 0.0
        %6430 = vmatprep.subr.mxu0 0.0
        %6431 = vmatpush1.msra.mxu0 0.0
        %6432 = vmatprep.subr.mxu0 0.0
        %6433 = vmatpush1.msra.mxu0 0.0
        %6434 = vmatprep.subr.mxu0 0.0
        %6435 = vmatpush1.msra.mxu0 0.0
        %6436 = vmatprep.subr.mxu0 0.0
        %6437 = vmatpush1.msra.mxu0 0.0
        %6438 = vmatprep.subr.mxu0 0.0
        %6439 = vmatpush1.msra.mxu0 0.0
        %6440 = vmatprep.subr.mxu0 0.0
        %6441 = vmatpush1.msra.mxu0 0.0
        %6442 = vmatprep.subr.mxu0 0.0
        %6443 = vmatpush1.msra.mxu0 0.0
        %6444 = vmatprep.subr.mxu0 0.0
        %6445 = vmatpush1.msra.mxu0 0.0
        %6446 = vmatprep.subr.mxu0 0.0
        %6447 = vmatpush1.msra.mxu0 0.0
        %6448 = vmatprep.subr.mxu0 0.0
        %6449 = vmatpush1.msra.mxu0 0.0
        %6450 = vmatprep.subr.mxu0 0.0
        %6451 = vmatpush1.msra.mxu0 0.0
        %6452 = vmatprep.subr.mxu0 0.0
        %6453 = vmatpush1.msra.mxu0 0.0
        %6454 = vmatprep.subr.mxu0 0.0
        %6455 = vmatpush1.msra.mxu0 0.0
        %6456 = vmatprep.subr.mxu0 0.0
        %6457 = vmatpush1.msra.mxu0 0.0
        %6458 = vmatprep.subr.mxu0 0.0
        %6459 = vmatpush1.msra.mxu0 0.0
        %6460 = vmatprep.subr.mxu0 0.0
        %6461 = vmatpush1.msra.mxu0 0.0
        %6462 = vmatprep.subr.mxu0 0.0
        %6463 = vmatpush1.msra.mxu0 0.0
        %6464 = vmatprep.subr.mxu0 0.0
        %6465 = vmatpush1.msra.mxu0 0.0
        %6466 = vmatprep.subr.mxu0 0.0
        %6467 = vmatpush1.msra.mxu0 0.0
        %6468 = vmatprep.mubr.f32.mxu0 0.0
        %6469 = vmatmul.mubr.f32.gmra.mrb[0].mxu0 %v6381
        %v6470 = vpop.f32.mrb[0].mxu0
        %v6471 = vadd.f32 0.0, %v6470
        %v6472 = vpop.f32.mrb[0].mxu0
        %6473 = vmatprep.mubr.f32.mxu0 0.0
        %6474 = vmatmul.mubr.f32.gmra.mrb[0].mxu0 %v6384
        %v6475 = vpop.f32.mrb[0].mxu0
        %v6476 = vadd.f32 0.0, %v6475
        %v6477 = vpop.f32.mrb[0].mxu0
        %6478 = vmatprep.mubr.f32.mxu0 0.0
        %6479 = vmatmul.mubr.f32.gmra.mrb[0].mxu0 %v6387
        %v6480 = vpop.f32.mrb[0].mxu0
        %v6481 = vadd.f32 0.0, %v6480
        %v6482 = vpop.f32.mrb[0].mxu0
        %6483 = vmatprep.mubr.f32.mxu0 0.0
        %6484 = vmatmul.mubr.f32.gmra.mrb[0].mxu0 %v6390
        %v6485 = vpop.f32.mrb[0].mxu0
        %v6486 = vadd.f32 0.0, %v6485
        %v6487 = vpop.f32.mrb[0].mxu0
        %6488 = vmatprep.mubr.f32.mxu0 0.0
        %6489 = vmatmul.mubr.f32.gmra.mrb[0].mxu0 %v6393
        %v6490 = vpop.f32.mrb[0].mxu0
        %v6491 = vadd.f32 0.0, %v6490
        %v6492 = vpop.f32.mrb[0].mxu0
        %6493 = vmatprep.mubr.f32.mxu0 0.0
        %6494 = vmatmul.mubr.f32.gmra.mrb[0].mxu0 %v6396
        %v6495 = vpop.f32.mrb[0].mxu0
        %v6496 = vadd.f32 0.0, %v6495
        %v6497 = vpop.f32.mrb[0].mxu0
        %6498 = vmatprep.mubr.f32.mxu0 0.0
        %6499 = vmatmul.mubr.f32.gmra.mrb[0].mxu0 %v6399
        %v6500 = vpop.f32.mrb[0].mxu0
        %v6501 = vadd.f32 0.0, %v6500
        %v6502 = vpop.f32.mrb[0].mxu0
        %6503 = vmatprep.mubr.f32.mxu0 0.0
        %6504 = vmatmul.mubr.f32.gmra.mrb[0].mxu0 %v6402
        %v6505 = vpop.f32.mrb[0].mxu0
        %v6506 = vadd.f32 0.0, %v6505
        %v6507 = vpop.f32.mrb[0].mxu0
        %6508 = vdwg.mxu0
        %v6509 = vadd.f32 %v6339, %v6471
        %v6510 = vadd.f32 %v6340, %v6476
        %v6511 = vadd.f32 %v6341, %v6481
        %v6512 = vadd.f32 %v6342, %v6486
        %v6513 = vadd.f32 %v6343, %v6491
        %v6514 = vadd.f32 %v6344, %v6496
        %v6515 = vadd.f32 %v6345, %v6501
        %v6516 = vadd.f32 %v6346, %v6506
        %s6517 = scalar_lea.vmem [#allocation5], 640
        %v6518 = vld [vmem:[%s6517] sm:$0xff]
        %v6519 = vld [vmem:[%s6517 + $0x8] sm:$0xff]
        %v6520 = vld [vmem:[%s6517 + $0x10] sm:$0xff]
        %v6521 = vld [vmem:[%s6517 + $0x18] sm:$0xff]
        %v6522 = vld [vmem:[%s6517 + $0x20] sm:$0xff]
        %v6523 = vld [vmem:[%s6517 + $0x28] sm:$0xff]
        %v6524 = vld [vmem:[%s6517 + $0x30] sm:$0xff]
        %v6525 = vld [vmem:[%s6517 + $0x38] sm:$0xff]
        %6526 = vrot.lane.b32.xlu0 %v4804, 118
        %v6527 = vpop.permute.xlu0 %6526
        %6528 = vrot.lane.b32.xlu0 %v4809, 118
        %v6529 = vpop.permute.xlu0 %6528
        %6530 = vrot.lane.b32.xlu0 %v4814, 118
        %v6531 = vpop.permute.xlu0 %6530
        %6532 = vrot.lane.b32.xlu0 %v4819, 118
        %v6533 = vpop.permute.xlu0 %6532
        %6534 = vrot.lane.b32.xlu0 %v4824, 118
        %v6535 = vpop.permute.xlu0 %6534
        %6536 = vrot.lane.b32.xlu0 %v4829, 118
        %v6537 = vpop.permute.xlu0 %6536
        %6538 = vrot.lane.b32.xlu0 %v4834, 118
        %v6539 = vpop.permute.xlu0 %6538
        %6540 = vrot.lane.b32.xlu0 %v4839, 118
        %v6541 = vpop.permute.xlu0 %6540
        %v6551 = vsel %vm1418, %v6518, 0
        %v6554 = vsel %vm1418, %v6519, 0
        %v6557 = vsel %vm1418, %v6520, 0
        %v6560 = vsel %vm1418, %v6521, 0
        %v6563 = vsel %vm1418, %v6522, 0
        %v6566 = vsel %vm1418, %v6523, 0
        %v6569 = vsel %vm1418, %v6524, 0
        %v6572 = vsel %vm1418, %v6525, 0
        %6574 = vmatprep.subr.mxu0 0.0
        %6575 = vmatpush1.msra.mxu0 %v6527
        %6576 = vmatprep.subr.mxu0 0.0
        %6577 = vmatpush1.msra.mxu0 %v6529
        %6578 = vmatprep.subr.mxu0 0.0
        %6579 = vmatpush1.msra.mxu0 %v6531
        %6580 = vmatprep.subr.mxu0 0.0
        %6581 = vmatpush1.msra.mxu0 %v6533
        %6582 = vmatprep.subr.mxu0 0.0
        %6583 = vmatpush1.msra.mxu0 %v6535
        %6584 = vmatprep.subr.mxu0 0.0
        %6585 = vmatpush1.msra.mxu0 %v6537
        %6586 = vmatprep.subr.mxu0 0.0
        %6587 = vmatpush1.msra.mxu0 %v6539
        %6588 = vmatprep.subr.mxu0 0.0
        %6589 = vmatpush1.msra.mxu0 %v6541
        %6590 = vmatprep.subr.mxu0 0.0
        %6591 = vmatpush1.msra.mxu0 0.0
        %6592 = vmatprep.subr.mxu0 0.0
        %6593 = vmatpush1.msra.mxu0 0.0
        %6594 = vmatprep.subr.mxu0 0.0
        %6595 = vmatpush1.msra.mxu0 0.0
        %6596 = vmatprep.subr.mxu0 0.0
        %6597 = vmatpush1.msra.mxu0 0.0
        %6598 = vmatprep.subr.mxu0 0.0
        %6599 = vmatpush1.msra.mxu0 0.0
        %6600 = vmatprep.subr.mxu0 0.0
        %6601 = vmatpush1.msra.mxu0 0.0
        %6602 = vmatprep.subr.mxu0 0.0
        %6603 = vmatpush1.msra.mxu0 0.0
        %6604 = vmatprep.subr.mxu0 0.0
        %6605 = vmatpush1.msra.mxu0 0.0
        %6606 = vmatprep.subr.mxu0 0.0
        %6607 = vmatpush1.msra.mxu0 0.0
        %6608 = vmatprep.subr.mxu0 0.0
        %6609 = vmatpush1.msra.mxu0 0.0
        %6610 = vmatprep.subr.mxu0 0.0
        %6611 = vmatpush1.msra.mxu0 0.0
        %6612 = vmatprep.subr.mxu0 0.0
        %6613 = vmatpush1.msra.mxu0 0.0
        %6614 = vmatprep.subr.mxu0 0.0
        %6615 = vmatpush1.msra.mxu0 0.0
        %6616 = vmatprep.subr.mxu0 0.0
        %6617 = vmatpush1.msra.mxu0 0.0
        %6618 = vmatprep.subr.mxu0 0.0
        %6619 = vmatpush1.msra.mxu0 0.0
        %6620 = vmatprep.subr.mxu0 0.0
        %6621 = vmatpush1.msra.mxu0 0.0
        %6622 = vmatprep.subr.mxu0 0.0
        %6623 = vmatpush1.msra.mxu0 0.0
        %6624 = vmatprep.subr.mxu0 0.0
        %6625 = vmatpush1.msra.mxu0 0.0
        %6626 = vmatprep.subr.mxu0 0.0
        %6627 = vmatpush1.msra.mxu0 0.0
        %6628 = vmatprep.subr.mxu0 0.0
        %6629 = vmatpush1.msra.mxu0 0.0
        %6630 = vmatprep.subr.mxu0 0.0
        %6631 = vmatpush1.msra.mxu0 0.0
        %6632 = vmatprep.subr.mxu0 0.0
        %6633 = vmatpush1.msra.mxu0 0.0
        %6634 = vmatprep.subr.mxu0 0.0
        %6635 = vmatpush1.msra.mxu0 0.0
        %6636 = vmatprep.subr.mxu0 0.0
        %6637 = vmatpush1.msra.mxu0 0.0
        %6638 = vmatprep.mubr.f32.mxu0 0.0
        %6639 = vmatmul.mubr.f32.gmra.mrb[0].mxu0 %v6551
        %v6640 = vpop.f32.mrb[0].mxu0
        %v6641 = vadd.f32 0.0, %v6640
        %v6642 = vpop.f32.mrb[0].mxu0
        %6643 = vmatprep.mubr.f32.mxu0 0.0
        %6644 = vmatmul.mubr.f32.gmra.mrb[0].mxu0 %v6554
        %v6645 = vpop.f32.mrb[0].mxu0
        %v6646 = vadd.f32 0.0, %v6645
        %v6647 = vpop.f32.mrb[0].mxu0
        %6648 = vmatprep.mubr.f32.mxu0 0.0
        %6649 = vmatmul.mubr.f32.gmra.mrb[0].mxu0 %v6557
        %v6650 = vpop.f32.mrb[0].mxu0
        %v6651 = vadd.f32 0.0, %v6650
        %v6652 = vpop.f32.mrb[0].mxu0
        %6653 = vmatprep.mubr.f32.mxu0 0.0
        %6654 = vmatmul.mubr.f32.gmra.mrb[0].mxu0 %v6560
        %v6655 = vpop.f32.mrb[0].mxu0
        %v6656 = vadd.f32 0.0, %v6655
        %v6657 = vpop.f32.mrb[0].mxu0
        %6658 = vmatprep.mubr.f32.mxu0 0.0
        %6659 = vmatmul.mubr.f32.gmra.mrb[0].mxu0 %v6563
        %v6660 = vpop.f32.mrb[0].mxu0
        %v6661 = vadd.f32 0.0, %v6660
        %v6662 = vpop.f32.mrb[0].mxu0
        %6663 = vmatprep.mubr.f32.mxu0 0.0
        %6664 = vmatmul.mubr.f32.gmra.mrb[0].mxu0 %v6566
        %v6665 = vpop.f32.mrb[0].mxu0
        %v6666 = vadd.f32 0.0, %v6665
        %v6667 = vpop.f32.mrb[0].mxu0
        %6668 = vmatprep.mubr.f32.mxu0 0.0
        %6669 = vmatmul.mubr.f32.gmra.mrb[0].mxu0 %v6569
        %v6670 = vpop.f32.mrb[0].mxu0
        %v6671 = vadd.f32 0.0, %v6670
        %v6672 = vpop.f32.mrb[0].mxu0
        %6673 = vmatprep.mubr.f32.mxu0 0.0
        %6674 = vmatmul.mubr.f32.gmra.mrb[0].mxu0 %v6572
        %v6675 = vpop.f32.mrb[0].mxu0
        %v6676 = vadd.f32 0.0, %v6675
        %v6677 = vpop.f32.mrb[0].mxu0
        %6678 = vdwg.mxu0
        %v6679 = vadd.f32 %v6509, %v6641
        %v6680 = vadd.f32 %v6510, %v6646
        %v6681 = vadd.f32 %v6511, %v6651
        %v6682 = vadd.f32 %v6512, %v6656
        %v6683 = vadd.f32 %v6513, %v6661
        %v6684 = vadd.f32 %v6514, %v6666
        %v6685 = vadd.f32 %v6515, %v6671
        %v6686 = vadd.f32 %v6516, %v6676
        %s6687 = scalar_lea.vmem [#allocation5], 704
        %v6688 = vld [vmem:[%s6687] sm:$0xff]
        %v6689 = vld [vmem:[%s6687 + $0x8] sm:$0xff]
        %v6690 = vld [vmem:[%s6687 + $0x10] sm:$0xff]
        %v6691 = vld [vmem:[%s6687 + $0x18] sm:$0xff]
        %v6692 = vld [vmem:[%s6687 + $0x20] sm:$0xff]
        %v6693 = vld [vmem:[%s6687 + $0x28] sm:$0xff]
        %v6694 = vld [vmem:[%s6687 + $0x30] sm:$0xff]
        %v6695 = vld [vmem:[%s6687 + $0x38] sm:$0xff]
        %6696 = vrot.lane.b32.xlu0 %v4804, 117
        %v6697 = vpop.permute.xlu0 %6696
        %6698 = vrot.lane.b32.xlu0 %v4809, 117
        %v6699 = vpop.permute.xlu0 %6698
        %6700 = vrot.lane.b32.xlu0 %v4814, 117
        %v6701 = vpop.permute.xlu0 %6700
        %6702 = vrot.lane.b32.xlu0 %v4819, 117
        %v6703 = vpop.permute.xlu0 %6702
        %6704 = vrot.lane.b32.xlu0 %v4824, 117
        %v6705 = vpop.permute.xlu0 %6704
        %6706 = vrot.lane.b32.xlu0 %v4829, 117
        %v6707 = vpop.permute.xlu0 %6706
        %6708 = vrot.lane.b32.xlu0 %v4834, 117
        %v6709 = vpop.permute.xlu0 %6708
        %6710 = vrot.lane.b32.xlu0 %v4839, 117
        %v6711 = vpop.permute.xlu0 %6710
        %v6721 = vsel %vm1418, %v6688, 0
        %v6724 = vsel %vm1418, %v6689, 0
        %v6727 = vsel %vm1418, %v6690, 0
        %v6730 = vsel %vm1418, %v6691, 0
        %v6733 = vsel %vm1418, %v6692, 0
        %v6736 = vsel %vm1418, %v6693, 0
        %v6739 = vsel %vm1418, %v6694, 0
        %v6742 = vsel %vm1418, %v6695, 0
        %6744 = vmatprep.subr.mxu0 0.0
        %6745 = vmatpush1.msra.mxu0 %v6697
        %6746 = vmatprep.subr.mxu0 0.0
        %6747 = vmatpush1.msra.mxu0 %v6699
        %6748 = vmatprep.subr.mxu0 0.0
        %6749 = vmatpush1.msra.mxu0 %v6701
        %6750 = vmatprep.subr.mxu0 0.0
        %6751 = vmatpush1.msra.mxu0 %v6703
        %6752 = vmatprep.subr.mxu0 0.0
        %6753 = vmatpush1.msra.mxu0 %v6705
        %6754 = vmatprep.subr.mxu0 0.0
        %6755 = vmatpush1.msra.mxu0 %v6707
        %6756 = vmatprep.subr.mxu0 0.0
        %6757 = vmatpush1.msra.mxu0 %v6709
        %6758 = vmatprep.subr.mxu0 0.0
        %6759 = vmatpush1.msra.mxu0 %v6711
        %6760 = vmatprep.subr.mxu0 0.0
        %6761 = vmatpush1.msra.mxu0 0.0
        %6762 = vmatprep.subr.mxu0 0.0
        %6763 = vmatpush1.msra.mxu0 0.0
        %6764 = vmatprep.subr.mxu0 0.0
        %6765 = vmatpush1.msra.mxu0 0.0
        %6766 = vmatprep.subr.mxu0 0.0
        %6767 = vmatpush1.msra.mxu0 0.0
        %6768 = vmatprep.subr.mxu0 0.0
        %6769 = vmatpush1.msra.mxu0 0.0
        %6770 = vmatprep.subr.mxu0 0.0
        %6771 = vmatpush1.msra.mxu0 0.0
        %6772 = vmatprep.subr.mxu0 0.0
        %6773 = vmatpush1.msra.mxu0 0.0
        %6774 = vmatprep.subr.mxu0 0.0
        %6775 = vmatpush1.msra.mxu0 0.0
        %6776 = vmatprep.subr.mxu0 0.0
        %6777 = vmatpush1.msra.mxu0 0.0
        %6778 = vmatprep.subr.mxu0 0.0
        %6779 = vmatpush1.msra.mxu0 0.0
        %6780 = vmatprep.subr.mxu0 0.0
        %6781 = vmatpush1.msra.mxu0 0.0
        %6782 = vmatprep.subr.mxu0 0.0
        %6783 = vmatpush1.msra.mxu0 0.0
        %6784 = vmatprep.subr.mxu0 0.0
        %6785 = vmatpush1.msra.mxu0 0.0
        %6786 = vmatprep.subr.mxu0 0.0
        %6787 = vmatpush1.msra.mxu0 0.0
        %6788 = vmatprep.subr.mxu0 0.0
        %6789 = vmatpush1.msra.mxu0 0.0
        %6790 = vmatprep.subr.mxu0 0.0
        %6791 = vmatpush1.msra.mxu0 0.0
        %6792 = vmatprep.subr.mxu0 0.0
        %6793 = vmatpush1.msra.mxu0 0.0
        %6794 = vmatprep.subr.mxu0 0.0
        %6795 = vmatpush1.msra.mxu0 0.0
        %6796 = vmatprep.subr.mxu0 0.0
        %6797 = vmatpush1.msra.mxu0 0.0
        %6798 = vmatprep.subr.mxu0 0.0
        %6799 = vmatpush1.msra.mxu0 0.0
        %6800 = vmatprep.subr.mxu0 0.0
        %6801 = vmatpush1.msra.mxu0 0.0
        %6802 = vmatprep.subr.mxu0 0.0
        %6803 = vmatpush1.msra.mxu0 0.0
        %6804 = vmatprep.subr.mxu0 0.0
        %6805 = vmatpush1.msra.mxu0 0.0
        %6806 = vmatprep.subr.mxu0 0.0
        %6807 = vmatpush1.msra.mxu0 0.0
        %6808 = vmatprep.mubr.f32.mxu0 0.0
        %6809 = vmatmul.mubr.f32.gmra.mrb[0].mxu0 %v6721
        %v6810 = vpop.f32.mrb[0].mxu0
        %v6811 = vadd.f32 0.0, %v6810
        %v6812 = vpop.f32.mrb[0].mxu0
        %6813 = vmatprep.mubr.f32.mxu0 0.0
        %6814 = vmatmul.mubr.f32.gmra.mrb[0].mxu0 %v6724
        %v6815 = vpop.f32.mrb[0].mxu0
        %v6816 = vadd.f32 0.0, %v6815
        %v6817 = vpop.f32.mrb[0].mxu0
        %6818 = vmatprep.mubr.f32.mxu0 0.0
        %6819 = vmatmul.mubr.f32.gmra.mrb[0].mxu0 %v6727
        %v6820 = vpop.f32.mrb[0].mxu0
        %v6821 = vadd.f32 0.0, %v6820
        %v6822 = vpop.f32.mrb[0].mxu0
        %6823 = vmatprep.mubr.f32.mxu0 0.0
        %6824 = vmatmul.mubr.f32.gmra.mrb[0].mxu0 %v6730
        %v6825 = vpop.f32.mrb[0].mxu0
        %v6826 = vadd.f32 0.0, %v6825
        %v6827 = vpop.f32.mrb[0].mxu0
        %6828 = vmatprep.mubr.f32.mxu0 0.0
        %6829 = vmatmul.mubr.f32.gmra.mrb[0].mxu0 %v6733
        %v6830 = vpop.f32.mrb[0].mxu0
        %v6831 = vadd.f32 0.0, %v6830
        %v6832 = vpop.f32.mrb[0].mxu0
        %6833 = vmatprep.mubr.f32.mxu0 0.0
        %6834 = vmatmul.mubr.f32.gmra.mrb[0].mxu0 %v6736
        %v6835 = vpop.f32.mrb[0].mxu0
        %v6836 = vadd.f32 0.0, %v6835
        %v6837 = vpop.f32.mrb[0].mxu0
        %6838 = vmatprep.mubr.f32.mxu0 0.0
        %6839 = vmatmul.mubr.f32.gmra.mrb[0].mxu0 %v6739
        %v6840 = vpop.f32.mrb[0].mxu0
        %v6841 = vadd.f32 0.0, %v6840
        %v6842 = vpop.f32.mrb[0].mxu0
        %6843 = vmatprep.mubr.f32.mxu0 0.0
        %6844 = vmatmul.mubr.f32.gmra.mrb[0].mxu0 %v6742
        %v6845 = vpop.f32.mrb[0].mxu0
        %v6846 = vadd.f32 0.0, %v6845
        %v6847 = vpop.f32.mrb[0].mxu0
        %6848 = vdwg.mxu0
        %v6849 = vadd.f32 %v6679, %v6811
        %v6850 = vadd.f32 %v6680, %v6816
        %v6851 = vadd.f32 %v6681, %v6821
        %v6852 = vadd.f32 %v6682, %v6826
        %v6853 = vadd.f32 %v6683, %v6831
        %v6854 = vadd.f32 %v6684, %v6836
        %v6855 = vadd.f32 %v6685, %v6841
        %v6856 = vadd.f32 %v6686, %v6846
        %s6857 = scalar_lea.vmem [#allocation5], 768
        %v6858 = vld [vmem:[%s6857] sm:$0xff]
        %v6859 = vld [vmem:[%s6857 + $0x8] sm:$0xff]
        %v6860 = vld [vmem:[%s6857 + $0x10] sm:$0xff]
        %v6861 = vld [vmem:[%s6857 + $0x18] sm:$0xff]
        %v6862 = vld [vmem:[%s6857 + $0x20] sm:$0xff]
        %v6863 = vld [vmem:[%s6857 + $0x28] sm:$0xff]
        %v6864 = vld [vmem:[%s6857 + $0x30] sm:$0xff]
        %v6865 = vld [vmem:[%s6857 + $0x38] sm:$0xff]
        %6866 = vrot.lane.b32.xlu0 %v4804, 116
        %v6867 = vpop.permute.xlu0 %6866
        %6868 = vrot.lane.b32.xlu0 %v4809, 116
        %v6869 = vpop.permute.xlu0 %6868
        %6870 = vrot.lane.b32.xlu0 %v4814, 116
        %v6871 = vpop.permute.xlu0 %6870
        %6872 = vrot.lane.b32.xlu0 %v4819, 116
        %v6873 = vpop.permute.xlu0 %6872
        %6874 = vrot.lane.b32.xlu0 %v4824, 116
        %v6875 = vpop.permute.xlu0 %6874
        %6876 = vrot.lane.b32.xlu0 %v4829, 116
        %v6877 = vpop.permute.xlu0 %6876
        %6878 = vrot.lane.b32.xlu0 %v4834, 116
        %v6879 = vpop.permute.xlu0 %6878
        %6880 = vrot.lane.b32.xlu0 %v4839, 116
        %v6881 = vpop.permute.xlu0 %6880
        %v6891 = vsel %vm1418, %v6858, 0
        %v6894 = vsel %vm1418, %v6859, 0
        %v6897 = vsel %vm1418, %v6860, 0
        %v6900 = vsel %vm1418, %v6861, 0
        %v6903 = vsel %vm1418, %v6862, 0
        %v6906 = vsel %vm1418, %v6863, 0
        %v6909 = vsel %vm1418, %v6864, 0
        %v6912 = vsel %vm1418, %v6865, 0
        %6914 = vmatprep.subr.mxu0 0.0
        %6915 = vmatpush1.msra.mxu0 %v6867
        %6916 = vmatprep.subr.mxu0 0.0
        %6917 = vmatpush1.msra.mxu0 %v6869
        %6918 = vmatprep.subr.mxu0 0.0
        %6919 = vmatpush1.msra.mxu0 %v6871
        %6920 = vmatprep.subr.mxu0 0.0
        %6921 = vmatpush1.msra.mxu0 %v6873
        %6922 = vmatprep.subr.mxu0 0.0
        %6923 = vmatpush1.msra.mxu0 %v6875
        %6924 = vmatprep.subr.mxu0 0.0
        %6925 = vmatpush1.msra.mxu0 %v6877
        %6926 = vmatprep.subr.mxu0 0.0
        %6927 = vmatpush1.msra.mxu0 %v6879
        %6928 = vmatprep.subr.mxu0 0.0
        %6929 = vmatpush1.msra.mxu0 %v6881
        %6930 = vmatprep.subr.mxu0 0.0
        %6931 = vmatpush1.msra.mxu0 0.0
        %6932 = vmatprep.subr.mxu0 0.0
        %6933 = vmatpush1.msra.mxu0 0.0
        %6934 = vmatprep.subr.mxu0 0.0
        %6935 = vmatpush1.msra.mxu0 0.0
        %6936 = vmatprep.subr.mxu0 0.0
        %6937 = vmatpush1.msra.mxu0 0.0
        %6938 = vmatprep.subr.mxu0 0.0
        %6939 = vmatpush1.msra.mxu0 0.0
        %6940 = vmatprep.subr.mxu0 0.0
        %6941 = vmatpush1.msra.mxu0 0.0
        %6942 = vmatprep.subr.mxu0 0.0
        %6943 = vmatpush1.msra.mxu0 0.0
        %6944 = vmatprep.subr.mxu0 0.0
        %6945 = vmatpush1.msra.mxu0 0.0
        %6946 = vmatprep.subr.mxu0 0.0
        %6947 = vmatpush1.msra.mxu0 0.0
        %6948 = vmatprep.subr.mxu0 0.0
        %6949 = vmatpush1.msra.mxu0 0.0
        %6950 = vmatprep.subr.mxu0 0.0
        %6951 = vmatpush1.msra.mxu0 0.0
        %6952 = vmatprep.subr.mxu0 0.0
        %6953 = vmatpush1.msra.mxu0 0.0
        %6954 = vmatprep.subr.mxu0 0.0
        %6955 = vmatpush1.msra.mxu0 0.0
        %6956 = vmatprep.subr.mxu0 0.0
        %6957 = vmatpush1.msra.mxu0 0.0
        %6958 = vmatprep.subr.mxu0 0.0
        %6959 = vmatpush1.msra.mxu0 0.0
        %6960 = vmatprep.subr.mxu0 0.0
        %6961 = vmatpush1.msra.mxu0 0.0
        %6962 = vmatprep.subr.mxu0 0.0
        %6963 = vmatpush1.msra.mxu0 0.0
        %6964 = vmatprep.subr.mxu0 0.0
        %6965 = vmatpush1.msra.mxu0 0.0
        %6966 = vmatprep.subr.mxu0 0.0
        %6967 = vmatpush1.msra.mxu0 0.0
        %6968 = vmatprep.subr.mxu0 0.0
        %6969 = vmatpush1.msra.mxu0 0.0
        %6970 = vmatprep.subr.mxu0 0.0
        %6971 = vmatpush1.msra.mxu0 0.0
        %6972 = vmatprep.subr.mxu0 0.0
        %6973 = vmatpush1.msra.mxu0 0.0
        %6974 = vmatprep.subr.mxu0 0.0
        %6975 = vmatpush1.msra.mxu0 0.0
        %6976 = vmatprep.subr.mxu0 0.0
        %6977 = vmatpush1.msra.mxu0 0.0
        %6978 = vmatprep.mubr.f32.mxu0 0.0
        %6979 = vmatmul.mubr.f32.gmra.mrb[0].mxu0 %v6891
        %v6980 = vpop.f32.mrb[0].mxu0
        %v6981 = vadd.f32 0.0, %v6980
        %v6982 = vpop.f32.mrb[0].mxu0
        %6983 = vmatprep.mubr.f32.mxu0 0.0
        %6984 = vmatmul.mubr.f32.gmra.mrb[0].mxu0 %v6894
        %v6985 = vpop.f32.mrb[0].mxu0
        %v6986 = vadd.f32 0.0, %v6985
        %v6987 = vpop.f32.mrb[0].mxu0
        %6988 = vmatprep.mubr.f32.mxu0 0.0
        %6989 = vmatmul.mubr.f32.gmra.mrb[0].mxu0 %v6897
        %v6990 = vpop.f32.mrb[0].mxu0
        %v6991 = vadd.f32 0.0, %v6990
        %v6992 = vpop.f32.mrb[0].mxu0
        %6993 = vmatprep.mubr.f32.mxu0 0.0
        %6994 = vmatmul.mubr.f32.gmra.mrb[0].mxu0 %v6900
        %v6995 = vpop.f32.mrb[0].mxu0
        %v6996 = vadd.f32 0.0, %v6995
        %v6997 = vpop.f32.mrb[0].mxu0
        %6998 = vmatprep.mubr.f32.mxu0 0.0
        %6999 = vmatmul.mubr.f32.gmra.mrb[0].mxu0 %v6903
        %v7000 = vpop.f32.mrb[0].mxu0
        %v7001 = vadd.f32 0.0, %v7000
        %v7002 = vpop.f32.mrb[0].mxu0
        %7003 = vmatprep.mubr.f32.mxu0 0.0
        %7004 = vmatmul.mubr.f32.gmra.mrb[0].mxu0 %v6906
        %v7005 = vpop.f32.mrb[0].mxu0
        %v7006 = vadd.f32 0.0, %v7005
        %v7007 = vpop.f32.mrb[0].mxu0
        %7008 = vmatprep.mubr.f32.mxu0 0.0
        %7009 = vmatmul.mubr.f32.gmra.mrb[0].mxu0 %v6909
        %v7010 = vpop.f32.mrb[0].mxu0
        %v7011 = vadd.f32 0.0, %v7010
        %v7012 = vpop.f32.mrb[0].mxu0
        %7013 = vmatprep.mubr.f32.mxu0 0.0
        %7014 = vmatmul.mubr.f32.gmra.mrb[0].mxu0 %v6912
        %v7015 = vpop.f32.mrb[0].mxu0
        %v7016 = vadd.f32 0.0, %v7015
        %v7017 = vpop.f32.mrb[0].mxu0
        %7018 = vdwg.mxu0
        %v7019 = vadd.f32 %v6849, %v6981
        %v7020 = vadd.f32 %v6850, %v6986
        %v7021 = vadd.f32 %v6851, %v6991
        %v7022 = vadd.f32 %v6852, %v6996
        %v7023 = vadd.f32 %v6853, %v7001
        %v7024 = vadd.f32 %v6854, %v7006
        %v7025 = vadd.f32 %v6855, %v7011
        %v7026 = vadd.f32 %v6856, %v7016
        %s7027 = scalar_lea.vmem [#allocation5], 832
        %v7028 = vld [vmem:[%s7027] sm:$0xff]
        %v7029 = vld [vmem:[%s7027 + $0x8] sm:$0xff]
        %v7030 = vld [vmem:[%s7027 + $0x10] sm:$0xff]
        %v7031 = vld [vmem:[%s7027 + $0x18] sm:$0xff]
        %v7032 = vld [vmem:[%s7027 + $0x20] sm:$0xff]
        %v7033 = vld [vmem:[%s7027 + $0x28] sm:$0xff]
        %v7034 = vld [vmem:[%s7027 + $0x30] sm:$0xff]
        %v7035 = vld [vmem:[%s7027 + $0x38] sm:$0xff]
        %7036 = vrot.lane.b32.xlu0 %v4804, 115
        %v7037 = vpop.permute.xlu0 %7036
        %7038 = vrot.lane.b32.xlu0 %v4809, 115
        %v7039 = vpop.permute.xlu0 %7038
        %7040 = vrot.lane.b32.xlu0 %v4814, 115
        %v7041 = vpop.permute.xlu0 %7040
        %7042 = vrot.lane.b32.xlu0 %v4819, 115
        %v7043 = vpop.permute.xlu0 %7042
        %7044 = vrot.lane.b32.xlu0 %v4824, 115
        %v7045 = vpop.permute.xlu0 %7044
        %7046 = vrot.lane.b32.xlu0 %v4829, 115
        %v7047 = vpop.permute.xlu0 %7046
        %7048 = vrot.lane.b32.xlu0 %v4834, 115
        %v7049 = vpop.permute.xlu0 %7048
        %7050 = vrot.lane.b32.xlu0 %v4839, 115
        %v7051 = vpop.permute.xlu0 %7050
        %v7061 = vsel %vm1418, %v7028, 0
        %v7064 = vsel %vm1418, %v7029, 0
        %v7067 = vsel %vm1418, %v7030, 0
        %v7070 = vsel %vm1418, %v7031, 0
        %v7073 = vsel %vm1418, %v7032, 0
        %v7076 = vsel %vm1418, %v7033, 0
        %v7079 = vsel %vm1418, %v7034, 0
        %v7082 = vsel %vm1418, %v7035, 0
        %7084 = vmatprep.subr.mxu0 0.0
        %7085 = vmatpush1.msra.mxu0 %v7037
        %7086 = vmatprep.subr.mxu0 0.0
        %7087 = vmatpush1.msra.mxu0 %v7039
        %7088 = vmatprep.subr.mxu0 0.0
        %7089 = vmatpush1.msra.mxu0 %v7041
        %7090 = vmatprep.subr.mxu0 0.0
        %7091 = vmatpush1.msra.mxu0 %v7043
        %7092 = vmatprep.subr.mxu0 0.0
        %7093 = vmatpush1.msra.mxu0 %v7045
        %7094 = vmatprep.subr.mxu0 0.0
        %7095 = vmatpush1.msra.mxu0 %v7047
        %7096 = vmatprep.subr.mxu0 0.0
        %7097 = vmatpush1.msra.mxu0 %v7049
        %7098 = vmatprep.subr.mxu0 0.0
        %7099 = vmatpush1.msra.mxu0 %v7051
        %7100 = vmatprep.subr.mxu0 0.0
        %7101 = vmatpush1.msra.mxu0 0.0
        %7102 = vmatprep.subr.mxu0 0.0
        %7103 = vmatpush1.msra.mxu0 0.0
        %7104 = vmatprep.subr.mxu0 0.0
        %7105 = vmatpush1.msra.mxu0 0.0
        %7106 = vmatprep.subr.mxu0 0.0
        %7107 = vmatpush1.msra.mxu0 0.0
        %7108 = vmatprep.subr.mxu0 0.0
        %7109 = vmatpush1.msra.mxu0 0.0
        %7110 = vmatprep.subr.mxu0 0.0
        %7111 = vmatpush1.msra.mxu0 0.0
        %7112 = vmatprep.subr.mxu0 0.0
        %7113 = vmatpush1.msra.mxu0 0.0
        %7114 = vmatprep.subr.mxu0 0.0
        %7115 = vmatpush1.msra.mxu0 0.0
        %7116 = vmatprep.subr.mxu0 0.0
        %7117 = vmatpush1.msra.mxu0 0.0
        %7118 = vmatprep.subr.mxu0 0.0
        %7119 = vmatpush1.msra.mxu0 0.0
        %7120 = vmatprep.subr.mxu0 0.0
        %7121 = vmatpush1.msra.mxu0 0.0
        %7122 = vmatprep.subr.mxu0 0.0
        %7123 = vmatpush1.msra.mxu0 0.0
        %7124 = vmatprep.subr.mxu0 0.0
        %7125 = vmatpush1.msra.mxu0 0.0
        %7126 = vmatprep.subr.mxu0 0.0
        %7127 = vmatpush1.msra.mxu0 0.0
        %7128 = vmatprep.subr.mxu0 0.0
        %7129 = vmatpush1.msra.mxu0 0.0
        %7130 = vmatprep.subr.mxu0 0.0
        %7131 = vmatpush1.msra.mxu0 0.0
        %7132 = vmatprep.subr.mxu0 0.0
        %7133 = vmatpush1.msra.mxu0 0.0
        %7134 = vmatprep.subr.mxu0 0.0
        %7135 = vmatpush1.msra.mxu0 0.0
        %7136 = vmatprep.subr.mxu0 0.0
        %7137 = vmatpush1.msra.mxu0 0.0
        %7138 = vmatprep.subr.mxu0 0.0
        %7139 = vmatpush1.msra.mxu0 0.0
        %7140 = vmatprep.subr.mxu0 0.0
        %7141 = vmatpush1.msra.mxu0 0.0
        %7142 = vmatprep.subr.mxu0 0.0
        %7143 = vmatpush1.msra.mxu0 0.0
        %7144 = vmatprep.subr.mxu0 0.0
        %7145 = vmatpush1.msra.mxu0 0.0
        %7146 = vmatprep.subr.mxu0 0.0
        %7147 = vmatpush1.msra.mxu0 0.0
        %7148 = vmatprep.mubr.f32.mxu0 0.0
        %7149 = vmatmul.mubr.f32.gmra.mrb[0].mxu0 %v7061
        %v7150 = vpop.f32.mrb[0].mxu0
        %v7151 = vadd.f32 0.0, %v7150
        %v7152 = vpop.f32.mrb[0].mxu0
        %7153 = vmatprep.mubr.f32.mxu0 0.0
        %7154 = vmatmul.mubr.f32.gmra.mrb[0].mxu0 %v7064
        %v7155 = vpop.f32.mrb[0].mxu0
        %v7156 = vadd.f32 0.0, %v7155
        %v7157 = vpop.f32.mrb[0].mxu0
        %7158 = vmatprep.mubr.f32.mxu0 0.0
        %7159 = vmatmul.mubr.f32.gmra.mrb[0].mxu0 %v7067
        %v7160 = vpop.f32.mrb[0].mxu0
        %v7161 = vadd.f32 0.0, %v7160
        %v7162 = vpop.f32.mrb[0].mxu0
        %7163 = vmatprep.mubr.f32.mxu0 0.0
        %7164 = vmatmul.mubr.f32.gmra.mrb[0].mxu0 %v7070
        %v7165 = vpop.f32.mrb[0].mxu0
        %v7166 = vadd.f32 0.0, %v7165
        %v7167 = vpop.f32.mrb[0].mxu0
        %7168 = vmatprep.mubr.f32.mxu0 0.0
        %7169 = vmatmul.mubr.f32.gmra.mrb[0].mxu0 %v7073
        %v7170 = vpop.f32.mrb[0].mxu0
        %v7171 = vadd.f32 0.0, %v7170
        %v7172 = vpop.f32.mrb[0].mxu0
        %7173 = vmatprep.mubr.f32.mxu0 0.0
        %7174 = vmatmul.mubr.f32.gmra.mrb[0].mxu0 %v7076
        %v7175 = vpop.f32.mrb[0].mxu0
        %v7176 = vadd.f32 0.0, %v7175
        %v7177 = vpop.f32.mrb[0].mxu0
        %7178 = vmatprep.mubr.f32.mxu0 0.0
        %7179 = vmatmul.mubr.f32.gmra.mrb[0].mxu0 %v7079
        %v7180 = vpop.f32.mrb[0].mxu0
        %v7181 = vadd.f32 0.0, %v7180
        %v7182 = vpop.f32.mrb[0].mxu0
        %7183 = vmatprep.mubr.f32.mxu0 0.0
        %7184 = vmatmul.mubr.f32.gmra.mrb[0].mxu0 %v7082
        %v7185 = vpop.f32.mrb[0].mxu0
        %v7186 = vadd.f32 0.0, %v7185
        %v7187 = vpop.f32.mrb[0].mxu0
        %7188 = vdwg.mxu0
        %v7189 = vadd.f32 %v7019, %v7151
        %v7190 = vadd.f32 %v7020, %v7156
        %v7191 = vadd.f32 %v7021, %v7161
        %v7192 = vadd.f32 %v7022, %v7166
        %v7193 = vadd.f32 %v7023, %v7171
        %v7194 = vadd.f32 %v7024, %v7176
        %v7195 = vadd.f32 %v7025, %v7181
        %v7196 = vadd.f32 %v7026, %v7186
        %s7197 = scalar_lea.vmem [#allocation5], 896
        %v7198 = vld [vmem:[%s7197] sm:$0xff]
        %v7199 = vld [vmem:[%s7197 + $0x8] sm:$0xff]
        %v7200 = vld [vmem:[%s7197 + $0x10] sm:$0xff]
        %v7201 = vld [vmem:[%s7197 + $0x18] sm:$0xff]
        %v7202 = vld [vmem:[%s7197 + $0x20] sm:$0xff]
        %v7203 = vld [vmem:[%s7197 + $0x28] sm:$0xff]
        %v7204 = vld [vmem:[%s7197 + $0x30] sm:$0xff]
        %v7205 = vld [vmem:[%s7197 + $0x38] sm:$0xff]
        %7206 = vrot.lane.b32.xlu0 %v4804, 114
        %v7207 = vpop.permute.xlu0 %7206
        %7208 = vrot.lane.b32.xlu0 %v4809, 114
        %v7209 = vpop.permute.xlu0 %7208
        %7210 = vrot.lane.b32.xlu0 %v4814, 114
        %v7211 = vpop.permute.xlu0 %7210
        %7212 = vrot.lane.b32.xlu0 %v4819, 114
        %v7213 = vpop.permute.xlu0 %7212
        %7214 = vrot.lane.b32.xlu0 %v4824, 114
        %v7215 = vpop.permute.xlu0 %7214
        %7216 = vrot.lane.b32.xlu0 %v4829, 114
        %v7217 = vpop.permute.xlu0 %7216
        %7218 = vrot.lane.b32.xlu0 %v4834, 114
        %v7219 = vpop.permute.xlu0 %7218
        %7220 = vrot.lane.b32.xlu0 %v4839, 114
        %v7221 = vpop.permute.xlu0 %7220
        %v7231 = vsel %vm1418, %v7198, 0
        %v7234 = vsel %vm1418, %v7199, 0
        %v7237 = vsel %vm1418, %v7200, 0
        %v7240 = vsel %vm1418, %v7201, 0
        %v7243 = vsel %vm1418, %v7202, 0
        %v7246 = vsel %vm1418, %v7203, 0
        %v7249 = vsel %vm1418, %v7204, 0
        %v7252 = vsel %vm1418, %v7205, 0
        %7254 = vmatprep.subr.mxu0 0.0
        %7255 = vmatpush1.msra.mxu0 %v7207
        %7256 = vmatprep.subr.mxu0 0.0
        %7257 = vmatpush1.msra.mxu0 %v7209
        %7258 = vmatprep.subr.mxu0 0.0
        %7259 = vmatpush1.msra.mxu0 %v7211
        %7260 = vmatprep.subr.mxu0 0.0
        %7261 = vmatpush1.msra.mxu0 %v7213
        %7262 = vmatprep.subr.mxu0 0.0
        %7263 = vmatpush1.msra.mxu0 %v7215
        %7264 = vmatprep.subr.mxu0 0.0
        %7265 = vmatpush1.msra.mxu0 %v7217
        %7266 = vmatprep.subr.mxu0 0.0
        %7267 = vmatpush1.msra.mxu0 %v7219
        %7268 = vmatprep.subr.mxu0 0.0
        %7269 = vmatpush1.msra.mxu0 %v7221
        %7270 = vmatprep.subr.mxu0 0.0
        %7271 = vmatpush1.msra.mxu0 0.0
        %7272 = vmatprep.subr.mxu0 0.0
        %7273 = vmatpush1.msra.mxu0 0.0
        %7274 = vmatprep.subr.mxu0 0.0
        %7275 = vmatpush1.msra.mxu0 0.0
        %7276 = vmatprep.subr.mxu0 0.0
        %7277 = vmatpush1.msra.mxu0 0.0
        %7278 = vmatprep.subr.mxu0 0.0
        %7279 = vmatpush1.msra.mxu0 0.0
        %7280 = vmatprep.subr.mxu0 0.0
        %7281 = vmatpush1.msra.mxu0 0.0
        %7282 = vmatprep.subr.mxu0 0.0
        %7283 = vmatpush1.msra.mxu0 0.0
        %7284 = vmatprep.subr.mxu0 0.0
        %7285 = vmatpush1.msra.mxu0 0.0
        %7286 = vmatprep.subr.mxu0 0.0
        %7287 = vmatpush1.msra.mxu0 0.0
        %7288 = vmatprep.subr.mxu0 0.0
        %7289 = vmatpush1.msra.mxu0 0.0
        %7290 = vmatprep.subr.mxu0 0.0
        %7291 = vmatpush1.msra.mxu0 0.0
        %7292 = vmatprep.subr.mxu0 0.0
        %7293 = vmatpush1.msra.mxu0 0.0
        %7294 = vmatprep.subr.mxu0 0.0
        %7295 = vmatpush1.msra.mxu0 0.0
        %7296 = vmatprep.subr.mxu0 0.0
        %7297 = vmatpush1.msra.mxu0 0.0
        %7298 = vmatprep.subr.mxu0 0.0
        %7299 = vmatpush1.msra.mxu0 0.0
        %7300 = vmatprep.subr.mxu0 0.0
        %7301 = vmatpush1.msra.mxu0 0.0
        %7302 = vmatprep.subr.mxu0 0.0
        %7303 = vmatpush1.msra.mxu0 0.0
        %7304 = vmatprep.subr.mxu0 0.0
        %7305 = vmatpush1.msra.mxu0 0.0
        %7306 = vmatprep.subr.mxu0 0.0
        %7307 = vmatpush1.msra.mxu0 0.0
        %7308 = vmatprep.subr.mxu0 0.0
        %7309 = vmatpush1.msra.mxu0 0.0
        %7310 = vmatprep.subr.mxu0 0.0
        %7311 = vmatpush1.msra.mxu0 0.0
        %7312 = vmatprep.subr.mxu0 0.0
        %7313 = vmatpush1.msra.mxu0 0.0
        %7314 = vmatprep.subr.mxu0 0.0
        %7315 = vmatpush1.msra.mxu0 0.0
        %7316 = vmatprep.subr.mxu0 0.0
        %7317 = vmatpush1.msra.mxu0 0.0
        %7318 = vmatprep.mubr.f32.mxu0 0.0
        %7319 = vmatmul.mubr.f32.gmra.mrb[0].mxu0 %v7231
        %v7320 = vpop.f32.mrb[0].mxu0
        %v7321 = vadd.f32 0.0, %v7320
        %v7322 = vpop.f32.mrb[0].mxu0
        %7323 = vmatprep.mubr.f32.mxu0 0.0
        %7324 = vmatmul.mubr.f32.gmra.mrb[0].mxu0 %v7234
        %v7325 = vpop.f32.mrb[0].mxu0
        %v7326 = vadd.f32 0.0, %v7325
        %v7327 = vpop.f32.mrb[0].mxu0
        %7328 = vmatprep.mubr.f32.mxu0 0.0
        %7329 = vmatmul.mubr.f32.gmra.mrb[0].mxu0 %v7237
        %v7330 = vpop.f32.mrb[0].mxu0
        %v7331 = vadd.f32 0.0, %v7330
        %v7332 = vpop.f32.mrb[0].mxu0
        %7333 = vmatprep.mubr.f32.mxu0 0.0
        %7334 = vmatmul.mubr.f32.gmra.mrb[0].mxu0 %v7240
        %v7335 = vpop.f32.mrb[0].mxu0
        %v7336 = vadd.f32 0.0, %v7335
        %v7337 = vpop.f32.mrb[0].mxu0
        %7338 = vmatprep.mubr.f32.mxu0 0.0
        %7339 = vmatmul.mubr.f32.gmra.mrb[0].mxu0 %v7243
        %v7340 = vpop.f32.mrb[0].mxu0
        %v7341 = vadd.f32 0.0, %v7340
        %v7342 = vpop.f32.mrb[0].mxu0
        %7343 = vmatprep.mubr.f32.mxu0 0.0
        %7344 = vmatmul.mubr.f32.gmra.mrb[0].mxu0 %v7246
        %v7345 = vpop.f32.mrb[0].mxu0
        %v7346 = vadd.f32 0.0, %v7345
        %v7347 = vpop.f32.mrb[0].mxu0
        %7348 = vmatprep.mubr.f32.mxu0 0.0
        %7349 = vmatmul.mubr.f32.gmra.mrb[0].mxu0 %v7249
        %v7350 = vpop.f32.mrb[0].mxu0
        %v7351 = vadd.f32 0.0, %v7350
        %v7352 = vpop.f32.mrb[0].mxu0
        %7353 = vmatprep.mubr.f32.mxu0 0.0
        %7354 = vmatmul.mubr.f32.gmra.mrb[0].mxu0 %v7252
        %v7355 = vpop.f32.mrb[0].mxu0
        %v7356 = vadd.f32 0.0, %v7355
        %v7357 = vpop.f32.mrb[0].mxu0
        %7358 = vdwg.mxu0
        %v7359 = vadd.f32 %v7189, %v7321
        %v7360 = vadd.f32 %v7190, %v7326
        %v7361 = vadd.f32 %v7191, %v7331
        %v7362 = vadd.f32 %v7192, %v7336
        %v7363 = vadd.f32 %v7193, %v7341
        %v7364 = vadd.f32 %v7194, %v7346
        %v7365 = vadd.f32 %v7195, %v7351
        %v7366 = vadd.f32 %v7196, %v7356
        %s7367 = scalar_lea.vmem [#allocation5], 960
        %v7368 = vld [vmem:[%s7367] sm:$0xff]
        %v7369 = vld [vmem:[%s7367 + $0x8] sm:$0xff]
        %v7370 = vld [vmem:[%s7367 + $0x10] sm:$0xff]
        %v7371 = vld [vmem:[%s7367 + $0x18] sm:$0xff]
        %v7372 = vld [vmem:[%s7367 + $0x20] sm:$0xff]
        %v7373 = vld [vmem:[%s7367 + $0x28] sm:$0xff]
        %v7374 = vld [vmem:[%s7367 + $0x30] sm:$0xff]
        %v7375 = vld [vmem:[%s7367 + $0x38] sm:$0xff]
        %7376 = vrot.lane.b32.xlu0 %v4804, 113
        %v7377 = vpop.permute.xlu0 %7376
        %7378 = vrot.lane.b32.xlu0 %v4809, 113
        %v7379 = vpop.permute.xlu0 %7378
        %7380 = vrot.lane.b32.xlu0 %v4814, 113
        %v7381 = vpop.permute.xlu0 %7380
        %7382 = vrot.lane.b32.xlu0 %v4819, 113
        %v7383 = vpop.permute.xlu0 %7382
        %7384 = vrot.lane.b32.xlu0 %v4824, 113
        %v7385 = vpop.permute.xlu0 %7384
        %7386 = vrot.lane.b32.xlu0 %v4829, 113
        %v7387 = vpop.permute.xlu0 %7386
        %7388 = vrot.lane.b32.xlu0 %v4834, 113
        %v7389 = vpop.permute.xlu0 %7388
        %7390 = vrot.lane.b32.xlu0 %v4839, 113
        %v7391 = vpop.permute.xlu0 %7390
        %v7401 = vsel %vm1418, %v7368, 0
        %v7404 = vsel %vm1418, %v7369, 0
        %v7407 = vsel %vm1418, %v7370, 0
        %v7410 = vsel %vm1418, %v7371, 0
        %v7413 = vsel %vm1418, %v7372, 0
        %v7416 = vsel %vm1418, %v7373, 0
        %v7419 = vsel %vm1418, %v7374, 0
        %v7422 = vsel %vm1418, %v7375, 0
        %7424 = vmatprep.subr.mxu0 0.0
        %7425 = vmatpush1.msra.mxu0 %v7377
        %7426 = vmatprep.subr.mxu0 0.0
        %7427 = vmatpush1.msra.mxu0 %v7379
        %7428 = vmatprep.subr.mxu0 0.0
        %7429 = vmatpush1.msra.mxu0 %v7381
        %7430 = vmatprep.subr.mxu0 0.0
        %7431 = vmatpush1.msra.mxu0 %v7383
        %7432 = vmatprep.subr.mxu0 0.0
        %7433 = vmatpush1.msra.mxu0 %v7385
        %7434 = vmatprep.subr.mxu0 0.0
        %7435 = vmatpush1.msra.mxu0 %v7387
        %7436 = vmatprep.subr.mxu0 0.0
        %7437 = vmatpush1.msra.mxu0 %v7389
        %7438 = vmatprep.subr.mxu0 0.0
        %7439 = vmatpush1.msra.mxu0 %v7391
        %7440 = vmatprep.subr.mxu0 0.0
        %7441 = vmatpush1.msra.mxu0 0.0
        %7442 = vmatprep.subr.mxu0 0.0
        %7443 = vmatpush1.msra.mxu0 0.0
        %7444 = vmatprep.subr.mxu0 0.0
        %7445 = vmatpush1.msra.mxu0 0.0
        %7446 = vmatprep.subr.mxu0 0.0
        %7447 = vmatpush1.msra.mxu0 0.0
        %7448 = vmatprep.subr.mxu0 0.0
        %7449 = vmatpush1.msra.mxu0 0.0
        %7450 = vmatprep.subr.mxu0 0.0
        %7451 = vmatpush1.msra.mxu0 0.0
        %7452 = vmatprep.subr.mxu0 0.0
        %7453 = vmatpush1.msra.mxu0 0.0
        %7454 = vmatprep.subr.mxu0 0.0
        %7455 = vmatpush1.msra.mxu0 0.0
        %7456 = vmatprep.subr.mxu0 0.0
        %7457 = vmatpush1.msra.mxu0 0.0
        %7458 = vmatprep.subr.mxu0 0.0
        %7459 = vmatpush1.msra.mxu0 0.0
        %7460 = vmatprep.subr.mxu0 0.0
        %7461 = vmatpush1.msra.mxu0 0.0
        %7462 = vmatprep.subr.mxu0 0.0
        %7463 = vmatpush1.msra.mxu0 0.0
        %7464 = vmatprep.subr.mxu0 0.0
        %7465 = vmatpush1.msra.mxu0 0.0
        %7466 = vmatprep.subr.mxu0 0.0
        %7467 = vmatpush1.msra.mxu0 0.0
        %7468 = vmatprep.subr.mxu0 0.0
        %7469 = vmatpush1.msra.mxu0 0.0
        %7470 = vmatprep.subr.mxu0 0.0
        %7471 = vmatpush1.msra.mxu0 0.0
        %7472 = vmatprep.subr.mxu0 0.0
        %7473 = vmatpush1.msra.mxu0 0.0
        %7474 = vmatprep.subr.mxu0 0.0
        %7475 = vmatpush1.msra.mxu0 0.0
        %7476 = vmatprep.subr.mxu0 0.0
        %7477 = vmatpush1.msra.mxu0 0.0
        %7478 = vmatprep.subr.mxu0 0.0
        %7479 = vmatpush1.msra.mxu0 0.0
        %7480 = vmatprep.subr.mxu0 0.0
        %7481 = vmatpush1.msra.mxu0 0.0
        %7482 = vmatprep.subr.mxu0 0.0
        %7483 = vmatpush1.msra.mxu0 0.0
        %7484 = vmatprep.subr.mxu0 0.0
        %7485 = vmatpush1.msra.mxu0 0.0
        %7486 = vmatprep.subr.mxu0 0.0
        %7487 = vmatpush1.msra.mxu0 0.0
        %7488 = vmatprep.mubr.f32.mxu0 0.0
        %7489 = vmatmul.mubr.f32.gmra.mrb[0].mxu0 %v7401
        %v7490 = vpop.f32.mrb[0].mxu0
        %v7491 = vadd.f32 0.0, %v7490
        %v7492 = vpop.f32.mrb[0].mxu0
        %7493 = vmatprep.mubr.f32.mxu0 0.0
        %7494 = vmatmul.mubr.f32.gmra.mrb[0].mxu0 %v7404
        %v7495 = vpop.f32.mrb[0].mxu0
        %v7496 = vadd.f32 0.0, %v7495
        %v7497 = vpop.f32.mrb[0].mxu0
        %7498 = vmatprep.mubr.f32.mxu0 0.0
        %7499 = vmatmul.mubr.f32.gmra.mrb[0].mxu0 %v7407
        %v7500 = vpop.f32.mrb[0].mxu0
        %v7501 = vadd.f32 0.0, %v7500
        %v7502 = vpop.f32.mrb[0].mxu0
        %7503 = vmatprep.mubr.f32.mxu0 0.0
        %7504 = vmatmul.mubr.f32.gmra.mrb[0].mxu0 %v7410
        %v7505 = vpop.f32.mrb[0].mxu0
        %v7506 = vadd.f32 0.0, %v7505
        %v7507 = vpop.f32.mrb[0].mxu0
        %7508 = vmatprep.mubr.f32.mxu0 0.0
        %7509 = vmatmul.mubr.f32.gmra.mrb[0].mxu0 %v7413
        %v7510 = vpop.f32.mrb[0].mxu0
        %v7511 = vadd.f32 0.0, %v7510
        %v7512 = vpop.f32.mrb[0].mxu0
        %7513 = vmatprep.mubr.f32.mxu0 0.0
        %7514 = vmatmul.mubr.f32.gmra.mrb[0].mxu0 %v7416
        %v7515 = vpop.f32.mrb[0].mxu0
        %v7516 = vadd.f32 0.0, %v7515
        %v7517 = vpop.f32.mrb[0].mxu0
        %7518 = vmatprep.mubr.f32.mxu0 0.0
        %7519 = vmatmul.mubr.f32.gmra.mrb[0].mxu0 %v7419
        %v7520 = vpop.f32.mrb[0].mxu0
        %v7521 = vadd.f32 0.0, %v7520
        %v7522 = vpop.f32.mrb[0].mxu0
        %7523 = vmatprep.mubr.f32.mxu0 0.0
        %7524 = vmatmul.mubr.f32.gmra.mrb[0].mxu0 %v7422
        %v7525 = vpop.f32.mrb[0].mxu0
        %v7526 = vadd.f32 0.0, %v7525
        %v7527 = vpop.f32.mrb[0].mxu0
        %7528 = vdwg.mxu0
        %v7529 = vadd.f32 %v7359, %v7491
        %v7530 = vadd.f32 %v7360, %v7496
        %v7531 = vadd.f32 %v7361, %v7501
        %v7532 = vadd.f32 %v7362, %v7506
        %v7533 = vadd.f32 %v7363, %v7511
        %v7534 = vadd.f32 %v7364, %v7516
        %v7535 = vadd.f32 %v7365, %v7521
        %v7536 = vadd.f32 %v7366, %v7526
        %s7537 = scalar_lea.vmem [#allocation5], 1024
        %v7538 = vld [vmem:[%s7537] sm:$0xff]
        %v7539 = vld [vmem:[%s7537 + $0x8] sm:$0xff]
        %v7540 = vld [vmem:[%s7537 + $0x10] sm:$0xff]
        %v7541 = vld [vmem:[%s7537 + $0x18] sm:$0xff]
        %v7542 = vld [vmem:[%s7537 + $0x20] sm:$0xff]
        %v7543 = vld [vmem:[%s7537 + $0x28] sm:$0xff]
        %v7544 = vld [vmem:[%s7537 + $0x30] sm:$0xff]
        %v7545 = vld [vmem:[%s7537 + $0x38] sm:$0xff]
        %7546 = vrot.lane.b32.xlu0 %v4804, 112
        %v7547 = vpop.permute.xlu0 %7546
        %7548 = vrot.lane.b32.xlu0 %v4809, 112
        %v7549 = vpop.permute.xlu0 %7548
        %7550 = vrot.lane.b32.xlu0 %v4814, 112
        %v7551 = vpop.permute.xlu0 %7550
        %7552 = vrot.lane.b32.xlu0 %v4819, 112
        %v7553 = vpop.permute.xlu0 %7552
        %7554 = vrot.lane.b32.xlu0 %v4824, 112
        %v7555 = vpop.permute.xlu0 %7554
        %7556 = vrot.lane.b32.xlu0 %v4829, 112
        %v7557 = vpop.permute.xlu0 %7556
        %7558 = vrot.lane.b32.xlu0 %v4834, 112
        %v7559 = vpop.permute.xlu0 %7558
        %7560 = vrot.lane.b32.xlu0 %v4839, 112
        %v7561 = vpop.permute.xlu0 %7560
        %v7571 = vsel %vm1418, %v7538, 0
        %v7574 = vsel %vm1418, %v7539, 0
        %v7577 = vsel %vm1418, %v7540, 0
        %v7580 = vsel %vm1418, %v7541, 0
        %v7583 = vsel %vm1418, %v7542, 0
        %v7586 = vsel %vm1418, %v7543, 0
        %v7589 = vsel %vm1418, %v7544, 0
        %v7592 = vsel %vm1418, %v7545, 0
        %7594 = vmatprep.subr.mxu0 0.0
        %7595 = vmatpush1.msra.mxu0 %v7547
        %7596 = vmatprep.subr.mxu0 0.0
        %7597 = vmatpush1.msra.mxu0 %v7549
        %7598 = vmatprep.subr.mxu0 0.0
        %7599 = vmatpush1.msra.mxu0 %v7551
        %7600 = vmatprep.subr.mxu0 0.0
        %7601 = vmatpush1.msra.mxu0 %v7553
        %7602 = vmatprep.subr.mxu0 0.0
        %7603 = vmatpush1.msra.mxu0 %v7555
        %7604 = vmatprep.subr.mxu0 0.0
        %7605 = vmatpush1.msra.mxu0 %v7557
        %7606 = vmatprep.subr.mxu0 0.0
        %7607 = vmatpush1.msra.mxu0 %v7559
        %7608 = vmatprep.subr.mxu0 0.0
        %7609 = vmatpush1.msra.mxu0 %v7561
        %7610 = vmatprep.subr.mxu0 0.0
        %7611 = vmatpush1.msra.mxu0 0.0
        %7612 = vmatprep.subr.mxu0 0.0
        %7613 = vmatpush1.msra.mxu0 0.0
        %7614 = vmatprep.subr.mxu0 0.0
        %7615 = vmatpush1.msra.mxu0 0.0
        %7616 = vmatprep.subr.mxu0 0.0
        %7617 = vmatpush1.msra.mxu0 0.0
        %7618 = vmatprep.subr.mxu0 0.0
        %7619 = vmatpush1.msra.mxu0 0.0
        %7620 = vmatprep.subr.mxu0 0.0
        %7621 = vmatpush1.msra.mxu0 0.0
        %7622 = vmatprep.subr.mxu0 0.0
        %7623 = vmatpush1.msra.mxu0 0.0
        %7624 = vmatprep.subr.mxu0 0.0
        %7625 = vmatpush1.msra.mxu0 0.0
        %7626 = vmatprep.subr.mxu0 0.0
        %7627 = vmatpush1.msra.mxu0 0.0
        %7628 = vmatprep.subr.mxu0 0.0
        %7629 = vmatpush1.msra.mxu0 0.0
        %7630 = vmatprep.subr.mxu0 0.0
        %7631 = vmatpush1.msra.mxu0 0.0
        %7632 = vmatprep.subr.mxu0 0.0
        %7633 = vmatpush1.msra.mxu0 0.0
        %7634 = vmatprep.subr.mxu0 0.0
        %7635 = vmatpush1.msra.mxu0 0.0
        %7636 = vmatprep.subr.mxu0 0.0
        %7637 = vmatpush1.msra.mxu0 0.0
        %7638 = vmatprep.subr.mxu0 0.0
        %7639 = vmatpush1.msra.mxu0 0.0
        %7640 = vmatprep.subr.mxu0 0.0
        %7641 = vmatpush1.msra.mxu0 0.0
        %7642 = vmatprep.subr.mxu0 0.0
        %7643 = vmatpush1.msra.mxu0 0.0
        %7644 = vmatprep.subr.mxu0 0.0
        %7645 = vmatpush1.msra.mxu0 0.0
        %7646 = vmatprep.subr.mxu0 0.0
        %7647 = vmatpush1.msra.mxu0 0.0
        %7648 = vmatprep.subr.mxu0 0.0
        %7649 = vmatpush1.msra.mxu0 0.0
        %7650 = vmatprep.subr.mxu0 0.0
        %7651 = vmatpush1.msra.mxu0 0.0
        %7652 = vmatprep.subr.mxu0 0.0
        %7653 = vmatpush1.msra.mxu0 0.0
        %7654 = vmatprep.subr.mxu0 0.0
        %7655 = vmatpush1.msra.mxu0 0.0
        %7656 = vmatprep.subr.mxu0 0.0
        %7657 = vmatpush1.msra.mxu0 0.0
        %7658 = vmatprep.mubr.f32.mxu0 0.0
        %7659 = vmatmul.mubr.f32.gmra.mrb[0].mxu0 %v7571
        %v7660 = vpop.f32.mrb[0].mxu0
        %v7661 = vadd.f32 0.0, %v7660
        %v7662 = vpop.f32.mrb[0].mxu0
        %7663 = vmatprep.mubr.f32.mxu0 0.0
        %7664 = vmatmul.mubr.f32.gmra.mrb[0].mxu0 %v7574
        %v7665 = vpop.f32.mrb[0].mxu0
        %v7666 = vadd.f32 0.0, %v7665
        %v7667 = vpop.f32.mrb[0].mxu0
        %7668 = vmatprep.mubr.f32.mxu0 0.0
        %7669 = vmatmul.mubr.f32.gmra.mrb[0].mxu0 %v7577
        %v7670 = vpop.f32.mrb[0].mxu0
        %v7671 = vadd.f32 0.0, %v7670
        %v7672 = vpop.f32.mrb[0].mxu0
        %7673 = vmatprep.mubr.f32.mxu0 0.0
        %7674 = vmatmul.mubr.f32.gmra.mrb[0].mxu0 %v7580
        %v7675 = vpop.f32.mrb[0].mxu0
        %v7676 = vadd.f32 0.0, %v7675
        %v7677 = vpop.f32.mrb[0].mxu0
        %7678 = vmatprep.mubr.f32.mxu0 0.0
        %7679 = vmatmul.mubr.f32.gmra.mrb[0].mxu0 %v7583
        %v7680 = vpop.f32.mrb[0].mxu0
        %v7681 = vadd.f32 0.0, %v7680
        %v7682 = vpop.f32.mrb[0].mxu0
        %7683 = vmatprep.mubr.f32.mxu0 0.0
        %7684 = vmatmul.mubr.f32.gmra.mrb[0].mxu0 %v7586
        %v7685 = vpop.f32.mrb[0].mxu0
        %v7686 = vadd.f32 0.0, %v7685
        %v7687 = vpop.f32.mrb[0].mxu0
        %7688 = vmatprep.mubr.f32.mxu0 0.0
        %7689 = vmatmul.mubr.f32.gmra.mrb[0].mxu0 %v7589
        %v7690 = vpop.f32.mrb[0].mxu0
        %v7691 = vadd.f32 0.0, %v7690
        %v7692 = vpop.f32.mrb[0].mxu0
        %7693 = vmatprep.mubr.f32.mxu0 0.0
        %7694 = vmatmul.mubr.f32.gmra.mrb[0].mxu0 %v7592
        %v7695 = vpop.f32.mrb[0].mxu0
        %v7696 = vadd.f32 0.0, %v7695
        %v7697 = vpop.f32.mrb[0].mxu0
        %7698 = vdwg.mxu0
        %v7699 = vadd.f32 %v7529, %v7661
        %v7700 = vadd.f32 %v7530, %v7666
        %v7701 = vadd.f32 %v7531, %v7671
        %v7702 = vadd.f32 %v7532, %v7676
        %v7703 = vadd.f32 %v7533, %v7681
        %v7704 = vadd.f32 %v7534, %v7686
        %v7705 = vadd.f32 %v7535, %v7691
        %v7706 = vadd.f32 %v7536, %v7696
        %7708 = vset.pattern.permute.xlu0 0
        %7709 = vperm.xlu0 %7708, %v4842
        %v7710 = vpop.permute.xlu0 %7709
        %7713 = vset.pattern.permute.xlu0 0
        %7714 = vperm.xlu0 %7713, %v4843
        %v7715 = vpop.permute.xlu0 %7714
        %7718 = vset.pattern.permute.xlu0 0
        %7719 = vperm.xlu0 %7718, %v4844
        %v7720 = vpop.permute.xlu0 %7719
        %7723 = vset.pattern.permute.xlu0 0
        %7724 = vperm.xlu0 %7723, %v4845
        %v7725 = vpop.permute.xlu0 %7724
        %7728 = vset.pattern.permute.xlu0 0
        %7729 = vperm.xlu0 %7728, %v4846
        %v7730 = vpop.permute.xlu0 %7729
        %7733 = vset.pattern.permute.xlu0 0
        %7734 = vperm.xlu0 %7733, %v4847
        %v7735 = vpop.permute.xlu0 %7734
        %7738 = vset.pattern.permute.xlu0 0
        %7739 = vperm.xlu0 %7738, %v4848
        %v7740 = vpop.permute.xlu0 %7739
        %7743 = vset.pattern.permute.xlu0 0
        %7744 = vperm.xlu0 %7743, %v4849
        %v7745 = vpop.permute.xlu0 %7744
        %v7747 = vadd.f32 %v7699, %v7710
        %v7748 = vadd.f32 %v7700, %v7715
        %v7749 = vadd.f32 %v7701, %v7720
        %v7750 = vadd.f32 %v7702, %v7725
        %v7751 = vadd.f32 %v7703, %v7730
        %v7752 = vadd.f32 %v7704, %v7735
        %v7753 = vadd.f32 %v7705, %v7740
        %v7754 = vadd.f32 %v7706, %v7745
        %v7755 = vmax.f32 %v7747, 0.0
        %v7756 = vmax.f32 %v7748, 0.0
        %v7757 = vmax.f32 %v7749, 0.0
        %v7758 = vmax.f32 %v7750, 0.0
        %v7759 = vmax.f32 %v7751, 0.0
        %v7760 = vmax.f32 %v7752, 0.0
        %v7761 = vmax.f32 %v7753, 0.0
        %v7762 = vmax.f32 %v7754, 0.0
        %7771 = vrot.lane.b32.xlu0 %v7755, 127
        %v7772 = vpop.permute.xlu0 %7771
        %7773 = vrot.lane.b32.xlu0 %v7756, 127
        %v7774 = vpop.permute.xlu0 %7773
        %7775 = vrot.lane.b32.xlu0 %v7757, 127
        %v7776 = vpop.permute.xlu0 %7775
        %7777 = vrot.lane.b32.xlu0 %v7758, 127
        %v7778 = vpop.permute.xlu0 %7777
        %7779 = vrot.lane.b32.xlu0 %v7759, 127
        %v7780 = vpop.permute.xlu0 %7779
        %7781 = vrot.lane.b32.xlu0 %v7760, 127
        %v7782 = vpop.permute.xlu0 %7781
        %7783 = vrot.lane.b32.xlu0 %v7761, 127
        %v7784 = vpop.permute.xlu0 %7783
        %7785 = vrot.lane.b32.xlu0 %v7762, 127
        %v7786 = vpop.permute.xlu0 %7785
        %v7795 = vmax.f32 %v7755, %v7772
        %v7796 = vmax.f32 %v7756, %v7774
        %v7797 = vmax.f32 %v7757, %v7776
        %v7798 = vmax.f32 %v7758, %v7778
        %v7799 = vmax.f32 %v7759, %v7780
        %v7800 = vmax.f32 %v7760, %v7782
        %v7801 = vmax.f32 %v7761, %v7784
        %v7802 = vmax.f32 %v7762, %v7786
        %7803 = vrot.lane.b32.xlu0 %v7755, 126
        %v7804 = vpop.permute.xlu0 %7803
        %7805 = vrot.lane.b32.xlu0 %v7756, 126
        %v7806 = vpop.permute.xlu0 %7805
        %7807 = vrot.lane.b32.xlu0 %v7757, 126
        %v7808 = vpop.permute.xlu0 %7807
        %7809 = vrot.lane.b32.xlu0 %v7758, 126
        %v7810 = vpop.permute.xlu0 %7809
        %7811 = vrot.lane.b32.xlu0 %v7759, 126
        %v7812 = vpop.permute.xlu0 %7811
        %7813 = vrot.lane.b32.xlu0 %v7760, 126
        %v7814 = vpop.permute.xlu0 %7813
        %7815 = vrot.lane.b32.xlu0 %v7761, 126
        %v7816 = vpop.permute.xlu0 %7815
        %7817 = vrot.lane.b32.xlu0 %v7762, 126
        %v7818 = vpop.permute.xlu0 %7817
        %v7827 = vmax.f32 %v7795, %v7804
        %v7828 = vmax.f32 %v7796, %v7806
        %v7829 = vmax.f32 %v7797, %v7808
        %v7830 = vmax.f32 %v7798, %v7810
        %v7831 = vmax.f32 %v7799, %v7812
        %v7832 = vmax.f32 %v7800, %v7814
        %v7833 = vmax.f32 %v7801, %v7816
        %v7834 = vmax.f32 %v7802, %v7818
        %v7835 = vld [vmem:[#allocation7] sm:$0xff]
        %v7836 = vld [vmem:[#allocation7 + $0x8] sm:$0xff]
        %v7837 = vld [vmem:[#allocation7 + $0x10] sm:$0xff]
        %v7838 = vld [vmem:[#allocation7 + $0x18] sm:$0xff]
        %v7839 = vld [vmem:[#allocation7 + $0x20] sm:$0xff]
        %v7840 = vld [vmem:[#allocation7 + $0x28] sm:$0xff]
        %v7841 = vld [vmem:[#allocation7 + $0x30] sm:$0x3]
        %v7842 = vld [vmem:[#allocation7 + $0x38] sm:$0x3]
        %v7843 = vld [vmem:[#allocation7 + $0x40] sm:$0x3]
        %vm7844 = vcmask 146432
        %v7846 = vsel %vm7844, %v7827, 0
        %v7849 = vsel %vm7844, %v7828, 0
        %v7852 = vsel %vm7844, %v7829, 0
        %v7855 = vsel %vm7844, %v7830, 0
        %v7858 = vsel %vm7844, %v7831, 0
        %v7861 = vsel %vm7844, %v7832, 0
        %v7864 = vsel %vm7844, %v7833, 0
        %v7867 = vsel %vm7844, %v7834, 0
        %v7870 = vsel %vm1147, %v7841, 0
        %v7873 = vsel %vm1147, %v7842, 0
        %v7876 = vsel %vm1147, %v7843, 0
        %7878 = vmatprep.subr.mxu0 %v7836
        %7879 = vmatpush1.msra.mxu0 %v7835
        %7880 = vmatprep.subr.mxu0 %v7839
        %7881 = vmatpush1.msra.mxu0 %v7838
        %7882 = vmatprep.subr.mxu0 %v7873
        %7883 = vmatpush1.msra.mxu0 %v7870
        %7884 = vmatprep.subr.mxu0 0.0
        %7885 = vmatpush1.msra.mxu0 0.0
        %7886 = vmatprep.subr.mxu0 0.0
        %7887 = vmatpush1.msra.mxu0 0.0
        %7888 = vmatprep.subr.mxu0 0.0
        %7889 = vmatpush1.msra.mxu0 0.0
        %7890 = vmatprep.subr.mxu0 0.0
        %7891 = vmatpush1.msra.mxu0 0.0
        %7892 = vmatprep.subr.mxu0 0.0
        %7893 = vmatpush1.msra.mxu0 0.0
        %7894 = vmatprep.subr.mxu0 0.0
        %7895 = vmatpush1.msra.mxu0 0.0
        %7896 = vmatprep.subr.mxu0 0.0
        %7897 = vmatpush1.msra.mxu0 0.0
        %7898 = vmatprep.subr.mxu0 0.0
        %7899 = vmatpush1.msra.mxu0 0.0
        %7900 = vmatprep.subr.mxu0 0.0
        %7901 = vmatpush1.msra.mxu0 0.0
        %7902 = vmatprep.subr.mxu0 0.0
        %7903 = vmatpush1.msra.mxu0 0.0
        %7904 = vmatprep.subr.mxu0 0.0
        %7905 = vmatpush1.msra.mxu0 0.0
        %7906 = vmatprep.subr.mxu0 0.0
        %7907 = vmatpush1.msra.mxu0 0.0
        %7908 = vmatprep.subr.mxu0 0.0
        %7909 = vmatpush1.msra.mxu0 0.0
        %7910 = vmatprep.subr.mxu0 0.0
        %7911 = vmatpush1.msra.mxu0 0.0
        %7912 = vmatprep.subr.mxu0 0.0
        %7913 = vmatpush1.msra.mxu0 0.0
        %7914 = vmatprep.subr.mxu0 0.0
        %7915 = vmatpush1.msra.mxu0 0.0
        %7916 = vmatprep.subr.mxu0 0.0
        %7917 = vmatpush1.msra.mxu0 0.0
        %7918 = vmatprep.subr.mxu0 0.0
        %7919 = vmatpush1.msra.mxu0 0.0
        %7920 = vmatprep.subr.mxu0 0.0
        %7921 = vmatpush1.msra.mxu0 0.0
        %7922 = vmatprep.subr.mxu0 0.0
        %7923 = vmatpush1.msra.mxu0 0.0
        %7924 = vmatprep.subr.mxu0 0.0
        %7925 = vmatpush1.msra.mxu0 0.0
        %7926 = vmatprep.subr.mxu0 0.0
        %7927 = vmatpush1.msra.mxu0 0.0
        %7928 = vmatprep.subr.mxu0 0.0
        %7929 = vmatpush1.msra.mxu0 0.0
        %7930 = vmatprep.subr.mxu0 0.0
        %7931 = vmatpush1.msra.mxu0 0.0
        %7932 = vmatprep.subr.mxu0 0.0
        %7933 = vmatpush1.msra.mxu0 0.0
        %7934 = vmatprep.subr.mxu0 0.0
        %7935 = vmatpush1.msra.mxu0 0.0
        %7936 = vmatprep.subr.mxu0 0.0
        %7937 = vmatpush1.msra.mxu0 0.0
        %7938 = vmatprep.subr.mxu0 0.0
        %7939 = vmatpush1.msra.mxu0 0.0
        %7940 = vmatprep.subr.mxu0 0.0
        %7941 = vmatpush1.msra.mxu0 0.0
        %7942 = vmatprep.mubr.f32.mxu0 0.0
        %7943 = vmatmul.mubr.f32.gmra.mrb[0].mxu0 %v7846
        %v7944 = vpop.f32.mrb[0].mxu0
        %v7945 = vadd.f32 0.0, %v7944
        %v7946 = vpop.f32.mrb[0].mxu0
        %v7947 = vadd.f32 0.0, %v7946
        %7948 = vmatprep.mubr.f32.mxu0 0.0
        %7949 = vmatmul.mubr.f32.gmra.mrb[0].mxu0 %v7849
        %v7950 = vpop.f32.mrb[0].mxu0
        %v7951 = vadd.f32 0.0, %v7950
        %v7952 = vpop.f32.mrb[0].mxu0
        %v7953 = vadd.f32 0.0, %v7952
        %7954 = vmatprep.mubr.f32.mxu0 0.0
        %7955 = vmatmul.mubr.f32.gmra.mrb[0].mxu0 %v7852
        %v7956 = vpop.f32.mrb[0].mxu0
        %v7957 = vadd.f32 0.0, %v7956
        %v7958 = vpop.f32.mrb[0].mxu0
        %v7959 = vadd.f32 0.0, %v7958
        %7960 = vmatprep.mubr.f32.mxu0 0.0
        %7961 = vmatmul.mubr.f32.gmra.mrb[0].mxu0 %v7855
        %v7962 = vpop.f32.mrb[0].mxu0
        %v7963 = vadd.f32 0.0, %v7962
        %v7964 = vpop.f32.mrb[0].mxu0
        %v7965 = vadd.f32 0.0, %v7964
        %7966 = vmatprep.mubr.f32.mxu0 0.0
        %7967 = vmatmul.mubr.f32.gmra.mrb[0].mxu0 %v7858
        %v7968 = vpop.f32.mrb[0].mxu0
        %v7969 = vadd.f32 0.0, %v7968
        %v7970 = vpop.f32.mrb[0].mxu0
        %v7971 = vadd.f32 0.0, %v7970
        %7972 = vmatprep.mubr.f32.mxu0 0.0
        %7973 = vmatmul.mubr.f32.gmra.mrb[0].mxu0 %v7861
        %v7974 = vpop.f32.mrb[0].mxu0
        %v7975 = vadd.f32 0.0, %v7974
        %v7976 = vpop.f32.mrb[0].mxu0
        %v7977 = vadd.f32 0.0, %v7976
        %7978 = vmatprep.mubr.f32.mxu0 0.0
        %7979 = vmatmul.mubr.f32.gmra.mrb[0].mxu0 %v7864
        %v7980 = vpop.f32.mrb[0].mxu0
        %v7981 = vadd.f32 0.0, %v7980
        %v7982 = vpop.f32.mrb[0].mxu0
        %v7983 = vadd.f32 0.0, %v7982
        %7984 = vmatprep.mubr.f32.mxu0 0.0
        %7985 = vmatmul.mubr.f32.gmra.mrb[0].mxu0 %v7867
        %v7986 = vpop.f32.mrb[0].mxu0
        %v7987 = vadd.f32 0.0, %v7986
        %v7988 = vpop.f32.mrb[0].mxu0
        %v7989 = vadd.f32 0.0, %v7988
        %7990 = vdwg.mxu0
        %7991 = vmatprep.subr.mxu0 0.0
        %7992 = vmatpush1.msra.mxu0 %v7837
        %7993 = vmatprep.subr.mxu0 0.0
        %7994 = vmatpush1.msra.mxu0 %v7840
        %7995 = vmatprep.subr.mxu0 0.0
        %7996 = vmatpush1.msra.mxu0 %v7876
        %7997 = vmatprep.subr.mxu0 0.0
        %7998 = vmatpush1.msra.mxu0 0.0
        %7999 = vmatprep.subr.mxu0 0.0
        %8000 = vmatpush1.msra.mxu0 0.0
        %8001 = vmatprep.subr.mxu0 0.0
        %8002 = vmatpush1.msra.mxu0 0.0
        %8003 = vmatprep.subr.mxu0 0.0
        %8004 = vmatpush1.msra.mxu0 0.0
        %8005 = vmatprep.subr.mxu0 0.0
        %8006 = vmatpush1.msra.mxu0 0.0
        %8007 = vmatprep.subr.mxu0 0.0
        %8008 = vmatpush1.msra.mxu0 0.0
        %8009 = vmatprep.subr.mxu0 0.0
        %8010 = vmatpush1.msra.mxu0 0.0
        %8011 = vmatprep.subr.mxu0 0.0
        %8012 = vmatpush1.msra.mxu0 0.0
        %8013 = vmatprep.subr.mxu0 0.0
        %8014 = vmatpush1.msra.mxu0 0.0
        %8015 = vmatprep.subr.mxu0 0.0
        %8016 = vmatpush1.msra.mxu0 0.0
        %8017 = vmatprep.subr.mxu0 0.0
        %8018 = vmatpush1.msra.mxu0 0.0
        %8019 = vmatprep.subr.mxu0 0.0
        %8020 = vmatpush1.msra.mxu0 0.0
        %8021 = vmatprep.subr.mxu0 0.0
        %8022 = vmatpush1.msra.mxu0 0.0
        %8023 = vmatprep.subr.mxu0 0.0
        %8024 = vmatpush1.msra.mxu0 0.0
        %8025 = vmatprep.subr.mxu0 0.0
        %8026 = vmatpush1.msra.mxu0 0.0
        %8027 = vmatprep.subr.mxu0 0.0
        %8028 = vmatpush1.msra.mxu0 0.0
        %8029 = vmatprep.subr.mxu0 0.0
        %8030 = vmatpush1.msra.mxu0 0.0
        %8031 = vmatprep.subr.mxu0 0.0
        %8032 = vmatpush1.msra.mxu0 0.0
        %8033 = vmatprep.subr.mxu0 0.0
        %8034 = vmatpush1.msra.mxu0 0.0
        %8035 = vmatprep.subr.mxu0 0.0
        %8036 = vmatpush1.msra.mxu0 0.0
        %8037 = vmatprep.subr.mxu0 0.0
        %8038 = vmatpush1.msra.mxu0 0.0
        %8039 = vmatprep.subr.mxu0 0.0
        %8040 = vmatpush1.msra.mxu0 0.0
        %8041 = vmatprep.subr.mxu0 0.0
        %8042 = vmatpush1.msra.mxu0 0.0
        %8043 = vmatprep.subr.mxu0 0.0
        %8044 = vmatpush1.msra.mxu0 0.0
        %8045 = vmatprep.subr.mxu0 0.0
        %8046 = vmatpush1.msra.mxu0 0.0
        %8047 = vmatprep.subr.mxu0 0.0
        %8048 = vmatpush1.msra.mxu0 0.0
        %8049 = vmatprep.subr.mxu0 0.0
        %8050 = vmatpush1.msra.mxu0 0.0
        %8051 = vmatprep.subr.mxu0 0.0
        %8052 = vmatpush1.msra.mxu0 0.0
        %8053 = vmatprep.subr.mxu0 0.0
        %8054 = vmatpush1.msra.mxu0 0.0
        %8055 = vmatprep.mubr.f32.mxu0 0.0
        %8056 = vmatmul.mubr.f32.gmra.mrb[0].mxu0 %v7846
        %v8057 = vpop.f32.mrb[0].mxu0
        %v8058 = vadd.f32 0.0, %v8057
        %v8059 = vpop.f32.mrb[0].mxu0
        %8060 = vmatprep.mubr.f32.mxu0 0.0
        %8061 = vmatmul.mubr.f32.gmra.mrb[0].mxu0 %v7849
        %v8062 = vpop.f32.mrb[0].mxu0
        %v8063 = vadd.f32 0.0, %v8062
        %v8064 = vpop.f32.mrb[0].mxu0
        %8065 = vmatprep.mubr.f32.mxu0 0.0
        %8066 = vmatmul.mubr.f32.gmra.mrb[0].mxu0 %v7852
        %v8067 = vpop.f32.mrb[0].mxu0
        %v8068 = vadd.f32 0.0, %v8067
        %v8069 = vpop.f32.mrb[0].mxu0
        %8070 = vmatprep.mubr.f32.mxu0 0.0
        %8071 = vmatmul.mubr.f32.gmra.mrb[0].mxu0 %v7855
        %v8072 = vpop.f32.mrb[0].mxu0
        %v8073 = vadd.f32 0.0, %v8072
        %v8074 = vpop.f32.mrb[0].mxu0
        %8075 = vmatprep.mubr.f32.mxu0 0.0
        %8076 = vmatmul.mubr.f32.gmra.mrb[0].mxu0 %v7858
        %v8077 = vpop.f32.mrb[0].mxu0
        %v8078 = vadd.f32 0.0, %v8077
        %v8079 = vpop.f32.mrb[0].mxu0
        %8080 = vmatprep.mubr.f32.mxu0 0.0
        %8081 = vmatmul.mubr.f32.gmra.mrb[0].mxu0 %v7861
        %v8082 = vpop.f32.mrb[0].mxu0
        %v8083 = vadd.f32 0.0, %v8082
        %v8084 = vpop.f32.mrb[0].mxu0
        %8085 = vmatprep.mubr.f32.mxu0 0.0
        %8086 = vmatmul.mubr.f32.gmra.mrb[0].mxu0 %v7864
        %v8087 = vpop.f32.mrb[0].mxu0
        %v8088 = vadd.f32 0.0, %v8087
        %v8089 = vpop.f32.mrb[0].mxu0
        %8090 = vmatprep.mubr.f32.mxu0 0.0
        %8091 = vmatmul.mubr.f32.gmra.mrb[0].mxu0 %v7867
        %v8092 = vpop.f32.mrb[0].mxu0
        %v8093 = vadd.f32 0.0, %v8092
        %v8094 = vpop.f32.mrb[0].mxu0
        %8095 = vdwg.mxu0
        %v8096 = vld [vmem:[%s10] sm:$0xff]
        %v8097 = vld [vmem:[%s10 + $0x8] sm:$0xff]
        %v8098 = vld [vmem:[%s10 + $0x10] sm:$0xff]
        %v8099 = vld [vmem:[%s10 + $0x18] sm:$0xff]
        %v8100 = vld [vmem:[%s10 + $0x20] sm:$0xff]
        %v8101 = vld [vmem:[%s10 + $0x28] sm:$0xff]
        %v8102 = vld [vmem:[%s10 + $0x30] sm:$0xff]
        %v8103 = vld [vmem:[%s10 + $0x38] sm:$0xff]
        %v8104 = vld [vmem:[%s10 + $0x40] sm:$0xff]
        %v8105 = vld [vmem:[%s10 + $0x48] sm:$0xff]
        %v8106 = vld [vmem:[%s10 + $0x50] sm:$0xff]
        %v8107 = vld [vmem:[%s10 + $0x58] sm:$0xff]
        %v8108 = vld [vmem:[%s10 + $0x60] sm:$0xff]
        %v8109 = vld [vmem:[%s10 + $0x68] sm:$0xff]
        %v8110 = vld [vmem:[%s10 + $0x70] sm:$0xff]
        %v8111 = vld [vmem:[%s10 + $0x78] sm:$0xff]
        %v8112 = vld [vmem:[%s10 + $0x80] sm:$0xff]
        %v8113 = vld [vmem:[%s10 + $0x88] sm:$0xff]
        %v8114 = vld [vmem:[%s10 + $0x90] sm:$0xff]
        %v8115 = vld [vmem:[%s10 + $0x98] sm:$0xff]
        %v8116 = vld [vmem:[%s10 + $0xa0] sm:$0xff]
        %v8117 = vld [vmem:[%s10 + $0xa8] sm:$0xff]
        %v8118 = vld [vmem:[%s10 + $0xb0] sm:$0xff]
        %v8119 = vld [vmem:[%s10 + $0xb8] sm:$0xff]
        %v8120 = vmul.f32 %v7945, %v8096
        %v8121 = vmul.f32 %v7947, %v8097
        %v8122 = vmul.f32 %v8058, %v8098
        %v8123 = vmul.f32 %v7951, %v8099
        %v8124 = vmul.f32 %v7953, %v8100
        %v8125 = vmul.f32 %v8063, %v8101
        %v8126 = vmul.f32 %v7957, %v8102
        %v8127 = vmul.f32 %v7959, %v8103
        %v8128 = vmul.f32 %v8068, %v8104
        %v8129 = vmul.f32 %v7963, %v8105
        %v8130 = vmul.f32 %v7965, %v8106
        %v8131 = vmul.f32 %v8073, %v8107
        %v8132 = vmul.f32 %v7969, %v8108
        %v8133 = vmul.f32 %v7971, %v8109
        %v8134 = vmul.f32 %v8078, %v8110
        %v8135 = vmul.f32 %v7975, %v8111
        %v8136 = vmul.f32 %v7977, %v8112
        %v8137 = vmul.f32 %v8083, %v8113
        %v8138 = vmul.f32 %v7981, %v8114
        %v8139 = vmul.f32 %v7983, %v8115
        %v8140 = vmul.f32 %v8088, %v8116
        %v8141 = vmul.f32 %v7987, %v8117
        %v8142 = vmul.f32 %v7989, %v8118
        %v8143 = vmul.f32 %v8093, %v8119
        %v8144 = vadd.f32 %v8120, %v8123
        %v8145 = vadd.f32 %v8144, %v8126
        %v8146 = vadd.f32 %v8145, %v8129
        %v8147 = vadd.f32 %v8146, %v8132
        %v8148 = vadd.f32 %v8147, %v8135
        %v8149 = vadd.f32 %v8148, %v8138
        %v8150 = vadd.f32 %v8149, %v8141
        %v8151 = vrot.slane %v8150, 4
        %v8152 = vadd.f32 %v8150, %v8151
        %v8153 = vrot.slane %v8152, 2
        %v8154 = vadd.f32 %v8152, %v8153
        %v8155 = vrot.slane %v8154, 1
        %v8156 = vadd.f32 %v8154, %v8155
        %v8157 = vadd.f32 %v8121, %v8124
        %v8158 = vadd.f32 %v8157, %v8127
        %v8159 = vadd.f32 %v8158, %v8130
        %v8160 = vadd.f32 %v8159, %v8133
        %v8161 = vadd.f32 %v8160, %v8136
        %v8162 = vadd.f32 %v8161, %v8139
        %v8163 = vadd.f32 %v8162, %v8142
        %v8164 = vrot.slane %v8163, 4
        %v8165 = vadd.f32 %v8163, %v8164
        %v8166 = vrot.slane %v8165, 2
        %v8167 = vadd.f32 %v8165, %v8166
        %v8168 = vrot.slane %v8167, 1
        %v8169 = vadd.f32 %v8167, %v8168
        %v8170 = vadd.f32 %v8122, %v8125
        %v8171 = vadd.f32 %v8170, %v8128
        %v8172 = vadd.f32 %v8171, %v8131
        %v8173 = vadd.f32 %v8172, %v8134
        %v8174 = vadd.f32 %v8173, %v8137
        %v8175 = vadd.f32 %v8174, %v8140
        %v8176 = vadd.f32 %v8175, %v8143
        %v8177 = vrot.slane %v8176, 4
        %v8178 = vadd.f32 %v8176, %v8177
        %v8179 = vrot.slane %v8178, 2
        %v8180 = vadd.f32 %v8178, %v8179
        %v8181 = vrot.slane %v8180, 1
        %v8182 = vadd.f32 %v8180, %v8181
        %v8183 = vld [vmem:[%s11] sm:$0xff]
        %v8184 = vld [vmem:[%s11 + $0x8] sm:$0xff]
        %v8185 = vld [vmem:[%s11 + $0x10] sm:$0xff]
        %v8186 = vld [vmem:[%s11 + $0x18] sm:$0xff]
        %v8187 = vld [vmem:[%s11 + $0x20] sm:$0xff]
        %v8188 = vld [vmem:[%s11 + $0x28] sm:$0xff]
        %v8189 = vld [vmem:[%s11 + $0x30] sm:$0xff]
        %v8190 = vld [vmem:[%s11 + $0x38] sm:$0xff]
        %v8191 = vld [vmem:[%s11 + $0x40] sm:$0xff]
        %v8192 = vld [vmem:[%s11 + $0x48] sm:$0xff]
        %v8193 = vld [vmem:[%s11 + $0x50] sm:$0xff]
        %v8194 = vld [vmem:[%s11 + $0x58] sm:$0xff]
        %v8195 = vld [vmem:[%s11 + $0x60] sm:$0xff]
        %v8196 = vld [vmem:[%s11 + $0x68] sm:$0xff]
        %v8197 = vld [vmem:[%s11 + $0x70] sm:$0xff]
        %v8198 = vld [vmem:[%s11 + $0x78] sm:$0xff]
        %v8199 = vld [vmem:[%s11 + $0x80] sm:$0xff]
        %v8200 = vld [vmem:[%s11 + $0x88] sm:$0xff]
        %v8201 = vld [vmem:[%s11 + $0x90] sm:$0xff]
        %v8202 = vld [vmem:[%s11 + $0x98] sm:$0xff]
        %v8203 = vld [vmem:[%s11 + $0xa0] sm:$0xff]
        %v8204 = vld [vmem:[%s11 + $0xa8] sm:$0xff]
        %v8205 = vld [vmem:[%s11 + $0xb0] sm:$0xff]
        %v8206 = vld [vmem:[%s11 + $0xb8] sm:$0xff]
        %v8207 = vld [vmem:[%s11 + $0xc0] sm:$0xff]
        %v8208 = vld [vmem:[%s11 + $0xc8] sm:$0xff]
        %v8209 = vld [vmem:[%s11 + $0xd0] sm:$0xff]
        %v8210 = vld [vmem:[%s11 + $0xd8] sm:$0xff]
        %v8211 = vld [vmem:[%s11 + $0xe0] sm:$0xff]
        %v8212 = vld [vmem:[%s11 + $0xe8] sm:$0xff]
        %v8213 = vld [vmem:[%s11 + $0xf0] sm:$0xff]
        %v8214 = vld [vmem:[%s11 + $0xf8] sm:$0xff]
        %v8215 = vld [vmem:[%s11 + $0x100] sm:$0xff]
        %v8216 = vld [vmem:[%s11 + $0x108] sm:$0xff]
        %v8217 = vld [vmem:[%s11 + $0x110] sm:$0xff]
        %v8218 = vld [vmem:[%s11 + $0x118] sm:$0xff]
        %v8219 = vld [vmem:[%s11 + $0x120] sm:$0xff]
        %v8220 = vld [vmem:[%s11 + $0x128] sm:$0xff]
        %v8221 = vld [vmem:[%s11 + $0x130] sm:$0xff]
        %v8222 = vld [vmem:[%s11 + $0x138] sm:$0xff]
        %v8223 = vld [vmem:[%s11 + $0x140] sm:$0xff]
        %v8224 = vld [vmem:[%s11 + $0x148] sm:$0xff]
        %v8225 = vld [vmem:[%s11 + $0x150] sm:$0xff]
        %v8226 = vld [vmem:[%s11 + $0x158] sm:$0xff]
        %v8227 = vld [vmem:[%s11 + $0x160] sm:$0xff]
        %v8228 = vld [vmem:[%s11 + $0x168] sm:$0xff]
        %v8229 = vld [vmem:[%s11 + $0x170] sm:$0xff]
        %v8230 = vld [vmem:[%s11 + $0x178] sm:$0xff]
        %v8231 = vld [vmem:[%s12] sm:$0x1]
        %8232 = vmatprep.subr.mxu0 0.0
        %8233 = vmatpush1.msra.mxu0 %v8183
        %8234 = vmatprep.subr.mxu0 0.0
        %8235 = vmatpush1.msra.mxu0 %v8184
        %8236 = vmatprep.subr.mxu0 0.0
        %8237 = vmatpush1.msra.mxu0 %v8185
        %8238 = vmatprep.subr.mxu0 0.0
        %8239 = vmatpush1.msra.mxu0 %v8186
        %8240 = vmatprep.subr.mxu0 0.0
        %8241 = vmatpush1.msra.mxu0 %v8187
        %8242 = vmatprep.subr.mxu0 0.0
        %8243 = vmatpush1.msra.mxu0 %v8188
        %8244 = vmatprep.subr.mxu0 0.0
        %8245 = vmatpush1.msra.mxu0 %v8189
        %8246 = vmatprep.subr.mxu0 0.0
        %8247 = vmatpush1.msra.mxu0 %v8190
        %8248 = vmatprep.subr.mxu0 0.0
        %8249 = vmatpush1.msra.mxu0 %v8191
        %8250 = vmatprep.subr.mxu0 0.0
        %8251 = vmatpush1.msra.mxu0 %v8192
        %8252 = vmatprep.subr.mxu0 0.0
        %8253 = vmatpush1.msra.mxu0 %v8193
        %8254 = vmatprep.subr.mxu0 0.0
        %8255 = vmatpush1.msra.mxu0 %v8194
        %8256 = vmatprep.subr.mxu0 0.0
        %8257 = vmatpush1.msra.mxu0 %v8195
        %8258 = vmatprep.subr.mxu0 0.0
        %8259 = vmatpush1.msra.mxu0 %v8196
        %8260 = vmatprep.subr.mxu0 0.0
        %8261 = vmatpush1.msra.mxu0 %v8197
        %8262 = vmatprep.subr.mxu0 0.0
        %8263 = vmatpush1.msra.mxu0 %v8198
        %8264 = vmatprep.subr.mxu0 0.0
        %8265 = vmatpush1.msra.mxu0 %v8199
        %8266 = vmatprep.subr.mxu0 0.0
        %8267 = vmatpush1.msra.mxu0 %v8200
        %8268 = vmatprep.subr.mxu0 0.0
        %8269 = vmatpush1.msra.mxu0 %v8201
        %8270 = vmatprep.subr.mxu0 0.0
        %8271 = vmatpush1.msra.mxu0 %v8202
        %8272 = vmatprep.subr.mxu0 0.0
        %8273 = vmatpush1.msra.mxu0 %v8203
        %8274 = vmatprep.subr.mxu0 0.0
        %8275 = vmatpush1.msra.mxu0 %v8204
        %8276 = vmatprep.subr.mxu0 0.0
        %8277 = vmatpush1.msra.mxu0 %v8205
        %8278 = vmatprep.subr.mxu0 0.0
        %8279 = vmatpush1.msra.mxu0 %v8206
        %8280 = vmatprep.subr.mxu0 0.0
        %8281 = vmatpush1.msra.mxu0 %v8207
        %8282 = vmatprep.subr.mxu0 0.0
        %8283 = vmatpush1.msra.mxu0 %v8208
        %8284 = vmatprep.subr.mxu0 0.0
        %8285 = vmatpush1.msra.mxu0 %v8209
        %8286 = vmatprep.subr.mxu0 0.0
        %8287 = vmatpush1.msra.mxu0 %v8210
        %8288 = vmatprep.subr.mxu0 0.0
        %8289 = vmatpush1.msra.mxu0 %v8211
        %8290 = vmatprep.subr.mxu0 0.0
        %8291 = vmatpush1.msra.mxu0 %v8212
        %8292 = vmatprep.subr.mxu0 0.0
        %8293 = vmatpush1.msra.mxu0 %v8213
        %8294 = vmatprep.subr.mxu0 0.0
        %8295 = vmatpush1.msra.mxu0 %v8214
        %8296 = vmatprep.mubr.f32.mxu0 %v8169
        %8297 = vmatmul.mubr.f32.gmra.mrb[0].mxu0 %v8156
        %v8298 = vpop.f32.mrb[0].mxu0
        %v8299 = vadd.f32 %v8231, %v8298
        %v8300 = vpop.f32.mrb[0].mxu0
        %8301 = vdwg.mxu0
        %8302 = vmatprep.subr.mxu0 0.0
        %8303 = vmatpush1.msra.mxu0 %v8215
        %8304 = vmatprep.subr.mxu0 0.0
        %8305 = vmatpush1.msra.mxu0 %v8216
        %8306 = vmatprep.subr.mxu0 0.0
        %8307 = vmatpush1.msra.mxu0 %v8217
        %8308 = vmatprep.subr.mxu0 0.0
        %8309 = vmatpush1.msra.mxu0 %v8218
        %8310 = vmatprep.subr.mxu0 0.0
        %8311 = vmatpush1.msra.mxu0 %v8219
        %8312 = vmatprep.subr.mxu0 0.0
        %8313 = vmatpush1.msra.mxu0 %v8220
        %8314 = vmatprep.subr.mxu0 0.0
        %8315 = vmatpush1.msra.mxu0 %v8221
        %8316 = vmatprep.subr.mxu0 0.0
        %8317 = vmatpush1.msra.mxu0 %v8222
        %8318 = vmatprep.subr.mxu0 0.0
        %8319 = vmatpush1.msra.mxu0 %v8223
        %8320 = vmatprep.subr.mxu0 0.0
        %8321 = vmatpush1.msra.mxu0 %v8224
        %8322 = vmatprep.subr.mxu0 0.0
        %8323 = vmatpush1.msra.mxu0 %v8225
        %8324 = vmatprep.subr.mxu0 0.0
        %8325 = vmatpush1.msra.mxu0 %v8226
        %8326 = vmatprep.subr.mxu0 0.0
        %8327 = vmatpush1.msra.mxu0 %v8227
        %8328 = vmatprep.subr.mxu0 0.0
        %8329 = vmatpush1.msra.mxu0 %v8228
        %8330 = vmatprep.subr.mxu0 0.0
        %8331 = vmatpush1.msra.mxu0 %v8229
        %8332 = vmatprep.subr.mxu0 0.0
        %8333 = vmatpush1.msra.mxu0 %v8230
        %8334 = vmatprep.subr.mxu0 0.0
        %8335 = vmatpush1.msra.mxu0 0.0
        %8336 = vmatprep.subr.mxu0 0.0
        %8337 = vmatpush1.msra.mxu0 0.0
        %8338 = vmatprep.subr.mxu0 0.0
        %8339 = vmatpush1.msra.mxu0 0.0
        %8340 = vmatprep.subr.mxu0 0.0
        %8341 = vmatpush1.msra.mxu0 0.0
        %8342 = vmatprep.subr.mxu0 0.0
        %8343 = vmatpush1.msra.mxu0 0.0
        %8344 = vmatprep.subr.mxu0 0.0
        %8345 = vmatpush1.msra.mxu0 0.0
        %8346 = vmatprep.subr.mxu0 0.0
        %8347 = vmatpush1.msra.mxu0 0.0
        %8348 = vmatprep.subr.mxu0 0.0
        %8349 = vmatpush1.msra.mxu0 0.0
        %8350 = vmatprep.subr.mxu0 0.0
        %8351 = vmatpush1.msra.mxu0 0.0
        %8352 = vmatprep.subr.mxu0 0.0
        %8353 = vmatpush1.msra.mxu0 0.0
        %8354 = vmatprep.subr.mxu0 0.0
        %8355 = vmatpush1.msra.mxu0 0.0
        %8356 = vmatprep.subr.mxu0 0.0
        %8357 = vmatpush1.msra.mxu0 0.0
        %8358 = vmatprep.subr.mxu0 0.0
        %8359 = vmatpush1.msra.mxu0 0.0
        %8360 = vmatprep.subr.mxu0 0.0
        %8361 = vmatpush1.msra.mxu0 0.0
        %8362 = vmatprep.subr.mxu0 0.0
        %8363 = vmatpush1.msra.mxu0 0.0
        %8364 = vmatprep.subr.mxu0 0.0
        %8365 = vmatpush1.msra.mxu0 0.0
        %8366 = vmatprep.mubr.f32.mxu0 0.0
        %8367 = vmatmul.mubr.f32.gmra.mrb[0].mxu0 %v8182
        %v8368 = vpop.f32.mrb[0].mxu0
        %v8369 = vadd.f32 %v8299, %v8368
        %v8370 = vpop.f32.mrb[0].mxu0
        %8371 = vdwg.mxu0
        %vm8372 = vcmask 57344
        %v8373 = vsel %vm8372, %v8369, -inf
        %8374 = vmax.xlane.f32.xlu0 %v8373
        %v8375 = vpop.xlane.xlu0 %8374
        %v8376 = vsub.f32 %v8369, %v8375
        %v8377 = vmul.f32 %v8376, 1.442695
        %v8378 = vpow.pop %v8377
        %v8379 = vsel %vm8372, %v8378, 0.0
        %8380 = vadd.xlane.f32.xlu0 %v8379
        %v8381 = vpop.xlane.xlu0 %8380
        %v8382 = vrcp.pop %v8381
        %v8383 = vmul.f32 %v8378, %v8382
        %8384 = vst.msk [vmem:[%s476] sm:$0x1] %vm8372, %v8383
        %s8385 = sand.u32 %s315, 1
        %s8386 = scalar_lea.sflag [#allocation4], %s8385
        %s8387 = sand.u32 %s315, 1
        %s8388 = scalar_lea.vmem [#allocation8], %s8387
        // Predicated region
        $region85: #{cnn3layers_forward.1} parent=71 // pred_check
          %p8389 = pneg %p325
        $region86: #{cnn3layers_forward.1} parent=71 // pred_check_branch
          %8391 = sbr.rel (%p8389) target = $region88
        $region87: #{cnn3layers_forward.1} parent=71 // pred_region
          %s8393 = ssub.s32 16, 16
          %8394 = vsyncadd %s8386, %s8393
          %s8395 = smul.addr %s29, 16
          %s8396 = scalar_lea.hbm %s13, %s8395
          %s8398 = sshll.u32 %s8388, 4
          %s8399 = int_to_ptr.vmem [resolvable:$true] %s8398
          %8401 = dma.vmem_to_hbm [thread:$0]  %s8399, 16, %s8396, %s8386
        $region88: #{cnn3layers_forward.1} parent=71 // pred_fallthru
          _
      $region72: #{cnn3layers_forward.1} parent=5 // pred_fallthru
        _
      %p8402 = scmp.le.s32.totalorder 2, %s24
      // Predicated region
      $region89: #{cnn3layers_forward.1} parent=5 // pred_check
        %p8403 = pneg %p8402
      $region90: #{cnn3layers_forward.1} parent=5 // pred_check_branch
        %8405 = sbr.rel (%p8403) target = $region92
      $region91: #{cnn3layers_forward.1} parent=5 // pred_region
        %s8406 = ssub.s32 %s24, 2
        // Predicated region
        $region93: #{cnn3layers_forward.1} parent=91 // pred_check
          %p8407 = pneg %p331
        $region94: #{cnn3layers_forward.1} parent=91 // pred_check_branch
          %8409 = sbr.rel (%p8407) target = $region96
        $region95: #{cnn3layers_forward.1} parent=91 // pred_region
          %s8410 = sand.u32 %s316, 1
          %s8411 = scalar_lea.sflag [#allocation4], %s8410
          %s8412 = sand.u32 %s316, 1
          %s8413 = scalar_lea.vmem [#allocation8], %s8412
          %8414 = dma.done %s8411, 16
        $region96: #{cnn3layers_forward.1} parent=91 // pred_fallthru
          _
      $region92: #{cnn3layers_forward.1} parent=5 // pred_fallthru
        _
    $region6: #{cnn3layers_forward.1} parent=1 // loop_footer
      %s28 = sadd.s32 1, %s24
    $region7: #{cnn3layers_forward.1} parent=1 // loop_footer_branch
      %23 = sbr.rel target = $region3
    $region8: #{cnn3layers_forward.1} parent=1 // loop_exit
      _
    %8415 = vsyncpa [#allocation3], 1
    %s8416 = scalar_lea.sflag [#allocation3], 1
    %8417 = vsyncpa %s8416, 1
    %8418 = vsyncpa [#allocation6], 1
    %8419 = vsyncpa [#allocation4], 1
    %s8420 = scalar_lea.sflag [#allocation4], 1
    %8421 = vsyncpa %s8420, 1

</llo_original>
